<compile_context>
chip_gen: v5e
topology: v5e:2x2
jax: 0.10.0
libtpu: 0.0.40
codegen_flags: <defaults>
</compile_context>

<pallas_src>
import functools

import jax
import jax.numpy as jnp
from jax.experimental import pallas as pl
from jax.experimental.pallas import tpu as pltpu

EMB = 64
CIN = EMB * 6             # 384 conv input channels
CONV_OUT = 64 * 4         # 256 concatenated conv output channels
FF = 400
LSTM_HIDDEN = 200
HPAD = 256                # per-gate lane-aligned width (200 -> 256)
H4P = 4 * HPAD            # 1024 padded gate width
VMEM_LIMIT = 48 * 1024 * 1024   # below v7x's 64 MiB physical VMEM; fine on v5e/v6e


def _largest_divisor_le(n, cap):
    cap = max(1, min(n, cap))
    best = 1
    for d in range(1, cap + 1):
        if n % d == 0:
            best = d
    return best


# --------------------------------------------------------------------------
# Kernel 1: alignment bmm — (left|mid|right) interleaved per position, bf16 MXU
# --------------------------------------------------------------------------
def _align_kernel(a_ref, d_ref, o_ref):
    o_ref[...] = jnp.einsum("brs,bsc->brc", a_ref[...], d_ref[...],
                            preferred_element_type=jnp.float32)


def align_bmm(a_stack, src_emb):
    """a_stack: (B, 3*S_tgt, S_src) bf16, src_emb: (B, S_src, 64) bf16 -> f32."""
    B, R, S_src = a_stack.shape
    C = src_emb.shape[2]
    bb = _largest_divisor_le(B, 8)
    if bb == B and B >= 4:            # keep >=2 grid steps for v7x's 2 TensorCores
        bb = _largest_divisor_le(B, B // 2)
    return pl.pallas_call(
        _align_kernel,
        out_shape=jax.ShapeDtypeStruct((B, R, C), jnp.float32),
        grid=(B // bb,),
        in_specs=[
            pl.BlockSpec((bb, R, S_src), lambda i: (i, 0, 0)),
            pl.BlockSpec((bb, S_src, C), lambda i: (i, 0, 0)),
        ],
        out_specs=pl.BlockSpec((bb, R, C), lambda i: (i, 0, 0)),
        compiler_params=pltpu.CompilerParams(
            dimension_semantics=("parallel",), vmem_limit_bytes=VMEM_LIMIT),
    )(a_stack, src_emb)


# --------------------------------------------------------------------------
# Kernel 2: 7-tap conv + linear_1 + linear_2 + LSTM input projections
#           (multi-batch block, conv output flattened to (Bb*S, 256))
# --------------------------------------------------------------------------
def _conv_ff_kernel(feat_ref, convw_ref, convb_ref,
                    w1_ref, b1_ref, w2_ref, b2_ref,
                    wf_ref, bf_ref, wb_ref, bb_ref,
                    gates_ref, *, seq_len, block_b):
    S = seq_len
    rows = block_b * S

    # 7-tap conv accumulated on the MXU; lhs flattened to (Bb*S, 384) per tap
    # so M is tall even for small per-batch sequence lengths.
    acc = jnp.zeros((rows, CONV_OUT), jnp.float32)
    for j in range(7):
        lhs = feat_ref[:, j:j + S, :].reshape(rows, CIN)        # bf16, no re-cast
        acc = acc + jnp.dot(lhs, convw_ref[j],
                            preferred_element_type=jnp.float32)
    conv = jnp.maximum(acc + convb_ref[...], 0.0).astype(jnp.bfloat16)

    h1 = jnp.maximum(
        jnp.dot(conv, w1_ref[...], preferred_element_type=jnp.float32)
        + b1_ref[...], 0.0).astype(jnp.bfloat16)
    h2 = jnp.maximum(
        jnp.dot(h1, w2_ref[...], preferred_element_type=jnp.float32)
        + b2_ref[...], 0.0).astype(jnp.bfloat16)

    gf = jnp.dot(h2, wf_ref[...], preferred_element_type=jnp.float32) + bf_ref[...]
    gb = jnp.dot(h2, wb_ref[...], preferred_element_type=jnp.float32) + bb_ref[...]
    gates_ref[0] = gf.reshape(block_b, S, H4P)
    gates_ref[1] = gb.reshape(block_b, S, H4P)


def _pick_block_b(B, S, row_cap=512):
    # Largest batch block whose flattened row count fits the per-step VMEM budget
    # (sized for v7x's 64 MiB); prefer >=2 grid steps when each step keeps a tall M.
    bb = _largest_divisor_le(B, max(1, row_cap // max(S, 1)))
    if bb == B and B > 1 and (B // 2) * S >= 256:
        bb = _largest_divisor_le(B, B // 2)
    return bb


def conv_ff_gates(feat_pad, p):
    B, Sp6, _ = feat_pad.shape
    S = Sp6 - 6
    bb = _pick_block_b(B, S)
    kernel = functools.partial(_conv_ff_kernel, seq_len=S, block_b=bb)
    full = lambda shape: pl.BlockSpec(shape, lambda i: (0,) * len(shape))
    return pl.pallas_call(
        kernel,
        out_shape=jax.ShapeDtypeStruct((2, B, S, H4P), jnp.float32),
        grid=(B // bb,),
        in_specs=[
            pl.BlockSpec((bb, Sp6, CIN), lambda i: (i, 0, 0)),
            full((7, CIN, CONV_OUT)), full((1, CONV_OUT)),
            full((CONV_OUT, FF)), full((1, FF)),
            full((FF, FF)), full((1, FF)),
            full((FF, H4P)), full((1, H4P)),
            full((FF, H4P)), full((1, H4P)),
        ],
        out_specs=pl.BlockSpec((2, bb, S, H4P), lambda i: (0, i, 0, 0)),
        compiler_params=pltpu.CompilerParams(
            dimension_semantics=("parallel",), vmem_limit_bytes=VMEM_LIMIT),
    )(feat_pad,
      p["conv_w"], p["conv_b"],
      p["w1"], p["b1"], p["w2"], p["b2"],
      p["wih_f"], p["bih_f"], p["wih_b"], p["bih_b"])


# --------------------------------------------------------------------------
# Kernel 3: bidirectional LSTM recurrence — grid=(direction, time), direction
#           axis parallel (v7x: one direction per TensorCore), state in VMEM
# --------------------------------------------------------------------------
def _lstm_kernel(g_ref, whh_ref, hout_ref, h_ref, c_ref):
    H = LSTM_HIDDEN

    @pl.when(pl.program_id(1) == 0)
    def _():
        h_ref[...] = jnp.zeros_like(h_ref)
        c_ref[...] = jnp.zeros_like(c_ref)

    # Recurrent projection in bf16 (serial critical path), f32 accumulation.
    g = g_ref[0, 0] + jnp.dot(h_ref[...].astype(jnp.bfloat16), whh_ref[0],
                              preferred_element_type=jnp.float32)   # (N, 1024)
    # Gates live at lane-aligned 256-wide slots: starts 0 / 256 / 512 / 768.
    i = jax.nn.sigmoid(g[:, 0 * HPAD:0 * HPAD + H])
    f = jax.nn.sigmoid(g[:, 1 * HPAD:1 * HPAD + H])
    gg = jnp.tanh(g[:, 2 * HPAD:2 * HPAD + H])
    o = jax.nn.sigmoid(g[:, 3 * HPAD:3 * HPAD + H])
    c_new = f * c_ref[...] + i * gg
    h_new = o * jnp.tanh(c_new)
    c_ref[...] = c_new
    h_ref[...] = h_new
    hout_ref[0, 0] = h_new.astype(jnp.bfloat16)


def bilstm(gates, whh):
    """gates: (2, T, N, 1024) f32, whh: (2, 200, 1024) bf16 -> (2, T, N, 200) bf16."""
    _, T, N, _ = gates.shape
    H = LSTM_HIDDEN

    def t_sel(d, t):                         # forward: t, backward: T-1-t
        return (1 - d) * t + d * (T - 1 - t)

    return pl.pallas_call(
        _lstm_kernel,
        out_shape=jax.ShapeDtypeStruct((2, T, N, H), jnp.bfloat16),
        grid=(2, T),
        in_specs=[
            pl.BlockSpec((1, 1, N, H4P), lambda d, t: (d, t_sel(d, t), 0, 0)),
            pl.BlockSpec((1, H, H4P), lambda d, t: (d, 0, 0)),   # resident per dir
        ],
        out_specs=pl.BlockSpec((1, 1, N, H), lambda d, t: (d, t_sel(d, t), 0, 0)),
        scratch_shapes=[pltpu.VMEM((N, H), jnp.float32),
                        pltpu.VMEM((N, H), jnp.float32)],
        compiler_params=pltpu.CompilerParams(
            dimension_semantics=("parallel", "arbitrary"),
            vmem_limit_bytes=VMEM_LIMIT),
    )(gates, whh)


# --------------------------------------------------------------------------
# Kernel 4: linear_3..linear_6 + final 50->1 + sigmoid, lane-dense padded output
# --------------------------------------------------------------------------
def _head_kernel(x_ref, w3_ref, b3_ref, w4_ref, b4_ref, w5_ref, b5_ref,
                 w6_ref, b6_ref, wo_ref, bo_ref, o_ref):
    hf = x_ref[0]                             # (tm, 200) bf16 (forward dir)
    hb = x_ref[1]                             # (tm, 200) bf16 (backward dir)
    # linear_3 on [hf | hb] without materializing the 400-wide concat.
    h = jnp.dot(hf, w3_ref[0], preferred_element_type=jnp.float32)
    h = h + jnp.dot(hb, w3_ref[1], preferred_element_type=jnp.float32)
    h = jnp.maximum(h + b3_ref[...], 0.0)

    def ff(h, w_ref, b_ref):
        y = jnp.dot(h.astype(jnp.bfloat16), w_ref[...],
                    preferred_element_type=jnp.float32) + b_ref[...]
        return jnp.maximum(y, 0.0)

    h = ff(h, w4_ref, b4_ref)
    h = ff(h, w5_ref, b5_ref)
    h = ff(h, w6_ref, b6_ref)                 # (tm, 64); cols 50..63 are zero
    y = jnp.dot(h.astype(jnp.bfloat16), wo_ref[...],
                preferred_element_type=jnp.float32) + bo_ref[...]
    o_ref[...] = jax.nn.sigmoid(y)            # only column 0 is meaningful


def head(h2, p):
    """h2: (2, M, 200) bf16 stacked LSTM directions -> (M, 1) f32."""
    _, M, H = h2.shape
    if M >= 1024:
        tm = 512
    elif M >= 512:
        tm = 256
    else:
        tm = -(-M // 8) * 8
    Mp = -(-M // tm) * tm
    if Mp != M:
        h2 = jnp.pad(h2, ((0, 0), (0, Mp - M), (0, 0)))
    full = lambda shape: pl.BlockSpec(shape, lambda i: (0,) * len(shape))
    out = pl.pallas_call(
        _head_kernel,
        out_shape=jax.ShapeDtypeStruct((Mp, 128), jnp.float32),
        grid=(Mp // tm,),
        in_specs=[
            pl.BlockSpec((2, tm, H), lambda i: (0, i, 0)),
            full((2, H, FF)), full((1, FF)),
            full((FF, FF)), full((1, FF)),
            full((FF, FF)), full((1, FF)),
            full((FF, 64)), full((1, 64)),
            full((64, 128)), full((1, 128)),
        ],
        out_specs=pl.BlockSpec((tm, 128), lambda i: (i, 0)),
        compiler_params=pltpu.CompilerParams(
            dimension_semantics=("parallel",), vmem_limit_bytes=VMEM_LIMIT),
    )(h2, p["w3s"], p["b3"], p["w4"], p["b4"], p["w5"], p["b5"],
      p["w6p"], p["b6p"], p["wout_p"], p["bout_p"])
    return out[:M, :1]


# --------------------------------------------------------------------------
# Forward pass (glue: embedding gathers, shifts, concats in plain JAX)
# --------------------------------------------------------------------------
def main_model_forward(params, source, target_idx, alignment):
    B, S_src = source.shape
    S_tgt = target_idx.shape[1]
    alignment = alignment.astype(jnp.float32)

    src_emb = params["emb1"][source]                      # (B, S_src, 64)
    tgt_emb = params["emb2"][target_idx]                  # (B, S_tgt, 64)

    align_T = jnp.transpose(alignment, (0, 2, 1))         # (B, S_tgt, S_src)
    cnt = jnp.sum(alignment, axis=1)                      # (B, S_tgt), UNshifted
    inv = 1.0 / jnp.where(cnt == 0.0, 1.0, cnt)           # applied AFTER the bmm

    if S_tgt > 1:
        zc = jnp.zeros((B, S_tgt, 1), jnp.float32)
        a_left_T = jnp.concatenate([align_T[:, :, 1:], zc], axis=2)
        a_right_T = jnp.concatenate([zc, align_T[:, :, :-1]], axis=2)
        zr = jnp.zeros((B, 1, EMB), jnp.float32)
        t_left = jnp.concatenate([tgt_emb[:, 1:, :], zr], axis=1)
        t_right = jnp.concatenate([zr, tgt_emb[:, :-1, :]], axis=1)
    else:  # reference leaves left/right as zeros when target length <= 1
        a_left_T = jnp.zeros_like(align_T)
        a_right_T = jnp.zeros_like(align_T)
        t_left = jnp.zeros_like(tgt_emb)
        t_right = jnp.zeros_like(tgt_emb)

    # Rows interleaved per target position (s, mode): after the bmm a plain
    # reshape yields the [left|mid|right] channel layout — no 4-D transpose.
    a_stack = jnp.stack([a_left_T, align_T, a_right_T], axis=2)     # (B,S,3,Ssrc)
    a_stack = a_stack.reshape(B, 3 * S_tgt, S_src).astype(jnp.bfloat16)

    sa = align_bmm(a_stack, src_emb.astype(jnp.bfloat16))           # (B,3S,64) f32
    sa = (sa.reshape(B, S_tgt, 3, EMB) * inv[:, :, None, None]
          ).reshape(B, S_tgt, 3 * EMB)

    features = jnp.concatenate([sa, t_left, tgt_emb, t_right], axis=2)  # (B,S,384)
    feat_pad = jnp.pad(features, ((0, 0), (3, 3), (0, 0))
                       ).astype(jnp.bfloat16)                           # bf16 halo'd

    gates = conv_ff_gates(feat_pad, params)               # (2, B, S, 1024) f32
    h_all = bilstm(gates, params["whh"])                  # (2, B, S, 200) bf16

    out = head(h_all.reshape(2, B * S_tgt, LSTM_HIDDEN), params)    # (B*S, 1)
    return out.reshape(B, S_tgt, 1)


# --------------------------------------------------------------------------
# Deterministic parameter initialization (shapes follow MainModel.__init__)
# --------------------------------------------------------------------------
def init_params(key, num_words1, num_words2):
    H = LSTM_HIDDEN
    keys = iter(jax.random.split(key, 64))
    nxt = lambda: next(keys)

    def unif(shape, scale):
        return jax.random.uniform(nxt(), shape, jnp.float32, -scale, scale)

    p = {}
    p["emb1"] = 0.1 * jax.random.normal(nxt(), (num_words1, EMB), jnp.float32)
    p["emb2"] = 0.1 * jax.random.normal(nxt(), (num_words2, EMB), jnp.float32)

    # Four Conv1d(384->64, k=1/3/5/7, same padding) packed into one centered
    # 7-tap weight bank (7, 384, 256) so the kernel accumulates taps on the MXU.
    big_w = jnp.zeros((7, CIN, CONV_OUT), jnp.float32)
    biases = []
    for m, k in enumerate([1, 3, 5, 7]):
        scale = 1.0 / float((CIN * k) ** 0.5)
        w_small = unif((k, CIN, 64), scale)
        b_small = unif((64,), scale)
        off = 3 - (k - 1) // 2
        big_w = big_w.at[off:off + k, :, m * 64:(m + 1) * 64].set(w_small)
        biases.append(b_small)
    p["conv_w"] = big_w.astype(jnp.bfloat16)
    p["conv_b"] = jnp.concatenate(biases).reshape(1, CONV_OUT)

    def dense(fan_in, fan_out):
        s = 1.0 / float(fan_in ** 0.5)
        return unif((fan_in, fan_out), s), unif((fan_out,), s)

    w1, b1 = dense(CONV_OUT, FF)
    w2, b2 = dense(FF, FF)
    w3, b3 = dense(FF, FF)
    w4, b4 = dense(FF, FF)
    w5, b5 = dense(FF, FF)
    w6, b6 = dense(FF, 50)
    wo, bo = dense(50, 1)

    p["w1"], p["b1"] = w1.astype(jnp.bfloat16), b1.reshape(1, -1)
    p["w2"], p["b2"] = w2.astype(jnp.bfloat16), b2.reshape(1, -1)
    # linear_3 split into the hf / hb row halves so the head consumes the two
    # LSTM directions directly (no 400-wide concat round-trip).
    p["w3s"] = jnp.stack([w3[:H], w3[H:]], axis=0).astype(jnp.bfloat16)
    p["b3"] = b3.reshape(1, -1)
    p["w4"], p["b4"] = w4.astype(jnp.bfloat16), b4.reshape(1, -1)
    p["w5"], p["b5"] = w5.astype(jnp.bfloat16), b5.reshape(1, -1)
    # linear_6 padded to 64 lanes, final 50->1 padded to a dense 128-wide slab.
    w6p = jnp.zeros((FF, 64), jnp.float32).at[:, :50].set(w6)
    b6p = jnp.zeros((1, 64), jnp.float32).at[0, :50].set(b6)
    p["w6p"], p["b6p"] = w6p.astype(jnp.bfloat16), b6p
    wop = jnp.zeros((64, 128), jnp.float32).at[:50, 0].set(wo[:, 0])
    bop = jnp.zeros((1, 128), jnp.float32).at[0, 0].set(bo[0])
    p["wout_p"], p["bout_p"] = wop.astype(jnp.bfloat16), bop

    # Bidirectional LSTM(400, 200).  Input projections live in the fused conv/FC
    # kernel.  Gate widths are padded 4x200 -> 4x256 so every gate slice starts
    # on a 128-lane boundary (zero columns are never read).
    def pad_gates(x):
        out = jnp.zeros(x.shape[:-1] + (H4P,), x.dtype)
        for g in range(4):
            out = out.at[..., g * HPAD:g * HPAD + H].set(x[..., g * H:(g + 1) * H])
        return out

    def lstm_dir():
        s = 1.0 / float(H ** 0.5)
        w_ih_t = unif((FF, 4 * H), s)
        w_hh_t = unif((H, 4 * H), s)
        b = unif((4 * H,), s) + unif((4 * H,), s)      # b_ih + b_hh
        return w_ih_t, w_hh_t, b

    wih_f, whh_f, bsum_f = lstm_dir()
    wih_b, whh_b, bsum_b = lstm_dir()
    p["wih_f"] = pad_gates(wih_f).astype(jnp.bfloat16)
    p["wih_b"] = pad_gates(wih_b).astype(jnp.bfloat16)
    p["bih_f"] = pad_gates(bsum_f).reshape(1, -1)
    p["bih_b"] = pad_gates(bsum_b).reshape(1, -1)
    p["whh"] = jnp.stack([pad_gates(whh_f), pad_gates(whh_b)],
                         axis=0).astype(jnp.bfloat16)          # (2, 200, 1024)
    # NOTE: GRU_2 in the reference NN is defined but never used in forward().
    return p


# --------------------------------------------------------------------------
if __name__ == "__main__":
    key = jax.random.PRNGKey(0)
    B, S_src, S_tgt = 2, 8, 8
    num_words1, num_words2 = 20, 30

    k1, k2, k3, kp = jax.random.split(key, 4)
    source = jax.random.randint(k1, (B, S_src), 0, num_words1, dtype=jnp.int32)
    target = jax.random.randint(k2, (B, S_tgt), 0, num_words2, dtype=jnp.int32)
    alignment = (jax.random.uniform(k3, (B, S_src, S_tgt)) < 0.3).astype(jnp.float32)

    params = init_params(kp, num_words1, num_words2)
    out = jax.jit(main_model_forward)(params, source, target, alignment)
    out = jax.block_until_ready(out)
    assert out.shape == (B, S_tgt, 1) and out.dtype == jnp.float32
    assert bool(jnp.all(jnp.isfinite(out)))
    print("KERNEL_OK")
</pallas_src>

<mosaic_0001>
module attributes {stable_mosaic.version = 11 : i64} {
  func.func @_align_kernel(%arg0: i32, %arg1: memref<2x24x8xbf16, #tpu.memory_space<vmem>>, %arg2: memref<2x8x64xbf16, #tpu.memory_space<vmem>>, %arg3: memref<2x24x64xf32, #tpu.memory_space<vmem>>) attributes {dimension_semantics = [#tpu.dimension_semantics<parallel>], iteration_bounds = array<i64: 1>, scalar_prefetch = 0 : i64, scratch_operands = 0 : i64, tpu.core_type = #tpu.core_type<tc>, window_params = [{transform_indices = @transform_0, window_bounds = array<i64: 2, 24, 8>}, {transform_indices = @transform_1, window_bounds = array<i64: 2, 8, 64>}, {transform_indices = @transform_2, window_bounds = array<i64: 2, 24, 64>}]} {
    %c0 = arith.constant 0 : index
    %c0_0 = arith.constant 0 : index
    %c0_1 = arith.constant 0 : index
    %0 = vector.load %arg1[%c0, %c0_0, %c0_1] : memref<2x24x8xbf16, #tpu.memory_space<vmem>>, vector<2x24x8xbf16>
    %c0_2 = arith.constant 0 : index
    %c0_3 = arith.constant 0 : index
    %c0_4 = arith.constant 0 : index
    %1 = vector.load %arg2[%c0_2, %c0_3, %c0_4] : memref<2x8x64xbf16, #tpu.memory_space<vmem>>, vector<2x8x64xbf16>
    "tpu.trace_start"() <{level = 10 : i32, message = "brs,bsc->brc"}> : () -> ()
    %cst = arith.constant dense<0.000000e+00> : vector<2x24x64xf32>
    %2 = tpu.matmul %0, %1, %cst {dimension_numbers = #tpu.dot_dimension_numbers<[2], [1], [1], [2], [0, 0, 0, 1, 1, 2], [0], [0]>} : vector<2x24x8xbf16>, vector<2x8x64xbf16>, vector<2x24x64xf32> -> vector<2x24x64xf32>
    "tpu.trace_stop"() : () -> ()
    %c0_5 = arith.constant 0 : index
    %c0_6 = arith.constant 0 : index
    %c0_7 = arith.constant 0 : index
    %3 = vector.load %arg3[%c0_5, %c0_6, %c0_7] : memref<2x24x64xf32, #tpu.memory_space<vmem>>, vector<2x24x64xf32>
    tpu.vector_store %arg3[%c0_5, %c0_6, %c0_7], %2 {strides = array<i32>} : memref<2x24x64xf32, #tpu.memory_space<vmem>>, vector<2x24x64xf32>,
    return
  }
  func.func @transform_0(%arg0: i32) -> (i32, i32, i32) {
    %c0_i32 = arith.constant 0 : i32
    %c0_i32_0 = arith.constant 0 : i32
    %c0_i32_1 = arith.constant 0 : i32
    return %arg0, %c0_i32, %c0_i32_0 : i32, i32, i32
  }
  func.func @transform_1(%arg0: i32) -> (i32, i32, i32) {
    %c0_i32 = arith.constant 0 : i32
    %c0_i32_0 = arith.constant 0 : i32
    %c0_i32_1 = arith.constant 0 : i32
    return %arg0, %c0_i32, %c0_i32_0 : i32, i32, i32
  }
  func.func @transform_2(%arg0: i32) -> (i32, i32, i32) {
    %c0_i32 = arith.constant 0 : i32
    %c0_i32_0 = arith.constant 0 : i32
    %c0_i32_1 = arith.constant 0 : i32
    return %arg0, %c0_i32, %c0_i32_0 : i32, i32, i32
  }
}

module attributes {stable_mosaic.version = 11 : i64} {
  func.func @_lstm_kernel(%arg0: i32, %arg1: i32, %arg2: memref<1x1x8x1024xf32, #tpu.memory_space<vmem>>, %arg3: memref<1x200x1024xbf16, #tpu.memory_space<vmem>>, %arg4: memref<1x1x8x200xbf16, #tpu.memory_space<vmem>>, %arg5: memref<8x200xf32, #tpu.memory_space<vmem>>, %arg6: memref<8x200xf32, #tpu.memory_space<vmem>>) attributes {dimension_semantics = [#tpu.dimension_semantics<parallel>, #tpu.dimension_semantics<arbitrary>], iteration_bounds = array<i64: 2, 2>, scalar_prefetch = 0 : i64, scratch_operands = 2 : i64, tpu.core_type = #tpu.core_type<tc>, window_params = [{transform_indices = @transform_0, window_bounds = array<i64: 1, 1, 8, 1024>}, {transform_indices = @transform_1, window_bounds = array<i64: 1, 200, 1024>}, {transform_indices = @transform_2, window_bounds = array<i64: 1, 1, 8, 200>}]} {
    %c0_i32 = arith.constant 0 : i32
    %0 = arith.cmpi eq, %arg1, %c0_i32 : i32
    %1 = arith.extui %0 : i1 to i32
    %c0_i32_0 = arith.constant 0 : i32
    %2 = arith.cmpi ne, %1, %c0_i32_0 : i32
    scf.if %2 {
      %cst_22 = arith.constant 0.000000e+00 : f32
      %43 = vector.broadcast %cst_22 : f32 to vector<8x200xf32>
      %c0_23 = arith.constant 0 : index
      %c0_24 = arith.constant 0 : index
      %44 = vector.load %arg5[%c0_23, %c0_24] : memref<8x200xf32, #tpu.memory_space<vmem>>, vector<8x200xf32>
      tpu.vector_store %arg5[%c0_23, %c0_24], %43 {strides = array<i32>} : memref<8x200xf32, #tpu.memory_space<vmem>>, vector<8x200xf32>,
      %cst_25 = arith.constant 0.000000e+00 : f32
      %45 = vector.broadcast %cst_25 : f32 to vector<8x200xf32>
      %c0_26 = arith.constant 0 : index
      %c0_27 = arith.constant 0 : index
      %46 = vector.load %arg6[%c0_26, %c0_27] : memref<8x200xf32, #tpu.memory_space<vmem>>, vector<8x200xf32>
      tpu.vector_store %arg6[%c0_26, %c0_27], %45 {strides = array<i32>} : memref<8x200xf32, #tpu.memory_space<vmem>>, vector<8x200xf32>,
    } else {
    }
    %c0 = arith.constant 0 : index
    %c0_1 = arith.constant 0 : index
    %c0_2 = arith.constant 0 : index
    %c0_3 = arith.constant 0 : index
    %3 = vector.load %arg2[%c0, %c0_1, %c0_2, %c0_3] : memref<1x1x8x1024xf32, #tpu.memory_space<vmem>>, vector<1x1x8x1024xf32>
    %4 = vector.shape_cast %3 : vector<1x1x8x1024xf32> to vector<8x1024xf32>
    %c0_4 = arith.constant 0 : index
    %c0_5 = arith.constant 0 : index
    %5 = vector.load %arg5[%c0_4, %c0_5] : memref<8x200xf32, #tpu.memory_space<vmem>>, vector<8x200xf32>
    %6 = arith.truncf %5 : vector<8x200xf32> to vector<8x200xbf16>
    %c0_6 = arith.constant 0 : index
    %c0_7 = arith.constant 0 : index
    %c0_8 = arith.constant 0 : index
    %7 = vector.load %arg3[%c0_6, %c0_7, %c0_8] : memref<1x200x1024xbf16, #tpu.memory_space<vmem>>, vector<1x200x1024xbf16>
    %8 = vector.shape_cast %7 : vector<1x200x1024xbf16> to vector<200x1024xbf16>
    %cst = arith.constant dense<0.000000e+00> : vector<8x1024xf32>
    %9 = tpu.matmul %6, %8, %cst {dimension_numbers = #tpu.dot_dimension_numbers<[1], [0], [0], [1], [0, 0, 1, 1], [], []>} : vector<8x200xbf16>, vector<200x1024xbf16>, vector<8x1024xf32> -> vector<8x1024xf32>
    %10 = arith.addf %4, %9 : vector<8x1024xf32>
    %11 = vector.extract_strided_slice %10 {offsets = [0, 0], sizes = [8, 200], strides = [1, 1]} : vector<8x1024xf32> to vector<8x200xf32>
    %12 = arith.negf %11 : vector<8x200xf32>
    %13 = math.exp %12 : vector<8x200xf32>
    %cst_9 = arith.constant 1.000000e+00 : f32
    %14 = vector.broadcast %cst_9 : f32 to vector<8x200xf32>
    %15 = arith.addf %14, %13 : vector<8x200xf32>
    %16 = arith.divf %14, %15 : vector<8x200xf32>
    %17 = vector.extract_strided_slice %10 {offsets = [0, 256], sizes = [8, 200], strides = [1, 1]} : vector<8x1024xf32> to vector<8x200xf32>
    %18 = arith.negf %17 : vector<8x200xf32>
    %19 = math.exp %18 : vector<8x200xf32>
    %cst_10 = arith.constant 1.000000e+00 : f32
    %20 = vector.broadcast %cst_10 : f32 to vector<8x200xf32>
    %21 = arith.addf %20, %19 : vector<8x200xf32>
    %22 = arith.divf %20, %21 : vector<8x200xf32>
    %23 = vector.extract_strided_slice %10 {offsets = [0, 512], sizes = [8, 200], strides = [1, 1]} : vector<8x1024xf32> to vector<8x200xf32>
    %24 = math.tanh %23 : vector<8x200xf32>
    %25 = vector.extract_strided_slice %10 {offsets = [0, 768], sizes = [8, 200], strides = [1, 1]} : vector<8x1024xf32> to vector<8x200xf32>
    %26 = arith.negf %25 : vector<8x200xf32>
    %27 = math.exp %26 : vector<8x200xf32>
    %cst_11 = arith.constant 1.000000e+00 : f32
    %28 = vector.broadcast %cst_11 : f32 to vector<8x200xf32>
    %29 = arith.addf %28, %27 : vector<8x200xf32>
    %30 = arith.divf %28, %29 : vector<8x200xf32>
    %c0_12 = arith.constant 0 : index
    %c0_13 = arith.constant 0 : index
    %31 = vector.load %arg6[%c0_12, %c0_13] : memref<8x200xf32, #tpu.memory_space<vmem>>, vector<8x200xf32>
    %32 = arith.mulf %22, %31 : vector<8x200xf32>
    %33 = arith.mulf %16, %24 : vector<8x200xf32>
    %34 = arith.addf %32, %33 : vector<8x200xf32>
    %35 = math.tanh %34 : vector<8x200xf32>
    %36 = arith.mulf %30, %35 : vector<8x200xf32>
    %c0_14 = arith.constant 0 : index
    %c0_15 = arith.constant 0 : index
    %37 = vector.load %arg6[%c0_14, %c0_15] : memref<8x200xf32, #tpu.memory_space<vmem>>, vector<8x200xf32>
    tpu.vector_store %arg6[%c0_14, %c0_15], %34 {strides = array<i32>} : memref<8x200xf32, #tpu.memory_space<vmem>>, vector<8x200xf32>,
    %c0_16 = arith.constant 0 : index
    %c0_17 = arith.constant 0 : index
    %38 = vector.load %arg5[%c0_16, %c0_17] : memref<8x200xf32, #tpu.memory_space<vmem>>, vector<8x200xf32>
    tpu.vector_store %arg5[%c0_16, %c0_17], %36 {strides = array<i32>} : memref<8x200xf32, #tpu.memory_space<vmem>>, vector<8x200xf32>,
    %39 = arith.truncf %36 : vector<8x200xf32> to vector<8x200xbf16>
    %c0_18 = arith.constant 0 : index
    %c0_19 = arith.constant 0 : index
    %c0_20 = arith.constant 0 : index
    %c0_21 = arith.constant 0 : index
    %40 = vector.load %arg4[%c0_18, %c0_19, %c0_20, %c0_21] : memref<1x1x8x200xbf16, #tpu.memory_space<vmem>>, vector<1x1x8x200xbf16>
    %41 = vector.shape_cast %40 : vector<1x1x8x200xbf16> to vector<8x200xbf16>
    %42 = vector.shape_cast %39 : vector<8x200xbf16> to vector<1x1x8x200xbf16>
    tpu.vector_store %arg4[%c0_18, %c0_19, %c0_20, %c0_21], %42 {strides = array<i32>} : memref<1x1x8x200xbf16, #tpu.memory_space<vmem>>, vector<1x1x8x200xbf16>,
    return
  }
  func.func @transform_0(%arg0: i32, %arg1: i32) -> (i32, i32, i32, i32) {
    %c1_i32 = arith.constant 1 : i32
    %0 = arith.subi %c1_i32, %arg0 : i32
    %1 = arith.muli %0, %arg1 : i32
    %c1_i32_0 = arith.constant 1 : i32
    %2 = arith.subi %c1_i32_0, %arg1 : i32
    %3 = arith.muli %arg0, %2 : i32
    %4 = arith.addi %1, %3 : i32
    %c0_i32 = arith.constant 0 : i32
    %c0_i32_1 = arith.constant 0 : i32
    %c0_i32_2 = arith.constant 0 : i32
    return %arg0, %4, %c0_i32, %c0_i32_1 : i32, i32, i32, i32
  }
  func.func @transform_1(%arg0: i32, %arg1: i32) -> (i32, i32, i32) {
    %c0_i32 = arith.constant 0 : i32
    %c0_i32_0 = arith.constant 0 : i32
    %c0_i32_1 = arith.constant 0 : i32
    return %arg0, %c0_i32, %c0_i32_0 : i32, i32, i32
  }
  func.func @transform_2(%arg0: i32, %arg1: i32) -> (i32, i32, i32, i32) {
    %c1_i32 = arith.constant 1 : i32
    %0 = arith.subi %c1_i32, %arg0 : i32
    %1 = arith.muli %0, %arg1 : i32
    %c1_i32_0 = arith.constant 1 : i32
    %2 = arith.subi %c1_i32_0, %arg1 : i32
    %3 = arith.muli %arg0, %2 : i32
    %4 = arith.addi %1, %3 : i32
    %c0_i32 = arith.constant 0 : i32
    %c0_i32_1 = arith.constant 0 : i32
    %c0_i32_2 = arith.constant 0 : i32
    return %arg0, %4, %c0_i32, %c0_i32_1 : i32, i32, i32, i32
  }
}

module attributes {stable_mosaic.version = 11 : i64} {
  func.func @_conv_ff_kernel(%arg0: i32, %arg1: memref<2x14x384xbf16, #tpu.memory_space<vmem>>, %arg2: memref<7x384x256xbf16, #tpu.memory_space<vmem>>, %arg3: memref<1x256xf32, #tpu.memory_space<vmem>>, %arg4: memref<256x400xbf16, #tpu.memory_space<vmem>>, %arg5: memref<1x400xf32, #tpu.memory_space<vmem>>, %arg6: memref<400x400xbf16, #tpu.memory_space<vmem>>, %arg7: memref<1x400xf32, #tpu.memory_space<vmem>>, %arg8: memref<400x1024xbf16, #tpu.memory_space<vmem>>, %arg9: memref<1x1024xf32, #tpu.memory_space<vmem>>, %arg10: memref<400x1024xbf16, #tpu.memory_space<vmem>>, %arg11: memref<1x1024xf32, #tpu.memory_space<vmem>>, %arg12: memref<2x2x8x1024xf32, #tpu.memory_space<vmem>>) attributes {dimension_semantics = [#tpu.dimension_semantics<parallel>], iteration_bounds = array<i64: 1>, scalar_prefetch = 0 : i64, scratch_operands = 0 : i64, tpu.core_type = #tpu.core_type<tc>, window_params = [{transform_indices = @transform_0, window_bounds = array<i64: 2, 14, 384>}, {pipeline_mode = #tpu.pipeline_mode<synchronous>, transform_indices = @transform_1, window_bounds = array<i64: 7, 384, 256>}, {pipeline_mode = #tpu.pipeline_mode<synchronous>, transform_indices = @transform_2, window_bounds = array<i64: 1, 256>}, {pipeline_mode = #tpu.pipeline_mode<synchronous>, transform_indices = @transform_3, window_bounds = array<i64: 256, 400>}, {pipeline_mode = #tpu.pipeline_mode<synchronous>, transform_indices = @transform_4, window_bounds = array<i64: 1, 400>}, {pipeline_mode = #tpu.pipeline_mode<synchronous>, transform_indices = @transform_5, window_bounds = array<i64: 400, 400>}, {pipeline_mode = #tpu.pipeline_mode<synchronous>, transform_indices = @transform_6, window_bounds = array<i64: 1, 400>}, {pipeline_mode = #tpu.pipeline_mode<synchronous>, transform_indices = @transform_7, window_bounds = array<i64: 400, 1024>}, {pipeline_mode = #tpu.pipeline_mode<synchronous>, transform_indices = @transform_8, window_bounds = array<i64: 1, 1024>}, {pipeline_mode = #tpu.pipeline_mode<synchronous>, transform_indices = @transform_9, window_bounds = array<i64: 400, 1024>}, {pipeline_mode = #tpu.pipeline_mode<synchronous>, transform_indices = @transform_10, window_bounds = array<i64: 1, 1024>}, {transform_indices = @transform_11, window_bounds = array<i64: 2, 2, 8, 1024>}]} {
    %cst = arith.constant 0.000000e+00 : f32
    %0 = vector.broadcast %cst : f32 to vector<16x256xf32>
    %c0 = arith.constant 0 : index
    %c0_0 = arith.constant 0 : index
    %c0_1 = arith.constant 0 : index
    %1 = vector.load %arg1[%c0, %c0_0, %c0_1] : memref<2x14x384xbf16, #tpu.memory_space<vmem>>, vector<2x8x384xbf16>
    %2 = vector.shape_cast %1 : vector<2x8x384xbf16> to vector<16x384xbf16>
    %c0_2 = arith.constant 0 : index
    %c0_3 = arith.constant 0 : index
    %c0_4 = arith.constant 0 : index
    %3 = vector.load %arg2[%c0_2, %c0_3, %c0_4] : memref<7x384x256xbf16, #tpu.memory_space<vmem>>, vector<1x384x256xbf16>
    %4 = vector.shape_cast %3 : vector<1x384x256xbf16> to vector<384x256xbf16>
    %cst_5 = arith.constant dense<0.000000e+00> : vector<16x256xf32>
    %5 = tpu.matmul %2, %4, %cst_5 {dimension_numbers = #tpu.dot_dimension_numbers<[1], [0], [0], [1], [0, 0, 1, 1], [], []>} : vector<16x384xbf16>, vector<384x256xbf16>, vector<16x256xf32> -> vector<16x256xf32>
    %6 = arith.addf %0, %5 : vector<16x256xf32>
    %c0_6 = arith.constant 0 : index
    %c1 = arith.constant 1 : index
    %c0_7 = arith.constant 0 : index
    %7 = vector.load %arg1[%c0_6, %c1, %c0_7] : memref<2x14x384xbf16, #tpu.memory_space<vmem>>, vector<2x8x384xbf16>
    %8 = vector.shape_cast %7 : vector<2x8x384xbf16> to vector<16x384xbf16>
    %c1_8 = arith.constant 1 : index
    %c0_9 = arith.constant 0 : index
    %c0_10 = arith.constant 0 : index
    %9 = vector.load %arg2[%c1_8, %c0_9, %c0_10] : memref<7x384x256xbf16, #tpu.memory_space<vmem>>, vector<1x384x256xbf16>
    %10 = vector.shape_cast %9 : vector<1x384x256xbf16> to vector<384x256xbf16>
    %cst_11 = arith.constant dense<0.000000e+00> : vector<16x256xf32>
    %11 = tpu.matmul %8, %10, %cst_11 {dimension_numbers = #tpu.dot_dimension_numbers<[1], [0], [0], [1], [0, 0, 1, 1], [], []>} : vector<16x384xbf16>, vector<384x256xbf16>, vector<16x256xf32> -> vector<16x256xf32>
    %12 = arith.addf %6, %11 : vector<16x256xf32>
    %c0_12 = arith.constant 0 : index
    %c2 = arith.constant 2 : index
    %c0_13 = arith.constant 0 : index
    %13 = vector.load %arg1[%c0_12, %c2, %c0_13] : memref<2x14x384xbf16, #tpu.memory_space<vmem>>, vector<2x8x384xbf16>
    %14 = vector.shape_cast %13 : vector<2x8x384xbf16> to vector<16x384xbf16>
    %c2_14 = arith.constant 2 : index
    %c0_15 = arith.constant 0 : index
    %c0_16 = arith.constant 0 : index
    %15 = vector.load %arg2[%c2_14, %c0_15, %c0_16] : memref<7x384x256xbf16, #tpu.memory_space<vmem>>, vector<1x384x256xbf16>
    %16 = vector.shape_cast %15 : vector<1x384x256xbf16> to vector<384x256xbf16>
    %cst_17 = arith.constant dense<0.000000e+00> : vector<16x256xf32>
    %17 = tpu.matmul %14, %16, %cst_17 {dimension_numbers = #tpu.dot_dimension_numbers<[1], [0], [0], [1], [0, 0, 1, 1], [], []>} : vector<16x384xbf16>, vector<384x256xbf16>, vector<16x256xf32> -> vector<16x256xf32>
    %18 = arith.addf %12, %17 : vector<16x256xf32>
    %c0_18 = arith.constant 0 : index
    %c3 = arith.constant 3 : index
    %c0_19 = arith.constant 0 : index
    %19 = vector.load %arg1[%c0_18, %c3, %c0_19] : memref<2x14x384xbf16, #tpu.memory_space<vmem>>, vector<2x8x384xbf16>
    %20 = vector.shape_cast %19 : vector<2x8x384xbf16> to vector<16x384xbf16>
    %c3_20 = arith.constant 3 : index
    %c0_21 = arith.constant 0 : index
    %c0_22 = arith.constant 0 : index
    %21 = vector.load %arg2[%c3_20, %c0_21, %c0_22] : memref<7x384x256xbf16, #tpu.memory_space<vmem>>, vector<1x384x256xbf16>
    %22 = vector.shape_cast %21 : vector<1x384x256xbf16> to vector<384x256xbf16>
    %cst_23 = arith.constant dense<0.000000e+00> : vector<16x256xf32>
    %23 = tpu.matmul %20, %22, %cst_23 {dimension_numbers = #tpu.dot_dimension_numbers<[1], [0], [0], [1], [0, 0, 1, 1], [], []>} : vector<16x384xbf16>, vector<384x256xbf16>, vector<16x256xf32> -> vector<16x256xf32>
    %24 = arith.addf %18, %23 : vector<16x256xf32>
    %c0_24 = arith.constant 0 : index
    %c4 = arith.constant 4 : index
    %c0_25 = arith.constant 0 : index
    %25 = vector.load %arg1[%c0_24, %c4, %c0_25] : memref<2x14x384xbf16, #tpu.memory_space<vmem>>, vector<2x8x384xbf16>
    %26 = vector.shape_cast %25 : vector<2x8x384xbf16> to vector<16x384xbf16>
    %c4_26 = arith.constant 4 : index
    %c0_27 = arith.constant 0 : index
    %c0_28 = arith.constant 0 : index
    %27 = vector.load %arg2[%c4_26, %c0_27, %c0_28] : memref<7x384x256xbf16, #tpu.memory_space<vmem>>, vector<1x384x256xbf16>
    %28 = vector.shape_cast %27 : vector<1x384x256xbf16> to vector<384x256xbf16>
    %cst_29 = arith.constant dense<0.000000e+00> : vector<16x256xf32>
    %29 = tpu.matmul %26, %28, %cst_29 {dimension_numbers = #tpu.dot_dimension_numbers<[1], [0], [0], [1], [0, 0, 1, 1], [], []>} : vector<16x384xbf16>, vector<384x256xbf16>, vector<16x256xf32> -> vector<16x256xf32>
    %30 = arith.addf %24, %29 : vector<16x256xf32>
    %c0_30 = arith.constant 0 : index
    %c5 = arith.constant 5 : index
    %c0_31 = arith.constant 0 : index
    %31 = vector.load %arg1[%c0_30, %c5, %c0_31] : memref<2x14x384xbf16, #tpu.memory_space<vmem>>, vector<2x8x384xbf16>
    %32 = vector.shape_cast %31 : vector<2x8x384xbf16> to vector<16x384xbf16>
    %c5_32 = arith.constant 5 : index
    %c0_33 = arith.constant 0 : index
    %c0_34 = arith.constant 0 : index
    %33 = vector.load %arg2[%c5_32, %c0_33, %c0_34] : memref<7x384x256xbf16, #tpu.memory_space<vmem>>, vector<1x384x256xbf16>
    %34 = vector.shape_cast %33 : vector<1x384x256xbf16> to vector<384x256xbf16>
    %cst_35 = arith.constant dense<0.000000e+00> : vector<16x256xf32>
    %35 = tpu.matmul %32, %34, %cst_35 {dimension_numbers = #tpu.dot_dimension_numbers<[1], [0], [0], [1], [0, 0, 1, 1], [], []>} : vector<16x384xbf16>, vector<384x256xbf16>, vector<16x256xf32> -> vector<16x256xf32>
    %36 = arith.addf %30, %35 : vector<16x256xf32>
    %c0_36 = arith.constant 0 : index
    %c6 = arith.constant 6 : index
    %c0_37 = arith.constant 0 : index
    %37 = vector.load %arg1[%c0_36, %c6, %c0_37] : memref<2x14x384xbf16, #tpu.memory_space<vmem>>, vector<2x8x384xbf16>
    %38 = vector.shape_cast %37 : vector<2x8x384xbf16> to vector<16x384xbf16>
    %c6_38 = arith.constant 6 : index
    %c0_39 = arith.constant 0 : index
    %c0_40 = arith.constant 0 : index
    %39 = vector.load %arg2[%c6_38, %c0_39, %c0_40] : memref<7x384x256xbf16, #tpu.memory_space<vmem>>, vector<1x384x256xbf16>
    %40 = vector.shape_cast %39 : vector<1x384x256xbf16> to vector<384x256xbf16>
    %cst_41 = arith.constant dense<0.000000e+00> : vector<16x256xf32>
    %41 = tpu.matmul %38, %40, %cst_41 {dimension_numbers = #tpu.dot_dimension_numbers<[1], [0], [0], [1], [0, 0, 1, 1], [], []>} : vector<16x384xbf16>, vector<384x256xbf16>, vector<16x256xf32> -> vector<16x256xf32>
    %42 = arith.addf %36, %41 : vector<16x256xf32>
    %c0_42 = arith.constant 0 : index
    %c0_43 = arith.constant 0 : index
    %43 = vector.load %arg3[%c0_42, %c0_43] : memref<1x256xf32, #tpu.memory_space<vmem>>, vector<1x256xf32>
    %44 = vector.broadcast %43 : vector<1x256xf32> to vector<16x256xf32>
    %45 = arith.addf %42, %44 : vector<16x256xf32>
    %cst_44 = arith.constant 0.000000e+00 : f32
    %46 = vector.broadcast %cst_44 : f32 to vector<16x256xf32>
    %47 = arith.maximumf %45, %46 : vector<16x256xf32>
    %48 = arith.truncf %47 : vector<16x256xf32> to vector<16x256xbf16>
    %c0_45 = arith.constant 0 : index
    %c0_46 = arith.constant 0 : index
    %49 = vector.load %arg4[%c0_45, %c0_46] : memref<256x400xbf16, #tpu.memory_space<vmem>>, vector<256x400xbf16>
    %cst_47 = arith.constant dense<0.000000e+00> : vector<16x400xf32>
    %50 = tpu.matmul %48, %49, %cst_47 {dimension_numbers = #tpu.dot_dimension_numbers<[1], [0], [0], [1], [0, 0, 1, 1], [], []>} : vector<16x256xbf16>, vector<256x400xbf16>, vector<16x400xf32> -> vector<16x400xf32>
    %c0_48 = arith.constant 0 : index
    %c0_49 = arith.constant 0 : index
    %51 = vector.load %arg5[%c0_48, %c0_49] : memref<1x400xf32, #tpu.memory_space<vmem>>, vector<1x400xf32>
    %52 = vector.broadcast %51 : vector<1x400xf32> to vector<16x400xf32>
    %53 = arith.addf %50, %52 : vector<16x400xf32>
    %cst_50 = arith.constant 0.000000e+00 : f32
    %54 = vector.broadcast %cst_50 : f32 to vector<16x400xf32>
    %55 = arith.maximumf %53, %54 : vector<16x400xf32>
    %56 = arith.truncf %55 : vector<16x400xf32> to vector<16x400xbf16>
    %c0_51 = arith.constant 0 : index
    %c0_52 = arith.constant 0 : index
    %57 = vector.load %arg6[%c0_51, %c0_52] : memref<400x400xbf16, #tpu.memory_space<vmem>>, vector<400x400xbf16>
    %cst_53 = arith.constant dense<0.000000e+00> : vector<16x400xf32>
    %58 = tpu.matmul %56, %57, %cst_53 {dimension_numbers = #tpu.dot_dimension_numbers<[1], [0], [0], [1], [0, 0, 1, 1], [], []>} : vector<16x400xbf16>, vector<400x400xbf16>, vector<16x400xf32> -> vector<16x400xf32>
    %c0_54 = arith.constant 0 : index
    %c0_55 = arith.constant 0 : index
    %59 = vector.load %arg7[%c0_54, %c0_55] : memref<1x400xf32, #tpu.memory_space<vmem>>, vector<1x400xf32>
    %60 = vector.broadcast %59 : vector<1x400xf32> to vector<16x400xf32>
    %61 = arith.addf %58, %60 : vector<16x400xf32>
    %cst_56 = arith.constant 0.000000e+00 : f32
    %62 = vector.broadcast %cst_56 : f32 to vector<16x400xf32>
    %63 = arith.maximumf %61, %62 : vector<16x400xf32>
    %64 = arith.truncf %63 : vector<16x400xf32> to vector<16x400xbf16>
    %c0_57 = arith.constant 0 : index
    %c0_58 = arith.constant 0 : index
    %65 = vector.load %arg8[%c0_57, %c0_58] : memref<400x1024xbf16, #tpu.memory_space<vmem>>, vector<400x1024xbf16>
    %cst_59 = arith.constant dense<0.000000e+00> : vector<16x1024xf32>
    %66 = tpu.matmul %64, %65, %cst_59 {dimension_numbers = #tpu.dot_dimension_numbers<[1], [0], [0], [1], [0, 0, 1, 1], [], []>} : vector<16x400xbf16>, vector<400x1024xbf16>, vector<16x1024xf32> -> vector<16x1024xf32>
    %c0_60 = arith.constant 0 : index
    %c0_61 = arith.constant 0 : index
    %67 = vector.load %arg9[%c0_60, %c0_61] : memref<1x1024xf32, #tpu.memory_space<vmem>>, vector<1x1024xf32>
    %68 = vector.broadcast %67 : vector<1x1024xf32> to vector<16x1024xf32>
    %69 = arith.addf %66, %68 : vector<16x1024xf32>
    %c0_62 = arith.constant 0 : index
    %c0_63 = arith.constant 0 : index
    %70 = vector.load %arg10[%c0_62, %c0_63] : memref<400x1024xbf16, #tpu.memory_space<vmem>>, vector<400x1024xbf16>
    %cst_64 = arith.constant dense<0.000000e+00> : vector<16x1024xf32>
    %71 = tpu.matmul %64, %70, %cst_64 {dimension_numbers = #tpu.dot_dimension_numbers<[1], [0], [0], [1], [0, 0, 1, 1], [], []>} : vector<16x400xbf16>, vector<400x1024xbf16>, vector<16x1024xf32> -> vector<16x1024xf32>
    %c0_65 = arith.constant 0 : index
    %c0_66 = arith.constant 0 : index
    %72 = vector.load %arg11[%c0_65, %c0_66] : memref<1x1024xf32, #tpu.memory_space<vmem>>, vector<1x1024xf32>
    %73 = vector.broadcast %72 : vector<1x1024xf32> to vector<16x1024xf32>
    %74 = arith.addf %71, %73 : vector<16x1024xf32>
    %75 = vector.shape_cast %69 : vector<16x1024xf32> to vector<2x8x1024xf32>
    %c0_67 = arith.constant 0 : index
    %c0_68 = arith.constant 0 : index
    %c0_69 = arith.constant 0 : index
    %c0_70 = arith.constant 0 : index
    %76 = vector.load %arg12[%c0_67, %c0_68, %c0_69, %c0_70] : memref<2x2x8x1024xf32, #tpu.memory_space<vmem>>, vector<1x2x8x1024xf32>
    %77 = vector.shape_cast %76 : vector<1x2x8x1024xf32> to vector<2x8x1024xf32>
    %78 = vector.shape_cast %75 : vector<2x8x1024xf32> to vector<1x2x8x1024xf32>
    tpu.vector_store %arg12[%c0_67, %c0_68, %c0_69, %c0_70], %78 {strides = array<i32>} : memref<2x2x8x1024xf32, #tpu.memory_space<vmem>>, vector<1x2x8x1024xf32>,
    %79 = vector.shape_cast %74 : vector<16x1024xf32> to vector<2x8x1024xf32>
    %c1_71 = arith.constant 1 : index
    %c0_72 = arith.constant 0 : index
    %c0_73 = arith.constant 0 : index
    %c0_74 = arith.constant 0 : index
    %80 = vector.load %arg12[%c1_71, %c0_72, %c0_73, %c0_74] : memref<2x2x8x1024xf32, #tpu.memory_space<vmem>>, vector<1x2x8x1024xf32>
    %81 = vector.shape_cast %80 : vector<1x2x8x1024xf32> to vector<2x8x1024xf32>
    %82 = vector.shape_cast %79 : vector<2x8x1024xf32> to vector<1x2x8x1024xf32>
    tpu.vector_store %arg12[%c1_71, %c0_72, %c0_73, %c0_74], %82 {strides = array<i32>} : memref<2x2x8x1024xf32, #tpu.memory_space<vmem>>, vector<1x2x8x1024xf32>,
    return
  }
  func.func @transform_0(%arg0: i32) -> (i32, i32, i32) {
    %c0_i32 = arith.constant 0 : i32
    %c0_i32_0 = arith.constant 0 : i32
    %c0_i32_1 = arith.constant 0 : i32
    return %arg0, %c0_i32, %c0_i32_0 : i32, i32, i32
  }
  func.func @transform_1(%arg0: i32) -> (i32, i32, i32) {
    %c0_i32 = arith.constant 0 : i32
    %c0_i32_0 = arith.constant 0 : i32
    %c0_i32_1 = arith.constant 0 : i32
    %c0_i32_2 = arith.constant 0 : i32
    return %c0_i32, %c0_i32_0, %c0_i32_1 : i32, i32, i32
  }
  func.func @transform_2(%arg0: i32) -> (i32, i32) {
    %c0_i32 = arith.constant 0 : i32
    %c0_i32_0 = arith.constant 0 : i32
    %c0_i32_1 = arith.constant 0 : i32
    return %c0_i32, %c0_i32_0 : i32, i32
  }
  func.func @transform_3(%arg0: i32) -> (i32, i32) {
    %c0_i32 = arith.constant 0 : i32
    %c0_i32_0 = arith.constant 0 : i32
    %c0_i32_1 = arith.constant 0 : i32
    return %c0_i32, %c0_i32_0 : i32, i32
  }
  func.func @transform_4(%arg0: i32) -> (i32, i32) {
    %c0_i32 = arith.constant 0 : i32
    %c0_i32_0 = arith.constant 0 : i32
    %c0_i32_1 = arith.constant 0 : i32
    return %c0_i32, %c0_i32_0 : i32, i32
  }
  func.func @transform_5(%arg0: i32) -> (i32, i32) {
    %c0_i32 = arith.constant 0 : i32
    %c0_i32_0 = arith.constant 0 : i32
    %c0_i32_1 = arith.constant 0 : i32
    return %c0_i32, %c0_i32_0 : i32, i32
  }
  func.func @transform_6(%arg0: i32) -> (i32, i32) {
    %c0_i32 = arith.constant 0 : i32
    %c0_i32_0 = arith.constant 0 : i32
    %c0_i32_1 = arith.constant 0 : i32
    return %c0_i32, %c0_i32_0 : i32, i32
  }
  func.func @transform_7(%arg0: i32) -> (i32, i32) {
    %c0_i32 = arith.constant 0 : i32
    %c0_i32_0 = arith.constant 0 : i32
    %c0_i32_1 = arith.constant 0 : i32
    return %c0_i32, %c0_i32_0 : i32, i32
  }
  func.func @transform_8(%arg0: i32) -> (i32, i32) {
    %c0_i32 = arith.constant 0 : i32
    %c0_i32_0 = arith.constant 0 : i32
    %c0_i32_1 = arith.constant 0 : i32
    return %c0_i32, %c0_i32_0 : i32, i32
  }
  func.func @transform_9(%arg0: i32) -> (i32, i32) {
    %c0_i32 = arith.constant 0 : i32
    %c0_i32_0 = arith.constant 0 : i32
    %c0_i32_1 = arith.constant 0 : i32
    return %c0_i32, %c0_i32_0 : i32, i32
  }
  func.func @transform_10(%arg0: i32) -> (i32, i32) {
    %c0_i32 = arith.constant 0 : i32
    %c0_i32_0 = arith.constant 0 : i32
    %c0_i32_1 = arith.constant 0 : i32
    return %c0_i32, %c0_i32_0 : i32, i32
  }
  func.func @transform_11(%arg0: i32) -> (i32, i32, i32, i32) {
    %c0_i32 = arith.constant 0 : i32
    %c0_i32_0 = arith.constant 0 : i32
    %c0_i32_1 = arith.constant 0 : i32
    %c0_i32_2 = arith.constant 0 : i32
    return %c0_i32, %arg0, %c0_i32_0, %c0_i32_1 : i32, i32, i32, i32
  }
}

module attributes {stable_mosaic.version = 11 : i64} {
  func.func @_head_kernel(%arg0: i32, %arg1: memref<2x16x200xbf16, #tpu.memory_space<vmem>>, %arg2: memref<2x200x400xbf16, #tpu.memory_space<vmem>>, %arg3: memref<1x400xf32, #tpu.memory_space<vmem>>, %arg4: memref<400x400xbf16, #tpu.memory_space<vmem>>, %arg5: memref<1x400xf32, #tpu.memory_space<vmem>>, %arg6: memref<400x400xbf16, #tpu.memory_space<vmem>>, %arg7: memref<1x400xf32, #tpu.memory_space<vmem>>, %arg8: memref<400x64xbf16, #tpu.memory_space<vmem>>, %arg9: memref<1x64xf32, #tpu.memory_space<vmem>>, %arg10: memref<64x128xbf16, #tpu.memory_space<vmem>>, %arg11: memref<1x128xf32, #tpu.memory_space<vmem>>, %arg12: memref<16x128xf32, #tpu.memory_space<vmem>>) attributes {dimension_semantics = [#tpu.dimension_semantics<parallel>], iteration_bounds = array<i64: 1>, scalar_prefetch = 0 : i64, scratch_operands = 0 : i64, tpu.core_type = #tpu.core_type<tc>, window_params = [{transform_indices = @transform_0, window_bounds = array<i64: 2, 16, 200>}, {pipeline_mode = #tpu.pipeline_mode<synchronous>, transform_indices = @transform_1, window_bounds = array<i64: 2, 200, 400>}, {pipeline_mode = #tpu.pipeline_mode<synchronous>, transform_indices = @transform_2, window_bounds = array<i64: 1, 400>}, {pipeline_mode = #tpu.pipeline_mode<synchronous>, transform_indices = @transform_3, window_bounds = array<i64: 400, 400>}, {pipeline_mode = #tpu.pipeline_mode<synchronous>, transform_indices = @transform_4, window_bounds = array<i64: 1, 400>}, {pipeline_mode = #tpu.pipeline_mode<synchronous>, transform_indices = @transform_5, window_bounds = array<i64: 400, 400>}, {pipeline_mode = #tpu.pipeline_mode<synchronous>, transform_indices = @transform_6, window_bounds = array<i64: 1, 400>}, {pipeline_mode = #tpu.pipeline_mode<synchronous>, transform_indices = @transform_7, window_bounds = array<i64: 400, 64>}, {pipeline_mode = #tpu.pipeline_mode<synchronous>, transform_indices = @transform_8, window_bounds = array<i64: 1, 64>}, {pipeline_mode = #tpu.pipeline_mode<synchronous>, transform_indices = @transform_9, window_bounds = array<i64: 64, 128>}, {pipeline_mode = #tpu.pipeline_mode<synchronous>, transform_indices = @transform_10, window_bounds = array<i64: 1, 128>}, {transform_indices = @transform_11, window_bounds = array<i64: 16, 128>}]} {
    %c0 = arith.constant 0 : index
    %c0_0 = arith.constant 0 : index
    %c0_1 = arith.constant 0 : index
    %0 = vector.load %arg1[%c0, %c0_0, %c0_1] : memref<2x16x200xbf16, #tpu.memory_space<vmem>>, vector<1x16x200xbf16>
    %1 = vector.shape_cast %0 : vector<1x16x200xbf16> to vector<16x200xbf16>
    %c1 = arith.constant 1 : index
    %c0_2 = arith.constant 0 : index
    %c0_3 = arith.constant 0 : index
    %2 = vector.load %arg1[%c1, %c0_2, %c0_3] : memref<2x16x200xbf16, #tpu.memory_space<vmem>>, vector<1x16x200xbf16>
    %3 = vector.shape_cast %2 : vector<1x16x200xbf16> to vector<16x200xbf16>
    %c0_4 = arith.constant 0 : index
    %c0_5 = arith.constant 0 : index
    %c0_6 = arith.constant 0 : index
    %4 = vector.load %arg2[%c0_4, %c0_5, %c0_6] : memref<2x200x400xbf16, #tpu.memory_space<vmem>>, vector<1x200x400xbf16>
    %5 = vector.shape_cast %4 : vector<1x200x400xbf16> to vector<200x400xbf16>
    %cst = arith.constant dense<0.000000e+00> : vector<16x400xf32>
    %6 = tpu.matmul %1, %5, %cst {dimension_numbers = #tpu.dot_dimension_numbers<[1], [0], [0], [1], [0, 0, 1, 1], [], []>} : vector<16x200xbf16>, vector<200x400xbf16>, vector<16x400xf32> -> vector<16x400xf32>
    %c1_7 = arith.constant 1 : index
    %c0_8 = arith.constant 0 : index
    %c0_9 = arith.constant 0 : index
    %7 = vector.load %arg2[%c1_7, %c0_8, %c0_9] : memref<2x200x400xbf16, #tpu.memory_space<vmem>>, vector<1x200x400xbf16>
    %8 = vector.shape_cast %7 : vector<1x200x400xbf16> to vector<200x400xbf16>
    %cst_10 = arith.constant dense<0.000000e+00> : vector<16x400xf32>
    %9 = tpu.matmul %3, %8, %cst_10 {dimension_numbers = #tpu.dot_dimension_numbers<[1], [0], [0], [1], [0, 0, 1, 1], [], []>} : vector<16x200xbf16>, vector<200x400xbf16>, vector<16x400xf32> -> vector<16x400xf32>
    %10 = arith.addf %6, %9 : vector<16x400xf32>
    %c0_11 = arith.constant 0 : index
    %c0_12 = arith.constant 0 : index
    %11 = vector.load %arg3[%c0_11, %c0_12] : memref<1x400xf32, #tpu.memory_space<vmem>>, vector<1x400xf32>
    %12 = vector.broadcast %11 : vector<1x400xf32> to vector<16x400xf32>
    %13 = arith.addf %10, %12 : vector<16x400xf32>
    %cst_13 = arith.constant 0.000000e+00 : f32
    %14 = vector.broadcast %cst_13 : f32 to vector<16x400xf32>
    %15 = arith.maximumf %13, %14 : vector<16x400xf32>
    %16 = arith.truncf %15 : vector<16x400xf32> to vector<16x400xbf16>
    %c0_14 = arith.constant 0 : index
    %c0_15 = arith.constant 0 : index
    %17 = vector.load %arg4[%c0_14, %c0_15] : memref<400x400xbf16, #tpu.memory_space<vmem>>, vector<400x400xbf16>
    %cst_16 = arith.constant dense<0.000000e+00> : vector<16x400xf32>
    %18 = tpu.matmul %16, %17, %cst_16 {dimension_numbers = #tpu.dot_dimension_numbers<[1], [0], [0], [1], [0, 0, 1, 1], [], []>} : vector<16x400xbf16>, vector<400x400xbf16>, vector<16x400xf32> -> vector<16x400xf32>
    %c0_17 = arith.constant 0 : index
    %c0_18 = arith.constant 0 : index
    %19 = vector.load %arg5[%c0_17, %c0_18] : memref<1x400xf32, #tpu.memory_space<vmem>>, vector<1x400xf32>
    %20 = vector.broadcast %19 : vector<1x400xf32> to vector<16x400xf32>
    %21 = arith.addf %18, %20 : vector<16x400xf32>
    %cst_19 = arith.constant 0.000000e+00 : f32
    %22 = vector.broadcast %cst_19 : f32 to vector<16x400xf32>
    %23 = arith.maximumf %21, %22 : vector<16x400xf32>
    %24 = arith.truncf %23 : vector<16x400xf32> to vector<16x400xbf16>
    %c0_20 = arith.constant 0 : index
    %c0_21 = arith.constant 0 : index
    %25 = vector.load %arg6[%c0_20, %c0_21] : memref<400x400xbf16, #tpu.memory_space<vmem>>, vector<400x400xbf16>
    %cst_22 = arith.constant dense<0.000000e+00> : vector<16x400xf32>
    %26 = tpu.matmul %24, %25, %cst_22 {dimension_numbers = #tpu.dot_dimension_numbers<[1], [0], [0], [1], [0, 0, 1, 1], [], []>} : vector<16x400xbf16>, vector<400x400xbf16>, vector<16x400xf32> -> vector<16x400xf32>
    %c0_23 = arith.constant 0 : index
    %c0_24 = arith.constant 0 : index
    %27 = vector.load %arg7[%c0_23, %c0_24] : memref<1x400xf32, #tpu.memory_space<vmem>>, vector<1x400xf32>
    %28 = vector.broadcast %27 : vector<1x400xf32> to vector<16x400xf32>
    %29 = arith.addf %26, %28 : vector<16x400xf32>
    %cst_25 = arith.constant 0.000000e+00 : f32
    %30 = vector.broadcast %cst_25 : f32 to vector<16x400xf32>
    %31 = arith.maximumf %29, %30 : vector<16x400xf32>
    %32 = arith.truncf %31 : vector<16x400xf32> to vector<16x400xbf16>
    %c0_26 = arith.constant 0 : index
    %c0_27 = arith.constant 0 : index
    %33 = vector.load %arg8[%c0_26, %c0_27] : memref<400x64xbf16, #tpu.memory_space<vmem>>, vector<400x64xbf16>
    %cst_28 = arith.constant dense<0.000000e+00> : vector<16x64xf32>
    %34 = tpu.matmul %32, %33, %cst_28 {dimension_numbers = #tpu.dot_dimension_numbers<[1], [0], [0], [1], [0, 0, 1, 1], [], []>} : vector<16x400xbf16>, vector<400x64xbf16>, vector<16x64xf32> -> vector<16x64xf32>
    %c0_29 = arith.constant 0 : index
    %c0_30 = arith.constant 0 : index
    %35 = vector.load %arg9[%c0_29, %c0_30] : memref<1x64xf32, #tpu.memory_space<vmem>>, vector<1x64xf32>
    %36 = vector.broadcast %35 : vector<1x64xf32> to vector<16x64xf32>
    %37 = arith.addf %34, %36 : vector<16x64xf32>
    %cst_31 = arith.constant 0.000000e+00 : f32
    %38 = vector.broadcast %cst_31 : f32 to vector<16x64xf32>
    %39 = arith.maximumf %37, %38 : vector<16x64xf32>
    %40 = arith.truncf %39 : vector<16x64xf32> to vector<16x64xbf16>
    %c0_32 = arith.constant 0 : index
    %c0_33 = arith.constant 0 : index
    %41 = vector.load %arg10[%c0_32, %c0_33] : memref<64x128xbf16, #tpu.memory_space<vmem>>, vector<64x128xbf16>
    %cst_34 = arith.constant dense<0.000000e+00> : vector<16x128xf32>
    %42 = tpu.matmul %40, %41, %cst_34 {dimension_numbers = #tpu.dot_dimension_numbers<[1], [0], [0], [1], [0, 0, 1, 1], [], []>} : vector<16x64xbf16>, vector<64x128xbf16>, vector<16x128xf32> -> vector<16x128xf32>
    %c0_35 = arith.constant 0 : index
    %c0_36 = arith.constant 0 : index
    %43 = vector.load %arg11[%c0_35, %c0_36] : memref<1x128xf32, #tpu.memory_space<vmem>>, vector<1x128xf32>
    %44 = vector.broadcast %43 : vector<1x128xf32> to vector<16x128xf32>
    %45 = arith.addf %42, %44 : vector<16x128xf32>
    %46 = arith.negf %45 : vector<16x128xf32>
    %47 = math.exp %46 : vector<16x128xf32>
    %cst_37 = arith.constant 1.000000e+00 : f32
    %48 = vector.broadcast %cst_37 : f32 to vector<16x128xf32>
    %49 = arith.addf %48, %47 : vector<16x128xf32>
    %50 = arith.divf %48, %49 : vector<16x128xf32>
    %c0_38 = arith.constant 0 : index
    %c0_39 = arith.constant 0 : index
    %51 = vector.load %arg12[%c0_38, %c0_39] : memref<16x128xf32, #tpu.memory_space<vmem>>, vector<16x128xf32>
    tpu.vector_store %arg12[%c0_38, %c0_39], %50 {strides = array<i32>} : memref<16x128xf32, #tpu.memory_space<vmem>>, vector<16x128xf32>,
    return
  }
  func.func @transform_0(%arg0: i32) -> (i32, i32, i32) {
    %c0_i32 = arith.constant 0 : i32
    %c0_i32_0 = arith.constant 0 : i32
    %c0_i32_1 = arith.constant 0 : i32
    return %c0_i32, %arg0, %c0_i32_0 : i32, i32, i32
  }
  func.func @transform_1(%arg0: i32) -> (i32, i32, i32) {
    %c0_i32 = arith.constant 0 : i32
    %c0_i32_0 = arith.constant 0 : i32
    %c0_i32_1 = arith.constant 0 : i32
    %c0_i32_2 = arith.constant 0 : i32
    return %c0_i32, %c0_i32_0, %c0_i32_1 : i32, i32, i32
  }
  func.func @transform_2(%arg0: i32) -> (i32, i32) {
    %c0_i32 = arith.constant 0 : i32
    %c0_i32_0 = arith.constant 0 : i32
    %c0_i32_1 = arith.constant 0 : i32
    return %c0_i32, %c0_i32_0 : i32, i32
  }
  func.func @transform_3(%arg0: i32) -> (i32, i32) {
    %c0_i32 = arith.constant 0 : i32
    %c0_i32_0 = arith.constant 0 : i32
    %c0_i32_1 = arith.constant 0 : i32
    return %c0_i32, %c0_i32_0 : i32, i32
  }
  func.func @transform_4(%arg0: i32) -> (i32, i32) {
    %c0_i32 = arith.constant 0 : i32
    %c0_i32_0 = arith.constant 0 : i32
    %c0_i32_1 = arith.constant 0 : i32
    return %c0_i32, %c0_i32_0 : i32, i32
  }
  func.func @transform_5(%arg0: i32) -> (i32, i32) {
    %c0_i32 = arith.constant 0 : i32
    %c0_i32_0 = arith.constant 0 : i32
    %c0_i32_1 = arith.constant 0 : i32
    return %c0_i32, %c0_i32_0 : i32, i32
  }
  func.func @transform_6(%arg0: i32) -> (i32, i32) {
    %c0_i32 = arith.constant 0 : i32
    %c0_i32_0 = arith.constant 0 : i32
    %c0_i32_1 = arith.constant 0 : i32
    return %c0_i32, %c0_i32_0 : i32, i32
  }
  func.func @transform_7(%arg0: i32) -> (i32, i32) {
    %c0_i32 = arith.constant 0 : i32
    %c0_i32_0 = arith.constant 0 : i32
    %c0_i32_1 = arith.constant 0 : i32
    return %c0_i32, %c0_i32_0 : i32, i32
  }
  func.func @transform_8(%arg0: i32) -> (i32, i32) {
    %c0_i32 = arith.constant 0 : i32
    %c0_i32_0 = arith.constant 0 : i32
    %c0_i32_1 = arith.constant 0 : i32
    return %c0_i32, %c0_i32_0 : i32, i32
  }
  func.func @transform_9(%arg0: i32) -> (i32, i32) {
    %c0_i32 = arith.constant 0 : i32
    %c0_i32_0 = arith.constant 0 : i32
    %c0_i32_1 = arith.constant 0 : i32
    return %c0_i32, %c0_i32_0 : i32, i32
  }
  func.func @transform_10(%arg0: i32) -> (i32, i32) {
    %c0_i32 = arith.constant 0 : i32
    %c0_i32_0 = arith.constant 0 : i32
    %c0_i32_1 = arith.constant 0 : i32
    return %c0_i32, %c0_i32_0 : i32, i32
  }
  func.func @transform_11(%arg0: i32) -> (i32, i32) {
    %c0_i32 = arith.constant 0 : i32
    %c0_i32_0 = arith.constant 0 : i32
    return %arg0, %c0_i32 : i32, i32
  }
}

</mosaic_0001>

<llo_original>
// kernel: main_model_forward.4
$region0: #{main_model_forward.4}
  #allocation0 [shape = 'u32[]', space=smem, size = 0x4, offset = 0x4, fixed_abs, tag = 'smem constant byte address 0x4 - core index']
  #allocation1 [shape = 'u32[72,128]{1,0:T(1,128)}', space=vmem, size = 0x9000, scoped, tag = 'internal scratch']
  %s0 = inlined_call_operand.vmem [shape: bf16[2,24,8], index: 0, kind: input, shape index: {}]
  %s1 = inlined_call_operand.vmem [shape: bf16[2,8,64], index: 1, kind: input, shape index: {}]
  %s2 = inlined_call_operand.vmem [shape: f32[2,24,64], index: 2, kind: output, shape index: {}]
  %s3 = sld [smem:[#allocation0]]
  $region18: #{main_model_forward.4} parent=0
    _
  %s5 = ssub.s32 1, %s3
  %s6 = scalar_select 0, %s5, %s3
  // Predicated region
  $region2: #{main_model_forward.4} parent=0 // pred_check
    _
  $region3: #{main_model_forward.4} parent=0 // pred_check_branch
    %8 = sbr.rel (0) target = $region5
  $region4: #{main_model_forward.4} parent=0 // pred_region
    _
  $region5: #{main_model_forward.4} parent=0 // pred_fallthru
    _
  // Predicated region
  $region6: #{main_model_forward.4} parent=0 // pred_check
    _
  $region7: #{main_model_forward.4} parent=0 // pred_check_branch
    %10 = sbr.rel (0) target = $region9
  $region8: #{main_model_forward.4} parent=0 // pred_region
    _
  $region9: #{main_model_forward.4} parent=0 // pred_fallthru
    _
  %v12 = vld [vmem:[%s0] sm:$0xf]
  %v13 = vld [vmem:[%s0 + $0x4] sm:$0xf]
  %v14 = vld [vmem:[%s0 + $0x8] sm:$0xf]
  %v15 = vld [vmem:[%s0 + $0xc] sm:$0xf]
  %v16 = vld [vmem:[%s0 + $0x10] sm:$0xf]
  %v17 = vld [vmem:[%s0 + $0x14] sm:$0xf]
  %v18 = vld [vmem:[%s1] sm:$0xf]
  %v19 = vld [vmem:[%s1 + $0x4] sm:$0xf]
  %v23 = vunpack.c.l.b16 %v12
  %v24 = vunpack.c.l.b16 %v13
  %v25 = vunpack.c.l.b16 %v14
  %v26 = vpack.c.b16 %v24, %v23
  %v27 = vpack.c.b16 %v25, %v25
  %vm28 = vcmask 64512
  %v30 = vsel %vm28, %v26, 0
  %v33 = vsel %vm28, %v27, 0
  %vm35 = vcmask 1043456
  %v37 = vsel %vm35, %v18, 0
  %39 = vmatpush.bf16.msra.mxu0 0
  %40 = vmatpush.bf16.msra.mxu0 0
  %41 = vmatpush.bf16.msra.mxu0 0
  %42 = vmatpush.bf16.msra.mxu0 0
  %43 = vmatpush.bf16.msra.mxu0 0
  %44 = vmatpush.bf16.msra.mxu0 0
  %45 = vmatpush.bf16.msra.mxu0 0
  %46 = vmatpush.bf16.msra.mxu0 %v37
  %47 = vmatmul.bf16.gmra.mxu0 %v30
  %v48 = vpop.f32.mrf.mxu0
  %v49 = vadd.f32 0.0, %v48
  %v50 = vpop.f32.mrf.mxu0
  %v51 = vadd.f32 0.0, %v50
  %52 = vmatmul.bf16.gmra.mxu0 %v33
  %v53 = vpop.f32.mrf.mxu0
  %v54 = vadd.f32 0.0, %v53
  %v55 = vpop.f32.mrf.mxu0
  %56 = vdwg.mxu0
  %v60 = vunpack.c.l.b16 %v15
  %v61 = vunpack.c.l.b16 %v16
  %v62 = vunpack.c.l.b16 %v17
  %v63 = vpack.c.b16 %v61, %v60
  %v64 = vpack.c.b16 %v62, %v62
  %v66 = vsel %vm28, %v63, 0
  %v69 = vsel %vm28, %v64, 0
  %v72 = vsel %vm35, %v19, 0
  %74 = vmatpush.bf16.msra.mxu0 0
  %75 = vmatpush.bf16.msra.mxu0 0
  %76 = vmatpush.bf16.msra.mxu0 0
  %77 = vmatpush.bf16.msra.mxu0 0
  %78 = vmatpush.bf16.msra.mxu0 0
  %79 = vmatpush.bf16.msra.mxu0 0
  %80 = vmatpush.bf16.msra.mxu0 0
  %81 = vmatpush.bf16.msra.mxu0 %v72
  %82 = vmatmul.bf16.gmra.mxu0 %v66
  %v83 = vpop.f32.mrf.mxu0
  %v84 = vadd.f32 0.0, %v83
  %v85 = vpop.f32.mrf.mxu0
  %v86 = vadd.f32 0.0, %v85
  %87 = vmatmul.bf16.gmra.mxu0 %v69
  %v88 = vpop.f32.mrf.mxu0
  %v89 = vadd.f32 0.0, %v88
  %v90 = vpop.f32.mrf.mxu0
  %91 = vdwg.mxu0
  %vm92 = vcmask 523264
  %93 = vst.msk [vmem:[%s2] sm:$0xff] %vm92, %v49
  %94 = vst.msk [vmem:[%s2 + $0x8] sm:$0xff] %vm92, %v51
  %95 = vst.msk [vmem:[%s2 + $0x10] sm:$0xff] %vm92, %v54
  %96 = vst.msk [vmem:[%s2 + $0x18] sm:$0xff] %vm92, %v84
  %97 = vst.msk [vmem:[%s2 + $0x20] sm:$0xff] %vm92, %v86
  %98 = vst.msk [vmem:[%s2 + $0x28] sm:$0xff] %vm92, %v89
  // Predicated region
  $region10: #{main_model_forward.4} parent=0 // pred_check
    _
  $region11: #{main_model_forward.4} parent=0 // pred_check_branch
    %100 = sbr.rel (0) target = $region13
  $region12: #{main_model_forward.4} parent=0 // pred_region
    _
  $region13: #{main_model_forward.4} parent=0 // pred_fallthru
    _
  // Predicated region
  $region14: #{main_model_forward.4} parent=0 // pred_check
    _
  $region15: #{main_model_forward.4} parent=0 // pred_check_branch
    %102 = sbr.rel (0) target = $region17
  $region16: #{main_model_forward.4} parent=0 // pred_region
    _
  $region17: #{main_model_forward.4} parent=0 // pred_fallthru
    _

// kernel: main_model_forward.6
$region0: #{main_model_forward.6}
  #allocation0 [shape = 'u32[]', space=smem, size = 0x4, offset = 0x4, fixed_abs, tag = 'smem constant byte address 0x4 - core index']
  #allocation1 [shape = 'u32[72,128]{1,0:T(1,128)}', space=vmem, size = 0x9000, scoped, tag = 'internal scratch']
  #allocation2 [shape = 'f32[8,200]{1,0:T(8,128)}', space=vmem, size = 0x2000, scoped, tag = 'scratch operand']
  #allocation3 [shape = 'f32[8,200]{1,0:T(8,128)}', space=vmem, size = 0x2000, scoped, tag = 'scratch operand']
  %s0 = inlined_call_operand.vmem [shape: f32[2,2,8,1024], index: 0, kind: input, shape index: {}]
  %s1 = inlined_call_operand.hbm [shape: bf16[2,200,1024], index: 1, kind: input, shape index: {}]
  %s2 = inlined_call_operand.vmem [shape: bf16[2,2,8,200], index: 2, kind: output, shape index: {}]
  %s3 = sld [smem:[#allocation0]]
  $region49: #{main_model_forward.6} parent=0
    _
  %s5 = ssub.s32 1, %s3
  %s6 = scalar_select 0, %s5, %s3
  $region1: #{main_model_forward.6} parent=0
    #allocation4 [shape = 'u8[819200]{0}', space=vmem, size = 0xc8000, scoped, tag = 'input window, operand 1']
    #allocation5 [shape = 's32[2]{0}', space=sflag, size = 0x8, scoped, tag = 'scoped memory for main_model_forward.6']
    %7 = vsyncpa [#allocation5], 0
    %s8 = scalar_lea.sflag [#allocation5], 1
    %9 = vsyncpa %s8, 0
    loop: start=0, step=1, limit=6
    $region2: #{main_model_forward.6} parent=1 // loop_pre_header
      _
    $region3: #{main_model_forward.6} parent=1 // loop_header
      %s11 = sphi 0, %s15
      %p12 = scmp.ge.s32.totalorder %s11, 6
      %s18 = sphi 0, %s30
      %s19 = sphi 0, %s26
      %s20 = sphi 0, %s18
      %s21 = sphi 0, %s19
      %s22 = sphi 0, %s20
      %s23 = sphi 0, %s21
      %s45 = sphi 0, %s47
      %s48 = sphi 0, %s45
      %s49 = sphi 0, %s48
      %s65 = sphi 0, %s49
      %s71 = sphi 0, %s73
      %s74 = sphi 0, %s71
      %s75 = sphi 0, %s74
      %s91 = sphi 0, %s75
      %s109 = sphi 0, %s111
      %s112 = sphi 0, %s109
      %s113 = sphi 0, %s112
      %s129 = sphi 0, %s113
    $region4: #{main_model_forward.6} parent=1 // loop_header_branch
      %14 = sbr.rel (%p12) target = $region8
    $region5: #{main_model_forward.6} parent=1 // loop_body
      %s16 = ssub.s32 %s11, 1
      %s17 = ssub.s32 %s11, 2
      %s24 = sadd.s32 1, %s19
      %p25 = scmp.ge.s32.totalorder %s24, 2
      %s26 = scalar_select %p25, 0, %s24
      %s27 = sadd.s32 1, %s18
      %s28 = scalar_select %p25, %s27, %s18
      %p29 = scmp.ge.s32.totalorder %s28, 2
      %s30 = scalar_select %p29, 0, %s28
      %s31 = ssub.s32 1, %s18
      %s32 = smul.u32 %s31, %s19
      %s33 = ssub.s32 1, %s19
      %s34 = smul.u32 %s18, %s33
      %s35 = sadd.s32 %s32, %s34
      %s36 = ssub.s32 1, %s30
      %s37 = smul.u32 %s36, %s26
      %s38 = ssub.s32 1, %s26
      %s39 = smul.u32 %s30, %s38
      %s40 = sadd.s32 %s37, %s39
      %s41 = ssub.s32 %s18, %s30
      %s42 = ssub.s32 %s35, %s40
      %s43 = sor.u32 %s41, %s42
      %p44 = scmp.eq.s32.totalorder %s43, 0
      %s46 = sadd.s32 %s45, 1
      %s47 = scalar_select %p44, %s45, %s46
      %p50 = pneg %p44
      %p51 = scmp.eq.s32.totalorder %s11, 3
      %p52 = por %p50, %p51
      %p53 = scmp.ne.s32.totalorder %s45, %s48
      %p54 = scmp.eq.s32.totalorder %s11, 0
      %p55 = por %p53, %p54
      %p56 = scmp.ne.s32.totalorder %s45, %s48
      %p57 = scmp.eq.s32.totalorder %s16, 3
      %p58 = por %p56, %p57
      %p59 = scmp.ne.s32.totalorder %s48, %s49
      %p60 = scmp.eq.s32.totalorder %s16, 0
      %p61 = por %p59, %p60
      %p62 = scmp.ne.s32.totalorder %s48, %s49
      %p63 = scmp.eq.s32.totalorder %s17, 3
      %p64 = por %p62, %p63
      %p66 = scmp.ne.s32.totalorder %s49, %s65
      %p67 = scmp.eq.s32.totalorder %s17, 0
      %p68 = por %p66, %p67
      %s69 = ssub.s32 %s18, %s30
      %p70 = scmp.eq.s32.totalorder %s69, 0
      %s72 = sadd.s32 %s71, 1
      %s73 = scalar_select %p70, %s71, %s72
      %p76 = pneg %p70
      %p77 = scmp.eq.s32.totalorder %s11, 3
      %p78 = por %p76, %p77
      %p79 = scmp.ne.s32.totalorder %s71, %s74
      %p80 = scmp.eq.s32.totalorder %s11, 0
      %p81 = por %p79, %p80
      %p82 = scmp.ne.s32.totalorder %s71, %s74
      %p83 = scmp.eq.s32.totalorder %s16, 3
      %p84 = por %p82, %p83
      %p85 = scmp.ne.s32.totalorder %s74, %s75
      %p86 = scmp.eq.s32.totalorder %s16, 0
      %p87 = por %p85, %p86
      %p88 = scmp.ne.s32.totalorder %s74, %s75
      %p89 = scmp.eq.s32.totalorder %s17, 3
      %p90 = por %p88, %p89
      %p92 = scmp.ne.s32.totalorder %s75, %s91
      %p93 = scmp.eq.s32.totalorder %s17, 0
      %p94 = por %p92, %p93
      %s95 = ssub.s32 1, %s18
      %s96 = smul.u32 %s95, %s19
      %s97 = ssub.s32 1, %s19
      %s98 = smul.u32 %s18, %s97
      %s99 = sadd.s32 %s96, %s98
      %s100 = ssub.s32 1, %s30
      %s101 = smul.u32 %s100, %s26
      %s102 = ssub.s32 1, %s26
      %s103 = smul.u32 %s30, %s102
      %s104 = sadd.s32 %s101, %s103
      %s105 = ssub.s32 %s18, %s30
      %s106 = ssub.s32 %s99, %s104
      %s107 = sor.u32 %s105, %s106
      %p108 = scmp.eq.s32.totalorder %s107, 0
      %s110 = sadd.s32 %s109, 1
      %s111 = scalar_select %p108, %s109, %s110
      %p114 = pneg %p108
      %p115 = scmp.eq.s32.totalorder %s11, 3
      %p116 = por %p114, %p115
      %p117 = scmp.ne.s32.totalorder %s109, %s112
      %p118 = scmp.eq.s32.totalorder %s11, 0
      %p119 = por %p117, %p118
      %p120 = scmp.ne.s32.totalorder %s109, %s112
      %p121 = scmp.eq.s32.totalorder %s16, 3
      %p122 = por %p120, %p121
      %p123 = scmp.ne.s32.totalorder %s112, %s113
      %p124 = scmp.eq.s32.totalorder %s16, 0
      %p125 = por %p123, %p124
      %p126 = scmp.ne.s32.totalorder %s112, %s113
      %p127 = scmp.eq.s32.totalorder %s17, 3
      %p128 = por %p126, %p127
      %p130 = scmp.ne.s32.totalorder %s113, %s129
      %p131 = scmp.eq.s32.totalorder %s17, 0
      %p132 = por %p130, %p131
      %p133 = scmp.le.s32.totalorder 1, %s11
      %p134 = scmp.lt.s32.totalorder %s11, 5
      %p135 = pnand %p133, %p134
      %p136 = pneg %p135
      // Predicated region
      $region9: #{main_model_forward.6} parent=5 // pred_check
        _
      $region10: #{main_model_forward.6} parent=5 // pred_check_branch
        %138 = sbr.rel (%p135) target = $region12
      $region11: #{main_model_forward.6} parent=5 // pred_region
        %s139 = ssub.s32 %s11, 1
      $region12: #{main_model_forward.6} parent=5 // pred_fallthru
        _
      %p140 = scmp.lt.s32.totalorder %s11, 4
      // Predicated region
      $region13: #{main_model_forward.6} parent=5 // pred_check
        %p141 = pneg %p140
      $region14: #{main_model_forward.6} parent=5 // pred_check_branch
        %143 = sbr.rel (%p141) target = $region16
      $region15: #{main_model_forward.6} parent=5 // pred_region
        // Predicated region
        $region17: #{main_model_forward.6} parent=15 // pred_check
          %p144 = pneg %p55
        $region18: #{main_model_forward.6} parent=15 // pred_check_branch
          %146 = sbr.rel (%p144) target = $region20
        $region19: #{main_model_forward.6} parent=15 // pred_region
          %s147 = ssub.s32 1, %s18
          %s148 = smul.u32 %s147, %s19
          %s149 = ssub.s32 1, %s19
          %s150 = smul.u32 %s18, %s149
          %s151 = sadd.s32 %s148, %s150
          %p152 = scmp.lt.s32.totalorder %s18, 1
          %s153 = scalar_select %p152, %s18, 1
          %p154 = scmp.lt.s32.totalorder %s151, 1
          %s155 = scalar_select %p154, %s151, 1
          %s156 = smul.addr %s155, 8
          %s157 = smul.addr %s153, 16
          %s158 = sadd.s32 %s156, %s157
          %s159 = smul.addr %s158, 8
          %s160 = scalar_lea.vmem %s0, %s159
          %s161 = ssub.s32 1, %s18
          %s162 = smul.u32 %s161, %s19
          %s163 = ssub.s32 1, %s19
          %s164 = smul.u32 %s18, %s163
          %s165 = sadd.s32 %s162, %s164
        $region20: #{main_model_forward.6} parent=15 // pred_fallthru
          _
        // Predicated region
        $region21: #{main_model_forward.6} parent=15 // pred_check
          %p166 = pneg %p81
        $region22: #{main_model_forward.6} parent=15 // pred_check_branch
          %168 = sbr.rel (%p166) target = $region24
        $region23: #{main_model_forward.6} parent=15 // pred_region
          %s169 = sand.u32 %s71, 1
          %s170 = scalar_lea.sflag [#allocation5], %s169
          %s171 = sand.u32 %s71, 1
          %s172 = smul.addr %s171, 800
          %s173 = scalar_lea.vmem [#allocation4], %s172
          %175 = vsyncadd %s170, 0
          %s176 = smul.addr %s18, 200
          %s177 = smul.addr %s176, 4
          %s178 = scalar_lea.hbm %s1, %s177
          %s179 = sshll.u32 %s178, 4
          %s180 = int_to_ptr.hbm [resolvable:$true] %s179
          %s181 = sshll.u32 %s173, 4
          %s182 = int_to_ptr.vmem [resolvable:$true] %s181
          %187 = dma.hbm_to_vmem [thread:$0]  %s180, 12800, %s182, %s170, 512, 512, 32
        $region24: #{main_model_forward.6} parent=15 // pred_fallthru
          _
      $region16: #{main_model_forward.6} parent=5 // pred_fallthru
        _
      %p188 = scmp.le.s32.totalorder 1, %s11
      %p189 = scmp.lt.s32.totalorder %s11, 5
      %p190 = pnand %p188, %p189
      %p191 = pneg %p190
      // Predicated region
      $region25: #{main_model_forward.6} parent=5 // pred_check
        _
      $region26: #{main_model_forward.6} parent=5 // pred_check_branch
        %193 = sbr.rel (%p190) target = $region28
      $region27: #{main_model_forward.6} parent=5 // pred_region
        %s194 = ssub.s32 %s11, 1
        %s195 = sand.u32 %s74, 1
        %s196 = scalar_lea.sflag [#allocation5], %s195
        %s197 = sand.u32 %s74, 1
        %s198 = smul.addr %s197, 800
        %s199 = scalar_lea.vmem [#allocation4], %s198
        // Predicated region
        $region29: #{main_model_forward.6} parent=27 // pred_check
          %p200 = pneg %p87
        $region30: #{main_model_forward.6} parent=27 // pred_check_branch
          %202 = sbr.rel (%p200) target = $region32
        $region31: #{main_model_forward.6} parent=27 // pred_region
          %204 = dma.done %s196, 12800
        $region32: #{main_model_forward.6} parent=27 // pred_fallthru
          _
        %s205 = ssub.s32 1, %s20
        %s206 = smul.u32 %s205, %s21
        %s207 = ssub.s32 1, %s21
        %s208 = smul.u32 %s20, %s207
        %s209 = sadd.s32 %s206, %s208
        %p210 = scmp.lt.s32.totalorder %s20, 1
        %s211 = scalar_select %p210, %s20, 1
        %p212 = scmp.lt.s32.totalorder %s209, 1
        %s213 = scalar_select %p212, %s209, 1
        %s214 = smul.addr %s213, 8
        %s215 = smul.addr %s211, 16
        %s216 = sadd.s32 %s214, %s215
        %s217 = smul.addr %s216, 8
        %s218 = scalar_lea.vmem %s0, %s217
        %p219 = pneg %p61
        %p220 = pneg %p58
        %s221 = sand.u32 %s74, 1
        %s222 = scalar_lea.sflag [#allocation5], %s221
        %s223 = sand.u32 %s74, 1
        %s224 = smul.addr %s223, 800
        %s225 = scalar_lea.vmem [#allocation4], %s224
        %p226 = pneg %p87
        %p227 = pneg %p84
        %p228 = pneg %p125
        %p229 = pneg %p122
        %s230 = ssub.s32 1, %s20
        %s231 = smul.u32 %s230, %s21
        %s232 = ssub.s32 1, %s21
        %s233 = smul.u32 %s20, %s232
        %s234 = sadd.s32 %s231, %s233
        %p235 = scmp.lt.s32.totalorder %s20, 1
        %s236 = scalar_select %p235, %s20, 1
        %p237 = scmp.lt.s32.totalorder %s234, 1
        %s238 = scalar_select %p237, %s234, 1
        %s239 = smul.addr %s238, 2
        %s240 = smul.addr %s236, 4
        %s241 = sadd.s32 %s239, %s240
        %s242 = smul.addr %s241, 4
        %s243 = scalar_lea.vmem %s2, %s242
        %s244 = ssub.s32 1, %s20
        %s245 = smul.u32 %s244, %s21
        %s246 = ssub.s32 1, %s21
        %s247 = smul.u32 %s20, %s246
        %s248 = sadd.s32 %s245, %s247
        %p249 = scmp.lt.s32.totalorder %s20, 1
        %s250 = scalar_select %p249, %s20, 1
        %p251 = scmp.lt.s32.totalorder %s248, 1
        %s252 = scalar_select %p251, %s248, 1
        %s253 = smul.addr %s252, 8
        %s254 = smul.addr %s250, 16
        %s255 = sadd.s32 %s253, %s254
        %s256 = smul.addr %s255, 8
        %s257 = scalar_lea.vmem %s0, %s256
        %s258 = ssub.s32 1, %s20
        %s259 = smul.u32 %s258, %s21
        %s260 = ssub.s32 1, %s21
        %s261 = smul.u32 %s20, %s260
        %s262 = sadd.s32 %s259, %s261
        %s263 = ssub.s32 1, %s20
        %s264 = smul.u32 %s263, %s21
        %s265 = ssub.s32 1, %s21
        %s266 = smul.u32 %s20, %s265
        %s267 = sadd.s32 %s264, %s266
        %p268 = scmp.lt.s32.totalorder %s20, 1
        %s269 = scalar_select %p268, %s20, 1
        %p270 = scmp.lt.s32.totalorder %s267, 1
        %s271 = scalar_select %p270, %s267, 1
        %s272 = smul.addr %s271, 2
        %s273 = smul.addr %s269, 4
        %s274 = sadd.s32 %s272, %s273
        %s275 = smul.addr %s274, 4
        %s276 = scalar_lea.vmem %s2, %s275
        %s277 = ssub.s32 1, %s20
        %s278 = smul.u32 %s277, %s21
        %s279 = ssub.s32 1, %s21
        %s280 = smul.u32 %s20, %s279
        %s281 = sadd.s32 %s278, %s280
        %p283 = scmp.eq.s32.totalorder %s21, 0
        // Predicated region
        $region33: #{main_model_forward.6} parent=27 // pred_check
          %p284 = pneg %p283
        $region34: #{main_model_forward.6} parent=27 // pred_check_branch
          %286 = sbr.rel (%p284) target = $region36
        $region35: #{main_model_forward.6} parent=27 // pred_region
          %287 = vst [vmem:[#allocation2] sm:$0xff] 0.0
          %vm288 = vcmask 588800
          %289 = vst.msk [vmem:[#allocation2 + $0x8] sm:$0xff] %vm288, 0.0
          %290 = vst [vmem:[#allocation3] sm:$0xff] 0.0
          %291 = vst.msk [vmem:[#allocation3 + $0x8] sm:$0xff] %vm288, 0.0
        $region36: #{main_model_forward.6} parent=27 // pred_fallthru
          _
        %v292 = vld [vmem:[%s257] sm:$0xff]
        %v293 = vld [vmem:[%s257 + $0x8] sm:$0xff]
        %v294 = vld [vmem:[%s257 + $0x10] sm:$0xff]
        %v295 = vld [vmem:[%s257 + $0x18] sm:$0xff]
        %v296 = vld [vmem:[%s257 + $0x20] sm:$0xff]
        %v297 = vld [vmem:[%s257 + $0x28] sm:$0xff]
        %v298 = vld [vmem:[%s257 + $0x30] sm:$0xff]
        %v299 = vld [vmem:[%s257 + $0x38] sm:$0xff]
        %v300 = vld [vmem:[#allocation2] sm:$0xff]
        %v301 = vld [vmem:[#allocation2 + $0x8] sm:$0xff]
        %v302 = vpack.c.bf16 %v300, %v300
        %v303 = vpack.c.bf16 %v301, %v301
        %v304 = vld [vmem:[%s199] sm:$0xff]
        %v305 = vld [vmem:[%s199 + $0x8] sm:$0xff]
        %v306 = vld [vmem:[%s199 + $0x10] sm:$0xff]
        %v307 = vld [vmem:[%s199 + $0x18] sm:$0xff]
        %v308 = vld [vmem:[%s199 + $0x20] sm:$0xff]
        %v309 = vld [vmem:[%s199 + $0x28] sm:$0xff]
        %v310 = vld [vmem:[%s199 + $0x30] sm:$0xff]
        %v311 = vld [vmem:[%s199 + $0x38] sm:$0xff]
        %v312 = vld [vmem:[%s199 + $0x40] sm:$0xff]
        %v313 = vld [vmem:[%s199 + $0x48] sm:$0xff]
        %v314 = vld [vmem:[%s199 + $0x50] sm:$0xff]
        %v315 = vld [vmem:[%s199 + $0x58] sm:$0xff]
        %v316 = vld [vmem:[%s199 + $0x60] sm:$0xff]
        %v317 = vld [vmem:[%s199 + $0x68] sm:$0xff]
        %v318 = vld [vmem:[%s199 + $0x70] sm:$0xff]
        %v319 = vld [vmem:[%s199 + $0x78] sm:$0xff]
        %v320 = vld [vmem:[%s199 + $0x80] sm:$0xff]
        %v321 = vld [vmem:[%s199 + $0x88] sm:$0xff]
        %v322 = vld [vmem:[%s199 + $0x90] sm:$0xff]
        %v323 = vld [vmem:[%s199 + $0x98] sm:$0xff]
        %v324 = vld [vmem:[%s199 + $0xa0] sm:$0xff]
        %v325 = vld [vmem:[%s199 + $0xa8] sm:$0xff]
        %v326 = vld [vmem:[%s199 + $0xb0] sm:$0xff]
        %v327 = vld [vmem:[%s199 + $0xb8] sm:$0xff]
        %v328 = vld [vmem:[%s199 + $0xc0] sm:$0xff]
        %v329 = vld [vmem:[%s199 + $0xc8] sm:$0xff]
        %v330 = vld [vmem:[%s199 + $0xd0] sm:$0xff]
        %v331 = vld [vmem:[%s199 + $0xd8] sm:$0xff]
        %v332 = vld [vmem:[%s199 + $0xe0] sm:$0xff]
        %v333 = vld [vmem:[%s199 + $0xe8] sm:$0xff]
        %v334 = vld [vmem:[%s199 + $0xf0] sm:$0xff]
        %v335 = vld [vmem:[%s199 + $0xf8] sm:$0xff]
        %v336 = vld [vmem:[%s199 + $0x100] sm:$0xff]
        %v337 = vld [vmem:[%s199 + $0x108] sm:$0xff]
        %v338 = vld [vmem:[%s199 + $0x110] sm:$0xff]
        %v339 = vld [vmem:[%s199 + $0x118] sm:$0xff]
        %v340 = vld [vmem:[%s199 + $0x120] sm:$0xff]
        %v341 = vld [vmem:[%s199 + $0x128] sm:$0xff]
        %v342 = vld [vmem:[%s199 + $0x130] sm:$0xff]
        %v343 = vld [vmem:[%s199 + $0x138] sm:$0xff]
        %v344 = vld [vmem:[%s199 + $0x140] sm:$0xff]
        %v345 = vld [vmem:[%s199 + $0x148] sm:$0xff]
        %v346 = vld [vmem:[%s199 + $0x150] sm:$0xff]
        %v347 = vld [vmem:[%s199 + $0x158] sm:$0xff]
        %v348 = vld [vmem:[%s199 + $0x160] sm:$0xff]
        %v349 = vld [vmem:[%s199 + $0x168] sm:$0xff]
        %v350 = vld [vmem:[%s199 + $0x170] sm:$0xff]
        %v351 = vld [vmem:[%s199 + $0x178] sm:$0xff]
        %v352 = vld [vmem:[%s199 + $0x180] sm:$0xff]
        %v353 = vld [vmem:[%s199 + $0x188] sm:$0xff]
        %v354 = vld [vmem:[%s199 + $0x190] sm:$0xff]
        %v355 = vld [vmem:[%s199 + $0x198] sm:$0xff]
        %v356 = vld [vmem:[%s199 + $0x1a0] sm:$0xff]
        %v357 = vld [vmem:[%s199 + $0x1a8] sm:$0xff]
        %v358 = vld [vmem:[%s199 + $0x1b0] sm:$0xff]
        %v359 = vld [vmem:[%s199 + $0x1b8] sm:$0xff]
        %v360 = vld [vmem:[%s199 + $0x1c0] sm:$0xff]
        %v361 = vld [vmem:[%s199 + $0x1c8] sm:$0xff]
        %v362 = vld [vmem:[%s199 + $0x1d0] sm:$0xff]
        %v363 = vld [vmem:[%s199 + $0x1d8] sm:$0xff]
        %v364 = vld [vmem:[%s199 + $0x1e0] sm:$0xff]
        %v365 = vld [vmem:[%s199 + $0x1e8] sm:$0xff]
        %v366 = vld [vmem:[%s199 + $0x1f0] sm:$0xff]
        %v367 = vld [vmem:[%s199 + $0x1f8] sm:$0xff]
        %v368 = vld [vmem:[%s199 + $0x200] sm:$0xff]
        %v369 = vld [vmem:[%s199 + $0x208] sm:$0xff]
        %v370 = vld [vmem:[%s199 + $0x210] sm:$0xff]
        %v371 = vld [vmem:[%s199 + $0x218] sm:$0xff]
        %v372 = vld [vmem:[%s199 + $0x220] sm:$0xff]
        %v373 = vld [vmem:[%s199 + $0x228] sm:$0xff]
        %v374 = vld [vmem:[%s199 + $0x230] sm:$0xff]
        %v375 = vld [vmem:[%s199 + $0x238] sm:$0xff]
        %v376 = vld [vmem:[%s199 + $0x240] sm:$0xff]
        %v377 = vld [vmem:[%s199 + $0x248] sm:$0xff]
        %v378 = vld [vmem:[%s199 + $0x250] sm:$0xff]
        %v379 = vld [vmem:[%s199 + $0x258] sm:$0xff]
        %v380 = vld [vmem:[%s199 + $0x260] sm:$0xff]
        %v381 = vld [vmem:[%s199 + $0x268] sm:$0xff]
        %v382 = vld [vmem:[%s199 + $0x270] sm:$0xff]
        %v383 = vld [vmem:[%s199 + $0x278] sm:$0xff]
        %v384 = vld [vmem:[%s199 + $0x280] sm:$0xff]
        %v385 = vld [vmem:[%s199 + $0x288] sm:$0xff]
        %v386 = vld [vmem:[%s199 + $0x290] sm:$0xff]
        %v387 = vld [vmem:[%s199 + $0x298] sm:$0xff]
        %v388 = vld [vmem:[%s199 + $0x2a0] sm:$0xff]
        %v389 = vld [vmem:[%s199 + $0x2a8] sm:$0xff]
        %v390 = vld [vmem:[%s199 + $0x2b0] sm:$0xff]
        %v391 = vld [vmem:[%s199 + $0x2b8] sm:$0xff]
        %v392 = vld [vmem:[%s199 + $0x2c0] sm:$0xff]
        %v393 = vld [vmem:[%s199 + $0x2c8] sm:$0xff]
        %v394 = vld [vmem:[%s199 + $0x2d0] sm:$0xff]
        %v395 = vld [vmem:[%s199 + $0x2d8] sm:$0xff]
        %v396 = vld [vmem:[%s199 + $0x2e0] sm:$0xff]
        %v397 = vld [vmem:[%s199 + $0x2e8] sm:$0xff]
        %v398 = vld [vmem:[%s199 + $0x2f0] sm:$0xff]
        %v399 = vld [vmem:[%s199 + $0x2f8] sm:$0xff]
        %v400 = vld [vmem:[%s199 + $0x300] sm:$0xff]
        %v401 = vld [vmem:[%s199 + $0x308] sm:$0xff]
        %v402 = vld [vmem:[%s199 + $0x310] sm:$0xff]
        %v403 = vld [vmem:[%s199 + $0x318] sm:$0xff]
        %v504 = vunpack.c.l.b16 %v304
        %v505 = vunpack.c.h.b16 %v304
        %v506 = vunpack.c.l.b16 %v305
        %v507 = vunpack.c.h.b16 %v305
        %v508 = vunpack.c.l.b16 %v306
        %v509 = vunpack.c.h.b16 %v306
        %v510 = vunpack.c.l.b16 %v307
        %v511 = vunpack.c.h.b16 %v307
        %v512 = vunpack.c.l.b16 %v308
        %v513 = vunpack.c.h.b16 %v308
        %v514 = vunpack.c.l.b16 %v309
        %v515 = vunpack.c.h.b16 %v309
        %v516 = vunpack.c.l.b16 %v310
        %v517 = vunpack.c.h.b16 %v310
        %v518 = vunpack.c.l.b16 %v311
        %v519 = vunpack.c.h.b16 %v311
        %v520 = vunpack.c.l.b16 %v312
        %v521 = vunpack.c.h.b16 %v312
        %v522 = vunpack.c.l.b16 %v313
        %v523 = vunpack.c.h.b16 %v313
        %v524 = vunpack.c.l.b16 %v314
        %v525 = vunpack.c.h.b16 %v314
        %v526 = vunpack.c.l.b16 %v315
        %v527 = vunpack.c.h.b16 %v315
        %v528 = vunpack.c.l.b16 %v316
        %v529 = vunpack.c.h.b16 %v316
        %v530 = vunpack.c.l.b16 %v317
        %v531 = vunpack.c.h.b16 %v317
        %v532 = vunpack.c.l.b16 %v318
        %v533 = vunpack.c.h.b16 %v318
        %v534 = vunpack.c.l.b16 %v319
        %v535 = vunpack.c.h.b16 %v319
        %v536 = vunpack.c.l.b16 %v320
        %v537 = vunpack.c.h.b16 %v320
        %v538 = vunpack.c.l.b16 %v321
        %v539 = vunpack.c.h.b16 %v321
        %v540 = vunpack.c.l.b16 %v322
        %v541 = vunpack.c.h.b16 %v322
        %v542 = vunpack.c.l.b16 %v323
        %v543 = vunpack.c.h.b16 %v323
        %v544 = vunpack.c.l.b16 %v324
        %v545 = vunpack.c.h.b16 %v324
        %v546 = vunpack.c.l.b16 %v325
        %v547 = vunpack.c.h.b16 %v325
        %v548 = vunpack.c.l.b16 %v326
        %v549 = vunpack.c.h.b16 %v326
        %v550 = vunpack.c.l.b16 %v327
        %v551 = vunpack.c.h.b16 %v327
        %v552 = vunpack.c.l.b16 %v328
        %v553 = vunpack.c.h.b16 %v328
        %v554 = vunpack.c.l.b16 %v329
        %v555 = vunpack.c.h.b16 %v329
        %v556 = vunpack.c.l.b16 %v330
        %v557 = vunpack.c.h.b16 %v330
        %v558 = vunpack.c.l.b16 %v331
        %v559 = vunpack.c.h.b16 %v331
        %v560 = vunpack.c.l.b16 %v332
        %v561 = vunpack.c.h.b16 %v332
        %v562 = vunpack.c.l.b16 %v333
        %v563 = vunpack.c.h.b16 %v333
        %v564 = vunpack.c.l.b16 %v334
        %v565 = vunpack.c.h.b16 %v334
        %v566 = vunpack.c.l.b16 %v335
        %v567 = vunpack.c.h.b16 %v335
        %v568 = vunpack.c.l.b16 %v336
        %v569 = vunpack.c.h.b16 %v336
        %v570 = vunpack.c.l.b16 %v337
        %v571 = vunpack.c.h.b16 %v337
        %v572 = vunpack.c.l.b16 %v338
        %v573 = vunpack.c.h.b16 %v338
        %v574 = vunpack.c.l.b16 %v339
        %v575 = vunpack.c.h.b16 %v339
        %v576 = vunpack.c.l.b16 %v340
        %v577 = vunpack.c.h.b16 %v340
        %v578 = vunpack.c.l.b16 %v341
        %v579 = vunpack.c.h.b16 %v341
        %v580 = vunpack.c.l.b16 %v342
        %v581 = vunpack.c.h.b16 %v342
        %v582 = vunpack.c.l.b16 %v343
        %v583 = vunpack.c.h.b16 %v343
        %v584 = vunpack.c.l.b16 %v344
        %v585 = vunpack.c.h.b16 %v344
        %v586 = vunpack.c.l.b16 %v345
        %v587 = vunpack.c.h.b16 %v345
        %v588 = vunpack.c.l.b16 %v346
        %v589 = vunpack.c.h.b16 %v346
        %v590 = vunpack.c.l.b16 %v347
        %v591 = vunpack.c.h.b16 %v347
        %v592 = vunpack.c.l.b16 %v348
        %v593 = vunpack.c.h.b16 %v348
        %v594 = vunpack.c.l.b16 %v349
        %v595 = vunpack.c.h.b16 %v349
        %v596 = vunpack.c.l.b16 %v350
        %v597 = vunpack.c.h.b16 %v350
        %v598 = vunpack.c.l.b16 %v351
        %v599 = vunpack.c.h.b16 %v351
        %v600 = vunpack.c.l.b16 %v352
        %v601 = vunpack.c.h.b16 %v352
        %v602 = vunpack.c.l.b16 %v353
        %v603 = vunpack.c.h.b16 %v353
        %v604 = vunpack.c.l.b16 %v354
        %v605 = vunpack.c.h.b16 %v354
        %v606 = vunpack.c.l.b16 %v355
        %v607 = vunpack.c.h.b16 %v355
        %v608 = vunpack.c.l.b16 %v356
        %v609 = vunpack.c.h.b16 %v356
        %v610 = vunpack.c.l.b16 %v357
        %v611 = vunpack.c.h.b16 %v357
        %v612 = vunpack.c.l.b16 %v358
        %v613 = vunpack.c.h.b16 %v358
        %v614 = vunpack.c.l.b16 %v359
        %v615 = vunpack.c.h.b16 %v359
        %v616 = vunpack.c.l.b16 %v360
        %v617 = vunpack.c.h.b16 %v360
        %v618 = vunpack.c.l.b16 %v361
        %v619 = vunpack.c.h.b16 %v361
        %v620 = vunpack.c.l.b16 %v362
        %v621 = vunpack.c.h.b16 %v362
        %v622 = vunpack.c.l.b16 %v363
        %v623 = vunpack.c.h.b16 %v363
        %v624 = vunpack.c.l.b16 %v364
        %v625 = vunpack.c.h.b16 %v364
        %v626 = vunpack.c.l.b16 %v365
        %v627 = vunpack.c.h.b16 %v365
        %v628 = vunpack.c.l.b16 %v366
        %v629 = vunpack.c.h.b16 %v366
        %v630 = vunpack.c.l.b16 %v367
        %v631 = vunpack.c.h.b16 %v367
        %v632 = vunpack.c.l.b16 %v368
        %v633 = vunpack.c.h.b16 %v368
        %v634 = vunpack.c.l.b16 %v369
        %v635 = vunpack.c.h.b16 %v369
        %v636 = vunpack.c.l.b16 %v370
        %v637 = vunpack.c.h.b16 %v370
        %v638 = vunpack.c.l.b16 %v371
        %v639 = vunpack.c.h.b16 %v371
        %v640 = vunpack.c.l.b16 %v372
        %v641 = vunpack.c.h.b16 %v372
        %v642 = vunpack.c.l.b16 %v373
        %v643 = vunpack.c.h.b16 %v373
        %v644 = vunpack.c.l.b16 %v374
        %v645 = vunpack.c.h.b16 %v374
        %v646 = vunpack.c.l.b16 %v375
        %v647 = vunpack.c.h.b16 %v375
        %v648 = vunpack.c.l.b16 %v376
        %v649 = vunpack.c.h.b16 %v376
        %v650 = vunpack.c.l.b16 %v377
        %v651 = vunpack.c.h.b16 %v377
        %v652 = vunpack.c.l.b16 %v378
        %v653 = vunpack.c.h.b16 %v378
        %v654 = vunpack.c.l.b16 %v379
        %v655 = vunpack.c.h.b16 %v379
        %v656 = vunpack.c.l.b16 %v380
        %v657 = vunpack.c.h.b16 %v380
        %v658 = vunpack.c.l.b16 %v381
        %v659 = vunpack.c.h.b16 %v381
        %v660 = vunpack.c.l.b16 %v382
        %v661 = vunpack.c.h.b16 %v382
        %v662 = vunpack.c.l.b16 %v383
        %v663 = vunpack.c.h.b16 %v383
        %v664 = vunpack.c.l.b16 %v384
        %v665 = vunpack.c.h.b16 %v384
        %v666 = vunpack.c.l.b16 %v385
        %v667 = vunpack.c.h.b16 %v385
        %v668 = vunpack.c.l.b16 %v386
        %v669 = vunpack.c.h.b16 %v386
        %v670 = vunpack.c.l.b16 %v387
        %v671 = vunpack.c.h.b16 %v387
        %v672 = vunpack.c.l.b16 %v388
        %v673 = vunpack.c.h.b16 %v388
        %v674 = vunpack.c.l.b16 %v389
        %v675 = vunpack.c.h.b16 %v389
        %v676 = vunpack.c.l.b16 %v390
        %v677 = vunpack.c.h.b16 %v390
        %v678 = vunpack.c.l.b16 %v391
        %v679 = vunpack.c.h.b16 %v391
        %v680 = vunpack.c.l.b16 %v392
        %v681 = vunpack.c.h.b16 %v392
        %v682 = vunpack.c.l.b16 %v393
        %v683 = vunpack.c.h.b16 %v393
        %v684 = vunpack.c.l.b16 %v394
        %v685 = vunpack.c.h.b16 %v394
        %v686 = vunpack.c.l.b16 %v395
        %v687 = vunpack.c.h.b16 %v395
        %v688 = vunpack.c.l.b16 %v396
        %v689 = vunpack.c.h.b16 %v396
        %v690 = vunpack.c.l.b16 %v397
        %v691 = vunpack.c.h.b16 %v397
        %v692 = vunpack.c.l.b16 %v398
        %v693 = vunpack.c.h.b16 %v398
        %v694 = vunpack.c.l.b16 %v399
        %v695 = vunpack.c.h.b16 %v399
        %v696 = vunpack.c.l.b16 %v400
        %v697 = vunpack.c.h.b16 %v400
        %v698 = vunpack.c.l.b16 %v401
        %v699 = vunpack.c.h.b16 %v401
        %v700 = vunpack.c.l.b16 %v402
        %v701 = vunpack.c.h.b16 %v402
        %v702 = vunpack.c.l.b16 %v403
        %v703 = vunpack.c.h.b16 %v403
        %v704 = vpack.c.b16 %v512, %v504
        %v705 = vpack.c.b16 %v513, %v505
        %v706 = vpack.c.b16 %v514, %v506
        %v707 = vpack.c.b16 %v515, %v507
        %v708 = vpack.c.b16 %v516, %v508
        %v709 = vpack.c.b16 %v517, %v509
        %v710 = vpack.c.b16 %v518, %v510
        %v711 = vpack.c.b16 %v519, %v511
        %v712 = vpack.c.b16 %v528, %v520
        %v713 = vpack.c.b16 %v529, %v521
        %v714 = vpack.c.b16 %v530, %v522
        %v715 = vpack.c.b16 %v531, %v523
        %v716 = vpack.c.b16 %v532, %v524
        %v717 = vpack.c.b16 %v533, %v525
        %v718 = vpack.c.b16 %v534, %v526
        %v719 = vpack.c.b16 %v535, %v527
        %v720 = vpack.c.b16 %v544, %v536
        %v721 = vpack.c.b16 %v545, %v537
        %v722 = vpack.c.b16 %v546, %v538
        %v723 = vpack.c.b16 %v547, %v539
        %v724 = vpack.c.b16 %v548, %v540
        %v725 = vpack.c.b16 %v549, %v541
        %v726 = vpack.c.b16 %v550, %v542
        %v727 = vpack.c.b16 %v551, %v543
        %v728 = vpack.c.b16 %v560, %v552
        %v729 = vpack.c.b16 %v561, %v553
        %v730 = vpack.c.b16 %v562, %v554
        %v731 = vpack.c.b16 %v563, %v555
        %v732 = vpack.c.b16 %v564, %v556
        %v733 = vpack.c.b16 %v565, %v557
        %v734 = vpack.c.b16 %v566, %v558
        %v735 = vpack.c.b16 %v567, %v559
        %v736 = vpack.c.b16 %v576, %v568
        %v737 = vpack.c.b16 %v577, %v569
        %v738 = vpack.c.b16 %v578, %v570
        %v739 = vpack.c.b16 %v579, %v571
        %v740 = vpack.c.b16 %v580, %v572
        %v741 = vpack.c.b16 %v581, %v573
        %v742 = vpack.c.b16 %v582, %v574
        %v743 = vpack.c.b16 %v583, %v575
        %v744 = vpack.c.b16 %v592, %v584
        %v745 = vpack.c.b16 %v593, %v585
        %v746 = vpack.c.b16 %v594, %v586
        %v747 = vpack.c.b16 %v595, %v587
        %v748 = vpack.c.b16 %v596, %v588
        %v749 = vpack.c.b16 %v597, %v589
        %v750 = vpack.c.b16 %v598, %v590
        %v751 = vpack.c.b16 %v599, %v591
        %v752 = vpack.c.b16 %v608, %v600
        %v753 = vpack.c.b16 %v609, %v601
        %v754 = vpack.c.b16 %v610, %v602
        %v755 = vpack.c.b16 %v611, %v603
        %v756 = vpack.c.b16 %v612, %v604
        %v757 = vpack.c.b16 %v613, %v605
        %v758 = vpack.c.b16 %v614, %v606
        %v759 = vpack.c.b16 %v615, %v607
        %v760 = vpack.c.b16 %v624, %v616
        %v761 = vpack.c.b16 %v625, %v617
        %v762 = vpack.c.b16 %v626, %v618
        %v763 = vpack.c.b16 %v627, %v619
        %v764 = vpack.c.b16 %v628, %v620
        %v765 = vpack.c.b16 %v629, %v621
        %v766 = vpack.c.b16 %v630, %v622
        %v767 = vpack.c.b16 %v631, %v623
        %v768 = vpack.c.b16 %v640, %v632
        %v769 = vpack.c.b16 %v641, %v633
        %v770 = vpack.c.b16 %v642, %v634
        %v771 = vpack.c.b16 %v643, %v635
        %v772 = vpack.c.b16 %v644, %v636
        %v773 = vpack.c.b16 %v645, %v637
        %v774 = vpack.c.b16 %v646, %v638
        %v775 = vpack.c.b16 %v647, %v639
        %v776 = vpack.c.b16 %v656, %v648
        %v777 = vpack.c.b16 %v657, %v649
        %v778 = vpack.c.b16 %v658, %v650
        %v779 = vpack.c.b16 %v659, %v651
        %v780 = vpack.c.b16 %v660, %v652
        %v781 = vpack.c.b16 %v661, %v653
        %v782 = vpack.c.b16 %v662, %v654
        %v783 = vpack.c.b16 %v663, %v655
        %v784 = vpack.c.b16 %v672, %v664
        %v785 = vpack.c.b16 %v673, %v665
        %v786 = vpack.c.b16 %v674, %v666
        %v787 = vpack.c.b16 %v675, %v667
        %v788 = vpack.c.b16 %v676, %v668
        %v789 = vpack.c.b16 %v677, %v669
        %v790 = vpack.c.b16 %v678, %v670
        %v791 = vpack.c.b16 %v679, %v671
        %v792 = vpack.c.b16 %v688, %v680
        %v793 = vpack.c.b16 %v689, %v681
        %v794 = vpack.c.b16 %v690, %v682
        %v795 = vpack.c.b16 %v691, %v683
        %v796 = vpack.c.b16 %v692, %v684
        %v797 = vpack.c.b16 %v693, %v685
        %v798 = vpack.c.b16 %v694, %v686
        %v799 = vpack.c.b16 %v695, %v687
        %v800 = vpack.c.b16 %v696, %v696
        %v801 = vpack.c.b16 %v697, %v697
        %v802 = vpack.c.b16 %v698, %v698
        %v803 = vpack.c.b16 %v699, %v699
        %v804 = vpack.c.b16 %v700, %v700
        %v805 = vpack.c.b16 %v701, %v701
        %v806 = vpack.c.b16 %v702, %v702
        %v807 = vpack.c.b16 %v703, %v703
        %vm904 = vcmask 588800
        %v906 = vsel %vm904, %v303, 0
        %vm908 = vcmask 1043456
        %v910 = vsel %vm908, %v800, 0
        %v913 = vsel %vm908, %v801, 0
        %v916 = vsel %vm908, %v802, 0
        %v919 = vsel %vm908, %v803, 0
        %v922 = vsel %vm908, %v804, 0
        %v925 = vsel %vm908, %v805, 0
        %v928 = vsel %vm908, %v806, 0
        %v931 = vsel %vm908, %v807, 0
        %933 = vmatpush.bf16.msra.mxu0 %v760
        %934 = vmatpush.bf16.msra.mxu0 %v752
        %935 = vmatpush.bf16.msra.mxu0 %v744
        %936 = vmatpush.bf16.msra.mxu0 %v736
        %937 = vmatpush.bf16.msra.mxu0 %v728
        %938 = vmatpush.bf16.msra.mxu0 %v720
        %939 = vmatpush.bf16.msra.mxu0 %v712
        %940 = vmatpush.bf16.msra.mxu0 %v704
        %941 = vmatmul.bf16.gmra.mxu0 %v302
        %v942 = vpop.f32.mrf.mxu0
        %v943 = vadd.f32 0.0, %v942
        %v944 = vpop.f32.mrf.mxu0
        %945 = vdwg.mxu0
        %946 = vmatpush.bf16.msra.mxu0 0
        %947 = vmatpush.bf16.msra.mxu0 0
        %948 = vmatpush.bf16.msra.mxu0 0
        %949 = vmatpush.bf16.msra.mxu0 %v910
        %950 = vmatpush.bf16.msra.mxu0 %v792
        %951 = vmatpush.bf16.msra.mxu0 %v784
        %952 = vmatpush.bf16.msra.mxu0 %v776
        %953 = vmatpush.bf16.msra.mxu0 %v768
        %954 = vmatmul.bf16.gmra.mxu0 %v906
        %v955 = vpop.f32.mrf.mxu0
        %v956 = vadd.f32 %v943, %v955
        %v957 = vpop.f32.mrf.mxu0
        %958 = vdwg.mxu0
        %959 = vmatpush.bf16.msra.mxu0 %v761
        %960 = vmatpush.bf16.msra.mxu0 %v753
        %961 = vmatpush.bf16.msra.mxu0 %v745
        %962 = vmatpush.bf16.msra.mxu0 %v737
        %963 = vmatpush.bf16.msra.mxu0 %v729
        %964 = vmatpush.bf16.msra.mxu0 %v721
        %965 = vmatpush.bf16.msra.mxu0 %v713
        %966 = vmatpush.bf16.msra.mxu0 %v705
        %967 = vmatmul.bf16.gmra.mxu0 %v302
        %v968 = vpop.f32.mrf.mxu0
        %v969 = vadd.f32 0.0, %v968
        %v970 = vpop.f32.mrf.mxu0
        %971 = vdwg.mxu0
        %972 = vmatpush.bf16.msra.mxu0 0
        %973 = vmatpush.bf16.msra.mxu0 0
        %974 = vmatpush.bf16.msra.mxu0 0
        %975 = vmatpush.bf16.msra.mxu0 %v913
        %976 = vmatpush.bf16.msra.mxu0 %v793
        %977 = vmatpush.bf16.msra.mxu0 %v785
        %978 = vmatpush.bf16.msra.mxu0 %v777
        %979 = vmatpush.bf16.msra.mxu0 %v769
        %980 = vmatmul.bf16.gmra.mxu0 %v906
        %v981 = vpop.f32.mrf.mxu0
        %v982 = vadd.f32 %v969, %v981
        %v983 = vpop.f32.mrf.mxu0
        %984 = vdwg.mxu0
        %985 = vmatpush.bf16.msra.mxu0 %v762
        %986 = vmatpush.bf16.msra.mxu0 %v754
        %987 = vmatpush.bf16.msra.mxu0 %v746
        %988 = vmatpush.bf16.msra.mxu0 %v738
        %989 = vmatpush.bf16.msra.mxu0 %v730
        %990 = vmatpush.bf16.msra.mxu0 %v722
        %991 = vmatpush.bf16.msra.mxu0 %v714
        %992 = vmatpush.bf16.msra.mxu0 %v706
        %993 = vmatmul.bf16.gmra.mxu0 %v302
        %v994 = vpop.f32.mrf.mxu0
        %v995 = vadd.f32 0.0, %v994
        %v996 = vpop.f32.mrf.mxu0
        %997 = vdwg.mxu0
        %998 = vmatpush.bf16.msra.mxu0 0
        %999 = vmatpush.bf16.msra.mxu0 0
        %1000 = vmatpush.bf16.msra.mxu0 0
        %1001 = vmatpush.bf16.msra.mxu0 %v916
        %1002 = vmatpush.bf16.msra.mxu0 %v794
        %1003 = vmatpush.bf16.msra.mxu0 %v786
        %1004 = vmatpush.bf16.msra.mxu0 %v778
        %1005 = vmatpush.bf16.msra.mxu0 %v770
        %1006 = vmatmul.bf16.gmra.mxu0 %v906
        %v1007 = vpop.f32.mrf.mxu0
        %v1008 = vadd.f32 %v995, %v1007
        %v1009 = vpop.f32.mrf.mxu0
        %1010 = vdwg.mxu0
        %1011 = vmatpush.bf16.msra.mxu0 %v763
        %1012 = vmatpush.bf16.msra.mxu0 %v755
        %1013 = vmatpush.bf16.msra.mxu0 %v747
        %1014 = vmatpush.bf16.msra.mxu0 %v739
        %1015 = vmatpush.bf16.msra.mxu0 %v731
        %1016 = vmatpush.bf16.msra.mxu0 %v723
        %1017 = vmatpush.bf16.msra.mxu0 %v715
        %1018 = vmatpush.bf16.msra.mxu0 %v707
        %1019 = vmatmul.bf16.gmra.mxu0 %v302
        %v1020 = vpop.f32.mrf.mxu0
        %v1021 = vadd.f32 0.0, %v1020
        %v1022 = vpop.f32.mrf.mxu0
        %1023 = vdwg.mxu0
        %1024 = vmatpush.bf16.msra.mxu0 0
        %1025 = vmatpush.bf16.msra.mxu0 0
        %1026 = vmatpush.bf16.msra.mxu0 0
        %1027 = vmatpush.bf16.msra.mxu0 %v919
        %1028 = vmatpush.bf16.msra.mxu0 %v795
        %1029 = vmatpush.bf16.msra.mxu0 %v787
        %1030 = vmatpush.bf16.msra.mxu0 %v779
        %1031 = vmatpush.bf16.msra.mxu0 %v771
        %1032 = vmatmul.bf16.gmra.mxu0 %v906
        %v1033 = vpop.f32.mrf.mxu0
        %v1034 = vadd.f32 %v1021, %v1033
        %v1035 = vpop.f32.mrf.mxu0
        %1036 = vdwg.mxu0
        %1037 = vmatpush.bf16.msra.mxu0 %v764
        %1038 = vmatpush.bf16.msra.mxu0 %v756
        %1039 = vmatpush.bf16.msra.mxu0 %v748
        %1040 = vmatpush.bf16.msra.mxu0 %v740
        %1041 = vmatpush.bf16.msra.mxu0 %v732
        %1042 = vmatpush.bf16.msra.mxu0 %v724
        %1043 = vmatpush.bf16.msra.mxu0 %v716
        %1044 = vmatpush.bf16.msra.mxu0 %v708
        %1045 = vmatmul.bf16.gmra.mxu0 %v302
        %v1046 = vpop.f32.mrf.mxu0
        %v1047 = vadd.f32 0.0, %v1046
        %v1048 = vpop.f32.mrf.mxu0
        %1049 = vdwg.mxu0
        %1050 = vmatpush.bf16.msra.mxu0 0
        %1051 = vmatpush.bf16.msra.mxu0 0
        %1052 = vmatpush.bf16.msra.mxu0 0
        %1053 = vmatpush.bf16.msra.mxu0 %v922
        %1054 = vmatpush.bf16.msra.mxu0 %v796
        %1055 = vmatpush.bf16.msra.mxu0 %v788
        %1056 = vmatpush.bf16.msra.mxu0 %v780
        %1057 = vmatpush.bf16.msra.mxu0 %v772
        %1058 = vmatmul.bf16.gmra.mxu0 %v906
        %v1059 = vpop.f32.mrf.mxu0
        %v1060 = vadd.f32 %v1047, %v1059
        %v1061 = vpop.f32.mrf.mxu0
        %1062 = vdwg.mxu0
        %1063 = vmatpush.bf16.msra.mxu0 %v765
        %1064 = vmatpush.bf16.msra.mxu0 %v757
        %1065 = vmatpush.bf16.msra.mxu0 %v749
        %1066 = vmatpush.bf16.msra.mxu0 %v741
        %1067 = vmatpush.bf16.msra.mxu0 %v733
        %1068 = vmatpush.bf16.msra.mxu0 %v725
        %1069 = vmatpush.bf16.msra.mxu0 %v717
        %1070 = vmatpush.bf16.msra.mxu0 %v709
        %1071 = vmatmul.bf16.gmra.mxu0 %v302
        %v1072 = vpop.f32.mrf.mxu0
        %v1073 = vadd.f32 0.0, %v1072
        %v1074 = vpop.f32.mrf.mxu0
        %1075 = vdwg.mxu0
        %1076 = vmatpush.bf16.msra.mxu0 0
        %1077 = vmatpush.bf16.msra.mxu0 0
        %1078 = vmatpush.bf16.msra.mxu0 0
        %1079 = vmatpush.bf16.msra.mxu0 %v925
        %1080 = vmatpush.bf16.msra.mxu0 %v797
        %1081 = vmatpush.bf16.msra.mxu0 %v789
        %1082 = vmatpush.bf16.msra.mxu0 %v781
        %1083 = vmatpush.bf16.msra.mxu0 %v773
        %1084 = vmatmul.bf16.gmra.mxu0 %v906
        %v1085 = vpop.f32.mrf.mxu0
        %v1086 = vadd.f32 %v1073, %v1085
        %v1087 = vpop.f32.mrf.mxu0
        %1088 = vdwg.mxu0
        %1089 = vmatpush.bf16.msra.mxu0 %v766
        %1090 = vmatpush.bf16.msra.mxu0 %v758
        %1091 = vmatpush.bf16.msra.mxu0 %v750
        %1092 = vmatpush.bf16.msra.mxu0 %v742
        %1093 = vmatpush.bf16.msra.mxu0 %v734
        %1094 = vmatpush.bf16.msra.mxu0 %v726
        %1095 = vmatpush.bf16.msra.mxu0 %v718
        %1096 = vmatpush.bf16.msra.mxu0 %v710
        %1097 = vmatmul.bf16.gmra.mxu0 %v302
        %v1098 = vpop.f32.mrf.mxu0
        %v1099 = vadd.f32 0.0, %v1098
        %v1100 = vpop.f32.mrf.mxu0
        %1101 = vdwg.mxu0
        %1102 = vmatpush.bf16.msra.mxu0 0
        %1103 = vmatpush.bf16.msra.mxu0 0
        %1104 = vmatpush.bf16.msra.mxu0 0
        %1105 = vmatpush.bf16.msra.mxu0 %v928
        %1106 = vmatpush.bf16.msra.mxu0 %v798
        %1107 = vmatpush.bf16.msra.mxu0 %v790
        %1108 = vmatpush.bf16.msra.mxu0 %v782
        %1109 = vmatpush.bf16.msra.mxu0 %v774
        %1110 = vmatmul.bf16.gmra.mxu0 %v906
        %v1111 = vpop.f32.mrf.mxu0
        %v1112 = vadd.f32 %v1099, %v1111
        %v1113 = vpop.f32.mrf.mxu0
        %1114 = vdwg.mxu0
        %1115 = vmatpush.bf16.msra.mxu0 %v767
        %1116 = vmatpush.bf16.msra.mxu0 %v759
        %1117 = vmatpush.bf16.msra.mxu0 %v751
        %1118 = vmatpush.bf16.msra.mxu0 %v743
        %1119 = vmatpush.bf16.msra.mxu0 %v735
        %1120 = vmatpush.bf16.msra.mxu0 %v727
        %1121 = vmatpush.bf16.msra.mxu0 %v719
        %1122 = vmatpush.bf16.msra.mxu0 %v711
        %1123 = vmatmul.bf16.gmra.mxu0 %v302
        %v1124 = vpop.f32.mrf.mxu0
        %v1125 = vadd.f32 0.0, %v1124
        %v1126 = vpop.f32.mrf.mxu0
        %1127 = vdwg.mxu0
        %1128 = vmatpush.bf16.msra.mxu0 0
        %1129 = vmatpush.bf16.msra.mxu0 0
        %1130 = vmatpush.bf16.msra.mxu0 0
        %1131 = vmatpush.bf16.msra.mxu0 %v931
        %1132 = vmatpush.bf16.msra.mxu0 %v799
        %1133 = vmatpush.bf16.msra.mxu0 %v791
        %1134 = vmatpush.bf16.msra.mxu0 %v783
        %1135 = vmatpush.bf16.msra.mxu0 %v775
        %1136 = vmatmul.bf16.gmra.mxu0 %v906
        %v1137 = vpop.f32.mrf.mxu0
        %v1138 = vadd.f32 %v1125, %v1137
        %v1139 = vpop.f32.mrf.mxu0
        %1140 = vdwg.mxu0
        %v1141 = vadd.f32 %v292, %v956
        %v1142 = vadd.f32 %v293, %v982
        %v1143 = vadd.f32 %v294, %v1008
        %v1144 = vadd.f32 %v295, %v1034
        %v1145 = vadd.f32 %v296, %v1060
        %v1146 = vadd.f32 %v297, %v1086
        %v1147 = vadd.f32 %v298, %v1112
        %v1148 = vadd.f32 %v299, %v1138
        %v1149 = vxor.u32 %v1141, 2147483648
        %v1150 = vxor.u32 %v1142, 2147483648
        %v1151 = vmul.f32 %v1149, 1.442695
        %v1152 = vpow.pop %v1151
        %v1153 = vmul.f32 %v1150, 1.442695
        %v1154 = vpow.pop %v1153
        %v1155 = vadd.f32 %v1152, 1.0
        %v1156 = vadd.f32 %v1154, 1.0
        %v1157 = vrcp.pop %v1155
        %v1158 = vmul.f32 %v1155, %v1157
        %v1159 = vsub.f32 1.0, %v1158
        %v1160 = vmul.f32 %v1157, %v1159
        %v1161 = vadd.f32 %v1157, %v1160
        %vm1162 = vweird.f32 %v1155
        %vm1163 = vweird.f32 %v1157
        %vm1164 = vmor %vm1162, %vm1163
        %v1165 = vsel %vm1164, %v1157, %v1161
        %v1166 = vand.u32 2147483647, %v1155
        %vm1167 = vcmp.eq.f32.partialorder %v1166, 8.507059e+37
        %v1168 = vand.u32 %v1155, 2147483648
        %v1169 = vor.u32 1.1754944e-38, %v1168
        %v1170 = vsel %vm1167, %v1169, %v1165
        %v1171 = vmul.f32 1.0, %v1170
        %v1172 = vrcp.pop %v1156
        %v1173 = vmul.f32 %v1156, %v1172
        %v1174 = vsub.f32 1.0, %v1173
        %v1175 = vmul.f32 %v1172, %v1174
        %v1176 = vadd.f32 %v1172, %v1175
        %vm1177 = vweird.f32 %v1156
        %vm1178 = vweird.f32 %v1172
        %vm1179 = vmor %vm1177, %vm1178
        %v1180 = vsel %vm1179, %v1172, %v1176
        %v1181 = vand.u32 2147483647, %v1156
        %vm1182 = vcmp.eq.f32.partialorder %v1181, 8.507059e+37
        %v1183 = vand.u32 %v1156, 2147483648
        %v1184 = vor.u32 1.1754944e-38, %v1183
        %v1185 = vsel %vm1182, %v1184, %v1180
        %v1186 = vmul.f32 1.0, %v1185
        %v1187 = vxor.u32 %v1143, 2147483648
        %v1188 = vxor.u32 %v1144, 2147483648
        %v1189 = vmul.f32 %v1187, 1.442695
        %v1190 = vpow.pop %v1189
        %v1191 = vmul.f32 %v1188, 1.442695
        %v1192 = vpow.pop %v1191
        %v1193 = vadd.f32 %v1190, 1.0
        %v1194 = vadd.f32 %v1192, 1.0
        %v1195 = vrcp.pop %v1193
        %v1196 = vmul.f32 %v1193, %v1195
        %v1197 = vsub.f32 1.0, %v1196
        %v1198 = vmul.f32 %v1195, %v1197
        %v1199 = vadd.f32 %v1195, %v1198
        %vm1200 = vweird.f32 %v1193
        %vm1201 = vweird.f32 %v1195
        %vm1202 = vmor %vm1200, %vm1201
        %v1203 = vsel %vm1202, %v1195, %v1199
        %v1204 = vand.u32 2147483647, %v1193
        %vm1205 = vcmp.eq.f32.partialorder %v1204, 8.507059e+37
        %v1206 = vand.u32 %v1193, 2147483648
        %v1207 = vor.u32 1.1754944e-38, %v1206
        %v1208 = vsel %vm1205, %v1207, %v1203
        %v1209 = vmul.f32 1.0, %v1208
        %v1210 = vrcp.pop %v1194
        %v1211 = vmul.f32 %v1194, %v1210
        %v1212 = vsub.f32 1.0, %v1211
        %v1213 = vmul.f32 %v1210, %v1212
        %v1214 = vadd.f32 %v1210, %v1213
        %vm1215 = vweird.f32 %v1194
        %vm1216 = vweird.f32 %v1210
        %vm1217 = vmor %vm1215, %vm1216
        %v1218 = vsel %vm1217, %v1210, %v1214
        %v1219 = vand.u32 2147483647, %v1194
        %vm1220 = vcmp.eq.f32.partialorder %v1219, 8.507059e+37
        %v1221 = vand.u32 %v1194, 2147483648
        %v1222 = vor.u32 1.1754944e-38, %v1221
        %v1223 = vsel %vm1220, %v1222, %v1218
        %v1224 = vmul.f32 1.0, %v1223
        %v1225 = vtanh.pop %v1145
        %v1226 = vtanh.pop %v1146
        %v1227 = vxor.u32 %v1147, 2147483648
        %v1228 = vxor.u32 %v1148, 2147483648
        %v1229 = vmul.f32 %v1227, 1.442695
        %v1230 = vpow.pop %v1229
        %v1231 = vmul.f32 %v1228, 1.442695
        %v1232 = vpow.pop %v1231
        %v1233 = vadd.f32 %v1230, 1.0
        %v1234 = vadd.f32 %v1232, 1.0
        %v1235 = vrcp.pop %v1233
        %v1236 = vmul.f32 %v1233, %v1235
        %v1237 = vsub.f32 1.0, %v1236
        %v1238 = vmul.f32 %v1235, %v1237
        %v1239 = vadd.f32 %v1235, %v1238
        %vm1240 = vweird.f32 %v1233
        %vm1241 = vweird.f32 %v1235
        %vm1242 = vmor %vm1240, %vm1241
        %v1243 = vsel %vm1242, %v1235, %v1239
        %v1244 = vand.u32 2147483647, %v1233
        %vm1245 = vcmp.eq.f32.partialorder %v1244, 8.507059e+37
        %v1246 = vand.u32 %v1233, 2147483648
        %v1247 = vor.u32 1.1754944e-38, %v1246
        %v1248 = vsel %vm1245, %v1247, %v1243
        %v1249 = vmul.f32 1.0, %v1248
        %v1250 = vrcp.pop %v1234
        %v1251 = vmul.f32 %v1234, %v1250
        %v1252 = vsub.f32 1.0, %v1251
        %v1253 = vmul.f32 %v1250, %v1252
        %v1254 = vadd.f32 %v1250, %v1253
        %vm1255 = vweird.f32 %v1234
        %vm1256 = vweird.f32 %v1250
        %vm1257 = vmor %vm1255, %vm1256
        %v1258 = vsel %vm1257, %v1250, %v1254
        %v1259 = vand.u32 2147483647, %v1234
        %vm1260 = vcmp.eq.f32.partialorder %v1259, 8.507059e+37
        %v1261 = vand.u32 %v1234, 2147483648
        %v1262 = vor.u32 1.1754944e-38, %v1261
        %v1263 = vsel %vm1260, %v1262, %v1258
        %v1264 = vmul.f32 1.0, %v1263
        %v1265 = vld [vmem:[#allocation3] sm:$0xff]
        %v1266 = vld [vmem:[#allocation3 + $0x8] sm:$0xff]
        %v1267 = vmul.f32 %v1209, %v1265
        %v1268 = vmul.f32 %v1224, %v1266
        %v1269 = vmul.f32 %v1171, %v1225
        %v1270 = vmul.f32 %v1186, %v1226
        %v1271 = vadd.f32 %v1267, %v1269
        %v1272 = vadd.f32 %v1268, %v1270
        %v1273 = vtanh.pop %v1271
        %v1274 = vtanh.pop %v1272
        %v1275 = vmul.f32 %v1249, %v1273
        %v1276 = vmul.f32 %v1264, %v1274
        %1277 = vst [vmem:[#allocation3] sm:$0xff] %v1271
        %1278 = vst.msk [vmem:[#allocation3 + $0x8] sm:$0xff] %vm904, %v1272
        %1279 = vst [vmem:[#allocation2] sm:$0xff] %v1275
        %1280 = vst.msk [vmem:[#allocation2 + $0x8] sm:$0xff] %vm904, %v1276
        %v1281 = vpack.c.bf16 %v1276, %v1275
        %vm1282 = vcmask 588804
        %vm1283 = vmor %vm1282, %vm908
        %1284 = vst.msk [vmem:[%s276] sm:$0xff] %vm1283, %v1281
        %s1285 = ssub.s32 1, %s20
        %s1286 = smul.u32 %s1285, %s21
        %s1287 = ssub.s32 1, %s21
        %s1288 = smul.u32 %s20, %s1287
        %s1289 = sadd.s32 %s1286, %s1288
        %p1290 = scmp.lt.s32.totalorder %s20, 1
        %s1291 = scalar_select %p1290, %s20, 1
        %p1292 = scmp.lt.s32.totalorder %s1289, 1
        %s1293 = scalar_select %p1292, %s1289, 1
        %s1294 = smul.addr %s1293, 2
        %s1295 = smul.addr %s1291, 4
        %s1296 = sadd.s32 %s1294, %s1295
        %s1297 = smul.addr %s1296, 4
        %s1298 = scalar_lea.vmem %s2, %s1297
        // Predicated region
        $region37: #{main_model_forward.6} parent=27 // pred_check
          %p1299 = pneg %p122
        $region38: #{main_model_forward.6} parent=27 // pred_check_branch
          %1301 = sbr.rel (%p1299) target = $region40
        $region39: #{main_model_forward.6} parent=27 // pred_region
          %s1302 = ssub.s32 1, %s20
          %s1303 = smul.u32 %s1302, %s21
          %s1304 = ssub.s32 1, %s21
          %s1305 = smul.u32 %s20, %s1304
          %s1306 = sadd.s32 %s1303, %s1305
        $region40: #{main_model_forward.6} parent=27 // pred_fallthru
          _
      $region28: #{main_model_forward.6} parent=5 // pred_fallthru
        _
      %p1307 = scmp.le.s32.totalorder 2, %s11
      // Predicated region
      $region41: #{main_model_forward.6} parent=5 // pred_check
        %p1308 = pneg %p1307
      $region42: #{main_model_forward.6} parent=5 // pred_check_branch
        %1310 = sbr.rel (%p1308) target = $region44
      $region43: #{main_model_forward.6} parent=5 // pred_region
        %s1311 = ssub.s32 %s11, 2
        // Predicated region
        $region45: #{main_model_forward.6} parent=43 // pred_check
          %p1312 = pneg %p128
        $region46: #{main_model_forward.6} parent=43 // pred_check_branch
          %1314 = sbr.rel (%p1312) target = $region48
        $region47: #{main_model_forward.6} parent=43 // pred_region
          %s1315 = ssub.s32 1, %s22
          %s1316 = smul.u32 %s1315, %s23
          %s1317 = ssub.s32 1, %s23
          %s1318 = smul.u32 %s22, %s1317
          %s1319 = sadd.s32 %s1316, %s1318
          %p1320 = scmp.lt.s32.totalorder %s22, 1
          %s1321 = scalar_select %p1320, %s22, 1
          %p1322 = scmp.lt.s32.totalorder %s1319, 1
          %s1323 = scalar_select %p1322, %s1319, 1
          %s1324 = smul.addr %s1323, 2
          %s1325 = smul.addr %s1321, 4
          %s1326 = sadd.s32 %s1324, %s1325
          %s1327 = smul.addr %s1326, 4
          %s1328 = scalar_lea.vmem %s2, %s1327
        $region48: #{main_model_forward.6} parent=43 // pred_fallthru
          _
      $region44: #{main_model_forward.6} parent=5 // pred_fallthru
        _
    $region6: #{main_model_forward.6} parent=1 // loop_footer
      %s15 = sadd.s32 1, %s11
    $region7: #{main_model_forward.6} parent=1 // loop_footer_branch
      %10 = sbr.rel target = $region3
    $region8: #{main_model_forward.6} parent=1 // loop_exit
      _
    %1329 = vsyncpa [#allocation5], 1
    %s1330 = scalar_lea.sflag [#allocation5], 1
    %1331 = vsyncpa %s1330, 1

// kernel: main_model_forward.7
$region0: #{main_model_forward.7}
  #allocation0 [shape = 'u32[]', space=smem, size = 0x4, offset = 0x4, fixed_abs, tag = 'smem constant byte address 0x4 - core index']
  #allocation1 [shape = 'u32[72,128]{1,0:T(1,128)}', space=vmem, size = 0x9000, scoped, tag = 'internal scratch']
  %s0 = inlined_call_operand.vmem [shape: bf16[2,16,200], index: 0, kind: input, shape index: {}]
  %s1 = inlined_call_operand.hbm [shape: bf16[2,200,400], index: 1, kind: input, shape index: {}]
  %s2 = inlined_call_operand.hbm [shape: f32[1,400], index: 2, kind: input, shape index: {}]
  %s3 = inlined_call_operand.hbm [shape: bf16[400,400], index: 3, kind: input, shape index: {}]
  %s4 = inlined_call_operand.hbm [shape: f32[1,400], index: 4, kind: input, shape index: {}]
  %s5 = inlined_call_operand.hbm [shape: bf16[400,400], index: 5, kind: input, shape index: {}]
  %s6 = inlined_call_operand.hbm [shape: f32[1,400], index: 6, kind: input, shape index: {}]
  %s7 = inlined_call_operand.vmem [shape: bf16[400,64], index: 7, kind: input, shape index: {}]
  %s8 = inlined_call_operand.hbm [shape: f32[1,64], index: 8, kind: input, shape index: {}]
  %s9 = inlined_call_operand.hbm [shape: bf16[64,128], index: 9, kind: input, shape index: {}]
  %s10 = inlined_call_operand.hbm [shape: f32[1,128], index: 10, kind: input, shape index: {}]
  %s11 = inlined_call_operand.vmem [shape: f32[16,128], index: 11, kind: output, shape index: {}]
  %s12 = sld [smem:[#allocation0]]
  $region90: #{main_model_forward.7} parent=0
    _
  %s14 = ssub.s32 1, %s12
  %s15 = scalar_select 0, %s14, %s12
  $region1: #{main_model_forward.7} parent=0
    #allocation2 [shape = 'u8[409600]{0}', space=vmem, size = 0x64000, scoped, tag = 'input window, operand 1, single buffered']
    #allocation3 [shape = 's32[1]{0}', space=sflag, size = 0x4, scoped, tag = 'scoped memory for main_model_forward.7']
    #allocation4 [shape = 'u8[2048]{0}', space=vmem, size = 0x800, scoped, tag = 'input window, operand 2, single buffered']
    #allocation5 [shape = 's32[1]{0}', space=sflag, size = 0x4, scoped, tag = 'scoped memory for main_model_forward.7']
    #allocation6 [shape = 'u8[409600]{0}', space=vmem, size = 0x64000, scoped, tag = 'input window, operand 3, single buffered']
    #allocation7 [shape = 'u8[2048]{0}', space=vmem, size = 0x800, scoped, tag = 'input window, operand 4, single buffered']
    #allocation8 [shape = 's32[1]{0}', space=sflag, size = 0x4, scoped, tag = 'scoped memory for main_model_forward.7']
    #allocation9 [shape = 'u8[409600]{0}', space=vmem, size = 0x64000, scoped, tag = 'input window, operand 5, single buffered']
    #allocation10 [shape = 'u8[2048]{0}', space=vmem, size = 0x800, scoped, tag = 'input window, operand 6, single buffered']
    #allocation11 [shape = 's32[1]{0}', space=sflag, size = 0x4, scoped, tag = 'scoped memory for main_model_forward.7']
    #allocation12 [shape = 'u8[512]{0}', space=vmem, size = 0x400, scoped, tag = 'input window, operand 8, single buffered']
    #allocation13 [shape = 'u8[16384]{0}', space=vmem, size = 0x4000, scoped, tag = 'input window, operand 9, single buffered']
    #allocation14 [shape = 's32[1]{0}', space=sflag, size = 0x4, scoped, tag = 'scoped memory for main_model_forward.7']
    #allocation15 [shape = 'u8[512]{0}', space=vmem, size = 0x400, scoped, tag = 'input window, operand 10, single buffered']
    %16 = vsyncpa [#allocation3], 0
    %17 = vsyncpa [#allocation5], 0
    %18 = vsyncpa [#allocation8], 0
    %19 = vsyncpa [#allocation11], 0
    %20 = vsyncpa [#allocation14], 0
    // Predicated region
    $region2: #{main_model_forward.7} parent=1 // pred_check
      _
    $region3: #{main_model_forward.7} parent=1 // pred_check_branch
      %22 = sbr.rel (0) target = $region5
    $region4: #{main_model_forward.7} parent=1 // pred_region
      _
    $region5: #{main_model_forward.7} parent=1 // pred_fallthru
      _
    // Predicated region
    $region6: #{main_model_forward.7} parent=1 // pred_check
      _
    $region7: #{main_model_forward.7} parent=1 // pred_check_branch
      %24 = sbr.rel (0) target = $region9
    $region8: #{main_model_forward.7} parent=1 // pred_region
      %26 = vsyncadd [#allocation3], 0
      %s27 = sshll.u32 %s1, 4
      %s28 = int_to_ptr.hbm [resolvable:$true] %s27
      %s29 = sshll.u32 [#allocation2], 4
      %s30 = int_to_ptr.vmem [resolvable:$true] %s29
      %35 = dma.hbm_to_vmem [thread:$0]  %s28, 12800, %s30, [#allocation3], 256, 256, 16
    $region9: #{main_model_forward.7} parent=1 // pred_fallthru
      _
    // Predicated region
    $region10: #{main_model_forward.7} parent=1 // pred_check
      _
    $region11: #{main_model_forward.7} parent=1 // pred_check_branch
      %37 = sbr.rel (0) target = $region13
    $region12: #{main_model_forward.7} parent=1 // pred_region
      %39 = vsyncadd [#allocation5], 0
      %s41 = sshll.u32 %s2, 4
      %s42 = int_to_ptr.hbm [resolvable:$true] %s41
      %s43 = sshll.u32 [#allocation4], 4
      %s44 = int_to_ptr.vmem [resolvable:$true] %s43
      %46 = dma.hbm_to_vmem [thread:$0]  %s42, 64, %s44, [#allocation5]
    $region13: #{main_model_forward.7} parent=1 // pred_fallthru
      _
    // Predicated region
    $region14: #{main_model_forward.7} parent=1 // pred_check
      _
    $region15: #{main_model_forward.7} parent=1 // pred_check_branch
      %48 = sbr.rel (0) target = $region17
    $region16: #{main_model_forward.7} parent=1 // pred_region
      %50 = vsyncadd [#allocation5], 0
      %s51 = sshll.u32 %s3, 4
      %s52 = int_to_ptr.hbm [resolvable:$true] %s51
      %s53 = sshll.u32 [#allocation6], 4
      %s54 = int_to_ptr.vmem [resolvable:$true] %s53
      %59 = dma.hbm_to_vmem [thread:$0]  %s52, 12800, %s54, [#allocation5], 256, 256, 16
    $region17: #{main_model_forward.7} parent=1 // pred_fallthru
      _
    // Predicated region
    $region18: #{main_model_forward.7} parent=1 // pred_check
      _
    $region19: #{main_model_forward.7} parent=1 // pred_check_branch
      %61 = sbr.rel (0) target = $region21
    $region20: #{main_model_forward.7} parent=1 // pred_region
      %63 = vsyncadd [#allocation8], 0
      %s65 = sshll.u32 %s4, 4
      %s66 = int_to_ptr.hbm [resolvable:$true] %s65
      %s67 = sshll.u32 [#allocation7], 4
      %s68 = int_to_ptr.vmem [resolvable:$true] %s67
      %70 = dma.hbm_to_vmem [thread:$0]  %s66, 64, %s68, [#allocation8]
    $region21: #{main_model_forward.7} parent=1 // pred_fallthru
      _
    // Predicated region
    $region22: #{main_model_forward.7} parent=1 // pred_check
      _
    $region23: #{main_model_forward.7} parent=1 // pred_check_branch
      %72 = sbr.rel (0) target = $region25
    $region24: #{main_model_forward.7} parent=1 // pred_region
      %74 = vsyncadd [#allocation8], 0
      %s75 = sshll.u32 %s5, 4
      %s76 = int_to_ptr.hbm [resolvable:$true] %s75
      %s77 = sshll.u32 [#allocation9], 4
      %s78 = int_to_ptr.vmem [resolvable:$true] %s77
      %83 = dma.hbm_to_vmem [thread:$0]  %s76, 12800, %s78, [#allocation8], 256, 256, 16
    $region25: #{main_model_forward.7} parent=1 // pred_fallthru
      _
    // Predicated region
    $region26: #{main_model_forward.7} parent=1 // pred_check
      _
    $region27: #{main_model_forward.7} parent=1 // pred_check_branch
      %85 = sbr.rel (0) target = $region29
    $region28: #{main_model_forward.7} parent=1 // pred_region
      %87 = vsyncadd [#allocation11], 0
      %s89 = sshll.u32 %s6, 4
      %s90 = int_to_ptr.hbm [resolvable:$true] %s89
      %s91 = sshll.u32 [#allocation10], 4
      %s92 = int_to_ptr.vmem [resolvable:$true] %s91
      %94 = dma.hbm_to_vmem [thread:$0]  %s90, 64, %s92, [#allocation11]
    $region29: #{main_model_forward.7} parent=1 // pred_fallthru
      _
    // Predicated region
    $region30: #{main_model_forward.7} parent=1 // pred_check
      _
    $region31: #{main_model_forward.7} parent=1 // pred_check_branch
      %96 = sbr.rel (0) target = $region33
    $region32: #{main_model_forward.7} parent=1 // pred_region
      _
    $region33: #{main_model_forward.7} parent=1 // pred_fallthru
      _
    // Predicated region
    $region34: #{main_model_forward.7} parent=1 // pred_check
      _
    $region35: #{main_model_forward.7} parent=1 // pred_check_branch
      %98 = sbr.rel (0) target = $region37
    $region36: #{main_model_forward.7} parent=1 // pred_region
      %100 = vsyncadd [#allocation11], 0
      %s102 = sshll.u32 %s8, 4
      %s103 = int_to_ptr.hbm [resolvable:$true] %s102
      %s104 = sshll.u32 [#allocation12], 4
      %s105 = int_to_ptr.vmem [resolvable:$true] %s104
      %107 = dma.hbm_to_vmem [thread:$0]  %s103, 16, %s105, [#allocation11]
    $region37: #{main_model_forward.7} parent=1 // pred_fallthru
      _
    // Predicated region
    $region38: #{main_model_forward.7} parent=1 // pred_check
      _
    $region39: #{main_model_forward.7} parent=1 // pred_check_branch
      %109 = sbr.rel (0) target = $region41
    $region40: #{main_model_forward.7} parent=1 // pred_region
      %111 = vsyncadd [#allocation14], 0
      %s112 = sshll.u32 %s9, 4
      %s113 = int_to_ptr.hbm [resolvable:$true] %s112
      %s114 = sshll.u32 [#allocation13], 4
      %s115 = int_to_ptr.vmem [resolvable:$true] %s114
      %120 = dma.hbm_to_vmem [thread:$0]  %s113, 512, %s115, [#allocation14], 64, 64, 4
    $region41: #{main_model_forward.7} parent=1 // pred_fallthru
      _
    // Predicated region
    $region42: #{main_model_forward.7} parent=1 // pred_check
      _
    $region43: #{main_model_forward.7} parent=1 // pred_check_branch
      %122 = sbr.rel (0) target = $region45
    $region44: #{main_model_forward.7} parent=1 // pred_region
      %124 = vsyncadd [#allocation14], 0
      %s126 = sshll.u32 %s10, 4
      %s127 = int_to_ptr.hbm [resolvable:$true] %s126
      %s128 = sshll.u32 [#allocation15], 4
      %s129 = int_to_ptr.vmem [resolvable:$true] %s128
      %131 = dma.hbm_to_vmem [thread:$0]  %s127, 16, %s129, [#allocation14]
    $region45: #{main_model_forward.7} parent=1 // pred_fallthru
      _
    // Predicated region
    $region46: #{main_model_forward.7} parent=1 // pred_check
      _
    $region47: #{main_model_forward.7} parent=1 // pred_check_branch
      %133 = sbr.rel (0) target = $region49
    $region48: #{main_model_forward.7} parent=1 // pred_region
      %135 = dma.done [#allocation3], 12800
    $region49: #{main_model_forward.7} parent=1 // pred_fallthru
      _
    // Predicated region
    $region50: #{main_model_forward.7} parent=1 // pred_check
      _
    $region51: #{main_model_forward.7} parent=1 // pred_check_branch
      %137 = sbr.rel (0) target = $region53
    $region52: #{main_model_forward.7} parent=1 // pred_region
      %139 = dma.done [#allocation5], 64
    $region53: #{main_model_forward.7} parent=1 // pred_fallthru
      _
    // Predicated region
    $region54: #{main_model_forward.7} parent=1 // pred_check
      _
    $region55: #{main_model_forward.7} parent=1 // pred_check_branch
      %141 = sbr.rel (0) target = $region57
    $region56: #{main_model_forward.7} parent=1 // pred_region
      %143 = dma.done [#allocation5], 12800
    $region57: #{main_model_forward.7} parent=1 // pred_fallthru
      _
    // Predicated region
    $region58: #{main_model_forward.7} parent=1 // pred_check
      _
    $region59: #{main_model_forward.7} parent=1 // pred_check_branch
      %145 = sbr.rel (0) target = $region61
    $region60: #{main_model_forward.7} parent=1 // pred_region
      %147 = dma.done [#allocation8], 64
    $region61: #{main_model_forward.7} parent=1 // pred_fallthru
      _
    // Predicated region
    $region62: #{main_model_forward.7} parent=1 // pred_check
      _
    $region63: #{main_model_forward.7} parent=1 // pred_check_branch
      %149 = sbr.rel (0) target = $region65
    $region64: #{main_model_forward.7} parent=1 // pred_region
      %151 = dma.done [#allocation8], 12800
    $region65: #{main_model_forward.7} parent=1 // pred_fallthru
      _
    // Predicated region
    $region66: #{main_model_forward.7} parent=1 // pred_check
      _
    $region67: #{main_model_forward.7} parent=1 // pred_check_branch
      %153 = sbr.rel (0) target = $region69
    $region68: #{main_model_forward.7} parent=1 // pred_region
      %155 = dma.done [#allocation11], 64
    $region69: #{main_model_forward.7} parent=1 // pred_fallthru
      _
    // Predicated region
    $region70: #{main_model_forward.7} parent=1 // pred_check
      _
    $region71: #{main_model_forward.7} parent=1 // pred_check_branch
      %157 = sbr.rel (0) target = $region73
    $region72: #{main_model_forward.7} parent=1 // pred_region
      %159 = dma.done [#allocation11], 16
    $region73: #{main_model_forward.7} parent=1 // pred_fallthru
      _
    // Predicated region
    $region74: #{main_model_forward.7} parent=1 // pred_check
      _
    $region75: #{main_model_forward.7} parent=1 // pred_check_branch
      %161 = sbr.rel (0) target = $region77
    $region76: #{main_model_forward.7} parent=1 // pred_region
      %163 = dma.done [#allocation14], 512
    $region77: #{main_model_forward.7} parent=1 // pred_fallthru
      _
    // Predicated region
    $region78: #{main_model_forward.7} parent=1 // pred_check
      _
    $region79: #{main_model_forward.7} parent=1 // pred_check_branch
      %165 = sbr.rel (0) target = $region81
    $region80: #{main_model_forward.7} parent=1 // pred_region
      %167 = dma.done [#allocation14], 16
    $region81: #{main_model_forward.7} parent=1 // pred_fallthru
      _
    %v169 = vld [vmem:[%s0] sm:$0xff]
    %v170 = vld [vmem:[%s0 + $0x8] sm:$0xff]
    %s171 = scalar_lea.vmem %s0, 16
    %v172 = vld [vmem:[%s171] sm:$0xff]
    %v173 = vld [vmem:[%s171 + $0x8] sm:$0xff]
    %v174 = vld [vmem:[#allocation2] sm:$0xff]
    %v175 = vld [vmem:[#allocation2 + $0x8] sm:$0xff]
    %v176 = vld [vmem:[#allocation2 + $0x10] sm:$0xff]
    %v177 = vld [vmem:[#allocation2 + $0x18] sm:$0xff]
    %v178 = vld [vmem:[#allocation2 + $0x20] sm:$0xff]
    %v179 = vld [vmem:[#allocation2 + $0x28] sm:$0xff]
    %v180 = vld [vmem:[#allocation2 + $0x30] sm:$0xff]
    %v181 = vld [vmem:[#allocation2 + $0x38] sm:$0xff]
    %v182 = vld [vmem:[#allocation2 + $0x40] sm:$0xff]
    %v183 = vld [vmem:[#allocation2 + $0x48] sm:$0xff]
    %v184 = vld [vmem:[#allocation2 + $0x50] sm:$0xff]
    %v185 = vld [vmem:[#allocation2 + $0x58] sm:$0xff]
    %v186 = vld [vmem:[#allocation2 + $0x60] sm:$0xff]
    %v187 = vld [vmem:[#allocation2 + $0x68] sm:$0xff]
    %v188 = vld [vmem:[#allocation2 + $0x70] sm:$0xff]
    %v189 = vld [vmem:[#allocation2 + $0x78] sm:$0xff]
    %v190 = vld [vmem:[#allocation2 + $0x80] sm:$0xff]
    %v191 = vld [vmem:[#allocation2 + $0x88] sm:$0xff]
    %v192 = vld [vmem:[#allocation2 + $0x90] sm:$0xff]
    %v193 = vld [vmem:[#allocation2 + $0x98] sm:$0xff]
    %v194 = vld [vmem:[#allocation2 + $0xa0] sm:$0xff]
    %v195 = vld [vmem:[#allocation2 + $0xa8] sm:$0xff]
    %v196 = vld [vmem:[#allocation2 + $0xb0] sm:$0xff]
    %v197 = vld [vmem:[#allocation2 + $0xb8] sm:$0xff]
    %v198 = vld [vmem:[#allocation2 + $0xc0] sm:$0xff]
    %v199 = vld [vmem:[#allocation2 + $0xc8] sm:$0xff]
    %v200 = vld [vmem:[#allocation2 + $0xd0] sm:$0xff]
    %v201 = vld [vmem:[#allocation2 + $0xd8] sm:$0xff]
    %v202 = vld [vmem:[#allocation2 + $0xe0] sm:$0xff]
    %v203 = vld [vmem:[#allocation2 + $0xe8] sm:$0xff]
    %v204 = vld [vmem:[#allocation2 + $0xf0] sm:$0xff]
    %v205 = vld [vmem:[#allocation2 + $0xf8] sm:$0xff]
    %v206 = vld [vmem:[#allocation2 + $0x100] sm:$0xff]
    %v207 = vld [vmem:[#allocation2 + $0x108] sm:$0xff]
    %v208 = vld [vmem:[#allocation2 + $0x110] sm:$0xff]
    %v209 = vld [vmem:[#allocation2 + $0x118] sm:$0xff]
    %v210 = vld [vmem:[#allocation2 + $0x120] sm:$0xff]
    %v211 = vld [vmem:[#allocation2 + $0x128] sm:$0xff]
    %v212 = vld [vmem:[#allocation2 + $0x130] sm:$0xff]
    %v213 = vld [vmem:[#allocation2 + $0x138] sm:$0xff]
    %v214 = vld [vmem:[#allocation2 + $0x140] sm:$0xff]
    %v215 = vld [vmem:[#allocation2 + $0x148] sm:$0xff]
    %v216 = vld [vmem:[#allocation2 + $0x150] sm:$0xff]
    %v217 = vld [vmem:[#allocation2 + $0x158] sm:$0xff]
    %v218 = vld [vmem:[#allocation2 + $0x160] sm:$0xff]
    %v219 = vld [vmem:[#allocation2 + $0x168] sm:$0xff]
    %v220 = vld [vmem:[#allocation2 + $0x170] sm:$0xff]
    %v221 = vld [vmem:[#allocation2 + $0x178] sm:$0xff]
    %v222 = vld [vmem:[#allocation2 + $0x180] sm:$0xff]
    %v223 = vld [vmem:[#allocation2 + $0x188] sm:$0xff]
    %s224 = scalar_lea.vmem [#allocation2], 400
    %v225 = vld [vmem:[%s224] sm:$0xff]
    %v226 = vld [vmem:[%s224 + $0x8] sm:$0xff]
    %v227 = vld [vmem:[%s224 + $0x10] sm:$0xff]
    %v228 = vld [vmem:[%s224 + $0x18] sm:$0xff]
    %v229 = vld [vmem:[%s224 + $0x20] sm:$0xff]
    %v230 = vld [vmem:[%s224 + $0x28] sm:$0xff]
    %v231 = vld [vmem:[%s224 + $0x30] sm:$0xff]
    %v232 = vld [vmem:[%s224 + $0x38] sm:$0xff]
    %v233 = vld [vmem:[%s224 + $0x40] sm:$0xff]
    %v234 = vld [vmem:[%s224 + $0x48] sm:$0xff]
    %v235 = vld [vmem:[%s224 + $0x50] sm:$0xff]
    %v236 = vld [vmem:[%s224 + $0x58] sm:$0xff]
    %v237 = vld [vmem:[%s224 + $0x60] sm:$0xff]
    %v238 = vld [vmem:[%s224 + $0x68] sm:$0xff]
    %v239 = vld [vmem:[%s224 + $0x70] sm:$0xff]
    %v240 = vld [vmem:[%s224 + $0x78] sm:$0xff]
    %v241 = vld [vmem:[%s224 + $0x80] sm:$0xff]
    %v242 = vld [vmem:[%s224 + $0x88] sm:$0xff]
    %v243 = vld [vmem:[%s224 + $0x90] sm:$0xff]
    %v244 = vld [vmem:[%s224 + $0x98] sm:$0xff]
    %v245 = vld [vmem:[%s224 + $0xa0] sm:$0xff]
    %v246 = vld [vmem:[%s224 + $0xa8] sm:$0xff]
    %v247 = vld [vmem:[%s224 + $0xb0] sm:$0xff]
    %v248 = vld [vmem:[%s224 + $0xb8] sm:$0xff]
    %v249 = vld [vmem:[%s224 + $0xc0] sm:$0xff]
    %v250 = vld [vmem:[%s224 + $0xc8] sm:$0xff]
    %v251 = vld [vmem:[%s224 + $0xd0] sm:$0xff]
    %v252 = vld [vmem:[%s224 + $0xd8] sm:$0xff]
    %v253 = vld [vmem:[%s224 + $0xe0] sm:$0xff]
    %v254 = vld [vmem:[%s224 + $0xe8] sm:$0xff]
    %v255 = vld [vmem:[%s224 + $0xf0] sm:$0xff]
    %v256 = vld [vmem:[%s224 + $0xf8] sm:$0xff]
    %v257 = vld [vmem:[%s224 + $0x100] sm:$0xff]
    %v258 = vld [vmem:[%s224 + $0x108] sm:$0xff]
    %v259 = vld [vmem:[%s224 + $0x110] sm:$0xff]
    %v260 = vld [vmem:[%s224 + $0x118] sm:$0xff]
    %v261 = vld [vmem:[%s224 + $0x120] sm:$0xff]
    %v262 = vld [vmem:[%s224 + $0x128] sm:$0xff]
    %v263 = vld [vmem:[%s224 + $0x130] sm:$0xff]
    %v264 = vld [vmem:[%s224 + $0x138] sm:$0xff]
    %v265 = vld [vmem:[%s224 + $0x140] sm:$0xff]
    %v266 = vld [vmem:[%s224 + $0x148] sm:$0xff]
    %v267 = vld [vmem:[%s224 + $0x150] sm:$0xff]
    %v268 = vld [vmem:[%s224 + $0x158] sm:$0xff]
    %v269 = vld [vmem:[%s224 + $0x160] sm:$0xff]
    %v270 = vld [vmem:[%s224 + $0x168] sm:$0xff]
    %v271 = vld [vmem:[%s224 + $0x170] sm:$0xff]
    %v272 = vld [vmem:[%s224 + $0x178] sm:$0xff]
    %v273 = vld [vmem:[%s224 + $0x180] sm:$0xff]
    %v274 = vld [vmem:[%s224 + $0x188] sm:$0xff]
    %v277 = vunpack.c.l.b16 %v172
    %v278 = vunpack.c.h.b16 %v172
    %v279 = vunpack.c.l.b16 %v173
    %v280 = vunpack.c.h.b16 %v173
    %v281 = vpack.c.b16 %v279, %v277
    %v282 = vpack.c.b16 %v280, %v278
    %v334 = vunpack.c.l.b16 %v225
    %v335 = vunpack.c.h.b16 %v225
    %v336 = vunpack.c.l.b16 %v226
    %v337 = vunpack.c.h.b16 %v226
    %v338 = vunpack.c.l.b16 %v227
    %v339 = vunpack.c.h.b16 %v227
    %v340 = vunpack.c.l.b16 %v228
    %v341 = vunpack.c.h.b16 %v228
    %v342 = vunpack.c.l.b16 %v229
    %v343 = vunpack.c.h.b16 %v229
    %v344 = vunpack.c.l.b16 %v230
    %v345 = vunpack.c.h.b16 %v230
    %v346 = vunpack.c.l.b16 %v231
    %v347 = vunpack.c.h.b16 %v231
    %v348 = vunpack.c.l.b16 %v232
    %v349 = vunpack.c.h.b16 %v232
    %v350 = vunpack.c.l.b16 %v233
    %v351 = vunpack.c.h.b16 %v233
    %v352 = vunpack.c.l.b16 %v234
    %v353 = vunpack.c.h.b16 %v234
    %v354 = vunpack.c.l.b16 %v235
    %v355 = vunpack.c.h.b16 %v235
    %v356 = vunpack.c.l.b16 %v236
    %v357 = vunpack.c.h.b16 %v236
    %v358 = vunpack.c.l.b16 %v237
    %v359 = vunpack.c.h.b16 %v237
    %v360 = vunpack.c.l.b16 %v238
    %v361 = vunpack.c.h.b16 %v238
    %v362 = vunpack.c.l.b16 %v239
    %v363 = vunpack.c.h.b16 %v239
    %v364 = vunpack.c.l.b16 %v240
    %v365 = vunpack.c.h.b16 %v240
    %v366 = vunpack.c.l.b16 %v241
    %v367 = vunpack.c.h.b16 %v241
    %v368 = vunpack.c.l.b16 %v242
    %v369 = vunpack.c.h.b16 %v242
    %v370 = vunpack.c.l.b16 %v243
    %v371 = vunpack.c.h.b16 %v243
    %v372 = vunpack.c.l.b16 %v244
    %v373 = vunpack.c.h.b16 %v244
    %v374 = vunpack.c.l.b16 %v245
    %v375 = vunpack.c.h.b16 %v245
    %v376 = vunpack.c.l.b16 %v246
    %v377 = vunpack.c.h.b16 %v246
    %v378 = vunpack.c.l.b16 %v247
    %v379 = vunpack.c.h.b16 %v247
    %v380 = vunpack.c.l.b16 %v248
    %v381 = vunpack.c.h.b16 %v248
    %v382 = vunpack.c.l.b16 %v249
    %v383 = vunpack.c.h.b16 %v249
    %v384 = vunpack.c.l.b16 %v250
    %v385 = vunpack.c.h.b16 %v250
    %v386 = vunpack.c.l.b16 %v251
    %v387 = vunpack.c.h.b16 %v251
    %v388 = vunpack.c.l.b16 %v252
    %v389 = vunpack.c.h.b16 %v252
    %v390 = vunpack.c.l.b16 %v253
    %v391 = vunpack.c.h.b16 %v253
    %v392 = vunpack.c.l.b16 %v254
    %v393 = vunpack.c.h.b16 %v254
    %v394 = vunpack.c.l.b16 %v255
    %v395 = vunpack.c.h.b16 %v255
    %v396 = vunpack.c.l.b16 %v256
    %v397 = vunpack.c.h.b16 %v256
    %v398 = vunpack.c.l.b16 %v257
    %v399 = vunpack.c.h.b16 %v257
    %v400 = vunpack.c.l.b16 %v258
    %v401 = vunpack.c.h.b16 %v258
    %v402 = vunpack.c.l.b16 %v259
    %v403 = vunpack.c.h.b16 %v259
    %v404 = vunpack.c.l.b16 %v260
    %v405 = vunpack.c.h.b16 %v260
    %v406 = vunpack.c.l.b16 %v261
    %v407 = vunpack.c.h.b16 %v261
    %v408 = vunpack.c.l.b16 %v262
    %v409 = vunpack.c.h.b16 %v262
    %v410 = vunpack.c.l.b16 %v263
    %v411 = vunpack.c.h.b16 %v263
    %v412 = vunpack.c.l.b16 %v264
    %v413 = vunpack.c.h.b16 %v264
    %v414 = vunpack.c.l.b16 %v265
    %v415 = vunpack.c.h.b16 %v265
    %v416 = vunpack.c.l.b16 %v266
    %v417 = vunpack.c.h.b16 %v266
    %v418 = vunpack.c.l.b16 %v267
    %v419 = vunpack.c.h.b16 %v267
    %v420 = vunpack.c.l.b16 %v268
    %v421 = vunpack.c.h.b16 %v268
    %v422 = vunpack.c.l.b16 %v269
    %v423 = vunpack.c.h.b16 %v269
    %v424 = vunpack.c.l.b16 %v270
    %v425 = vunpack.c.h.b16 %v270
    %v426 = vunpack.c.l.b16 %v271
    %v427 = vunpack.c.h.b16 %v271
    %v428 = vunpack.c.l.b16 %v272
    %v429 = vunpack.c.h.b16 %v272
    %v430 = vunpack.c.l.b16 %v273
    %v431 = vunpack.c.h.b16 %v273
    %v432 = vunpack.c.l.b16 %v274
    %v433 = vunpack.c.h.b16 %v274
    %v434 = vpack.c.b16 %v338, %v334
    %v435 = vpack.c.b16 %v339, %v335
    %v436 = vpack.c.b16 %v340, %v336
    %v437 = vpack.c.b16 %v341, %v337
    %v438 = vpack.c.b16 %v346, %v342
    %v439 = vpack.c.b16 %v347, %v343
    %v440 = vpack.c.b16 %v348, %v344
    %v441 = vpack.c.b16 %v349, %v345
    %v442 = vpack.c.b16 %v354, %v350
    %v443 = vpack.c.b16 %v355, %v351
    %v444 = vpack.c.b16 %v356, %v352
    %v445 = vpack.c.b16 %v357, %v353
    %v446 = vpack.c.b16 %v362, %v358
    %v447 = vpack.c.b16 %v363, %v359
    %v448 = vpack.c.b16 %v364, %v360
    %v449 = vpack.c.b16 %v365, %v361
    %v450 = vpack.c.b16 %v370, %v366
    %v451 = vpack.c.b16 %v371, %v367
    %v452 = vpack.c.b16 %v372, %v368
    %v453 = vpack.c.b16 %v373, %v369
    %v454 = vpack.c.b16 %v378, %v374
    %v455 = vpack.c.b16 %v379, %v375
    %v456 = vpack.c.b16 %v380, %v376
    %v457 = vpack.c.b16 %v381, %v377
    %v458 = vpack.c.b16 %v386, %v382
    %v459 = vpack.c.b16 %v387, %v383
    %v460 = vpack.c.b16 %v388, %v384
    %v461 = vpack.c.b16 %v389, %v385
    %v462 = vpack.c.b16 %v394, %v390
    %v463 = vpack.c.b16 %v395, %v391
    %v464 = vpack.c.b16 %v396, %v392
    %v465 = vpack.c.b16 %v397, %v393
    %v466 = vpack.c.b16 %v402, %v398
    %v467 = vpack.c.b16 %v403, %v399
    %v468 = vpack.c.b16 %v404, %v400
    %v469 = vpack.c.b16 %v405, %v401
    %v470 = vpack.c.b16 %v410, %v406
    %v471 = vpack.c.b16 %v411, %v407
    %v472 = vpack.c.b16 %v412, %v408
    %v473 = vpack.c.b16 %v413, %v409
    %v474 = vpack.c.b16 %v418, %v414
    %v475 = vpack.c.b16 %v419, %v415
    %v476 = vpack.c.b16 %v420, %v416
    %v477 = vpack.c.b16 %v421, %v417
    %v478 = vpack.c.b16 %v426, %v422
    %v479 = vpack.c.b16 %v427, %v423
    %v480 = vpack.c.b16 %v428, %v424
    %v481 = vpack.c.b16 %v429, %v425
    %v482 = vpack.c.b16 %v430, %v430
    %v483 = vpack.c.b16 %v431, %v431
    %v484 = vpack.c.b16 %v432, %v432
    %v485 = vpack.c.b16 %v433, %v433
    %vm534 = vcmask 588800
    %v536 = vsel %vm534, %v282, 0
    %vm538 = vcmask 1043456
    %v540 = vsel %vm538, %v482, 0
    %v543 = vsel %vm538, %v483, 0
    %v546 = vsel %vm538, %v484, 0
    %v549 = vsel %vm538, %v485, 0
    %551 = vmatpush.bf16.msra.mxu0 %v462
    %552 = vmatpush.bf16.msra.mxu0 %v458
    %553 = vmatpush.bf16.msra.mxu0 %v454
    %554 = vmatpush.bf16.msra.mxu0 %v450
    %555 = vmatpush.bf16.msra.mxu0 %v446
    %556 = vmatpush.bf16.msra.mxu0 %v442
    %557 = vmatpush.bf16.msra.mxu0 %v438
    %558 = vmatpush.bf16.msra.mxu0 %v434
    %559 = vmatmul.bf16.gmra.mxu0 %v281
    %v560 = vpop.f32.mrf.mxu0
    %v561 = vadd.f32 0.0, %v560
    %v562 = vpop.f32.mrf.mxu0
    %v563 = vadd.f32 0.0, %v562
    %564 = vdwg.mxu0
    %565 = vmatpush.bf16.msra.mxu0 0
    %566 = vmatpush.bf16.msra.mxu0 0
    %567 = vmatpush.bf16.msra.mxu0 0
    %568 = vmatpush.bf16.msra.mxu0 %v540
    %569 = vmatpush.bf16.msra.mxu0 %v478
    %570 = vmatpush.bf16.msra.mxu0 %v474
    %571 = vmatpush.bf16.msra.mxu0 %v470
    %572 = vmatpush.bf16.msra.mxu0 %v466
    %573 = vmatmul.bf16.gmra.mxu0 %v536
    %v574 = vpop.f32.mrf.mxu0
    %v575 = vadd.f32 %v561, %v574
    %v576 = vpop.f32.mrf.mxu0
    %v577 = vadd.f32 %v563, %v576
    %578 = vdwg.mxu0
    %579 = vmatpush.bf16.msra.mxu0 %v463
    %580 = vmatpush.bf16.msra.mxu0 %v459
    %581 = vmatpush.bf16.msra.mxu0 %v455
    %582 = vmatpush.bf16.msra.mxu0 %v451
    %583 = vmatpush.bf16.msra.mxu0 %v447
    %584 = vmatpush.bf16.msra.mxu0 %v443
    %585 = vmatpush.bf16.msra.mxu0 %v439
    %586 = vmatpush.bf16.msra.mxu0 %v435
    %587 = vmatmul.bf16.gmra.mxu0 %v281
    %v588 = vpop.f32.mrf.mxu0
    %v589 = vadd.f32 0.0, %v588
    %v590 = vpop.f32.mrf.mxu0
    %v591 = vadd.f32 0.0, %v590
    %592 = vdwg.mxu0
    %593 = vmatpush.bf16.msra.mxu0 0
    %594 = vmatpush.bf16.msra.mxu0 0
    %595 = vmatpush.bf16.msra.mxu0 0
    %596 = vmatpush.bf16.msra.mxu0 %v543
    %597 = vmatpush.bf16.msra.mxu0 %v479
    %598 = vmatpush.bf16.msra.mxu0 %v475
    %599 = vmatpush.bf16.msra.mxu0 %v471
    %600 = vmatpush.bf16.msra.mxu0 %v467
    %601 = vmatmul.bf16.gmra.mxu0 %v536
    %v602 = vpop.f32.mrf.mxu0
    %v603 = vadd.f32 %v589, %v602
    %v604 = vpop.f32.mrf.mxu0
    %v605 = vadd.f32 %v591, %v604
    %606 = vdwg.mxu0
    %607 = vmatpush.bf16.msra.mxu0 %v464
    %608 = vmatpush.bf16.msra.mxu0 %v460
    %609 = vmatpush.bf16.msra.mxu0 %v456
    %610 = vmatpush.bf16.msra.mxu0 %v452
    %611 = vmatpush.bf16.msra.mxu0 %v448
    %612 = vmatpush.bf16.msra.mxu0 %v444
    %613 = vmatpush.bf16.msra.mxu0 %v440
    %614 = vmatpush.bf16.msra.mxu0 %v436
    %615 = vmatmul.bf16.gmra.mxu0 %v281
    %v616 = vpop.f32.mrf.mxu0
    %v617 = vadd.f32 0.0, %v616
    %v618 = vpop.f32.mrf.mxu0
    %v619 = vadd.f32 0.0, %v618
    %620 = vdwg.mxu0
    %621 = vmatpush.bf16.msra.mxu0 0
    %622 = vmatpush.bf16.msra.mxu0 0
    %623 = vmatpush.bf16.msra.mxu0 0
    %624 = vmatpush.bf16.msra.mxu0 %v546
    %625 = vmatpush.bf16.msra.mxu0 %v480
    %626 = vmatpush.bf16.msra.mxu0 %v476
    %627 = vmatpush.bf16.msra.mxu0 %v472
    %628 = vmatpush.bf16.msra.mxu0 %v468
    %629 = vmatmul.bf16.gmra.mxu0 %v536
    %v630 = vpop.f32.mrf.mxu0
    %v631 = vadd.f32 %v617, %v630
    %v632 = vpop.f32.mrf.mxu0
    %v633 = vadd.f32 %v619, %v632
    %634 = vdwg.mxu0
    %635 = vmatpush.bf16.msra.mxu0 %v465
    %636 = vmatpush.bf16.msra.mxu0 %v461
    %637 = vmatpush.bf16.msra.mxu0 %v457
    %638 = vmatpush.bf16.msra.mxu0 %v453
    %639 = vmatpush.bf16.msra.mxu0 %v449
    %640 = vmatpush.bf16.msra.mxu0 %v445
    %641 = vmatpush.bf16.msra.mxu0 %v441
    %642 = vmatpush.bf16.msra.mxu0 %v437
    %643 = vmatmul.bf16.gmra.mxu0 %v281
    %v644 = vpop.f32.mrf.mxu0
    %v645 = vadd.f32 0.0, %v644
    %v646 = vpop.f32.mrf.mxu0
    %v647 = vadd.f32 0.0, %v646
    %648 = vdwg.mxu0
    %649 = vmatpush.bf16.msra.mxu0 0
    %650 = vmatpush.bf16.msra.mxu0 0
    %651 = vmatpush.bf16.msra.mxu0 0
    %652 = vmatpush.bf16.msra.mxu0 %v549
    %653 = vmatpush.bf16.msra.mxu0 %v481
    %654 = vmatpush.bf16.msra.mxu0 %v477
    %655 = vmatpush.bf16.msra.mxu0 %v473
    %656 = vmatpush.bf16.msra.mxu0 %v469
    %657 = vmatmul.bf16.gmra.mxu0 %v536
    %v658 = vpop.f32.mrf.mxu0
    %v659 = vadd.f32 %v645, %v658
    %v660 = vpop.f32.mrf.mxu0
    %v661 = vadd.f32 %v647, %v660
    %662 = vdwg.mxu0
    %v665 = vunpack.c.l.b16 %v169
    %v666 = vunpack.c.h.b16 %v169
    %v667 = vunpack.c.l.b16 %v170
    %v668 = vunpack.c.h.b16 %v170
    %v669 = vpack.c.b16 %v667, %v665
    %v670 = vpack.c.b16 %v668, %v666
    %v722 = vunpack.c.l.b16 %v174
    %v723 = vunpack.c.h.b16 %v174
    %v724 = vunpack.c.l.b16 %v175
    %v725 = vunpack.c.h.b16 %v175
    %v726 = vunpack.c.l.b16 %v176
    %v727 = vunpack.c.h.b16 %v176
    %v728 = vunpack.c.l.b16 %v177
    %v729 = vunpack.c.h.b16 %v177
    %v730 = vunpack.c.l.b16 %v178
    %v731 = vunpack.c.h.b16 %v178
    %v732 = vunpack.c.l.b16 %v179
    %v733 = vunpack.c.h.b16 %v179
    %v734 = vunpack.c.l.b16 %v180
    %v735 = vunpack.c.h.b16 %v180
    %v736 = vunpack.c.l.b16 %v181
    %v737 = vunpack.c.h.b16 %v181
    %v738 = vunpack.c.l.b16 %v182
    %v739 = vunpack.c.h.b16 %v182
    %v740 = vunpack.c.l.b16 %v183
    %v741 = vunpack.c.h.b16 %v183
    %v742 = vunpack.c.l.b16 %v184
    %v743 = vunpack.c.h.b16 %v184
    %v744 = vunpack.c.l.b16 %v185
    %v745 = vunpack.c.h.b16 %v185
    %v746 = vunpack.c.l.b16 %v186
    %v747 = vunpack.c.h.b16 %v186
    %v748 = vunpack.c.l.b16 %v187
    %v749 = vunpack.c.h.b16 %v187
    %v750 = vunpack.c.l.b16 %v188
    %v751 = vunpack.c.h.b16 %v188
    %v752 = vunpack.c.l.b16 %v189
    %v753 = vunpack.c.h.b16 %v189
    %v754 = vunpack.c.l.b16 %v190
    %v755 = vunpack.c.h.b16 %v190
    %v756 = vunpack.c.l.b16 %v191
    %v757 = vunpack.c.h.b16 %v191
    %v758 = vunpack.c.l.b16 %v192
    %v759 = vunpack.c.h.b16 %v192
    %v760 = vunpack.c.l.b16 %v193
    %v761 = vunpack.c.h.b16 %v193
    %v762 = vunpack.c.l.b16 %v194
    %v763 = vunpack.c.h.b16 %v194
    %v764 = vunpack.c.l.b16 %v195
    %v765 = vunpack.c.h.b16 %v195
    %v766 = vunpack.c.l.b16 %v196
    %v767 = vunpack.c.h.b16 %v196
    %v768 = vunpack.c.l.b16 %v197
    %v769 = vunpack.c.h.b16 %v197
    %v770 = vunpack.c.l.b16 %v198
    %v771 = vunpack.c.h.b16 %v198
    %v772 = vunpack.c.l.b16 %v199
    %v773 = vunpack.c.h.b16 %v199
    %v774 = vunpack.c.l.b16 %v200
    %v775 = vunpack.c.h.b16 %v200
    %v776 = vunpack.c.l.b16 %v201
    %v777 = vunpack.c.h.b16 %v201
    %v778 = vunpack.c.l.b16 %v202
    %v779 = vunpack.c.h.b16 %v202
    %v780 = vunpack.c.l.b16 %v203
    %v781 = vunpack.c.h.b16 %v203
    %v782 = vunpack.c.l.b16 %v204
    %v783 = vunpack.c.h.b16 %v204
    %v784 = vunpack.c.l.b16 %v205
    %v785 = vunpack.c.h.b16 %v205
    %v786 = vunpack.c.l.b16 %v206
    %v787 = vunpack.c.h.b16 %v206
    %v788 = vunpack.c.l.b16 %v207
    %v789 = vunpack.c.h.b16 %v207
    %v790 = vunpack.c.l.b16 %v208
    %v791 = vunpack.c.h.b16 %v208
    %v792 = vunpack.c.l.b16 %v209
    %v793 = vunpack.c.h.b16 %v209
    %v794 = vunpack.c.l.b16 %v210
    %v795 = vunpack.c.h.b16 %v210
    %v796 = vunpack.c.l.b16 %v211
    %v797 = vunpack.c.h.b16 %v211
    %v798 = vunpack.c.l.b16 %v212
    %v799 = vunpack.c.h.b16 %v212
    %v800 = vunpack.c.l.b16 %v213
    %v801 = vunpack.c.h.b16 %v213
    %v802 = vunpack.c.l.b16 %v214
    %v803 = vunpack.c.h.b16 %v214
    %v804 = vunpack.c.l.b16 %v215
    %v805 = vunpack.c.h.b16 %v215
    %v806 = vunpack.c.l.b16 %v216
    %v807 = vunpack.c.h.b16 %v216
    %v808 = vunpack.c.l.b16 %v217
    %v809 = vunpack.c.h.b16 %v217
    %v810 = vunpack.c.l.b16 %v218
    %v811 = vunpack.c.h.b16 %v218
    %v812 = vunpack.c.l.b16 %v219
    %v813 = vunpack.c.h.b16 %v219
    %v814 = vunpack.c.l.b16 %v220
    %v815 = vunpack.c.h.b16 %v220
    %v816 = vunpack.c.l.b16 %v221
    %v817 = vunpack.c.h.b16 %v221
    %v818 = vunpack.c.l.b16 %v222
    %v819 = vunpack.c.h.b16 %v222
    %v820 = vunpack.c.l.b16 %v223
    %v821 = vunpack.c.h.b16 %v223
    %v822 = vpack.c.b16 %v726, %v722
    %v823 = vpack.c.b16 %v727, %v723
    %v824 = vpack.c.b16 %v728, %v724
    %v825 = vpack.c.b16 %v729, %v725
    %v826 = vpack.c.b16 %v734, %v730
    %v827 = vpack.c.b16 %v735, %v731
    %v828 = vpack.c.b16 %v736, %v732
    %v829 = vpack.c.b16 %v737, %v733
    %v830 = vpack.c.b16 %v742, %v738
    %v831 = vpack.c.b16 %v743, %v739
    %v832 = vpack.c.b16 %v744, %v740
    %v833 = vpack.c.b16 %v745, %v741
    %v834 = vpack.c.b16 %v750, %v746
    %v835 = vpack.c.b16 %v751, %v747
    %v836 = vpack.c.b16 %v752, %v748
    %v837 = vpack.c.b16 %v753, %v749
    %v838 = vpack.c.b16 %v758, %v754
    %v839 = vpack.c.b16 %v759, %v755
    %v840 = vpack.c.b16 %v760, %v756
    %v841 = vpack.c.b16 %v761, %v757
    %v842 = vpack.c.b16 %v766, %v762
    %v843 = vpack.c.b16 %v767, %v763
    %v844 = vpack.c.b16 %v768, %v764
    %v845 = vpack.c.b16 %v769, %v765
    %v846 = vpack.c.b16 %v774, %v770
    %v847 = vpack.c.b16 %v775, %v771
    %v848 = vpack.c.b16 %v776, %v772
    %v849 = vpack.c.b16 %v777, %v773
    %v850 = vpack.c.b16 %v782, %v778
    %v851 = vpack.c.b16 %v783, %v779
    %v852 = vpack.c.b16 %v784, %v780
    %v853 = vpack.c.b16 %v785, %v781
    %v854 = vpack.c.b16 %v790, %v786
    %v855 = vpack.c.b16 %v791, %v787
    %v856 = vpack.c.b16 %v792, %v788
    %v857 = vpack.c.b16 %v793, %v789
    %v858 = vpack.c.b16 %v798, %v794
    %v859 = vpack.c.b16 %v799, %v795
    %v860 = vpack.c.b16 %v800, %v796
    %v861 = vpack.c.b16 %v801, %v797
    %v862 = vpack.c.b16 %v806, %v802
    %v863 = vpack.c.b16 %v807, %v803
    %v864 = vpack.c.b16 %v808, %v804
    %v865 = vpack.c.b16 %v809, %v805
    %v866 = vpack.c.b16 %v814, %v810
    %v867 = vpack.c.b16 %v815, %v811
    %v868 = vpack.c.b16 %v816, %v812
    %v869 = vpack.c.b16 %v817, %v813
    %v870 = vpack.c.b16 %v818, %v818
    %v871 = vpack.c.b16 %v819, %v819
    %v872 = vpack.c.b16 %v820, %v820
    %v873 = vpack.c.b16 %v821, %v821
    %v923 = vsel %vm534, %v670, 0
    %v926 = vsel %vm538, %v870, 0
    %v929 = vsel %vm538, %v871, 0
    %v932 = vsel %vm538, %v872, 0
    %v935 = vsel %vm538, %v873, 0
    %937 = vmatpush.bf16.msra.mxu0 %v850
    %938 = vmatpush.bf16.msra.mxu0 %v846
    %939 = vmatpush.bf16.msra.mxu0 %v842
    %940 = vmatpush.bf16.msra.mxu0 %v838
    %941 = vmatpush.bf16.msra.mxu0 %v834
    %942 = vmatpush.bf16.msra.mxu0 %v830
    %943 = vmatpush.bf16.msra.mxu0 %v826
    %944 = vmatpush.bf16.msra.mxu0 %v822
    %945 = vmatmul.bf16.gmra.mxu0 %v669
    %v946 = vpop.f32.mrf.mxu0
    %v947 = vadd.f32 %v575, %v946
    %v948 = vpop.f32.mrf.mxu0
    %v949 = vadd.f32 %v577, %v948
    %950 = vdwg.mxu0
    %951 = vmatpush.bf16.msra.mxu0 0
    %952 = vmatpush.bf16.msra.mxu0 0
    %953 = vmatpush.bf16.msra.mxu0 0
    %954 = vmatpush.bf16.msra.mxu0 %v926
    %955 = vmatpush.bf16.msra.mxu0 %v866
    %956 = vmatpush.bf16.msra.mxu0 %v862
    %957 = vmatpush.bf16.msra.mxu0 %v858
    %958 = vmatpush.bf16.msra.mxu0 %v854
    %959 = vmatmul.bf16.gmra.mxu0 %v923
    %v960 = vpop.f32.mrf.mxu0
    %v961 = vadd.f32 %v947, %v960
    %v962 = vpop.f32.mrf.mxu0
    %v963 = vadd.f32 %v949, %v962
    %964 = vdwg.mxu0
    %965 = vmatpush.bf16.msra.mxu0 %v851
    %966 = vmatpush.bf16.msra.mxu0 %v847
    %967 = vmatpush.bf16.msra.mxu0 %v843
    %968 = vmatpush.bf16.msra.mxu0 %v839
    %969 = vmatpush.bf16.msra.mxu0 %v835
    %970 = vmatpush.bf16.msra.mxu0 %v831
    %971 = vmatpush.bf16.msra.mxu0 %v827
    %972 = vmatpush.bf16.msra.mxu0 %v823
    %973 = vmatmul.bf16.gmra.mxu0 %v669
    %v974 = vpop.f32.mrf.mxu0
    %v975 = vadd.f32 %v603, %v974
    %v976 = vpop.f32.mrf.mxu0
    %v977 = vadd.f32 %v605, %v976
    %978 = vdwg.mxu0
    %979 = vmatpush.bf16.msra.mxu0 0
    %980 = vmatpush.bf16.msra.mxu0 0
    %981 = vmatpush.bf16.msra.mxu0 0
    %982 = vmatpush.bf16.msra.mxu0 %v929
    %983 = vmatpush.bf16.msra.mxu0 %v867
    %984 = vmatpush.bf16.msra.mxu0 %v863
    %985 = vmatpush.bf16.msra.mxu0 %v859
    %986 = vmatpush.bf16.msra.mxu0 %v855
    %987 = vmatmul.bf16.gmra.mxu0 %v923
    %v988 = vpop.f32.mrf.mxu0
    %v989 = vadd.f32 %v975, %v988
    %v990 = vpop.f32.mrf.mxu0
    %v991 = vadd.f32 %v977, %v990
    %992 = vdwg.mxu0
    %993 = vmatpush.bf16.msra.mxu0 %v852
    %994 = vmatpush.bf16.msra.mxu0 %v848
    %995 = vmatpush.bf16.msra.mxu0 %v844
    %996 = vmatpush.bf16.msra.mxu0 %v840
    %997 = vmatpush.bf16.msra.mxu0 %v836
    %998 = vmatpush.bf16.msra.mxu0 %v832
    %999 = vmatpush.bf16.msra.mxu0 %v828
    %1000 = vmatpush.bf16.msra.mxu0 %v824
    %1001 = vmatmul.bf16.gmra.mxu0 %v669
    %v1002 = vpop.f32.mrf.mxu0
    %v1003 = vadd.f32 %v631, %v1002
    %v1004 = vpop.f32.mrf.mxu0
    %v1005 = vadd.f32 %v633, %v1004
    %1006 = vdwg.mxu0
    %1007 = vmatpush.bf16.msra.mxu0 0
    %1008 = vmatpush.bf16.msra.mxu0 0
    %1009 = vmatpush.bf16.msra.mxu0 0
    %1010 = vmatpush.bf16.msra.mxu0 %v932
    %1011 = vmatpush.bf16.msra.mxu0 %v868
    %1012 = vmatpush.bf16.msra.mxu0 %v864
    %1013 = vmatpush.bf16.msra.mxu0 %v860
    %1014 = vmatpush.bf16.msra.mxu0 %v856
    %1015 = vmatmul.bf16.gmra.mxu0 %v923
    %v1016 = vpop.f32.mrf.mxu0
    %v1017 = vadd.f32 %v1003, %v1016
    %v1018 = vpop.f32.mrf.mxu0
    %v1019 = vadd.f32 %v1005, %v1018
    %1020 = vdwg.mxu0
    %1021 = vmatpush.bf16.msra.mxu0 %v853
    %1022 = vmatpush.bf16.msra.mxu0 %v849
    %1023 = vmatpush.bf16.msra.mxu0 %v845
    %1024 = vmatpush.bf16.msra.mxu0 %v841
    %1025 = vmatpush.bf16.msra.mxu0 %v837
    %1026 = vmatpush.bf16.msra.mxu0 %v833
    %1027 = vmatpush.bf16.msra.mxu0 %v829
    %1028 = vmatpush.bf16.msra.mxu0 %v825
    %1029 = vmatmul.bf16.gmra.mxu0 %v669
    %v1030 = vpop.f32.mrf.mxu0
    %v1031 = vadd.f32 %v659, %v1030
    %v1032 = vpop.f32.mrf.mxu0
    %v1033 = vadd.f32 %v661, %v1032
    %1034 = vdwg.mxu0
    %1035 = vmatpush.bf16.msra.mxu0 0
    %1036 = vmatpush.bf16.msra.mxu0 0
    %1037 = vmatpush.bf16.msra.mxu0 0
    %1038 = vmatpush.bf16.msra.mxu0 %v935
    %1039 = vmatpush.bf16.msra.mxu0 %v869
    %1040 = vmatpush.bf16.msra.mxu0 %v865
    %1041 = vmatpush.bf16.msra.mxu0 %v861
    %1042 = vmatpush.bf16.msra.mxu0 %v857
    %1043 = vmatmul.bf16.gmra.mxu0 %v923
    %v1044 = vpop.f32.mrf.mxu0
    %v1045 = vadd.f32 %v1031, %v1044
    %v1046 = vpop.f32.mrf.mxu0
    %v1047 = vadd.f32 %v1033, %v1046
    %1048 = vdwg.mxu0
    %v1049 = vld [vmem:[#allocation4] sm:$0xf]
    %v1051 = vperm.slane %v1049, 0
    %v1052 = vperm.slane %v1049, 1
    %v1053 = vperm.slane %v1049, 2
    %v1054 = vperm.slane %v1049, 3
    %v1059 = vadd.f32 %v961, %v1051
    %v1060 = vadd.f32 %v989, %v1052
    %v1061 = vadd.f32 %v1017, %v1053
    %v1062 = vadd.f32 %v1045, %v1054
    %v1063 = vadd.f32 %v963, %v1051
    %v1064 = vadd.f32 %v991, %v1052
    %v1065 = vadd.f32 %v1019, %v1053
    %v1066 = vadd.f32 %v1047, %v1054
    %v1067 = vmax.f32 %v1059, 0.0
    %v1068 = vmax.f32 %v1060, 0.0
    %v1069 = vmax.f32 %v1061, 0.0
    %v1070 = vmax.f32 %v1062, 0.0
    %v1071 = vmax.f32 %v1063, 0.0
    %v1072 = vmax.f32 %v1064, 0.0
    %v1073 = vmax.f32 %v1065, 0.0
    %v1074 = vmax.f32 %v1066, 0.0
    %v1075 = vpack.c.bf16 %v1071, %v1067
    %v1076 = vpack.c.bf16 %v1072, %v1068
    %v1077 = vpack.c.bf16 %v1073, %v1069
    %v1078 = vpack.c.bf16 %v1074, %v1070
    %v1079 = vld [vmem:[#allocation6] sm:$0xff]
    %v1080 = vld [vmem:[#allocation6 + $0x8] sm:$0xff]
    %v1081 = vld [vmem:[#allocation6 + $0x10] sm:$0xff]
    %v1082 = vld [vmem:[#allocation6 + $0x18] sm:$0xff]
    %v1083 = vld [vmem:[#allocation6 + $0x20] sm:$0xff]
    %v1084 = vld [vmem:[#allocation6 + $0x28] sm:$0xff]
    %v1085 = vld [vmem:[#allocation6 + $0x30] sm:$0xff]
    %v1086 = vld [vmem:[#allocation6 + $0x38] sm:$0xff]
    %v1087 = vld [vmem:[#allocation6 + $0x40] sm:$0xff]
    %v1088 = vld [vmem:[#allocation6 + $0x48] sm:$0xff]
    %v1089 = vld [vmem:[#allocation6 + $0x50] sm:$0xff]
    %v1090 = vld [vmem:[#allocation6 + $0x58] sm:$0xff]
    %v1091 = vld [vmem:[#allocation6 + $0x60] sm:$0xff]
    %v1092 = vld [vmem:[#allocation6 + $0x68] sm:$0xff]
    %v1093 = vld [vmem:[#allocation6 + $0x70] sm:$0xff]
    %v1094 = vld [vmem:[#allocation6 + $0x78] sm:$0xff]
    %v1095 = vld [vmem:[#allocation6 + $0x80] sm:$0xff]
    %v1096 = vld [vmem:[#allocation6 + $0x88] sm:$0xff]
    %v1097 = vld [vmem:[#allocation6 + $0x90] sm:$0xff]
    %v1098 = vld [vmem:[#allocation6 + $0x98] sm:$0xff]
    %v1099 = vld [vmem:[#allocation6 + $0xa0] sm:$0xff]
    %v1100 = vld [vmem:[#allocation6 + $0xa8] sm:$0xff]
    %v1101 = vld [vmem:[#allocation6 + $0xb0] sm:$0xff]
    %v1102 = vld [vmem:[#allocation6 + $0xb8] sm:$0xff]
    %v1103 = vld [vmem:[#allocation6 + $0xc0] sm:$0xff]
    %v1104 = vld [vmem:[#allocation6 + $0xc8] sm:$0xff]
    %v1105 = vld [vmem:[#allocation6 + $0xd0] sm:$0xff]
    %v1106 = vld [vmem:[#allocation6 + $0xd8] sm:$0xff]
    %v1107 = vld [vmem:[#allocation6 + $0xe0] sm:$0xff]
    %v1108 = vld [vmem:[#allocation6 + $0xe8] sm:$0xff]
    %v1109 = vld [vmem:[#allocation6 + $0xf0] sm:$0xff]
    %v1110 = vld [vmem:[#allocation6 + $0xf8] sm:$0xff]
    %v1111 = vld [vmem:[#allocation6 + $0x100] sm:$0xff]
    %v1112 = vld [vmem:[#allocation6 + $0x108] sm:$0xff]
    %v1113 = vld [vmem:[#allocation6 + $0x110] sm:$0xff]
    %v1114 = vld [vmem:[#allocation6 + $0x118] sm:$0xff]
    %v1115 = vld [vmem:[#allocation6 + $0x120] sm:$0xff]
    %v1116 = vld [vmem:[#allocation6 + $0x128] sm:$0xff]
    %v1117 = vld [vmem:[#allocation6 + $0x130] sm:$0xff]
    %v1118 = vld [vmem:[#allocation6 + $0x138] sm:$0xff]
    %v1119 = vld [vmem:[#allocation6 + $0x140] sm:$0xff]
    %v1120 = vld [vmem:[#allocation6 + $0x148] sm:$0xff]
    %v1121 = vld [vmem:[#allocation6 + $0x150] sm:$0xff]
    %v1122 = vld [vmem:[#allocation6 + $0x158] sm:$0xff]
    %v1123 = vld [vmem:[#allocation6 + $0x160] sm:$0xff]
    %v1124 = vld [vmem:[#allocation6 + $0x168] sm:$0xff]
    %v1125 = vld [vmem:[#allocation6 + $0x170] sm:$0xff]
    %v1126 = vld [vmem:[#allocation6 + $0x178] sm:$0xff]
    %v1127 = vld [vmem:[#allocation6 + $0x180] sm:$0xff]
    %v1128 = vld [vmem:[#allocation6 + $0x188] sm:$0xff]
    %v1129 = vld [vmem:[#allocation6 + $0x190] sm:$0xff]
    %v1130 = vld [vmem:[#allocation6 + $0x198] sm:$0xff]
    %v1131 = vld [vmem:[#allocation6 + $0x1a0] sm:$0xff]
    %v1132 = vld [vmem:[#allocation6 + $0x1a8] sm:$0xff]
    %v1133 = vld [vmem:[#allocation6 + $0x1b0] sm:$0xff]
    %v1134 = vld [vmem:[#allocation6 + $0x1b8] sm:$0xff]
    %v1135 = vld [vmem:[#allocation6 + $0x1c0] sm:$0xff]
    %v1136 = vld [vmem:[#allocation6 + $0x1c8] sm:$0xff]
    %v1137 = vld [vmem:[#allocation6 + $0x1d0] sm:$0xff]
    %v1138 = vld [vmem:[#allocation6 + $0x1d8] sm:$0xff]
    %v1139 = vld [vmem:[#allocation6 + $0x1e0] sm:$0xff]
    %v1140 = vld [vmem:[#allocation6 + $0x1e8] sm:$0xff]
    %v1141 = vld [vmem:[#allocation6 + $0x1f0] sm:$0xff]
    %v1142 = vld [vmem:[#allocation6 + $0x1f8] sm:$0xff]
    %v1143 = vld [vmem:[#allocation6 + $0x200] sm:$0xff]
    %v1144 = vld [vmem:[#allocation6 + $0x208] sm:$0xff]
    %v1145 = vld [vmem:[#allocation6 + $0x210] sm:$0xff]
    %v1146 = vld [vmem:[#allocation6 + $0x218] sm:$0xff]
    %v1147 = vld [vmem:[#allocation6 + $0x220] sm:$0xff]
    %v1148 = vld [vmem:[#allocation6 + $0x228] sm:$0xff]
    %v1149 = vld [vmem:[#allocation6 + $0x230] sm:$0xff]
    %v1150 = vld [vmem:[#allocation6 + $0x238] sm:$0xff]
    %v1151 = vld [vmem:[#allocation6 + $0x240] sm:$0xff]
    %v1152 = vld [vmem:[#allocation6 + $0x248] sm:$0xff]
    %v1153 = vld [vmem:[#allocation6 + $0x250] sm:$0xff]
    %v1154 = vld [vmem:[#allocation6 + $0x258] sm:$0xff]
    %v1155 = vld [vmem:[#allocation6 + $0x260] sm:$0xff]
    %v1156 = vld [vmem:[#allocation6 + $0x268] sm:$0xff]
    %v1157 = vld [vmem:[#allocation6 + $0x270] sm:$0xff]
    %v1158 = vld [vmem:[#allocation6 + $0x278] sm:$0xff]
    %v1159 = vld [vmem:[#allocation6 + $0x280] sm:$0xff]
    %v1160 = vld [vmem:[#allocation6 + $0x288] sm:$0xff]
    %v1161 = vld [vmem:[#allocation6 + $0x290] sm:$0xff]
    %v1162 = vld [vmem:[#allocation6 + $0x298] sm:$0xff]
    %v1163 = vld [vmem:[#allocation6 + $0x2a0] sm:$0xff]
    %v1164 = vld [vmem:[#allocation6 + $0x2a8] sm:$0xff]
    %v1165 = vld [vmem:[#allocation6 + $0x2b0] sm:$0xff]
    %v1166 = vld [vmem:[#allocation6 + $0x2b8] sm:$0xff]
    %v1167 = vld [vmem:[#allocation6 + $0x2c0] sm:$0xff]
    %v1168 = vld [vmem:[#allocation6 + $0x2c8] sm:$0xff]
    %v1169 = vld [vmem:[#allocation6 + $0x2d0] sm:$0xff]
    %v1170 = vld [vmem:[#allocation6 + $0x2d8] sm:$0xff]
    %v1171 = vld [vmem:[#allocation6 + $0x2e0] sm:$0xff]
    %v1172 = vld [vmem:[#allocation6 + $0x2e8] sm:$0xff]
    %v1173 = vld [vmem:[#allocation6 + $0x2f0] sm:$0xff]
    %v1174 = vld [vmem:[#allocation6 + $0x2f8] sm:$0xff]
    %v1175 = vld [vmem:[#allocation6 + $0x300] sm:$0xff]
    %v1176 = vld [vmem:[#allocation6 + $0x308] sm:$0xff]
    %v1177 = vld [vmem:[#allocation6 + $0x310] sm:$0xff]
    %v1178 = vld [vmem:[#allocation6 + $0x318] sm:$0xff]
    %v1179 = vld [vmem:[#allocation7] sm:$0xf]
    %v1181 = vperm.slane %v1179, 0
    %v1182 = vperm.slane %v1179, 1
    %v1183 = vperm.slane %v1179, 2
    %v1184 = vperm.slane %v1179, 3
    %v1289 = vunpack.c.l.b16 %v1079
    %v1290 = vunpack.c.h.b16 %v1079
    %v1291 = vunpack.c.l.b16 %v1080
    %v1292 = vunpack.c.h.b16 %v1080
    %v1293 = vunpack.c.l.b16 %v1081
    %v1294 = vunpack.c.h.b16 %v1081
    %v1295 = vunpack.c.l.b16 %v1082
    %v1296 = vunpack.c.h.b16 %v1082
    %v1297 = vunpack.c.l.b16 %v1083
    %v1298 = vunpack.c.h.b16 %v1083
    %v1299 = vunpack.c.l.b16 %v1084
    %v1300 = vunpack.c.h.b16 %v1084
    %v1301 = vunpack.c.l.b16 %v1085
    %v1302 = vunpack.c.h.b16 %v1085
    %v1303 = vunpack.c.l.b16 %v1086
    %v1304 = vunpack.c.h.b16 %v1086
    %v1305 = vunpack.c.l.b16 %v1087
    %v1306 = vunpack.c.h.b16 %v1087
    %v1307 = vunpack.c.l.b16 %v1088
    %v1308 = vunpack.c.h.b16 %v1088
    %v1309 = vunpack.c.l.b16 %v1089
    %v1310 = vunpack.c.h.b16 %v1089
    %v1311 = vunpack.c.l.b16 %v1090
    %v1312 = vunpack.c.h.b16 %v1090
    %v1313 = vunpack.c.l.b16 %v1091
    %v1314 = vunpack.c.h.b16 %v1091
    %v1315 = vunpack.c.l.b16 %v1092
    %v1316 = vunpack.c.h.b16 %v1092
    %v1317 = vunpack.c.l.b16 %v1093
    %v1318 = vunpack.c.h.b16 %v1093
    %v1319 = vunpack.c.l.b16 %v1094
    %v1320 = vunpack.c.h.b16 %v1094
    %v1321 = vunpack.c.l.b16 %v1095
    %v1322 = vunpack.c.h.b16 %v1095
    %v1323 = vunpack.c.l.b16 %v1096
    %v1324 = vunpack.c.h.b16 %v1096
    %v1325 = vunpack.c.l.b16 %v1097
    %v1326 = vunpack.c.h.b16 %v1097
    %v1327 = vunpack.c.l.b16 %v1098
    %v1328 = vunpack.c.h.b16 %v1098
    %v1329 = vunpack.c.l.b16 %v1099
    %v1330 = vunpack.c.h.b16 %v1099
    %v1331 = vunpack.c.l.b16 %v1100
    %v1332 = vunpack.c.h.b16 %v1100
    %v1333 = vunpack.c.l.b16 %v1101
    %v1334 = vunpack.c.h.b16 %v1101
    %v1335 = vunpack.c.l.b16 %v1102
    %v1336 = vunpack.c.h.b16 %v1102
    %v1337 = vunpack.c.l.b16 %v1103
    %v1338 = vunpack.c.h.b16 %v1103
    %v1339 = vunpack.c.l.b16 %v1104
    %v1340 = vunpack.c.h.b16 %v1104
    %v1341 = vunpack.c.l.b16 %v1105
    %v1342 = vunpack.c.h.b16 %v1105
    %v1343 = vunpack.c.l.b16 %v1106
    %v1344 = vunpack.c.h.b16 %v1106
    %v1345 = vunpack.c.l.b16 %v1107
    %v1346 = vunpack.c.h.b16 %v1107
    %v1347 = vunpack.c.l.b16 %v1108
    %v1348 = vunpack.c.h.b16 %v1108
    %v1349 = vunpack.c.l.b16 %v1109
    %v1350 = vunpack.c.h.b16 %v1109
    %v1351 = vunpack.c.l.b16 %v1110
    %v1352 = vunpack.c.h.b16 %v1110
    %v1353 = vunpack.c.l.b16 %v1111
    %v1354 = vunpack.c.h.b16 %v1111
    %v1355 = vunpack.c.l.b16 %v1112
    %v1356 = vunpack.c.h.b16 %v1112
    %v1357 = vunpack.c.l.b16 %v1113
    %v1358 = vunpack.c.h.b16 %v1113
    %v1359 = vunpack.c.l.b16 %v1114
    %v1360 = vunpack.c.h.b16 %v1114
    %v1361 = vunpack.c.l.b16 %v1115
    %v1362 = vunpack.c.h.b16 %v1115
    %v1363 = vunpack.c.l.b16 %v1116
    %v1364 = vunpack.c.h.b16 %v1116
    %v1365 = vunpack.c.l.b16 %v1117
    %v1366 = vunpack.c.h.b16 %v1117
    %v1367 = vunpack.c.l.b16 %v1118
    %v1368 = vunpack.c.h.b16 %v1118
    %v1369 = vunpack.c.l.b16 %v1119
    %v1370 = vunpack.c.h.b16 %v1119
    %v1371 = vunpack.c.l.b16 %v1120
    %v1372 = vunpack.c.h.b16 %v1120
    %v1373 = vunpack.c.l.b16 %v1121
    %v1374 = vunpack.c.h.b16 %v1121
    %v1375 = vunpack.c.l.b16 %v1122
    %v1376 = vunpack.c.h.b16 %v1122
    %v1377 = vunpack.c.l.b16 %v1123
    %v1378 = vunpack.c.h.b16 %v1123
    %v1379 = vunpack.c.l.b16 %v1124
    %v1380 = vunpack.c.h.b16 %v1124
    %v1381 = vunpack.c.l.b16 %v1125
    %v1382 = vunpack.c.h.b16 %v1125
    %v1383 = vunpack.c.l.b16 %v1126
    %v1384 = vunpack.c.h.b16 %v1126
    %v1385 = vunpack.c.l.b16 %v1127
    %v1386 = vunpack.c.h.b16 %v1127
    %v1387 = vunpack.c.l.b16 %v1128
    %v1388 = vunpack.c.h.b16 %v1128
    %v1389 = vunpack.c.l.b16 %v1129
    %v1390 = vunpack.c.h.b16 %v1129
    %v1391 = vunpack.c.l.b16 %v1130
    %v1392 = vunpack.c.h.b16 %v1130
    %v1393 = vunpack.c.l.b16 %v1131
    %v1394 = vunpack.c.h.b16 %v1131
    %v1395 = vunpack.c.l.b16 %v1132
    %v1396 = vunpack.c.h.b16 %v1132
    %v1397 = vunpack.c.l.b16 %v1133
    %v1398 = vunpack.c.h.b16 %v1133
    %v1399 = vunpack.c.l.b16 %v1134
    %v1400 = vunpack.c.h.b16 %v1134
    %v1401 = vunpack.c.l.b16 %v1135
    %v1402 = vunpack.c.h.b16 %v1135
    %v1403 = vunpack.c.l.b16 %v1136
    %v1404 = vunpack.c.h.b16 %v1136
    %v1405 = vunpack.c.l.b16 %v1137
    %v1406 = vunpack.c.h.b16 %v1137
    %v1407 = vunpack.c.l.b16 %v1138
    %v1408 = vunpack.c.h.b16 %v1138
    %v1409 = vunpack.c.l.b16 %v1139
    %v1410 = vunpack.c.h.b16 %v1139
    %v1411 = vunpack.c.l.b16 %v1140
    %v1412 = vunpack.c.h.b16 %v1140
    %v1413 = vunpack.c.l.b16 %v1141
    %v1414 = vunpack.c.h.b16 %v1141
    %v1415 = vunpack.c.l.b16 %v1142
    %v1416 = vunpack.c.h.b16 %v1142
    %v1417 = vunpack.c.l.b16 %v1143
    %v1418 = vunpack.c.h.b16 %v1143
    %v1419 = vunpack.c.l.b16 %v1144
    %v1420 = vunpack.c.h.b16 %v1144
    %v1421 = vunpack.c.l.b16 %v1145
    %v1422 = vunpack.c.h.b16 %v1145
    %v1423 = vunpack.c.l.b16 %v1146
    %v1424 = vunpack.c.h.b16 %v1146
    %v1425 = vunpack.c.l.b16 %v1147
    %v1426 = vunpack.c.h.b16 %v1147
    %v1427 = vunpack.c.l.b16 %v1148
    %v1428 = vunpack.c.h.b16 %v1148
    %v1429 = vunpack.c.l.b16 %v1149
    %v1430 = vunpack.c.h.b16 %v1149
    %v1431 = vunpack.c.l.b16 %v1150
    %v1432 = vunpack.c.h.b16 %v1150
    %v1433 = vunpack.c.l.b16 %v1151
    %v1434 = vunpack.c.h.b16 %v1151
    %v1435 = vunpack.c.l.b16 %v1152
    %v1436 = vunpack.c.h.b16 %v1152
    %v1437 = vunpack.c.l.b16 %v1153
    %v1438 = vunpack.c.h.b16 %v1153
    %v1439 = vunpack.c.l.b16 %v1154
    %v1440 = vunpack.c.h.b16 %v1154
    %v1441 = vunpack.c.l.b16 %v1155
    %v1442 = vunpack.c.h.b16 %v1155
    %v1443 = vunpack.c.l.b16 %v1156
    %v1444 = vunpack.c.h.b16 %v1156
    %v1445 = vunpack.c.l.b16 %v1157
    %v1446 = vunpack.c.h.b16 %v1157
    %v1447 = vunpack.c.l.b16 %v1158
    %v1448 = vunpack.c.h.b16 %v1158
    %v1449 = vunpack.c.l.b16 %v1159
    %v1450 = vunpack.c.h.b16 %v1159
    %v1451 = vunpack.c.l.b16 %v1160
    %v1452 = vunpack.c.h.b16 %v1160
    %v1453 = vunpack.c.l.b16 %v1161
    %v1454 = vunpack.c.h.b16 %v1161
    %v1455 = vunpack.c.l.b16 %v1162
    %v1456 = vunpack.c.h.b16 %v1162
    %v1457 = vunpack.c.l.b16 %v1163
    %v1458 = vunpack.c.h.b16 %v1163
    %v1459 = vunpack.c.l.b16 %v1164
    %v1460 = vunpack.c.h.b16 %v1164
    %v1461 = vunpack.c.l.b16 %v1165
    %v1462 = vunpack.c.h.b16 %v1165
    %v1463 = vunpack.c.l.b16 %v1166
    %v1464 = vunpack.c.h.b16 %v1166
    %v1465 = vunpack.c.l.b16 %v1167
    %v1466 = vunpack.c.h.b16 %v1167
    %v1467 = vunpack.c.l.b16 %v1168
    %v1468 = vunpack.c.h.b16 %v1168
    %v1469 = vunpack.c.l.b16 %v1169
    %v1470 = vunpack.c.h.b16 %v1169
    %v1471 = vunpack.c.l.b16 %v1170
    %v1472 = vunpack.c.h.b16 %v1170
    %v1473 = vunpack.c.l.b16 %v1171
    %v1474 = vunpack.c.h.b16 %v1171
    %v1475 = vunpack.c.l.b16 %v1172
    %v1476 = vunpack.c.h.b16 %v1172
    %v1477 = vunpack.c.l.b16 %v1173
    %v1478 = vunpack.c.h.b16 %v1173
    %v1479 = vunpack.c.l.b16 %v1174
    %v1480 = vunpack.c.h.b16 %v1174
    %v1481 = vunpack.c.l.b16 %v1175
    %v1482 = vunpack.c.h.b16 %v1175
    %v1483 = vunpack.c.l.b16 %v1176
    %v1484 = vunpack.c.h.b16 %v1176
    %v1485 = vunpack.c.l.b16 %v1177
    %v1486 = vunpack.c.h.b16 %v1177
    %v1487 = vunpack.c.l.b16 %v1178
    %v1488 = vunpack.c.h.b16 %v1178
    %v1489 = vpack.c.b16 %v1293, %v1289
    %v1490 = vpack.c.b16 %v1294, %v1290
    %v1491 = vpack.c.b16 %v1295, %v1291
    %v1492 = vpack.c.b16 %v1296, %v1292
    %v1493 = vpack.c.b16 %v1301, %v1297
    %v1494 = vpack.c.b16 %v1302, %v1298
    %v1495 = vpack.c.b16 %v1303, %v1299
    %v1496 = vpack.c.b16 %v1304, %v1300
    %v1497 = vpack.c.b16 %v1309, %v1305
    %v1498 = vpack.c.b16 %v1310, %v1306
    %v1499 = vpack.c.b16 %v1311, %v1307
    %v1500 = vpack.c.b16 %v1312, %v1308
    %v1501 = vpack.c.b16 %v1317, %v1313
    %v1502 = vpack.c.b16 %v1318, %v1314
    %v1503 = vpack.c.b16 %v1319, %v1315
    %v1504 = vpack.c.b16 %v1320, %v1316
    %v1505 = vpack.c.b16 %v1325, %v1321
    %v1506 = vpack.c.b16 %v1326, %v1322
    %v1507 = vpack.c.b16 %v1327, %v1323
    %v1508 = vpack.c.b16 %v1328, %v1324
    %v1509 = vpack.c.b16 %v1333, %v1329
    %v1510 = vpack.c.b16 %v1334, %v1330
    %v1511 = vpack.c.b16 %v1335, %v1331
    %v1512 = vpack.c.b16 %v1336, %v1332
    %v1513 = vpack.c.b16 %v1341, %v1337
    %v1514 = vpack.c.b16 %v1342, %v1338
    %v1515 = vpack.c.b16 %v1343, %v1339
    %v1516 = vpack.c.b16 %v1344, %v1340
    %v1517 = vpack.c.b16 %v1349, %v1345
    %v1518 = vpack.c.b16 %v1350, %v1346
    %v1519 = vpack.c.b16 %v1351, %v1347
    %v1520 = vpack.c.b16 %v1352, %v1348
    %v1521 = vpack.c.b16 %v1357, %v1353
    %v1522 = vpack.c.b16 %v1358, %v1354
    %v1523 = vpack.c.b16 %v1359, %v1355
    %v1524 = vpack.c.b16 %v1360, %v1356
    %v1525 = vpack.c.b16 %v1365, %v1361
    %v1526 = vpack.c.b16 %v1366, %v1362
    %v1527 = vpack.c.b16 %v1367, %v1363
    %v1528 = vpack.c.b16 %v1368, %v1364
    %v1529 = vpack.c.b16 %v1373, %v1369
    %v1530 = vpack.c.b16 %v1374, %v1370
    %v1531 = vpack.c.b16 %v1375, %v1371
    %v1532 = vpack.c.b16 %v1376, %v1372
    %v1533 = vpack.c.b16 %v1381, %v1377
    %v1534 = vpack.c.b16 %v1382, %v1378
    %v1535 = vpack.c.b16 %v1383, %v1379
    %v1536 = vpack.c.b16 %v1384, %v1380
    %v1537 = vpack.c.b16 %v1389, %v1385
    %v1538 = vpack.c.b16 %v1390, %v1386
    %v1539 = vpack.c.b16 %v1391, %v1387
    %v1540 = vpack.c.b16 %v1392, %v1388
    %v1541 = vpack.c.b16 %v1397, %v1393
    %v1542 = vpack.c.b16 %v1398, %v1394
    %v1543 = vpack.c.b16 %v1399, %v1395
    %v1544 = vpack.c.b16 %v1400, %v1396
    %v1545 = vpack.c.b16 %v1405, %v1401
    %v1546 = vpack.c.b16 %v1406, %v1402
    %v1547 = vpack.c.b16 %v1407, %v1403
    %v1548 = vpack.c.b16 %v1408, %v1404
    %v1549 = vpack.c.b16 %v1413, %v1409
    %v1550 = vpack.c.b16 %v1414, %v1410
    %v1551 = vpack.c.b16 %v1415, %v1411
    %v1552 = vpack.c.b16 %v1416, %v1412
    %v1553 = vpack.c.b16 %v1421, %v1417
    %v1554 = vpack.c.b16 %v1422, %v1418
    %v1555 = vpack.c.b16 %v1423, %v1419
    %v1556 = vpack.c.b16 %v1424, %v1420
    %v1557 = vpack.c.b16 %v1429, %v1425
    %v1558 = vpack.c.b16 %v1430, %v1426
    %v1559 = vpack.c.b16 %v1431, %v1427
    %v1560 = vpack.c.b16 %v1432, %v1428
    %v1561 = vpack.c.b16 %v1437, %v1433
    %v1562 = vpack.c.b16 %v1438, %v1434
    %v1563 = vpack.c.b16 %v1439, %v1435
    %v1564 = vpack.c.b16 %v1440, %v1436
    %v1565 = vpack.c.b16 %v1445, %v1441
    %v1566 = vpack.c.b16 %v1446, %v1442
    %v1567 = vpack.c.b16 %v1447, %v1443
    %v1568 = vpack.c.b16 %v1448, %v1444
    %v1569 = vpack.c.b16 %v1453, %v1449
    %v1570 = vpack.c.b16 %v1454, %v1450
    %v1571 = vpack.c.b16 %v1455, %v1451
    %v1572 = vpack.c.b16 %v1456, %v1452
    %v1573 = vpack.c.b16 %v1461, %v1457
    %v1574 = vpack.c.b16 %v1462, %v1458
    %v1575 = vpack.c.b16 %v1463, %v1459
    %v1576 = vpack.c.b16 %v1464, %v1460
    %v1577 = vpack.c.b16 %v1469, %v1465
    %v1578 = vpack.c.b16 %v1470, %v1466
    %v1579 = vpack.c.b16 %v1471, %v1467
    %v1580 = vpack.c.b16 %v1472, %v1468
    %v1581 = vpack.c.b16 %v1477, %v1473
    %v1582 = vpack.c.b16 %v1478, %v1474
    %v1583 = vpack.c.b16 %v1479, %v1475
    %v1584 = vpack.c.b16 %v1480, %v1476
    %v1585 = vpack.c.b16 %v1485, %v1481
    %v1586 = vpack.c.b16 %v1486, %v1482
    %v1587 = vpack.c.b16 %v1487, %v1483
    %v1588 = vpack.c.b16 %v1488, %v1484
    %vm1689 = vcmask 130048
    %v1691 = vsel %vm1689, %v1078, 0
    %1693 = vmatpush.bf16.msra.mxu0 %v1517
    %1694 = vmatpush.bf16.msra.mxu0 %v1513
    %1695 = vmatpush.bf16.msra.mxu0 %v1509
    %1696 = vmatpush.bf16.msra.mxu0 %v1505
    %1697 = vmatpush.bf16.msra.mxu0 %v1501
    %1698 = vmatpush.bf16.msra.mxu0 %v1497
    %1699 = vmatpush.bf16.msra.mxu0 %v1493
    %1700 = vmatpush.bf16.msra.mxu0 %v1489
    %1701 = vmatmul.bf16.gmra.mxu0 %v1075
    %v1702 = vpop.f32.mrf.mxu0
    %v1703 = vadd.f32 %v1181, %v1702
    %v1704 = vpop.f32.mrf.mxu0
    %v1705 = vadd.f32 %v1181, %v1704
    %1706 = vdwg.mxu0
    %1707 = vmatpush.bf16.msra.mxu0 %v1549
    %1708 = vmatpush.bf16.msra.mxu0 %v1545
    %1709 = vmatpush.bf16.msra.mxu0 %v1541
    %1710 = vmatpush.bf16.msra.mxu0 %v1537
    %1711 = vmatpush.bf16.msra.mxu0 %v1533
    %1712 = vmatpush.bf16.msra.mxu0 %v1529
    %1713 = vmatpush.bf16.msra.mxu0 %v1525
    %1714 = vmatpush.bf16.msra.mxu0 %v1521
    %1715 = vmatmul.bf16.gmra.mxu0 %v1076
    %v1716 = vpop.f32.mrf.mxu0
    %v1717 = vadd.f32 %v1703, %v1716
    %v1718 = vpop.f32.mrf.mxu0
    %v1719 = vadd.f32 %v1705, %v1718
    %1720 = vdwg.mxu0
    %1721 = vmatpush.bf16.msra.mxu0 %v1581
    %1722 = vmatpush.bf16.msra.mxu0 %v1577
    %1723 = vmatpush.bf16.msra.mxu0 %v1573
    %1724 = vmatpush.bf16.msra.mxu0 %v1569
    %1725 = vmatpush.bf16.msra.mxu0 %v1565
    %1726 = vmatpush.bf16.msra.mxu0 %v1561
    %1727 = vmatpush.bf16.msra.mxu0 %v1557
    %1728 = vmatpush.bf16.msra.mxu0 %v1553
    %1729 = vmatmul.bf16.gmra.mxu0 %v1077
    %v1730 = vpop.f32.mrf.mxu0
    %v1731 = vadd.f32 %v1717, %v1730
    %v1732 = vpop.f32.mrf.mxu0
    %v1733 = vadd.f32 %v1719, %v1732
    %1734 = vdwg.mxu0
    %1735 = vmatpush.bf16.msra.mxu0 0
    %1736 = vmatpush.bf16.msra.mxu0 0
    %1737 = vmatpush.bf16.msra.mxu0 0
    %1738 = vmatpush.bf16.msra.mxu0 0
    %1739 = vmatpush.bf16.msra.mxu0 0
    %1740 = vmatpush.bf16.msra.mxu0 0
    %1741 = vmatpush.bf16.msra.mxu0 0
    %1742 = vmatpush.bf16.msra.mxu0 %v1585
    %1743 = vmatmul.bf16.gmra.mxu0 %v1691
    %v1744 = vpop.f32.mrf.mxu0
    %v1745 = vadd.f32 %v1731, %v1744
    %v1746 = vpop.f32.mrf.mxu0
    %v1747 = vadd.f32 %v1733, %v1746
    %1748 = vdwg.mxu0
    %1749 = vmatpush.bf16.msra.mxu0 %v1518
    %1750 = vmatpush.bf16.msra.mxu0 %v1514
    %1751 = vmatpush.bf16.msra.mxu0 %v1510
    %1752 = vmatpush.bf16.msra.mxu0 %v1506
    %1753 = vmatpush.bf16.msra.mxu0 %v1502
    %1754 = vmatpush.bf16.msra.mxu0 %v1498
    %1755 = vmatpush.bf16.msra.mxu0 %v1494
    %1756 = vmatpush.bf16.msra.mxu0 %v1490
    %1757 = vmatmul.bf16.gmra.mxu0 %v1075
    %v1758 = vpop.f32.mrf.mxu0
    %v1759 = vadd.f32 %v1182, %v1758
    %v1760 = vpop.f32.mrf.mxu0
    %v1761 = vadd.f32 %v1182, %v1760
    %1762 = vdwg.mxu0
    %1763 = vmatpush.bf16.msra.mxu0 %v1550
    %1764 = vmatpush.bf16.msra.mxu0 %v1546
    %1765 = vmatpush.bf16.msra.mxu0 %v1542
    %1766 = vmatpush.bf16.msra.mxu0 %v1538
    %1767 = vmatpush.bf16.msra.mxu0 %v1534
    %1768 = vmatpush.bf16.msra.mxu0 %v1530
    %1769 = vmatpush.bf16.msra.mxu0 %v1526
    %1770 = vmatpush.bf16.msra.mxu0 %v1522
    %1771 = vmatmul.bf16.gmra.mxu0 %v1076
    %v1772 = vpop.f32.mrf.mxu0
    %v1773 = vadd.f32 %v1759, %v1772
    %v1774 = vpop.f32.mrf.mxu0
    %v1775 = vadd.f32 %v1761, %v1774
    %1776 = vdwg.mxu0
    %1777 = vmatpush.bf16.msra.mxu0 %v1582
    %1778 = vmatpush.bf16.msra.mxu0 %v1578
    %1779 = vmatpush.bf16.msra.mxu0 %v1574
    %1780 = vmatpush.bf16.msra.mxu0 %v1570
    %1781 = vmatpush.bf16.msra.mxu0 %v1566
    %1782 = vmatpush.bf16.msra.mxu0 %v1562
    %1783 = vmatpush.bf16.msra.mxu0 %v1558
    %1784 = vmatpush.bf16.msra.mxu0 %v1554
    %1785 = vmatmul.bf16.gmra.mxu0 %v1077
    %v1786 = vpop.f32.mrf.mxu0
    %v1787 = vadd.f32 %v1773, %v1786
    %v1788 = vpop.f32.mrf.mxu0
    %v1789 = vadd.f32 %v1775, %v1788
    %1790 = vdwg.mxu0
    %1791 = vmatpush.bf16.msra.mxu0 0
    %1792 = vmatpush.bf16.msra.mxu0 0
    %1793 = vmatpush.bf16.msra.mxu0 0
    %1794 = vmatpush.bf16.msra.mxu0 0
    %1795 = vmatpush.bf16.msra.mxu0 0
    %1796 = vmatpush.bf16.msra.mxu0 0
    %1797 = vmatpush.bf16.msra.mxu0 0
    %1798 = vmatpush.bf16.msra.mxu0 %v1586
    %1799 = vmatmul.bf16.gmra.mxu0 %v1691
    %v1800 = vpop.f32.mrf.mxu0
    %v1801 = vadd.f32 %v1787, %v1800
    %v1802 = vpop.f32.mrf.mxu0
    %v1803 = vadd.f32 %v1789, %v1802
    %1804 = vdwg.mxu0
    %1805 = vmatpush.bf16.msra.mxu0 %v1519
    %1806 = vmatpush.bf16.msra.mxu0 %v1515
    %1807 = vmatpush.bf16.msra.mxu0 %v1511
    %1808 = vmatpush.bf16.msra.mxu0 %v1507
    %1809 = vmatpush.bf16.msra.mxu0 %v1503
    %1810 = vmatpush.bf16.msra.mxu0 %v1499
    %1811 = vmatpush.bf16.msra.mxu0 %v1495
    %1812 = vmatpush.bf16.msra.mxu0 %v1491
    %1813 = vmatmul.bf16.gmra.mxu0 %v1075
    %v1814 = vpop.f32.mrf.mxu0
    %v1815 = vadd.f32 %v1183, %v1814
    %v1816 = vpop.f32.mrf.mxu0
    %v1817 = vadd.f32 %v1183, %v1816
    %1818 = vdwg.mxu0
    %1819 = vmatpush.bf16.msra.mxu0 %v1551
    %1820 = vmatpush.bf16.msra.mxu0 %v1547
    %1821 = vmatpush.bf16.msra.mxu0 %v1543
    %1822 = vmatpush.bf16.msra.mxu0 %v1539
    %1823 = vmatpush.bf16.msra.mxu0 %v1535
    %1824 = vmatpush.bf16.msra.mxu0 %v1531
    %1825 = vmatpush.bf16.msra.mxu0 %v1527
    %1826 = vmatpush.bf16.msra.mxu0 %v1523
    %1827 = vmatmul.bf16.gmra.mxu0 %v1076
    %v1828 = vpop.f32.mrf.mxu0
    %v1829 = vadd.f32 %v1815, %v1828
    %v1830 = vpop.f32.mrf.mxu0
    %v1831 = vadd.f32 %v1817, %v1830
    %1832 = vdwg.mxu0
    %1833 = vmatpush.bf16.msra.mxu0 %v1583
    %1834 = vmatpush.bf16.msra.mxu0 %v1579
    %1835 = vmatpush.bf16.msra.mxu0 %v1575
    %1836 = vmatpush.bf16.msra.mxu0 %v1571
    %1837 = vmatpush.bf16.msra.mxu0 %v1567
    %1838 = vmatpush.bf16.msra.mxu0 %v1563
    %1839 = vmatpush.bf16.msra.mxu0 %v1559
    %1840 = vmatpush.bf16.msra.mxu0 %v1555
    %1841 = vmatmul.bf16.gmra.mxu0 %v1077
    %v1842 = vpop.f32.mrf.mxu0
    %v1843 = vadd.f32 %v1829, %v1842
    %v1844 = vpop.f32.mrf.mxu0
    %v1845 = vadd.f32 %v1831, %v1844
    %1846 = vdwg.mxu0
    %1847 = vmatpush.bf16.msra.mxu0 0
    %1848 = vmatpush.bf16.msra.mxu0 0
    %1849 = vmatpush.bf16.msra.mxu0 0
    %1850 = vmatpush.bf16.msra.mxu0 0
    %1851 = vmatpush.bf16.msra.mxu0 0
    %1852 = vmatpush.bf16.msra.mxu0 0
    %1853 = vmatpush.bf16.msra.mxu0 0
    %1854 = vmatpush.bf16.msra.mxu0 %v1587
    %1855 = vmatmul.bf16.gmra.mxu0 %v1691
    %v1856 = vpop.f32.mrf.mxu0
    %v1857 = vadd.f32 %v1843, %v1856
    %v1858 = vpop.f32.mrf.mxu0
    %v1859 = vadd.f32 %v1845, %v1858
    %1860 = vdwg.mxu0
    %1861 = vmatpush.bf16.msra.mxu0 %v1520
    %1862 = vmatpush.bf16.msra.mxu0 %v1516
    %1863 = vmatpush.bf16.msra.mxu0 %v1512
    %1864 = vmatpush.bf16.msra.mxu0 %v1508
    %1865 = vmatpush.bf16.msra.mxu0 %v1504
    %1866 = vmatpush.bf16.msra.mxu0 %v1500
    %1867 = vmatpush.bf16.msra.mxu0 %v1496
    %1868 = vmatpush.bf16.msra.mxu0 %v1492
    %1869 = vmatmul.bf16.gmra.mxu0 %v1075
    %v1870 = vpop.f32.mrf.mxu0
    %v1871 = vadd.f32 %v1184, %v1870
    %v1872 = vpop.f32.mrf.mxu0
    %v1873 = vadd.f32 %v1184, %v1872
    %1874 = vdwg.mxu0
    %1875 = vmatpush.bf16.msra.mxu0 %v1552
    %1876 = vmatpush.bf16.msra.mxu0 %v1548
    %1877 = vmatpush.bf16.msra.mxu0 %v1544
    %1878 = vmatpush.bf16.msra.mxu0 %v1540
    %1879 = vmatpush.bf16.msra.mxu0 %v1536
    %1880 = vmatpush.bf16.msra.mxu0 %v1532
    %1881 = vmatpush.bf16.msra.mxu0 %v1528
    %1882 = vmatpush.bf16.msra.mxu0 %v1524
    %1883 = vmatmul.bf16.gmra.mxu0 %v1076
    %v1884 = vpop.f32.mrf.mxu0
    %v1885 = vadd.f32 %v1871, %v1884
    %v1886 = vpop.f32.mrf.mxu0
    %v1887 = vadd.f32 %v1873, %v1886
    %1888 = vdwg.mxu0
    %1889 = vmatpush.bf16.msra.mxu0 %v1584
    %1890 = vmatpush.bf16.msra.mxu0 %v1580
    %1891 = vmatpush.bf16.msra.mxu0 %v1576
    %1892 = vmatpush.bf16.msra.mxu0 %v1572
    %1893 = vmatpush.bf16.msra.mxu0 %v1568
    %1894 = vmatpush.bf16.msra.mxu0 %v1564
    %1895 = vmatpush.bf16.msra.mxu0 %v1560
    %1896 = vmatpush.bf16.msra.mxu0 %v1556
    %1897 = vmatmul.bf16.gmra.mxu0 %v1077
    %v1898 = vpop.f32.mrf.mxu0
    %v1899 = vadd.f32 %v1885, %v1898
    %v1900 = vpop.f32.mrf.mxu0
    %v1901 = vadd.f32 %v1887, %v1900
    %1902 = vdwg.mxu0
    %1903 = vmatpush.bf16.msra.mxu0 0
    %1904 = vmatpush.bf16.msra.mxu0 0
    %1905 = vmatpush.bf16.msra.mxu0 0
    %1906 = vmatpush.bf16.msra.mxu0 0
    %1907 = vmatpush.bf16.msra.mxu0 0
    %1908 = vmatpush.bf16.msra.mxu0 0
    %1909 = vmatpush.bf16.msra.mxu0 0
    %1910 = vmatpush.bf16.msra.mxu0 %v1588
    %1911 = vmatmul.bf16.gmra.mxu0 %v1691
    %v1912 = vpop.f32.mrf.mxu0
    %v1913 = vadd.f32 %v1899, %v1912
    %v1914 = vpop.f32.mrf.mxu0
    %v1915 = vadd.f32 %v1901, %v1914
    %1916 = vdwg.mxu0
    %v1917 = vmax.f32 %v1745, 0.0
    %v1918 = vmax.f32 %v1801, 0.0
    %v1919 = vmax.f32 %v1857, 0.0
    %v1920 = vmax.f32 %v1913, 0.0
    %v1921 = vmax.f32 %v1747, 0.0
    %v1922 = vmax.f32 %v1803, 0.0
    %v1923 = vmax.f32 %v1859, 0.0
    %v1924 = vmax.f32 %v1915, 0.0
    %v1925 = vpack.c.bf16 %v1921, %v1917
    %v1926 = vpack.c.bf16 %v1922, %v1918
    %v1927 = vpack.c.bf16 %v1923, %v1919
    %v1928 = vpack.c.bf16 %v1924, %v1920
    %v1929 = vld [vmem:[#allocation9] sm:$0xff]
    %v1930 = vld [vmem:[#allocation9 + $0x8] sm:$0xff]
    %v1931 = vld [vmem:[#allocation9 + $0x10] sm:$0xff]
    %v1932 = vld [vmem:[#allocation9 + $0x18] sm:$0xff]
    %v1933 = vld [vmem:[#allocation9 + $0x20] sm:$0xff]
    %v1934 = vld [vmem:[#allocation9 + $0x28] sm:$0xff]
    %v1935 = vld [vmem:[#allocation9 + $0x30] sm:$0xff]
    %v1936 = vld [vmem:[#allocation9 + $0x38] sm:$0xff]
    %v1937 = vld [vmem:[#allocation9 + $0x40] sm:$0xff]
    %v1938 = vld [vmem:[#allocation9 + $0x48] sm:$0xff]
    %v1939 = vld [vmem:[#allocation9 + $0x50] sm:$0xff]
    %v1940 = vld [vmem:[#allocation9 + $0x58] sm:$0xff]
    %v1941 = vld [vmem:[#allocation9 + $0x60] sm:$0xff]
    %v1942 = vld [vmem:[#allocation9 + $0x68] sm:$0xff]
    %v1943 = vld [vmem:[#allocation9 + $0x70] sm:$0xff]
    %v1944 = vld [vmem:[#allocation9 + $0x78] sm:$0xff]
    %v1945 = vld [vmem:[#allocation9 + $0x80] sm:$0xff]
    %v1946 = vld [vmem:[#allocation9 + $0x88] sm:$0xff]
    %v1947 = vld [vmem:[#allocation9 + $0x90] sm:$0xff]
    %v1948 = vld [vmem:[#allocation9 + $0x98] sm:$0xff]
    %v1949 = vld [vmem:[#allocation9 + $0xa0] sm:$0xff]
    %v1950 = vld [vmem:[#allocation9 + $0xa8] sm:$0xff]
    %v1951 = vld [vmem:[#allocation9 + $0xb0] sm:$0xff]
    %v1952 = vld [vmem:[#allocation9 + $0xb8] sm:$0xff]
    %v1953 = vld [vmem:[#allocation9 + $0xc0] sm:$0xff]
    %v1954 = vld [vmem:[#allocation9 + $0xc8] sm:$0xff]
    %v1955 = vld [vmem:[#allocation9 + $0xd0] sm:$0xff]
    %v1956 = vld [vmem:[#allocation9 + $0xd8] sm:$0xff]
    %v1957 = vld [vmem:[#allocation9 + $0xe0] sm:$0xff]
    %v1958 = vld [vmem:[#allocation9 + $0xe8] sm:$0xff]
    %v1959 = vld [vmem:[#allocation9 + $0xf0] sm:$0xff]
    %v1960 = vld [vmem:[#allocation9 + $0xf8] sm:$0xff]
    %v1961 = vld [vmem:[#allocation9 + $0x100] sm:$0xff]
    %v1962 = vld [vmem:[#allocation9 + $0x108] sm:$0xff]
    %v1963 = vld [vmem:[#allocation9 + $0x110] sm:$0xff]
    %v1964 = vld [vmem:[#allocation9 + $0x118] sm:$0xff]
    %v1965 = vld [vmem:[#allocation9 + $0x120] sm:$0xff]
    %v1966 = vld [vmem:[#allocation9 + $0x128] sm:$0xff]
    %v1967 = vld [vmem:[#allocation9 + $0x130] sm:$0xff]
    %v1968 = vld [vmem:[#allocation9 + $0x138] sm:$0xff]
    %v1969 = vld [vmem:[#allocation9 + $0x140] sm:$0xff]
    %v1970 = vld [vmem:[#allocation9 + $0x148] sm:$0xff]
    %v1971 = vld [vmem:[#allocation9 + $0x150] sm:$0xff]
    %v1972 = vld [vmem:[#allocation9 + $0x158] sm:$0xff]
    %v1973 = vld [vmem:[#allocation9 + $0x160] sm:$0xff]
    %v1974 = vld [vmem:[#allocation9 + $0x168] sm:$0xff]
    %v1975 = vld [vmem:[#allocation9 + $0x170] sm:$0xff]
    %v1976 = vld [vmem:[#allocation9 + $0x178] sm:$0xff]
    %v1977 = vld [vmem:[#allocation9 + $0x180] sm:$0xff]
    %v1978 = vld [vmem:[#allocation9 + $0x188] sm:$0xff]
    %v1979 = vld [vmem:[#allocation9 + $0x190] sm:$0xff]
    %v1980 = vld [vmem:[#allocation9 + $0x198] sm:$0xff]
    %v1981 = vld [vmem:[#allocation9 + $0x1a0] sm:$0xff]
    %v1982 = vld [vmem:[#allocation9 + $0x1a8] sm:$0xff]
    %v1983 = vld [vmem:[#allocation9 + $0x1b0] sm:$0xff]
    %v1984 = vld [vmem:[#allocation9 + $0x1b8] sm:$0xff]
    %v1985 = vld [vmem:[#allocation9 + $0x1c0] sm:$0xff]
    %v1986 = vld [vmem:[#allocation9 + $0x1c8] sm:$0xff]
    %v1987 = vld [vmem:[#allocation9 + $0x1d0] sm:$0xff]
    %v1988 = vld [vmem:[#allocation9 + $0x1d8] sm:$0xff]
    %v1989 = vld [vmem:[#allocation9 + $0x1e0] sm:$0xff]
    %v1990 = vld [vmem:[#allocation9 + $0x1e8] sm:$0xff]
    %v1991 = vld [vmem:[#allocation9 + $0x1f0] sm:$0xff]
    %v1992 = vld [vmem:[#allocation9 + $0x1f8] sm:$0xff]
    %v1993 = vld [vmem:[#allocation9 + $0x200] sm:$0xff]
    %v1994 = vld [vmem:[#allocation9 + $0x208] sm:$0xff]
    %v1995 = vld [vmem:[#allocation9 + $0x210] sm:$0xff]
    %v1996 = vld [vmem:[#allocation9 + $0x218] sm:$0xff]
    %v1997 = vld [vmem:[#allocation9 + $0x220] sm:$0xff]
    %v1998 = vld [vmem:[#allocation9 + $0x228] sm:$0xff]
    %v1999 = vld [vmem:[#allocation9 + $0x230] sm:$0xff]
    %v2000 = vld [vmem:[#allocation9 + $0x238] sm:$0xff]
    %v2001 = vld [vmem:[#allocation9 + $0x240] sm:$0xff]
    %v2002 = vld [vmem:[#allocation9 + $0x248] sm:$0xff]
    %v2003 = vld [vmem:[#allocation9 + $0x250] sm:$0xff]
    %v2004 = vld [vmem:[#allocation9 + $0x258] sm:$0xff]
    %v2005 = vld [vmem:[#allocation9 + $0x260] sm:$0xff]
    %v2006 = vld [vmem:[#allocation9 + $0x268] sm:$0xff]
    %v2007 = vld [vmem:[#allocation9 + $0x270] sm:$0xff]
    %v2008 = vld [vmem:[#allocation9 + $0x278] sm:$0xff]
    %v2009 = vld [vmem:[#allocation9 + $0x280] sm:$0xff]
    %v2010 = vld [vmem:[#allocation9 + $0x288] sm:$0xff]
    %v2011 = vld [vmem:[#allocation9 + $0x290] sm:$0xff]
    %v2012 = vld [vmem:[#allocation9 + $0x298] sm:$0xff]
    %v2013 = vld [vmem:[#allocation9 + $0x2a0] sm:$0xff]
    %v2014 = vld [vmem:[#allocation9 + $0x2a8] sm:$0xff]
    %v2015 = vld [vmem:[#allocation9 + $0x2b0] sm:$0xff]
    %v2016 = vld [vmem:[#allocation9 + $0x2b8] sm:$0xff]
    %v2017 = vld [vmem:[#allocation9 + $0x2c0] sm:$0xff]
    %v2018 = vld [vmem:[#allocation9 + $0x2c8] sm:$0xff]
    %v2019 = vld [vmem:[#allocation9 + $0x2d0] sm:$0xff]
    %v2020 = vld [vmem:[#allocation9 + $0x2d8] sm:$0xff]
    %v2021 = vld [vmem:[#allocation9 + $0x2e0] sm:$0xff]
    %v2022 = vld [vmem:[#allocation9 + $0x2e8] sm:$0xff]
    %v2023 = vld [vmem:[#allocation9 + $0x2f0] sm:$0xff]
    %v2024 = vld [vmem:[#allocation9 + $0x2f8] sm:$0xff]
    %v2025 = vld [vmem:[#allocation9 + $0x300] sm:$0xff]
    %v2026 = vld [vmem:[#allocation9 + $0x308] sm:$0xff]
    %v2027 = vld [vmem:[#allocation9 + $0x310] sm:$0xff]
    %v2028 = vld [vmem:[#allocation9 + $0x318] sm:$0xff]
    %v2029 = vld [vmem:[#allocation10] sm:$0xf]
    %v2031 = vperm.slane %v2029, 0
    %v2032 = vperm.slane %v2029, 1
    %v2033 = vperm.slane %v2029, 2
    %v2034 = vperm.slane %v2029, 3
    %v2139 = vunpack.c.l.b16 %v1929
    %v2140 = vunpack.c.h.b16 %v1929
    %v2141 = vunpack.c.l.b16 %v1930
    %v2142 = vunpack.c.h.b16 %v1930
    %v2143 = vunpack.c.l.b16 %v1931
    %v2144 = vunpack.c.h.b16 %v1931
    %v2145 = vunpack.c.l.b16 %v1932
    %v2146 = vunpack.c.h.b16 %v1932
    %v2147 = vunpack.c.l.b16 %v1933
    %v2148 = vunpack.c.h.b16 %v1933
    %v2149 = vunpack.c.l.b16 %v1934
    %v2150 = vunpack.c.h.b16 %v1934
    %v2151 = vunpack.c.l.b16 %v1935
    %v2152 = vunpack.c.h.b16 %v1935
    %v2153 = vunpack.c.l.b16 %v1936
    %v2154 = vunpack.c.h.b16 %v1936
    %v2155 = vunpack.c.l.b16 %v1937
    %v2156 = vunpack.c.h.b16 %v1937
    %v2157 = vunpack.c.l.b16 %v1938
    %v2158 = vunpack.c.h.b16 %v1938
    %v2159 = vunpack.c.l.b16 %v1939
    %v2160 = vunpack.c.h.b16 %v1939
    %v2161 = vunpack.c.l.b16 %v1940
    %v2162 = vunpack.c.h.b16 %v1940
    %v2163 = vunpack.c.l.b16 %v1941
    %v2164 = vunpack.c.h.b16 %v1941
    %v2165 = vunpack.c.l.b16 %v1942
    %v2166 = vunpack.c.h.b16 %v1942
    %v2167 = vunpack.c.l.b16 %v1943
    %v2168 = vunpack.c.h.b16 %v1943
    %v2169 = vunpack.c.l.b16 %v1944
    %v2170 = vunpack.c.h.b16 %v1944
    %v2171 = vunpack.c.l.b16 %v1945
    %v2172 = vunpack.c.h.b16 %v1945
    %v2173 = vunpack.c.l.b16 %v1946
    %v2174 = vunpack.c.h.b16 %v1946
    %v2175 = vunpack.c.l.b16 %v1947
    %v2176 = vunpack.c.h.b16 %v1947
    %v2177 = vunpack.c.l.b16 %v1948
    %v2178 = vunpack.c.h.b16 %v1948
    %v2179 = vunpack.c.l.b16 %v1949
    %v2180 = vunpack.c.h.b16 %v1949
    %v2181 = vunpack.c.l.b16 %v1950
    %v2182 = vunpack.c.h.b16 %v1950
    %v2183 = vunpack.c.l.b16 %v1951
    %v2184 = vunpack.c.h.b16 %v1951
    %v2185 = vunpack.c.l.b16 %v1952
    %v2186 = vunpack.c.h.b16 %v1952
    %v2187 = vunpack.c.l.b16 %v1953
    %v2188 = vunpack.c.h.b16 %v1953
    %v2189 = vunpack.c.l.b16 %v1954
    %v2190 = vunpack.c.h.b16 %v1954
    %v2191 = vunpack.c.l.b16 %v1955
    %v2192 = vunpack.c.h.b16 %v1955
    %v2193 = vunpack.c.l.b16 %v1956
    %v2194 = vunpack.c.h.b16 %v1956
    %v2195 = vunpack.c.l.b16 %v1957
    %v2196 = vunpack.c.h.b16 %v1957
    %v2197 = vunpack.c.l.b16 %v1958
    %v2198 = vunpack.c.h.b16 %v1958
    %v2199 = vunpack.c.l.b16 %v1959
    %v2200 = vunpack.c.h.b16 %v1959
    %v2201 = vunpack.c.l.b16 %v1960
    %v2202 = vunpack.c.h.b16 %v1960
    %v2203 = vunpack.c.l.b16 %v1961
    %v2204 = vunpack.c.h.b16 %v1961
    %v2205 = vunpack.c.l.b16 %v1962
    %v2206 = vunpack.c.h.b16 %v1962
    %v2207 = vunpack.c.l.b16 %v1963
    %v2208 = vunpack.c.h.b16 %v1963
    %v2209 = vunpack.c.l.b16 %v1964
    %v2210 = vunpack.c.h.b16 %v1964
    %v2211 = vunpack.c.l.b16 %v1965
    %v2212 = vunpack.c.h.b16 %v1965
    %v2213 = vunpack.c.l.b16 %v1966
    %v2214 = vunpack.c.h.b16 %v1966
    %v2215 = vunpack.c.l.b16 %v1967
    %v2216 = vunpack.c.h.b16 %v1967
    %v2217 = vunpack.c.l.b16 %v1968
    %v2218 = vunpack.c.h.b16 %v1968
    %v2219 = vunpack.c.l.b16 %v1969
    %v2220 = vunpack.c.h.b16 %v1969
    %v2221 = vunpack.c.l.b16 %v1970
    %v2222 = vunpack.c.h.b16 %v1970
    %v2223 = vunpack.c.l.b16 %v1971
    %v2224 = vunpack.c.h.b16 %v1971
    %v2225 = vunpack.c.l.b16 %v1972
    %v2226 = vunpack.c.h.b16 %v1972
    %v2227 = vunpack.c.l.b16 %v1973
    %v2228 = vunpack.c.h.b16 %v1973
    %v2229 = vunpack.c.l.b16 %v1974
    %v2230 = vunpack.c.h.b16 %v1974
    %v2231 = vunpack.c.l.b16 %v1975
    %v2232 = vunpack.c.h.b16 %v1975
    %v2233 = vunpack.c.l.b16 %v1976
    %v2234 = vunpack.c.h.b16 %v1976
    %v2235 = vunpack.c.l.b16 %v1977
    %v2236 = vunpack.c.h.b16 %v1977
    %v2237 = vunpack.c.l.b16 %v1978
    %v2238 = vunpack.c.h.b16 %v1978
    %v2239 = vunpack.c.l.b16 %v1979
    %v2240 = vunpack.c.h.b16 %v1979
    %v2241 = vunpack.c.l.b16 %v1980
    %v2242 = vunpack.c.h.b16 %v1980
    %v2243 = vunpack.c.l.b16 %v1981
    %v2244 = vunpack.c.h.b16 %v1981
    %v2245 = vunpack.c.l.b16 %v1982
    %v2246 = vunpack.c.h.b16 %v1982
    %v2247 = vunpack.c.l.b16 %v1983
    %v2248 = vunpack.c.h.b16 %v1983
    %v2249 = vunpack.c.l.b16 %v1984
    %v2250 = vunpack.c.h.b16 %v1984
    %v2251 = vunpack.c.l.b16 %v1985
    %v2252 = vunpack.c.h.b16 %v1985
    %v2253 = vunpack.c.l.b16 %v1986
    %v2254 = vunpack.c.h.b16 %v1986
    %v2255 = vunpack.c.l.b16 %v1987
    %v2256 = vunpack.c.h.b16 %v1987
    %v2257 = vunpack.c.l.b16 %v1988
    %v2258 = vunpack.c.h.b16 %v1988
    %v2259 = vunpack.c.l.b16 %v1989
    %v2260 = vunpack.c.h.b16 %v1989
    %v2261 = vunpack.c.l.b16 %v1990
    %v2262 = vunpack.c.h.b16 %v1990
    %v2263 = vunpack.c.l.b16 %v1991
    %v2264 = vunpack.c.h.b16 %v1991
    %v2265 = vunpack.c.l.b16 %v1992
    %v2266 = vunpack.c.h.b16 %v1992
    %v2267 = vunpack.c.l.b16 %v1993
    %v2268 = vunpack.c.h.b16 %v1993
    %v2269 = vunpack.c.l.b16 %v1994
    %v2270 = vunpack.c.h.b16 %v1994
    %v2271 = vunpack.c.l.b16 %v1995
    %v2272 = vunpack.c.h.b16 %v1995
    %v2273 = vunpack.c.l.b16 %v1996
    %v2274 = vunpack.c.h.b16 %v1996
    %v2275 = vunpack.c.l.b16 %v1997
    %v2276 = vunpack.c.h.b16 %v1997
    %v2277 = vunpack.c.l.b16 %v1998
    %v2278 = vunpack.c.h.b16 %v1998
    %v2279 = vunpack.c.l.b16 %v1999
    %v2280 = vunpack.c.h.b16 %v1999
    %v2281 = vunpack.c.l.b16 %v2000
    %v2282 = vunpack.c.h.b16 %v2000
    %v2283 = vunpack.c.l.b16 %v2001
    %v2284 = vunpack.c.h.b16 %v2001
    %v2285 = vunpack.c.l.b16 %v2002
    %v2286 = vunpack.c.h.b16 %v2002
    %v2287 = vunpack.c.l.b16 %v2003
    %v2288 = vunpack.c.h.b16 %v2003
    %v2289 = vunpack.c.l.b16 %v2004
    %v2290 = vunpack.c.h.b16 %v2004
    %v2291 = vunpack.c.l.b16 %v2005
    %v2292 = vunpack.c.h.b16 %v2005
    %v2293 = vunpack.c.l.b16 %v2006
    %v2294 = vunpack.c.h.b16 %v2006
    %v2295 = vunpack.c.l.b16 %v2007
    %v2296 = vunpack.c.h.b16 %v2007
    %v2297 = vunpack.c.l.b16 %v2008
    %v2298 = vunpack.c.h.b16 %v2008
    %v2299 = vunpack.c.l.b16 %v2009
    %v2300 = vunpack.c.h.b16 %v2009
    %v2301 = vunpack.c.l.b16 %v2010
    %v2302 = vunpack.c.h.b16 %v2010
    %v2303 = vunpack.c.l.b16 %v2011
    %v2304 = vunpack.c.h.b16 %v2011
    %v2305 = vunpack.c.l.b16 %v2012
    %v2306 = vunpack.c.h.b16 %v2012
    %v2307 = vunpack.c.l.b16 %v2013
    %v2308 = vunpack.c.h.b16 %v2013
    %v2309 = vunpack.c.l.b16 %v2014
    %v2310 = vunpack.c.h.b16 %v2014
    %v2311 = vunpack.c.l.b16 %v2015
    %v2312 = vunpack.c.h.b16 %v2015
    %v2313 = vunpack.c.l.b16 %v2016
    %v2314 = vunpack.c.h.b16 %v2016
    %v2315 = vunpack.c.l.b16 %v2017
    %v2316 = vunpack.c.h.b16 %v2017
    %v2317 = vunpack.c.l.b16 %v2018
    %v2318 = vunpack.c.h.b16 %v2018
    %v2319 = vunpack.c.l.b16 %v2019
    %v2320 = vunpack.c.h.b16 %v2019
    %v2321 = vunpack.c.l.b16 %v2020
    %v2322 = vunpack.c.h.b16 %v2020
    %v2323 = vunpack.c.l.b16 %v2021
    %v2324 = vunpack.c.h.b16 %v2021
    %v2325 = vunpack.c.l.b16 %v2022
    %v2326 = vunpack.c.h.b16 %v2022
    %v2327 = vunpack.c.l.b16 %v2023
    %v2328 = vunpack.c.h.b16 %v2023
    %v2329 = vunpack.c.l.b16 %v2024
    %v2330 = vunpack.c.h.b16 %v2024
    %v2331 = vunpack.c.l.b16 %v2025
    %v2332 = vunpack.c.h.b16 %v2025
    %v2333 = vunpack.c.l.b16 %v2026
    %v2334 = vunpack.c.h.b16 %v2026
    %v2335 = vunpack.c.l.b16 %v2027
    %v2336 = vunpack.c.h.b16 %v2027
    %v2337 = vunpack.c.l.b16 %v2028
    %v2338 = vunpack.c.h.b16 %v2028
    %v2339 = vpack.c.b16 %v2143, %v2139
    %v2340 = vpack.c.b16 %v2144, %v2140
    %v2341 = vpack.c.b16 %v2145, %v2141
    %v2342 = vpack.c.b16 %v2146, %v2142
    %v2343 = vpack.c.b16 %v2151, %v2147
    %v2344 = vpack.c.b16 %v2152, %v2148
    %v2345 = vpack.c.b16 %v2153, %v2149
    %v2346 = vpack.c.b16 %v2154, %v2150
    %v2347 = vpack.c.b16 %v2159, %v2155
    %v2348 = vpack.c.b16 %v2160, %v2156
    %v2349 = vpack.c.b16 %v2161, %v2157
    %v2350 = vpack.c.b16 %v2162, %v2158
    %v2351 = vpack.c.b16 %v2167, %v2163
    %v2352 = vpack.c.b16 %v2168, %v2164
    %v2353 = vpack.c.b16 %v2169, %v2165
    %v2354 = vpack.c.b16 %v2170, %v2166
    %v2355 = vpack.c.b16 %v2175, %v2171
    %v2356 = vpack.c.b16 %v2176, %v2172
    %v2357 = vpack.c.b16 %v2177, %v2173
    %v2358 = vpack.c.b16 %v2178, %v2174
    %v2359 = vpack.c.b16 %v2183, %v2179
    %v2360 = vpack.c.b16 %v2184, %v2180
    %v2361 = vpack.c.b16 %v2185, %v2181
    %v2362 = vpack.c.b16 %v2186, %v2182
    %v2363 = vpack.c.b16 %v2191, %v2187
    %v2364 = vpack.c.b16 %v2192, %v2188
    %v2365 = vpack.c.b16 %v2193, %v2189
    %v2366 = vpack.c.b16 %v2194, %v2190
    %v2367 = vpack.c.b16 %v2199, %v2195
    %v2368 = vpack.c.b16 %v2200, %v2196
    %v2369 = vpack.c.b16 %v2201, %v2197
    %v2370 = vpack.c.b16 %v2202, %v2198
    %v2371 = vpack.c.b16 %v2207, %v2203
    %v2372 = vpack.c.b16 %v2208, %v2204
    %v2373 = vpack.c.b16 %v2209, %v2205
    %v2374 = vpack.c.b16 %v2210, %v2206
    %v2375 = vpack.c.b16 %v2215, %v2211
    %v2376 = vpack.c.b16 %v2216, %v2212
    %v2377 = vpack.c.b16 %v2217, %v2213
    %v2378 = vpack.c.b16 %v2218, %v2214
    %v2379 = vpack.c.b16 %v2223, %v2219
    %v2380 = vpack.c.b16 %v2224, %v2220
    %v2381 = vpack.c.b16 %v2225, %v2221
    %v2382 = vpack.c.b16 %v2226, %v2222
    %v2383 = vpack.c.b16 %v2231, %v2227
    %v2384 = vpack.c.b16 %v2232, %v2228
    %v2385 = vpack.c.b16 %v2233, %v2229
    %v2386 = vpack.c.b16 %v2234, %v2230
    %v2387 = vpack.c.b16 %v2239, %v2235
    %v2388 = vpack.c.b16 %v2240, %v2236
    %v2389 = vpack.c.b16 %v2241, %v2237
    %v2390 = vpack.c.b16 %v2242, %v2238
    %v2391 = vpack.c.b16 %v2247, %v2243
    %v2392 = vpack.c.b16 %v2248, %v2244
    %v2393 = vpack.c.b16 %v2249, %v2245
    %v2394 = vpack.c.b16 %v2250, %v2246
    %v2395 = vpack.c.b16 %v2255, %v2251
    %v2396 = vpack.c.b16 %v2256, %v2252
    %v2397 = vpack.c.b16 %v2257, %v2253
    %v2398 = vpack.c.b16 %v2258, %v2254
    %v2399 = vpack.c.b16 %v2263, %v2259
    %v2400 = vpack.c.b16 %v2264, %v2260
    %v2401 = vpack.c.b16 %v2265, %v2261
    %v2402 = vpack.c.b16 %v2266, %v2262
    %v2403 = vpack.c.b16 %v2271, %v2267
    %v2404 = vpack.c.b16 %v2272, %v2268
    %v2405 = vpack.c.b16 %v2273, %v2269
    %v2406 = vpack.c.b16 %v2274, %v2270
    %v2407 = vpack.c.b16 %v2279, %v2275
    %v2408 = vpack.c.b16 %v2280, %v2276
    %v2409 = vpack.c.b16 %v2281, %v2277
    %v2410 = vpack.c.b16 %v2282, %v2278
    %v2411 = vpack.c.b16 %v2287, %v2283
    %v2412 = vpack.c.b16 %v2288, %v2284
    %v2413 = vpack.c.b16 %v2289, %v2285
    %v2414 = vpack.c.b16 %v2290, %v2286
    %v2415 = vpack.c.b16 %v2295, %v2291
    %v2416 = vpack.c.b16 %v2296, %v2292
    %v2417 = vpack.c.b16 %v2297, %v2293
    %v2418 = vpack.c.b16 %v2298, %v2294
    %v2419 = vpack.c.b16 %v2303, %v2299
    %v2420 = vpack.c.b16 %v2304, %v2300
    %v2421 = vpack.c.b16 %v2305, %v2301
    %v2422 = vpack.c.b16 %v2306, %v2302
    %v2423 = vpack.c.b16 %v2311, %v2307
    %v2424 = vpack.c.b16 %v2312, %v2308
    %v2425 = vpack.c.b16 %v2313, %v2309
    %v2426 = vpack.c.b16 %v2314, %v2310
    %v2427 = vpack.c.b16 %v2319, %v2315
    %v2428 = vpack.c.b16 %v2320, %v2316
    %v2429 = vpack.c.b16 %v2321, %v2317
    %v2430 = vpack.c.b16 %v2322, %v2318
    %v2431 = vpack.c.b16 %v2327, %v2323
    %v2432 = vpack.c.b16 %v2328, %v2324
    %v2433 = vpack.c.b16 %v2329, %v2325
    %v2434 = vpack.c.b16 %v2330, %v2326
    %v2435 = vpack.c.b16 %v2335, %v2331
    %v2436 = vpack.c.b16 %v2336, %v2332
    %v2437 = vpack.c.b16 %v2337, %v2333
    %v2438 = vpack.c.b16 %v2338, %v2334
    %v2540 = vsel %vm1689, %v1928, 0
    %2542 = vmatpush.bf16.msra.mxu0 %v2367
    %2543 = vmatpush.bf16.msra.mxu0 %v2363
    %2544 = vmatpush.bf16.msra.mxu0 %v2359
    %2545 = vmatpush.bf16.msra.mxu0 %v2355
    %2546 = vmatpush.bf16.msra.mxu0 %v2351
    %2547 = vmatpush.bf16.msra.mxu0 %v2347
    %2548 = vmatpush.bf16.msra.mxu0 %v2343
    %2549 = vmatpush.bf16.msra.mxu0 %v2339
    %2550 = vmatmul.bf16.gmra.mxu0 %v1925
    %v2551 = vpop.f32.mrf.mxu0
    %v2552 = vadd.f32 %v2031, %v2551
    %v2553 = vpop.f32.mrf.mxu0
    %v2554 = vadd.f32 %v2031, %v2553
    %2555 = vdwg.mxu0
    %2556 = vmatpush.bf16.msra.mxu0 %v2399
    %2557 = vmatpush.bf16.msra.mxu0 %v2395
    %2558 = vmatpush.bf16.msra.mxu0 %v2391
    %2559 = vmatpush.bf16.msra.mxu0 %v2387
    %2560 = vmatpush.bf16.msra.mxu0 %v2383
    %2561 = vmatpush.bf16.msra.mxu0 %v2379
    %2562 = vmatpush.bf16.msra.mxu0 %v2375
    %2563 = vmatpush.bf16.msra.mxu0 %v2371
    %2564 = vmatmul.bf16.gmra.mxu0 %v1926
    %v2565 = vpop.f32.mrf.mxu0
    %v2566 = vadd.f32 %v2552, %v2565
    %v2567 = vpop.f32.mrf.mxu0
    %v2568 = vadd.f32 %v2554, %v2567
    %2569 = vdwg.mxu0
    %2570 = vmatpush.bf16.msra.mxu0 %v2431
    %2571 = vmatpush.bf16.msra.mxu0 %v2427
    %2572 = vmatpush.bf16.msra.mxu0 %v2423
    %2573 = vmatpush.bf16.msra.mxu0 %v2419
    %2574 = vmatpush.bf16.msra.mxu0 %v2415
    %2575 = vmatpush.bf16.msra.mxu0 %v2411
    %2576 = vmatpush.bf16.msra.mxu0 %v2407
    %2577 = vmatpush.bf16.msra.mxu0 %v2403
    %2578 = vmatmul.bf16.gmra.mxu0 %v1927
    %v2579 = vpop.f32.mrf.mxu0
    %v2580 = vadd.f32 %v2566, %v2579
    %v2581 = vpop.f32.mrf.mxu0
    %v2582 = vadd.f32 %v2568, %v2581
    %2583 = vdwg.mxu0
    %2584 = vmatpush.bf16.msra.mxu0 0
    %2585 = vmatpush.bf16.msra.mxu0 0
    %2586 = vmatpush.bf16.msra.mxu0 0
    %2587 = vmatpush.bf16.msra.mxu0 0
    %2588 = vmatpush.bf16.msra.mxu0 0
    %2589 = vmatpush.bf16.msra.mxu0 0
    %2590 = vmatpush.bf16.msra.mxu0 0
    %2591 = vmatpush.bf16.msra.mxu0 %v2435
    %2592 = vmatmul.bf16.gmra.mxu0 %v2540
    %v2593 = vpop.f32.mrf.mxu0
    %v2594 = vadd.f32 %v2580, %v2593
    %v2595 = vpop.f32.mrf.mxu0
    %v2596 = vadd.f32 %v2582, %v2595
    %2597 = vdwg.mxu0
    %2598 = vmatpush.bf16.msra.mxu0 %v2368
    %2599 = vmatpush.bf16.msra.mxu0 %v2364
    %2600 = vmatpush.bf16.msra.mxu0 %v2360
    %2601 = vmatpush.bf16.msra.mxu0 %v2356
    %2602 = vmatpush.bf16.msra.mxu0 %v2352
    %2603 = vmatpush.bf16.msra.mxu0 %v2348
    %2604 = vmatpush.bf16.msra.mxu0 %v2344
    %2605 = vmatpush.bf16.msra.mxu0 %v2340
    %2606 = vmatmul.bf16.gmra.mxu0 %v1925
    %v2607 = vpop.f32.mrf.mxu0
    %v2608 = vadd.f32 %v2032, %v2607
    %v2609 = vpop.f32.mrf.mxu0
    %v2610 = vadd.f32 %v2032, %v2609
    %2611 = vdwg.mxu0
    %2612 = vmatpush.bf16.msra.mxu0 %v2400
    %2613 = vmatpush.bf16.msra.mxu0 %v2396
    %2614 = vmatpush.bf16.msra.mxu0 %v2392
    %2615 = vmatpush.bf16.msra.mxu0 %v2388
    %2616 = vmatpush.bf16.msra.mxu0 %v2384
    %2617 = vmatpush.bf16.msra.mxu0 %v2380
    %2618 = vmatpush.bf16.msra.mxu0 %v2376
    %2619 = vmatpush.bf16.msra.mxu0 %v2372
    %2620 = vmatmul.bf16.gmra.mxu0 %v1926
    %v2621 = vpop.f32.mrf.mxu0
    %v2622 = vadd.f32 %v2608, %v2621
    %v2623 = vpop.f32.mrf.mxu0
    %v2624 = vadd.f32 %v2610, %v2623
    %2625 = vdwg.mxu0
    %2626 = vmatpush.bf16.msra.mxu0 %v2432
    %2627 = vmatpush.bf16.msra.mxu0 %v2428
    %2628 = vmatpush.bf16.msra.mxu0 %v2424
    %2629 = vmatpush.bf16.msra.mxu0 %v2420
    %2630 = vmatpush.bf16.msra.mxu0 %v2416
    %2631 = vmatpush.bf16.msra.mxu0 %v2412
    %2632 = vmatpush.bf16.msra.mxu0 %v2408
    %2633 = vmatpush.bf16.msra.mxu0 %v2404
    %2634 = vmatmul.bf16.gmra.mxu0 %v1927
    %v2635 = vpop.f32.mrf.mxu0
    %v2636 = vadd.f32 %v2622, %v2635
    %v2637 = vpop.f32.mrf.mxu0
    %v2638 = vadd.f32 %v2624, %v2637
    %2639 = vdwg.mxu0
    %2640 = vmatpush.bf16.msra.mxu0 0
    %2641 = vmatpush.bf16.msra.mxu0 0
    %2642 = vmatpush.bf16.msra.mxu0 0
    %2643 = vmatpush.bf16.msra.mxu0 0
    %2644 = vmatpush.bf16.msra.mxu0 0
    %2645 = vmatpush.bf16.msra.mxu0 0
    %2646 = vmatpush.bf16.msra.mxu0 0
    %2647 = vmatpush.bf16.msra.mxu0 %v2436
    %2648 = vmatmul.bf16.gmra.mxu0 %v2540
    %v2649 = vpop.f32.mrf.mxu0
    %v2650 = vadd.f32 %v2636, %v2649
    %v2651 = vpop.f32.mrf.mxu0
    %v2652 = vadd.f32 %v2638, %v2651
    %2653 = vdwg.mxu0
    %2654 = vmatpush.bf16.msra.mxu0 %v2369
    %2655 = vmatpush.bf16.msra.mxu0 %v2365
    %2656 = vmatpush.bf16.msra.mxu0 %v2361
    %2657 = vmatpush.bf16.msra.mxu0 %v2357
    %2658 = vmatpush.bf16.msra.mxu0 %v2353
    %2659 = vmatpush.bf16.msra.mxu0 %v2349
    %2660 = vmatpush.bf16.msra.mxu0 %v2345
    %2661 = vmatpush.bf16.msra.mxu0 %v2341
    %2662 = vmatmul.bf16.gmra.mxu0 %v1925
    %v2663 = vpop.f32.mrf.mxu0
    %v2664 = vadd.f32 %v2033, %v2663
    %v2665 = vpop.f32.mrf.mxu0
    %v2666 = vadd.f32 %v2033, %v2665
    %2667 = vdwg.mxu0
    %2668 = vmatpush.bf16.msra.mxu0 %v2401
    %2669 = vmatpush.bf16.msra.mxu0 %v2397
    %2670 = vmatpush.bf16.msra.mxu0 %v2393
    %2671 = vmatpush.bf16.msra.mxu0 %v2389
    %2672 = vmatpush.bf16.msra.mxu0 %v2385
    %2673 = vmatpush.bf16.msra.mxu0 %v2381
    %2674 = vmatpush.bf16.msra.mxu0 %v2377
    %2675 = vmatpush.bf16.msra.mxu0 %v2373
    %2676 = vmatmul.bf16.gmra.mxu0 %v1926
    %v2677 = vpop.f32.mrf.mxu0
    %v2678 = vadd.f32 %v2664, %v2677
    %v2679 = vpop.f32.mrf.mxu0
    %v2680 = vadd.f32 %v2666, %v2679
    %2681 = vdwg.mxu0
    %2682 = vmatpush.bf16.msra.mxu0 %v2433
    %2683 = vmatpush.bf16.msra.mxu0 %v2429
    %2684 = vmatpush.bf16.msra.mxu0 %v2425
    %2685 = vmatpush.bf16.msra.mxu0 %v2421
    %2686 = vmatpush.bf16.msra.mxu0 %v2417
    %2687 = vmatpush.bf16.msra.mxu0 %v2413
    %2688 = vmatpush.bf16.msra.mxu0 %v2409
    %2689 = vmatpush.bf16.msra.mxu0 %v2405
    %2690 = vmatmul.bf16.gmra.mxu0 %v1927
    %v2691 = vpop.f32.mrf.mxu0
    %v2692 = vadd.f32 %v2678, %v2691
    %v2693 = vpop.f32.mrf.mxu0
    %v2694 = vadd.f32 %v2680, %v2693
    %2695 = vdwg.mxu0
    %2696 = vmatpush.bf16.msra.mxu0 0
    %2697 = vmatpush.bf16.msra.mxu0 0
    %2698 = vmatpush.bf16.msra.mxu0 0
    %2699 = vmatpush.bf16.msra.mxu0 0
    %2700 = vmatpush.bf16.msra.mxu0 0
    %2701 = vmatpush.bf16.msra.mxu0 0
    %2702 = vmatpush.bf16.msra.mxu0 0
    %2703 = vmatpush.bf16.msra.mxu0 %v2437
    %2704 = vmatmul.bf16.gmra.mxu0 %v2540
    %v2705 = vpop.f32.mrf.mxu0
    %v2706 = vadd.f32 %v2692, %v2705
    %v2707 = vpop.f32.mrf.mxu0
    %v2708 = vadd.f32 %v2694, %v2707
    %2709 = vdwg.mxu0
    %2710 = vmatpush.bf16.msra.mxu0 %v2370
    %2711 = vmatpush.bf16.msra.mxu0 %v2366
    %2712 = vmatpush.bf16.msra.mxu0 %v2362
    %2713 = vmatpush.bf16.msra.mxu0 %v2358
    %2714 = vmatpush.bf16.msra.mxu0 %v2354
    %2715 = vmatpush.bf16.msra.mxu0 %v2350
    %2716 = vmatpush.bf16.msra.mxu0 %v2346
    %2717 = vmatpush.bf16.msra.mxu0 %v2342
    %2718 = vmatmul.bf16.gmra.mxu0 %v1925
    %v2719 = vpop.f32.mrf.mxu0
    %v2720 = vadd.f32 %v2034, %v2719
    %v2721 = vpop.f32.mrf.mxu0
    %v2722 = vadd.f32 %v2034, %v2721
    %2723 = vdwg.mxu0
    %2724 = vmatpush.bf16.msra.mxu0 %v2402
    %2725 = vmatpush.bf16.msra.mxu0 %v2398
    %2726 = vmatpush.bf16.msra.mxu0 %v2394
    %2727 = vmatpush.bf16.msra.mxu0 %v2390
    %2728 = vmatpush.bf16.msra.mxu0 %v2386
    %2729 = vmatpush.bf16.msra.mxu0 %v2382
    %2730 = vmatpush.bf16.msra.mxu0 %v2378
    %2731 = vmatpush.bf16.msra.mxu0 %v2374
    %2732 = vmatmul.bf16.gmra.mxu0 %v1926
    %v2733 = vpop.f32.mrf.mxu0
    %v2734 = vadd.f32 %v2720, %v2733
    %v2735 = vpop.f32.mrf.mxu0
    %v2736 = vadd.f32 %v2722, %v2735
    %2737 = vdwg.mxu0
    %2738 = vmatpush.bf16.msra.mxu0 %v2434
    %2739 = vmatpush.bf16.msra.mxu0 %v2430
    %2740 = vmatpush.bf16.msra.mxu0 %v2426
    %2741 = vmatpush.bf16.msra.mxu0 %v2422
    %2742 = vmatpush.bf16.msra.mxu0 %v2418
    %2743 = vmatpush.bf16.msra.mxu0 %v2414
    %2744 = vmatpush.bf16.msra.mxu0 %v2410
    %2745 = vmatpush.bf16.msra.mxu0 %v2406
    %2746 = vmatmul.bf16.gmra.mxu0 %v1927
    %v2747 = vpop.f32.mrf.mxu0
    %v2748 = vadd.f32 %v2734, %v2747
    %v2749 = vpop.f32.mrf.mxu0
    %v2750 = vadd.f32 %v2736, %v2749
    %2751 = vdwg.mxu0
    %2752 = vmatpush.bf16.msra.mxu0 0
    %2753 = vmatpush.bf16.msra.mxu0 0
    %2754 = vmatpush.bf16.msra.mxu0 0
    %2755 = vmatpush.bf16.msra.mxu0 0
    %2756 = vmatpush.bf16.msra.mxu0 0
    %2757 = vmatpush.bf16.msra.mxu0 0
    %2758 = vmatpush.bf16.msra.mxu0 0
    %2759 = vmatpush.bf16.msra.mxu0 %v2438
    %2760 = vmatmul.bf16.gmra.mxu0 %v2540
    %v2761 = vpop.f32.mrf.mxu0
    %v2762 = vadd.f32 %v2748, %v2761
    %v2763 = vpop.f32.mrf.mxu0
    %v2764 = vadd.f32 %v2750, %v2763
    %2765 = vdwg.mxu0
    %v2766 = vmax.f32 %v2594, 0.0
    %v2767 = vmax.f32 %v2650, 0.0
    %v2768 = vmax.f32 %v2706, 0.0
    %v2769 = vmax.f32 %v2762, 0.0
    %v2770 = vmax.f32 %v2596, 0.0
    %v2771 = vmax.f32 %v2652, 0.0
    %v2772 = vmax.f32 %v2708, 0.0
    %v2773 = vmax.f32 %v2764, 0.0
    %v2774 = vpack.c.bf16 %v2770, %v2766
    %v2775 = vpack.c.bf16 %v2771, %v2767
    %v2776 = vpack.c.bf16 %v2772, %v2768
    %v2777 = vpack.c.bf16 %v2773, %v2769
    %v2778 = vld [vmem:[%s7] sm:$0xf]
    %v2779 = vld [vmem:[%s7 + $0x4] sm:$0xf]
    %v2780 = vld [vmem:[%s7 + $0x8] sm:$0xf]
    %v2781 = vld [vmem:[%s7 + $0xc] sm:$0xf]
    %v2782 = vld [vmem:[%s7 + $0x10] sm:$0xf]
    %v2783 = vld [vmem:[%s7 + $0x14] sm:$0xf]
    %v2784 = vld [vmem:[%s7 + $0x18] sm:$0xf]
    %v2785 = vld [vmem:[%s7 + $0x1c] sm:$0xf]
    %v2786 = vld [vmem:[%s7 + $0x20] sm:$0xf]
    %v2787 = vld [vmem:[%s7 + $0x24] sm:$0xf]
    %v2788 = vld [vmem:[%s7 + $0x28] sm:$0xf]
    %v2789 = vld [vmem:[%s7 + $0x2c] sm:$0xf]
    %v2790 = vld [vmem:[%s7 + $0x30] sm:$0xf]
    %v2791 = vld [vmem:[%s7 + $0x34] sm:$0xf]
    %v2792 = vld [vmem:[%s7 + $0x38] sm:$0xf]
    %v2793 = vld [vmem:[%s7 + $0x3c] sm:$0xf]
    %v2794 = vld [vmem:[%s7 + $0x40] sm:$0xf]
    %v2795 = vld [vmem:[%s7 + $0x44] sm:$0xf]
    %v2796 = vld [vmem:[%s7 + $0x48] sm:$0xf]
    %v2797 = vld [vmem:[%s7 + $0x4c] sm:$0xf]
    %v2798 = vld [vmem:[%s7 + $0x50] sm:$0xf]
    %v2799 = vld [vmem:[%s7 + $0x54] sm:$0xf]
    %v2800 = vld [vmem:[%s7 + $0x58] sm:$0xf]
    %v2801 = vld [vmem:[%s7 + $0x5c] sm:$0xf]
    %v2802 = vld [vmem:[%s7 + $0x60] sm:$0xf]
    %v2803 = vld [vmem:[%s7 + $0x64] sm:$0xf]
    %v2804 = vld [vmem:[%s7 + $0x68] sm:$0xf]
    %v2805 = vld [vmem:[%s7 + $0x6c] sm:$0xf]
    %v2806 = vld [vmem:[%s7 + $0x70] sm:$0xf]
    %v2807 = vld [vmem:[%s7 + $0x74] sm:$0xf]
    %v2808 = vld [vmem:[%s7 + $0x78] sm:$0xf]
    %v2809 = vld [vmem:[%s7 + $0x7c] sm:$0xf]
    %v2810 = vld [vmem:[%s7 + $0x80] sm:$0xf]
    %v2811 = vld [vmem:[%s7 + $0x84] sm:$0xf]
    %v2812 = vld [vmem:[%s7 + $0x88] sm:$0xf]
    %v2813 = vld [vmem:[%s7 + $0x8c] sm:$0xf]
    %v2814 = vld [vmem:[%s7 + $0x90] sm:$0xf]
    %v2815 = vld [vmem:[%s7 + $0x94] sm:$0xf]
    %v2816 = vld [vmem:[%s7 + $0x98] sm:$0xf]
    %v2817 = vld [vmem:[%s7 + $0x9c] sm:$0xf]
    %v2818 = vld [vmem:[%s7 + $0xa0] sm:$0xf]
    %v2819 = vld [vmem:[%s7 + $0xa4] sm:$0xf]
    %v2820 = vld [vmem:[%s7 + $0xa8] sm:$0xf]
    %v2821 = vld [vmem:[%s7 + $0xac] sm:$0xf]
    %v2822 = vld [vmem:[%s7 + $0xb0] sm:$0xf]
    %v2823 = vld [vmem:[%s7 + $0xb4] sm:$0xf]
    %v2824 = vld [vmem:[%s7 + $0xb8] sm:$0xf]
    %v2825 = vld [vmem:[%s7 + $0xbc] sm:$0xf]
    %v2826 = vld [vmem:[%s7 + $0xc0] sm:$0xf]
    %v2827 = vld [vmem:[%s7 + $0xc4] sm:$0xf]
    %v2828 = vld [vmem:[#allocation12] sm:$0x1]
    %v2830 = vperm.slane %v2828, 0
    %v2882 = vunpack.c.l.b16 %v2778
    %v2883 = vunpack.c.l.b16 %v2779
    %v2884 = vunpack.c.l.b16 %v2780
    %v2885 = vunpack.c.l.b16 %v2781
    %v2886 = vunpack.c.l.b16 %v2782
    %v2887 = vunpack.c.l.b16 %v2783
    %v2888 = vunpack.c.l.b16 %v2784
    %v2889 = vunpack.c.l.b16 %v2785
    %v2890 = vunpack.c.l.b16 %v2786
    %v2891 = vunpack.c.l.b16 %v2787
    %v2892 = vunpack.c.l.b16 %v2788
    %v2893 = vunpack.c.l.b16 %v2789
    %v2894 = vunpack.c.l.b16 %v2790
    %v2895 = vunpack.c.l.b16 %v2791
    %v2896 = vunpack.c.l.b16 %v2792
    %v2897 = vunpack.c.l.b16 %v2793
    %v2898 = vunpack.c.l.b16 %v2794
    %v2899 = vunpack.c.l.b16 %v2795
    %v2900 = vunpack.c.l.b16 %v2796
    %v2901 = vunpack.c.l.b16 %v2797
    %v2902 = vunpack.c.l.b16 %v2798
    %v2903 = vunpack.c.l.b16 %v2799
    %v2904 = vunpack.c.l.b16 %v2800
    %v2905 = vunpack.c.l.b16 %v2801
    %v2906 = vunpack.c.l.b16 %v2802
    %v2907 = vunpack.c.l.b16 %v2803
    %v2908 = vunpack.c.l.b16 %v2804
    %v2909 = vunpack.c.l.b16 %v2805
    %v2910 = vunpack.c.l.b16 %v2806
    %v2911 = vunpack.c.l.b16 %v2807
    %v2912 = vunpack.c.l.b16 %v2808
    %v2913 = vunpack.c.l.b16 %v2809
    %v2914 = vunpack.c.l.b16 %v2810
    %v2915 = vunpack.c.l.b16 %v2811
    %v2916 = vunpack.c.l.b16 %v2812
    %v2917 = vunpack.c.l.b16 %v2813
    %v2918 = vunpack.c.l.b16 %v2814
    %v2919 = vunpack.c.l.b16 %v2815
    %v2920 = vunpack.c.l.b16 %v2816
    %v2921 = vunpack.c.l.b16 %v2817
    %v2922 = vunpack.c.l.b16 %v2818
    %v2923 = vunpack.c.l.b16 %v2819
    %v2924 = vunpack.c.l.b16 %v2820
    %v2925 = vunpack.c.l.b16 %v2821
    %v2926 = vunpack.c.l.b16 %v2822
    %v2927 = vunpack.c.l.b16 %v2823
    %v2928 = vunpack.c.l.b16 %v2824
    %v2929 = vunpack.c.l.b16 %v2825
    %v2930 = vunpack.c.l.b16 %v2826
    %v2931 = vunpack.c.l.b16 %v2827
    %v2932 = vpack.c.b16 %v2883, %v2882
    %v2933 = vpack.c.b16 %v2885, %v2884
    %v2934 = vpack.c.b16 %v2887, %v2886
    %v2935 = vpack.c.b16 %v2889, %v2888
    %v2936 = vpack.c.b16 %v2891, %v2890
    %v2937 = vpack.c.b16 %v2893, %v2892
    %v2938 = vpack.c.b16 %v2895, %v2894
    %v2939 = vpack.c.b16 %v2897, %v2896
    %v2940 = vpack.c.b16 %v2899, %v2898
    %v2941 = vpack.c.b16 %v2901, %v2900
    %v2942 = vpack.c.b16 %v2903, %v2902
    %v2943 = vpack.c.b16 %v2905, %v2904
    %v2944 = vpack.c.b16 %v2907, %v2906
    %v2945 = vpack.c.b16 %v2909, %v2908
    %v2946 = vpack.c.b16 %v2911, %v2910
    %v2947 = vpack.c.b16 %v2913, %v2912
    %v2948 = vpack.c.b16 %v2915, %v2914
    %v2949 = vpack.c.b16 %v2917, %v2916
    %v2950 = vpack.c.b16 %v2919, %v2918
    %v2951 = vpack.c.b16 %v2921, %v2920
    %v2952 = vpack.c.b16 %v2923, %v2922
    %v2953 = vpack.c.b16 %v2925, %v2924
    %v2954 = vpack.c.b16 %v2927, %v2926
    %v2955 = vpack.c.b16 %v2929, %v2928
    %v2956 = vpack.c.b16 %v2931, %v2930
    %v2983 = vsel %vm1689, %v2777, 0
    %2985 = vmatpush.bf16.msra.mxu0 %v2939
    %2986 = vmatpush.bf16.msra.mxu0 %v2938
    %2987 = vmatpush.bf16.msra.mxu0 %v2937
    %2988 = vmatpush.bf16.msra.mxu0 %v2936
    %2989 = vmatpush.bf16.msra.mxu0 %v2935
    %2990 = vmatpush.bf16.msra.mxu0 %v2934
    %2991 = vmatpush.bf16.msra.mxu0 %v2933
    %2992 = vmatpush.bf16.msra.mxu0 %v2932
    %2993 = vmatmul.bf16.gmra.mxu0 %v2774
    %v2994 = vpop.f32.mrf.mxu0
    %v2995 = vadd.f32 %v2830, %v2994
    %v2996 = vpop.f32.mrf.mxu0
    %v2997 = vadd.f32 %v2830, %v2996
    %2998 = vdwg.mxu0
    %2999 = vmatpush.bf16.msra.mxu0 %v2947
    %3000 = vmatpush.bf16.msra.mxu0 %v2946
    %3001 = vmatpush.bf16.msra.mxu0 %v2945
    %3002 = vmatpush.bf16.msra.mxu0 %v2944
    %3003 = vmatpush.bf16.msra.mxu0 %v2943
    %3004 = vmatpush.bf16.msra.mxu0 %v2942
    %3005 = vmatpush.bf16.msra.mxu0 %v2941
    %3006 = vmatpush.bf16.msra.mxu0 %v2940
    %3007 = vmatmul.bf16.gmra.mxu0 %v2775
    %v3008 = vpop.f32.mrf.mxu0
    %v3009 = vadd.f32 %v2995, %v3008
    %v3010 = vpop.f32.mrf.mxu0
    %v3011 = vadd.f32 %v2997, %v3010
    %3012 = vdwg.mxu0
    %3013 = vmatpush.bf16.msra.mxu0 %v2955
    %3014 = vmatpush.bf16.msra.mxu0 %v2954
    %3015 = vmatpush.bf16.msra.mxu0 %v2953
    %3016 = vmatpush.bf16.msra.mxu0 %v2952
    %3017 = vmatpush.bf16.msra.mxu0 %v2951
    %3018 = vmatpush.bf16.msra.mxu0 %v2950
    %3019 = vmatpush.bf16.msra.mxu0 %v2949
    %3020 = vmatpush.bf16.msra.mxu0 %v2948
    %3021 = vmatmul.bf16.gmra.mxu0 %v2776
    %v3022 = vpop.f32.mrf.mxu0
    %v3023 = vadd.f32 %v3009, %v3022
    %v3024 = vpop.f32.mrf.mxu0
    %v3025 = vadd.f32 %v3011, %v3024
    %3026 = vdwg.mxu0
    %3027 = vmatpush.bf16.msra.mxu0 0
    %3028 = vmatpush.bf16.msra.mxu0 0
    %3029 = vmatpush.bf16.msra.mxu0 0
    %3030 = vmatpush.bf16.msra.mxu0 0
    %3031 = vmatpush.bf16.msra.mxu0 0
    %3032 = vmatpush.bf16.msra.mxu0 0
    %3033 = vmatpush.bf16.msra.mxu0 0
    %3034 = vmatpush.bf16.msra.mxu0 %v2956
    %3035 = vmatmul.bf16.gmra.mxu0 %v2983
    %v3036 = vpop.f32.mrf.mxu0
    %v3037 = vadd.f32 %v3023, %v3036
    %v3038 = vpop.f32.mrf.mxu0
    %v3039 = vadd.f32 %v3025, %v3038
    %3040 = vdwg.mxu0
    %v3041 = vmax.f32 %v3037, 0.0
    %v3042 = vmax.f32 %v3039, 0.0
    %v3043 = vpack.c.bf16 %v3042, %v3041
    %v3044 = vld [vmem:[#allocation13] sm:$0xf]
    %v3045 = vld [vmem:[#allocation13 + $0x4] sm:$0xf]
    %v3046 = vld [vmem:[#allocation13 + $0x8] sm:$0xf]
    %v3047 = vld [vmem:[#allocation13 + $0xc] sm:$0xf]
    %v3048 = vld [vmem:[#allocation13 + $0x10] sm:$0xf]
    %v3049 = vld [vmem:[#allocation13 + $0x14] sm:$0xf]
    %v3050 = vld [vmem:[#allocation13 + $0x18] sm:$0xf]
    %v3051 = vld [vmem:[#allocation13 + $0x1c] sm:$0xf]
    %v3052 = vld [vmem:[#allocation15] sm:$0x1]
    %v3054 = vperm.slane %v3052, 0
    %v3064 = vunpack.c.l.b16 %v3044
    %v3065 = vunpack.c.l.b16 %v3045
    %v3066 = vunpack.c.l.b16 %v3046
    %v3067 = vunpack.c.l.b16 %v3047
    %v3068 = vunpack.c.l.b16 %v3048
    %v3069 = vunpack.c.l.b16 %v3049
    %v3070 = vunpack.c.l.b16 %v3050
    %v3071 = vunpack.c.l.b16 %v3051
    %v3072 = vpack.c.b16 %v3065, %v3064
    %v3073 = vpack.c.b16 %v3067, %v3066
    %v3074 = vpack.c.b16 %v3069, %v3068
    %v3075 = vpack.c.b16 %v3071, %v3070
    %vm3080 = vcmask 523264
    %v3082 = vsel %vm3080, %v3043, 0
    %3084 = vmatpush.bf16.msra.mxu0 0
    %3085 = vmatpush.bf16.msra.mxu0 0
    %3086 = vmatpush.bf16.msra.mxu0 0
    %3087 = vmatpush.bf16.msra.mxu0 0
    %3088 = vmatpush.bf16.msra.mxu0 %v3075
    %3089 = vmatpush.bf16.msra.mxu0 %v3074
    %3090 = vmatpush.bf16.msra.mxu0 %v3073
    %3091 = vmatpush.bf16.msra.mxu0 %v3072
    %3092 = vmatmul.bf16.gmra.mxu0 %v3082
    %v3093 = vpop.f32.mrf.mxu0
    %v3094 = vadd.f32 %v3054, %v3093
    %v3095 = vpop.f32.mrf.mxu0
    %v3096 = vadd.f32 %v3054, %v3095
    %3097 = vdwg.mxu0
    %v3098 = vxor.u32 %v3094, 2147483648
    %v3099 = vxor.u32 %v3096, 2147483648
    %v3100 = vmul.f32 %v3098, 1.442695
    %v3101 = vpow.pop %v3100
    %v3102 = vmul.f32 %v3099, 1.442695
    %v3103 = vpow.pop %v3102
    %v3104 = vadd.f32 %v3101, 1.0
    %v3105 = vadd.f32 %v3103, 1.0
    %v3106 = vrcp.pop %v3104
    %v3107 = vmul.f32 %v3104, %v3106
    %v3108 = vsub.f32 1.0, %v3107
    %v3109 = vmul.f32 %v3106, %v3108
    %v3110 = vadd.f32 %v3106, %v3109
    %vm3111 = vweird.f32 %v3104
    %vm3112 = vweird.f32 %v3106
    %vm3113 = vmor %vm3111, %vm3112
    %v3114 = vsel %vm3113, %v3106, %v3110
    %v3115 = vand.u32 2147483647, %v3104
    %vm3116 = vcmp.eq.f32.partialorder %v3115, 8.507059e+37
    %v3117 = vand.u32 %v3104, 2147483648
    %v3118 = vor.u32 1.1754944e-38, %v3117
    %v3119 = vsel %vm3116, %v3118, %v3114
    %v3120 = vmul.f32 1.0, %v3119
    %v3121 = vrcp.pop %v3105
    %v3122 = vmul.f32 %v3105, %v3121
    %v3123 = vsub.f32 1.0, %v3122
    %v3124 = vmul.f32 %v3121, %v3123
    %v3125 = vadd.f32 %v3121, %v3124
    %vm3126 = vweird.f32 %v3105
    %vm3127 = vweird.f32 %v3121
    %vm3128 = vmor %vm3126, %vm3127
    %v3129 = vsel %vm3128, %v3121, %v3125
    %v3130 = vand.u32 2147483647, %v3105
    %vm3131 = vcmp.eq.f32.partialorder %v3130, 8.507059e+37
    %v3132 = vand.u32 %v3105, 2147483648
    %v3133 = vor.u32 1.1754944e-38, %v3132
    %v3134 = vsel %vm3131, %v3133, %v3129
    %v3135 = vmul.f32 1.0, %v3134
    %3136 = vst [vmem:[%s11] sm:$0xff] %v3120
    %3137 = vst [vmem:[%s11 + $0x8] sm:$0xff] %v3135
    // Predicated region
    $region82: #{main_model_forward.7} parent=1 // pred_check
      _
    $region83: #{main_model_forward.7} parent=1 // pred_check_branch
      %3139 = sbr.rel (0) target = $region85
    $region84: #{main_model_forward.7} parent=1 // pred_region
      _
    $region85: #{main_model_forward.7} parent=1 // pred_fallthru
      _
    // Predicated region
    $region86: #{main_model_forward.7} parent=1 // pred_check
      _
    $region87: #{main_model_forward.7} parent=1 // pred_check_branch
      %3141 = sbr.rel (0) target = $region89
    $region88: #{main_model_forward.7} parent=1 // pred_region
      _
    $region89: #{main_model_forward.7} parent=1 // pred_fallthru
      _
    %3142 = vsyncpa [#allocation3], 1
    %3143 = vsyncpa [#allocation5], 1
    %3144 = vsyncpa [#allocation8], 1
    %3145 = vsyncpa [#allocation11], 1
    %3146 = vsyncpa [#allocation14], 1

// kernel: main_model_forward.5
$region0: #{main_model_forward.5}
  #allocation0 [shape = 'u32[]', space=smem, size = 0x4, offset = 0x4, fixed_abs, tag = 'smem constant byte address 0x4 - core index']
  #allocation1 [shape = 'u32[72,128]{1,0:T(1,128)}', space=vmem, size = 0x9000, scoped, tag = 'internal scratch']
  %s0 = inlined_call_operand.vmem [shape: bf16[2,14,384], index: 0, kind: input, shape index: {}]
  %s1 = inlined_call_operand.hbm [shape: bf16[7,384,256], index: 1, kind: input, shape index: {}]
  %s2 = inlined_call_operand.hbm [shape: f32[1,256], index: 2, kind: input, shape index: {}]
  %s3 = inlined_call_operand.vmem [shape: bf16[256,400], index: 3, kind: input, shape index: {}]
  %s4 = inlined_call_operand.hbm [shape: f32[1,400], index: 4, kind: input, shape index: {}]
  %s5 = inlined_call_operand.hbm [shape: bf16[400,400], index: 5, kind: input, shape index: {}]
  %s6 = inlined_call_operand.hbm [shape: f32[1,400], index: 6, kind: input, shape index: {}]
  %s7 = inlined_call_operand.hbm [shape: bf16[400,1024], index: 7, kind: input, shape index: {}]
  %s8 = inlined_call_operand.hbm [shape: f32[1,1024], index: 8, kind: input, shape index: {}]
  %s9 = inlined_call_operand.hbm [shape: bf16[400,1024], index: 9, kind: input, shape index: {}]
  %s10 = inlined_call_operand.hbm [shape: f32[1,1024], index: 10, kind: input, shape index: {}]
  %s11 = inlined_call_operand.vmem [shape: f32[2,2,8,1024], index: 11, kind: output, shape index: {}]
  %s12 = sld [smem:[#allocation0]]
  $region90: #{main_model_forward.5} parent=0
    _
  %s14 = ssub.s32 1, %s12
  %s15 = scalar_select 0, %s14, %s12
  $region1: #{main_model_forward.5} parent=0
    #allocation2 [shape = 'u8[1376256]{0}', space=vmem, size = 0x150000, scoped, tag = 'input window, operand 1, single buffered']
    #allocation3 [shape = 's32[1]{0}', space=sflag, size = 0x4, scoped, tag = 'scoped memory for main_model_forward.5']
    #allocation4 [shape = 'u8[1024]{0}', space=vmem, size = 0x400, scoped, tag = 'input window, operand 2, single buffered']
    #allocation5 [shape = 's32[1]{0}', space=sflag, size = 0x4, scoped, tag = 'scoped memory for main_model_forward.5']
    #allocation6 [shape = 'u8[2048]{0}', space=vmem, size = 0x800, scoped, tag = 'input window, operand 4, single buffered']
    #allocation7 [shape = 'u8[409600]{0}', space=vmem, size = 0x64000, scoped, tag = 'input window, operand 5, single buffered']
    #allocation8 [shape = 's32[1]{0}', space=sflag, size = 0x4, scoped, tag = 'scoped memory for main_model_forward.5']
    #allocation9 [shape = 'u8[2048]{0}', space=vmem, size = 0x800, scoped, tag = 'input window, operand 6, single buffered']
    #allocation10 [shape = 'u8[819200]{0}', space=vmem, size = 0xc8000, scoped, tag = 'input window, operand 7, single buffered']
    #allocation11 [shape = 's32[1]{0}', space=sflag, size = 0x4, scoped, tag = 'scoped memory for main_model_forward.5']
    #allocation12 [shape = 'u8[4096]{0}', space=vmem, size = 0x1000, scoped, tag = 'input window, operand 8, single buffered']
    #allocation13 [shape = 'u8[819200]{0}', space=vmem, size = 0xc8000, scoped, tag = 'input window, operand 9, single buffered']
    #allocation14 [shape = 's32[1]{0}', space=sflag, size = 0x4, scoped, tag = 'scoped memory for main_model_forward.5']
    #allocation15 [shape = 'u8[4096]{0}', space=vmem, size = 0x1000, scoped, tag = 'input window, operand 10, single buffered']
    %16 = vsyncpa [#allocation3], 0
    %17 = vsyncpa [#allocation5], 0
    %18 = vsyncpa [#allocation8], 0
    %19 = vsyncpa [#allocation11], 0
    %20 = vsyncpa [#allocation14], 0
    // Predicated region
    $region2: #{main_model_forward.5} parent=1 // pred_check
      _
    $region3: #{main_model_forward.5} parent=1 // pred_check_branch
      %22 = sbr.rel (0) target = $region5
    $region4: #{main_model_forward.5} parent=1 // pred_region
      _
    $region5: #{main_model_forward.5} parent=1 // pred_fallthru
      _
    // Predicated region
    $region6: #{main_model_forward.5} parent=1 // pred_check
      _
    $region7: #{main_model_forward.5} parent=1 // pred_check_branch
      %24 = sbr.rel (0) target = $region9
    $region8: #{main_model_forward.5} parent=1 // pred_region
      %26 = vsyncadd [#allocation3], 0
      %s27 = sshll.u32 %s1, 4
      %s28 = int_to_ptr.hbm [resolvable:$true] %s27
      %s29 = sshll.u32 [#allocation2], 4
      %s30 = int_to_ptr.vmem [resolvable:$true] %s29
      %35 = dma.hbm_to_vmem [thread:$0]  %s28, 43008, %s30, [#allocation3], 128, 128, 8
    $region9: #{main_model_forward.5} parent=1 // pred_fallthru
      _
    // Predicated region
    $region10: #{main_model_forward.5} parent=1 // pred_check
      _
    $region11: #{main_model_forward.5} parent=1 // pred_check_branch
      %37 = sbr.rel (0) target = $region13
    $region12: #{main_model_forward.5} parent=1 // pred_region
      %39 = vsyncadd [#allocation5], 0
      %s41 = sshll.u32 %s2, 4
      %s42 = int_to_ptr.hbm [resolvable:$true] %s41
      %s43 = sshll.u32 [#allocation4], 4
      %s44 = int_to_ptr.vmem [resolvable:$true] %s43
      %46 = dma.hbm_to_vmem [thread:$0]  %s42, 32, %s44, [#allocation5]
    $region13: #{main_model_forward.5} parent=1 // pred_fallthru
      _
    // Predicated region
    $region14: #{main_model_forward.5} parent=1 // pred_check
      _
    $region15: #{main_model_forward.5} parent=1 // pred_check_branch
      %48 = sbr.rel (0) target = $region17
    $region16: #{main_model_forward.5} parent=1 // pred_region
      _
    $region17: #{main_model_forward.5} parent=1 // pred_fallthru
      _
    // Predicated region
    $region18: #{main_model_forward.5} parent=1 // pred_check
      _
    $region19: #{main_model_forward.5} parent=1 // pred_check_branch
      %50 = sbr.rel (0) target = $region21
    $region20: #{main_model_forward.5} parent=1 // pred_region
      %52 = vsyncadd [#allocation5], 0
      %s54 = sshll.u32 %s4, 4
      %s55 = int_to_ptr.hbm [resolvable:$true] %s54
      %s56 = sshll.u32 [#allocation6], 4
      %s57 = int_to_ptr.vmem [resolvable:$true] %s56
      %59 = dma.hbm_to_vmem [thread:$0]  %s55, 64, %s57, [#allocation5]
    $region21: #{main_model_forward.5} parent=1 // pred_fallthru
      _
    // Predicated region
    $region22: #{main_model_forward.5} parent=1 // pred_check
      _
    $region23: #{main_model_forward.5} parent=1 // pred_check_branch
      %61 = sbr.rel (0) target = $region25
    $region24: #{main_model_forward.5} parent=1 // pred_region
      %63 = vsyncadd [#allocation8], 0
      %s64 = sshll.u32 %s5, 4
      %s65 = int_to_ptr.hbm [resolvable:$true] %s64
      %s66 = sshll.u32 [#allocation7], 4
      %s67 = int_to_ptr.vmem [resolvable:$true] %s66
      %72 = dma.hbm_to_vmem [thread:$0]  %s65, 12800, %s67, [#allocation8], 256, 256, 16
    $region25: #{main_model_forward.5} parent=1 // pred_fallthru
      _
    // Predicated region
    $region26: #{main_model_forward.5} parent=1 // pred_check
      _
    $region27: #{main_model_forward.5} parent=1 // pred_check_branch
      %74 = sbr.rel (0) target = $region29
    $region28: #{main_model_forward.5} parent=1 // pred_region
      %76 = vsyncadd [#allocation8], 0
      %s78 = sshll.u32 %s6, 4
      %s79 = int_to_ptr.hbm [resolvable:$true] %s78
      %s80 = sshll.u32 [#allocation9], 4
      %s81 = int_to_ptr.vmem [resolvable:$true] %s80
      %83 = dma.hbm_to_vmem [thread:$0]  %s79, 64, %s81, [#allocation8]
    $region29: #{main_model_forward.5} parent=1 // pred_fallthru
      _
    // Predicated region
    $region30: #{main_model_forward.5} parent=1 // pred_check
      _
    $region31: #{main_model_forward.5} parent=1 // pred_check_branch
      %85 = sbr.rel (0) target = $region33
    $region32: #{main_model_forward.5} parent=1 // pred_region
      %87 = vsyncadd [#allocation11], 0
      %s88 = sshll.u32 %s7, 4
      %s89 = int_to_ptr.hbm [resolvable:$true] %s88
      %s90 = sshll.u32 [#allocation10], 4
      %s91 = int_to_ptr.vmem [resolvable:$true] %s90
      %96 = dma.hbm_to_vmem [thread:$0]  %s89, 25600, %s91, [#allocation11], 512, 512, 32
    $region33: #{main_model_forward.5} parent=1 // pred_fallthru
      _
    // Predicated region
    $region34: #{main_model_forward.5} parent=1 // pred_check
      _
    $region35: #{main_model_forward.5} parent=1 // pred_check_branch
      %98 = sbr.rel (0) target = $region37
    $region36: #{main_model_forward.5} parent=1 // pred_region
      %100 = vsyncadd [#allocation11], 0
      %s102 = sshll.u32 %s8, 4
      %s103 = int_to_ptr.hbm [resolvable:$true] %s102
      %s104 = sshll.u32 [#allocation12], 4
      %s105 = int_to_ptr.vmem [resolvable:$true] %s104
      %107 = dma.hbm_to_vmem [thread:$0]  %s103, 128, %s105, [#allocation11]
    $region37: #{main_model_forward.5} parent=1 // pred_fallthru
      _
    // Predicated region
    $region38: #{main_model_forward.5} parent=1 // pred_check
      _
    $region39: #{main_model_forward.5} parent=1 // pred_check_branch
      %109 = sbr.rel (0) target = $region41
    $region40: #{main_model_forward.5} parent=1 // pred_region
      %111 = vsyncadd [#allocation14], 0
      %s112 = sshll.u32 %s9, 4
      %s113 = int_to_ptr.hbm [resolvable:$true] %s112
      %s114 = sshll.u32 [#allocation13], 4
      %s115 = int_to_ptr.vmem [resolvable:$true] %s114
      %120 = dma.hbm_to_vmem [thread:$0]  %s113, 25600, %s115, [#allocation14], 512, 512, 32
    $region41: #{main_model_forward.5} parent=1 // pred_fallthru
      _
    // Predicated region
    $region42: #{main_model_forward.5} parent=1 // pred_check
      _
    $region43: #{main_model_forward.5} parent=1 // pred_check_branch
      %122 = sbr.rel (0) target = $region45
    $region44: #{main_model_forward.5} parent=1 // pred_region
      %124 = vsyncadd [#allocation14], 0
      %s126 = sshll.u32 %s10, 4
      %s127 = int_to_ptr.hbm [resolvable:$true] %s126
      %s128 = sshll.u32 [#allocation15], 4
      %s129 = int_to_ptr.vmem [resolvable:$true] %s128
      %131 = dma.hbm_to_vmem [thread:$0]  %s127, 128, %s129, [#allocation14]
    $region45: #{main_model_forward.5} parent=1 // pred_fallthru
      _
    // Predicated region
    $region46: #{main_model_forward.5} parent=1 // pred_check
      _
    $region47: #{main_model_forward.5} parent=1 // pred_check_branch
      %133 = sbr.rel (0) target = $region49
    $region48: #{main_model_forward.5} parent=1 // pred_region
      %135 = dma.done [#allocation3], 43008
    $region49: #{main_model_forward.5} parent=1 // pred_fallthru
      _
    // Predicated region
    $region50: #{main_model_forward.5} parent=1 // pred_check
      _
    $region51: #{main_model_forward.5} parent=1 // pred_check_branch
      %137 = sbr.rel (0) target = $region53
    $region52: #{main_model_forward.5} parent=1 // pred_region
      %139 = dma.done [#allocation5], 32
    $region53: #{main_model_forward.5} parent=1 // pred_fallthru
      _
    // Predicated region
    $region54: #{main_model_forward.5} parent=1 // pred_check
      _
    $region55: #{main_model_forward.5} parent=1 // pred_check_branch
      %141 = sbr.rel (0) target = $region57
    $region56: #{main_model_forward.5} parent=1 // pred_region
      %143 = dma.done [#allocation5], 64
    $region57: #{main_model_forward.5} parent=1 // pred_fallthru
      _
    // Predicated region
    $region58: #{main_model_forward.5} parent=1 // pred_check
      _
    $region59: #{main_model_forward.5} parent=1 // pred_check_branch
      %145 = sbr.rel (0) target = $region61
    $region60: #{main_model_forward.5} parent=1 // pred_region
      %147 = dma.done [#allocation8], 12800
    $region61: #{main_model_forward.5} parent=1 // pred_fallthru
      _
    // Predicated region
    $region62: #{main_model_forward.5} parent=1 // pred_check
      _
    $region63: #{main_model_forward.5} parent=1 // pred_check_branch
      %149 = sbr.rel (0) target = $region65
    $region64: #{main_model_forward.5} parent=1 // pred_region
      %151 = dma.done [#allocation8], 64
    $region65: #{main_model_forward.5} parent=1 // pred_fallthru
      _
    // Predicated region
    $region66: #{main_model_forward.5} parent=1 // pred_check
      _
    $region67: #{main_model_forward.5} parent=1 // pred_check_branch
      %153 = sbr.rel (0) target = $region69
    $region68: #{main_model_forward.5} parent=1 // pred_region
      %155 = dma.done [#allocation11], 25600
    $region69: #{main_model_forward.5} parent=1 // pred_fallthru
      _
    // Predicated region
    $region70: #{main_model_forward.5} parent=1 // pred_check
      _
    $region71: #{main_model_forward.5} parent=1 // pred_check_branch
      %157 = sbr.rel (0) target = $region73
    $region72: #{main_model_forward.5} parent=1 // pred_region
      %159 = dma.done [#allocation11], 128
    $region73: #{main_model_forward.5} parent=1 // pred_fallthru
      _
    // Predicated region
    $region74: #{main_model_forward.5} parent=1 // pred_check
      _
    $region75: #{main_model_forward.5} parent=1 // pred_check_branch
      %161 = sbr.rel (0) target = $region77
    $region76: #{main_model_forward.5} parent=1 // pred_region
      %163 = dma.done [#allocation14], 25600
    $region77: #{main_model_forward.5} parent=1 // pred_fallthru
      _
    // Predicated region
    $region78: #{main_model_forward.5} parent=1 // pred_check
      _
    $region79: #{main_model_forward.5} parent=1 // pred_check_branch
      %165 = sbr.rel (0) target = $region81
    $region80: #{main_model_forward.5} parent=1 // pred_region
      %167 = dma.done [#allocation14], 128
    $region81: #{main_model_forward.5} parent=1 // pred_fallthru
      _
    %v169 = vld [vmem:[%s0] sm:$0xff]
    %v170 = vld [vmem:[%s0 + $0x8] sm:$0xf]
    %v171 = vld [vmem:[%s0 + $0x18] sm:$0xff]
    %v172 = vld [vmem:[%s0 + $0x20] sm:$0xf]
    %v173 = vld [vmem:[#allocation2] sm:$0xff]
    %v174 = vld [vmem:[#allocation2 + $0x8] sm:$0xff]
    %v175 = vld [vmem:[#allocation2 + $0x10] sm:$0xff]
    %v176 = vld [vmem:[#allocation2 + $0x18] sm:$0xff]
    %v177 = vld [vmem:[#allocation2 + $0x20] sm:$0xff]
    %v178 = vld [vmem:[#allocation2 + $0x28] sm:$0xff]
    %v179 = vld [vmem:[#allocation2 + $0x30] sm:$0xff]
    %v180 = vld [vmem:[#allocation2 + $0x38] sm:$0xff]
    %v181 = vld [vmem:[#allocation2 + $0x40] sm:$0xff]
    %v182 = vld [vmem:[#allocation2 + $0x48] sm:$0xff]
    %v183 = vld [vmem:[#allocation2 + $0x50] sm:$0xff]
    %v184 = vld [vmem:[#allocation2 + $0x58] sm:$0xff]
    %v185 = vld [vmem:[#allocation2 + $0x60] sm:$0xff]
    %v186 = vld [vmem:[#allocation2 + $0x68] sm:$0xff]
    %v187 = vld [vmem:[#allocation2 + $0x70] sm:$0xff]
    %v188 = vld [vmem:[#allocation2 + $0x78] sm:$0xff]
    %v189 = vld [vmem:[#allocation2 + $0x80] sm:$0xff]
    %v190 = vld [vmem:[#allocation2 + $0x88] sm:$0xff]
    %v191 = vld [vmem:[#allocation2 + $0x90] sm:$0xff]
    %v192 = vld [vmem:[#allocation2 + $0x98] sm:$0xff]
    %v193 = vld [vmem:[#allocation2 + $0xa0] sm:$0xff]
    %v194 = vld [vmem:[#allocation2 + $0xa8] sm:$0xff]
    %v195 = vld [vmem:[#allocation2 + $0xb0] sm:$0xff]
    %v196 = vld [vmem:[#allocation2 + $0xb8] sm:$0xff]
    %v197 = vld [vmem:[#allocation2 + $0xc0] sm:$0xff]
    %v198 = vld [vmem:[#allocation2 + $0xc8] sm:$0xff]
    %v199 = vld [vmem:[#allocation2 + $0xd0] sm:$0xff]
    %v200 = vld [vmem:[#allocation2 + $0xd8] sm:$0xff]
    %v201 = vld [vmem:[#allocation2 + $0xe0] sm:$0xff]
    %v202 = vld [vmem:[#allocation2 + $0xe8] sm:$0xff]
    %v203 = vld [vmem:[#allocation2 + $0xf0] sm:$0xff]
    %v204 = vld [vmem:[#allocation2 + $0xf8] sm:$0xff]
    %v205 = vld [vmem:[#allocation2 + $0x100] sm:$0xff]
    %v206 = vld [vmem:[#allocation2 + $0x108] sm:$0xff]
    %v207 = vld [vmem:[#allocation2 + $0x110] sm:$0xff]
    %v208 = vld [vmem:[#allocation2 + $0x118] sm:$0xff]
    %v209 = vld [vmem:[#allocation2 + $0x120] sm:$0xff]
    %v210 = vld [vmem:[#allocation2 + $0x128] sm:$0xff]
    %v211 = vld [vmem:[#allocation2 + $0x130] sm:$0xff]
    %v212 = vld [vmem:[#allocation2 + $0x138] sm:$0xff]
    %v213 = vld [vmem:[#allocation2 + $0x140] sm:$0xff]
    %v214 = vld [vmem:[#allocation2 + $0x148] sm:$0xff]
    %v215 = vld [vmem:[#allocation2 + $0x150] sm:$0xff]
    %v216 = vld [vmem:[#allocation2 + $0x158] sm:$0xff]
    %v217 = vld [vmem:[#allocation2 + $0x160] sm:$0xff]
    %v218 = vld [vmem:[#allocation2 + $0x168] sm:$0xff]
    %v219 = vld [vmem:[#allocation2 + $0x170] sm:$0xff]
    %v220 = vld [vmem:[#allocation2 + $0x178] sm:$0xff]
    %v221 = vld [vmem:[%s0 + $0xc] sm:$0x11]
    %v222 = vld [vmem:[%s0 + $0x14] sm:$0x1]
    %v223 = vld [vmem:[%s0 + $0x24] sm:$0x11]
    %v224 = vld [vmem:[%s0 + $0x2c] sm:$0x1]
    %vm225 = vsmask.f32 3328
    %vm226 = vsmask.f32 7440
    %vm227 = vmor %vm225, %vm226
    %v229 = vshrl.u32 %v169, 16
    %v231 = vrot.slane %v229, 4
    %v232 = vshll.u32 %v169, 16
    %v234 = vrot.slane %v232, 5
    %v235 = vor.u32 %v231, %v234
    %v236 = vrot.slane %v235, 4
    %v238 = vshll.u32 %v221, 16
    %v240 = vrot.slane %v238, 5
    %v241 = vsel %vm227, %v236, %v240
    %v243 = vshrl.u32 %v170, 16
    %v245 = vrot.slane %v243, 4
    %v246 = vshll.u32 %v170, 16
    %v248 = vrot.slane %v246, 5
    %v249 = vor.u32 %v245, %v248
    %v250 = vrot.slane %v249, 4
    %v252 = vshll.u32 %v222, 16
    %v254 = vrot.slane %v252, 5
    %v255 = vsel %vm227, %v250, %v254
    %v257 = vshrl.u32 %v171, 16
    %v259 = vrot.slane %v257, 4
    %v260 = vshll.u32 %v171, 16
    %v262 = vrot.slane %v260, 5
    %v263 = vor.u32 %v259, %v262
    %v264 = vrot.slane %v263, 4
    %v266 = vshll.u32 %v223, 16
    %v268 = vrot.slane %v266, 5
    %v269 = vsel %vm227, %v264, %v268
    %v271 = vshrl.u32 %v172, 16
    %v273 = vrot.slane %v271, 4
    %v274 = vshll.u32 %v172, 16
    %v276 = vrot.slane %v274, 5
    %v277 = vor.u32 %v273, %v276
    %v278 = vrot.slane %v277, 4
    %v280 = vshll.u32 %v224, 16
    %v282 = vrot.slane %v280, 5
    %v283 = vsel %vm227, %v278, %v282
    %s284 = scalar_lea.vmem [#allocation2], 384
    %v285 = vld [vmem:[%s284] sm:$0xff]
    %v286 = vld [vmem:[%s284 + $0x8] sm:$0xff]
    %v287 = vld [vmem:[%s284 + $0x10] sm:$0xff]
    %v288 = vld [vmem:[%s284 + $0x18] sm:$0xff]
    %v289 = vld [vmem:[%s284 + $0x20] sm:$0xff]
    %v290 = vld [vmem:[%s284 + $0x28] sm:$0xff]
    %v291 = vld [vmem:[%s284 + $0x30] sm:$0xff]
    %v292 = vld [vmem:[%s284 + $0x38] sm:$0xff]
    %v293 = vld [vmem:[%s284 + $0x40] sm:$0xff]
    %v294 = vld [vmem:[%s284 + $0x48] sm:$0xff]
    %v295 = vld [vmem:[%s284 + $0x50] sm:$0xff]
    %v296 = vld [vmem:[%s284 + $0x58] sm:$0xff]
    %v297 = vld [vmem:[%s284 + $0x60] sm:$0xff]
    %v298 = vld [vmem:[%s284 + $0x68] sm:$0xff]
    %v299 = vld [vmem:[%s284 + $0x70] sm:$0xff]
    %v300 = vld [vmem:[%s284 + $0x78] sm:$0xff]
    %v301 = vld [vmem:[%s284 + $0x80] sm:$0xff]
    %v302 = vld [vmem:[%s284 + $0x88] sm:$0xff]
    %v303 = vld [vmem:[%s284 + $0x90] sm:$0xff]
    %v304 = vld [vmem:[%s284 + $0x98] sm:$0xff]
    %v305 = vld [vmem:[%s284 + $0xa0] sm:$0xff]
    %v306 = vld [vmem:[%s284 + $0xa8] sm:$0xff]
    %v307 = vld [vmem:[%s284 + $0xb0] sm:$0xff]
    %v308 = vld [vmem:[%s284 + $0xb8] sm:$0xff]
    %v309 = vld [vmem:[%s284 + $0xc0] sm:$0xff]
    %v310 = vld [vmem:[%s284 + $0xc8] sm:$0xff]
    %v311 = vld [vmem:[%s284 + $0xd0] sm:$0xff]
    %v312 = vld [vmem:[%s284 + $0xd8] sm:$0xff]
    %v313 = vld [vmem:[%s284 + $0xe0] sm:$0xff]
    %v314 = vld [vmem:[%s284 + $0xe8] sm:$0xff]
    %v315 = vld [vmem:[%s284 + $0xf0] sm:$0xff]
    %v316 = vld [vmem:[%s284 + $0xf8] sm:$0xff]
    %v317 = vld [vmem:[%s284 + $0x100] sm:$0xff]
    %v318 = vld [vmem:[%s284 + $0x108] sm:$0xff]
    %v319 = vld [vmem:[%s284 + $0x110] sm:$0xff]
    %v320 = vld [vmem:[%s284 + $0x118] sm:$0xff]
    %v321 = vld [vmem:[%s284 + $0x120] sm:$0xff]
    %v322 = vld [vmem:[%s284 + $0x128] sm:$0xff]
    %v323 = vld [vmem:[%s284 + $0x130] sm:$0xff]
    %v324 = vld [vmem:[%s284 + $0x138] sm:$0xff]
    %v325 = vld [vmem:[%s284 + $0x140] sm:$0xff]
    %v326 = vld [vmem:[%s284 + $0x148] sm:$0xff]
    %v327 = vld [vmem:[%s284 + $0x150] sm:$0xff]
    %v328 = vld [vmem:[%s284 + $0x158] sm:$0xff]
    %v329 = vld [vmem:[%s284 + $0x160] sm:$0xff]
    %v330 = vld [vmem:[%s284 + $0x168] sm:$0xff]
    %v331 = vld [vmem:[%s284 + $0x170] sm:$0xff]
    %v332 = vld [vmem:[%s284 + $0x178] sm:$0xff]
    %v333 = vunpack.c.l.b16 %v241
    %v334 = vunpack.c.h.b16 %v241
    %v335 = vunpack.c.l.b16 %v255
    %v336 = vunpack.c.l.b16 %v269
    %v337 = vunpack.c.h.b16 %v269
    %v338 = vunpack.c.l.b16 %v283
    %v339 = vpack.c.b16 %v336, %v333
    %v340 = vpack.c.b16 %v337, %v334
    %v341 = vpack.c.b16 %v338, %v335
    %v393 = vunpack.c.l.b16 %v285
    %v394 = vunpack.c.h.b16 %v285
    %v395 = vunpack.c.l.b16 %v286
    %v396 = vunpack.c.h.b16 %v286
    %v397 = vunpack.c.l.b16 %v287
    %v398 = vunpack.c.h.b16 %v287
    %v399 = vunpack.c.l.b16 %v288
    %v400 = vunpack.c.h.b16 %v288
    %v401 = vunpack.c.l.b16 %v289
    %v402 = vunpack.c.h.b16 %v289
    %v403 = vunpack.c.l.b16 %v290
    %v404 = vunpack.c.h.b16 %v290
    %v405 = vunpack.c.l.b16 %v291
    %v406 = vunpack.c.h.b16 %v291
    %v407 = vunpack.c.l.b16 %v292
    %v408 = vunpack.c.h.b16 %v292
    %v409 = vunpack.c.l.b16 %v293
    %v410 = vunpack.c.h.b16 %v293
    %v411 = vunpack.c.l.b16 %v294
    %v412 = vunpack.c.h.b16 %v294
    %v413 = vunpack.c.l.b16 %v295
    %v414 = vunpack.c.h.b16 %v295
    %v415 = vunpack.c.l.b16 %v296
    %v416 = vunpack.c.h.b16 %v296
    %v417 = vunpack.c.l.b16 %v297
    %v418 = vunpack.c.h.b16 %v297
    %v419 = vunpack.c.l.b16 %v298
    %v420 = vunpack.c.h.b16 %v298
    %v421 = vunpack.c.l.b16 %v299
    %v422 = vunpack.c.h.b16 %v299
    %v423 = vunpack.c.l.b16 %v300
    %v424 = vunpack.c.h.b16 %v300
    %v425 = vunpack.c.l.b16 %v301
    %v426 = vunpack.c.h.b16 %v301
    %v427 = vunpack.c.l.b16 %v302
    %v428 = vunpack.c.h.b16 %v302
    %v429 = vunpack.c.l.b16 %v303
    %v430 = vunpack.c.h.b16 %v303
    %v431 = vunpack.c.l.b16 %v304
    %v432 = vunpack.c.h.b16 %v304
    %v433 = vunpack.c.l.b16 %v305
    %v434 = vunpack.c.h.b16 %v305
    %v435 = vunpack.c.l.b16 %v306
    %v436 = vunpack.c.h.b16 %v306
    %v437 = vunpack.c.l.b16 %v307
    %v438 = vunpack.c.h.b16 %v307
    %v439 = vunpack.c.l.b16 %v308
    %v440 = vunpack.c.h.b16 %v308
    %v441 = vunpack.c.l.b16 %v309
    %v442 = vunpack.c.h.b16 %v309
    %v443 = vunpack.c.l.b16 %v310
    %v444 = vunpack.c.h.b16 %v310
    %v445 = vunpack.c.l.b16 %v311
    %v446 = vunpack.c.h.b16 %v311
    %v447 = vunpack.c.l.b16 %v312
    %v448 = vunpack.c.h.b16 %v312
    %v449 = vunpack.c.l.b16 %v313
    %v450 = vunpack.c.h.b16 %v313
    %v451 = vunpack.c.l.b16 %v314
    %v452 = vunpack.c.h.b16 %v314
    %v453 = vunpack.c.l.b16 %v315
    %v454 = vunpack.c.h.b16 %v315
    %v455 = vunpack.c.l.b16 %v316
    %v456 = vunpack.c.h.b16 %v316
    %v457 = vunpack.c.l.b16 %v317
    %v458 = vunpack.c.h.b16 %v317
    %v459 = vunpack.c.l.b16 %v318
    %v460 = vunpack.c.h.b16 %v318
    %v461 = vunpack.c.l.b16 %v319
    %v462 = vunpack.c.h.b16 %v319
    %v463 = vunpack.c.l.b16 %v320
    %v464 = vunpack.c.h.b16 %v320
    %v465 = vunpack.c.l.b16 %v321
    %v466 = vunpack.c.h.b16 %v321
    %v467 = vunpack.c.l.b16 %v322
    %v468 = vunpack.c.h.b16 %v322
    %v469 = vunpack.c.l.b16 %v323
    %v470 = vunpack.c.h.b16 %v323
    %v471 = vunpack.c.l.b16 %v324
    %v472 = vunpack.c.h.b16 %v324
    %v473 = vunpack.c.l.b16 %v325
    %v474 = vunpack.c.h.b16 %v325
    %v475 = vunpack.c.l.b16 %v326
    %v476 = vunpack.c.h.b16 %v326
    %v477 = vunpack.c.l.b16 %v327
    %v478 = vunpack.c.h.b16 %v327
    %v479 = vunpack.c.l.b16 %v328
    %v480 = vunpack.c.h.b16 %v328
    %v481 = vunpack.c.l.b16 %v329
    %v482 = vunpack.c.h.b16 %v329
    %v483 = vunpack.c.l.b16 %v330
    %v484 = vunpack.c.h.b16 %v330
    %v485 = vunpack.c.l.b16 %v331
    %v486 = vunpack.c.h.b16 %v331
    %v487 = vunpack.c.l.b16 %v332
    %v488 = vunpack.c.h.b16 %v332
    %v489 = vpack.c.b16 %v395, %v393
    %v490 = vpack.c.b16 %v396, %v394
    %v491 = vpack.c.b16 %v399, %v397
    %v492 = vpack.c.b16 %v400, %v398
    %v493 = vpack.c.b16 %v403, %v401
    %v494 = vpack.c.b16 %v404, %v402
    %v495 = vpack.c.b16 %v407, %v405
    %v496 = vpack.c.b16 %v408, %v406
    %v497 = vpack.c.b16 %v411, %v409
    %v498 = vpack.c.b16 %v412, %v410
    %v499 = vpack.c.b16 %v415, %v413
    %v500 = vpack.c.b16 %v416, %v414
    %v501 = vpack.c.b16 %v419, %v417
    %v502 = vpack.c.b16 %v420, %v418
    %v503 = vpack.c.b16 %v423, %v421
    %v504 = vpack.c.b16 %v424, %v422
    %v505 = vpack.c.b16 %v427, %v425
    %v506 = vpack.c.b16 %v428, %v426
    %v507 = vpack.c.b16 %v431, %v429
    %v508 = vpack.c.b16 %v432, %v430
    %v509 = vpack.c.b16 %v435, %v433
    %v510 = vpack.c.b16 %v436, %v434
    %v511 = vpack.c.b16 %v439, %v437
    %v512 = vpack.c.b16 %v440, %v438
    %v513 = vpack.c.b16 %v443, %v441
    %v514 = vpack.c.b16 %v444, %v442
    %v515 = vpack.c.b16 %v447, %v445
    %v516 = vpack.c.b16 %v448, %v446
    %v517 = vpack.c.b16 %v451, %v449
    %v518 = vpack.c.b16 %v452, %v450
    %v519 = vpack.c.b16 %v455, %v453
    %v520 = vpack.c.b16 %v456, %v454
    %v521 = vpack.c.b16 %v459, %v457
    %v522 = vpack.c.b16 %v460, %v458
    %v523 = vpack.c.b16 %v463, %v461
    %v524 = vpack.c.b16 %v464, %v462
    %v525 = vpack.c.b16 %v467, %v465
    %v526 = vpack.c.b16 %v468, %v466
    %v527 = vpack.c.b16 %v471, %v469
    %v528 = vpack.c.b16 %v472, %v470
    %v529 = vpack.c.b16 %v475, %v473
    %v530 = vpack.c.b16 %v476, %v474
    %v531 = vpack.c.b16 %v479, %v477
    %v532 = vpack.c.b16 %v480, %v478
    %v533 = vpack.c.b16 %v483, %v481
    %v534 = vpack.c.b16 %v484, %v482
    %v535 = vpack.c.b16 %v487, %v485
    %v536 = vpack.c.b16 %v488, %v486
    %585 = vmatpush.bf16.msra.mxu0 %v503
    %586 = vmatpush.bf16.msra.mxu0 %v501
    %587 = vmatpush.bf16.msra.mxu0 %v499
    %588 = vmatpush.bf16.msra.mxu0 %v497
    %589 = vmatpush.bf16.msra.mxu0 %v495
    %590 = vmatpush.bf16.msra.mxu0 %v493
    %591 = vmatpush.bf16.msra.mxu0 %v491
    %592 = vmatpush.bf16.msra.mxu0 %v489
    %593 = vmatmul.bf16.gmra.mxu0 %v339
    %v594 = vpop.f32.mrf.mxu0
    %v595 = vadd.f32 0.0, %v594
    %v596 = vpop.f32.mrf.mxu0
    %v597 = vadd.f32 0.0, %v596
    %598 = vdwg.mxu0
    %599 = vmatpush.bf16.msra.mxu0 %v519
    %600 = vmatpush.bf16.msra.mxu0 %v517
    %601 = vmatpush.bf16.msra.mxu0 %v515
    %602 = vmatpush.bf16.msra.mxu0 %v513
    %603 = vmatpush.bf16.msra.mxu0 %v511
    %604 = vmatpush.bf16.msra.mxu0 %v509
    %605 = vmatpush.bf16.msra.mxu0 %v507
    %606 = vmatpush.bf16.msra.mxu0 %v505
    %607 = vmatmul.bf16.gmra.mxu0 %v340
    %v608 = vpop.f32.mrf.mxu0
    %v609 = vadd.f32 %v595, %v608
    %v610 = vpop.f32.mrf.mxu0
    %v611 = vadd.f32 %v597, %v610
    %612 = vdwg.mxu0
    %613 = vmatpush.bf16.msra.mxu0 %v535
    %614 = vmatpush.bf16.msra.mxu0 %v533
    %615 = vmatpush.bf16.msra.mxu0 %v531
    %616 = vmatpush.bf16.msra.mxu0 %v529
    %617 = vmatpush.bf16.msra.mxu0 %v527
    %618 = vmatpush.bf16.msra.mxu0 %v525
    %619 = vmatpush.bf16.msra.mxu0 %v523
    %620 = vmatpush.bf16.msra.mxu0 %v521
    %621 = vmatmul.bf16.gmra.mxu0 %v341
    %v622 = vpop.f32.mrf.mxu0
    %v623 = vadd.f32 %v609, %v622
    %v624 = vpop.f32.mrf.mxu0
    %v625 = vadd.f32 %v611, %v624
    %626 = vdwg.mxu0
    %627 = vmatpush.bf16.msra.mxu0 %v504
    %628 = vmatpush.bf16.msra.mxu0 %v502
    %629 = vmatpush.bf16.msra.mxu0 %v500
    %630 = vmatpush.bf16.msra.mxu0 %v498
    %631 = vmatpush.bf16.msra.mxu0 %v496
    %632 = vmatpush.bf16.msra.mxu0 %v494
    %633 = vmatpush.bf16.msra.mxu0 %v492
    %634 = vmatpush.bf16.msra.mxu0 %v490
    %635 = vmatmul.bf16.gmra.mxu0 %v339
    %v636 = vpop.f32.mrf.mxu0
    %v637 = vadd.f32 0.0, %v636
    %v638 = vpop.f32.mrf.mxu0
    %v639 = vadd.f32 0.0, %v638
    %640 = vdwg.mxu0
    %641 = vmatpush.bf16.msra.mxu0 %v520
    %642 = vmatpush.bf16.msra.mxu0 %v518
    %643 = vmatpush.bf16.msra.mxu0 %v516
    %644 = vmatpush.bf16.msra.mxu0 %v514
    %645 = vmatpush.bf16.msra.mxu0 %v512
    %646 = vmatpush.bf16.msra.mxu0 %v510
    %647 = vmatpush.bf16.msra.mxu0 %v508
    %648 = vmatpush.bf16.msra.mxu0 %v506
    %649 = vmatmul.bf16.gmra.mxu0 %v340
    %v650 = vpop.f32.mrf.mxu0
    %v651 = vadd.f32 %v637, %v650
    %v652 = vpop.f32.mrf.mxu0
    %v653 = vadd.f32 %v639, %v652
    %654 = vdwg.mxu0
    %655 = vmatpush.bf16.msra.mxu0 %v536
    %656 = vmatpush.bf16.msra.mxu0 %v534
    %657 = vmatpush.bf16.msra.mxu0 %v532
    %658 = vmatpush.bf16.msra.mxu0 %v530
    %659 = vmatpush.bf16.msra.mxu0 %v528
    %660 = vmatpush.bf16.msra.mxu0 %v526
    %661 = vmatpush.bf16.msra.mxu0 %v524
    %662 = vmatpush.bf16.msra.mxu0 %v522
    %663 = vmatmul.bf16.gmra.mxu0 %v341
    %v664 = vpop.f32.mrf.mxu0
    %v665 = vadd.f32 %v651, %v664
    %v666 = vpop.f32.mrf.mxu0
    %v667 = vadd.f32 %v653, %v666
    %668 = vdwg.mxu0
    %v673 = vunpack.c.l.b16 %v169
    %v674 = vunpack.c.h.b16 %v169
    %v675 = vunpack.c.l.b16 %v170
    %v676 = vunpack.c.l.b16 %v171
    %v677 = vunpack.c.h.b16 %v171
    %v678 = vunpack.c.l.b16 %v172
    %v679 = vpack.c.b16 %v676, %v673
    %v680 = vpack.c.b16 %v677, %v674
    %v681 = vpack.c.b16 %v678, %v675
    %v733 = vunpack.c.l.b16 %v173
    %v734 = vunpack.c.h.b16 %v173
    %v735 = vunpack.c.l.b16 %v174
    %v736 = vunpack.c.h.b16 %v174
    %v737 = vunpack.c.l.b16 %v175
    %v738 = vunpack.c.h.b16 %v175
    %v739 = vunpack.c.l.b16 %v176
    %v740 = vunpack.c.h.b16 %v176
    %v741 = vunpack.c.l.b16 %v177
    %v742 = vunpack.c.h.b16 %v177
    %v743 = vunpack.c.l.b16 %v178
    %v744 = vunpack.c.h.b16 %v178
    %v745 = vunpack.c.l.b16 %v179
    %v746 = vunpack.c.h.b16 %v179
    %v747 = vunpack.c.l.b16 %v180
    %v748 = vunpack.c.h.b16 %v180
    %v749 = vunpack.c.l.b16 %v181
    %v750 = vunpack.c.h.b16 %v181
    %v751 = vunpack.c.l.b16 %v182
    %v752 = vunpack.c.h.b16 %v182
    %v753 = vunpack.c.l.b16 %v183
    %v754 = vunpack.c.h.b16 %v183
    %v755 = vunpack.c.l.b16 %v184
    %v756 = vunpack.c.h.b16 %v184
    %v757 = vunpack.c.l.b16 %v185
    %v758 = vunpack.c.h.b16 %v185
    %v759 = vunpack.c.l.b16 %v186
    %v760 = vunpack.c.h.b16 %v186
    %v761 = vunpack.c.l.b16 %v187
    %v762 = vunpack.c.h.b16 %v187
    %v763 = vunpack.c.l.b16 %v188
    %v764 = vunpack.c.h.b16 %v188
    %v765 = vunpack.c.l.b16 %v189
    %v766 = vunpack.c.h.b16 %v189
    %v767 = vunpack.c.l.b16 %v190
    %v768 = vunpack.c.h.b16 %v190
    %v769 = vunpack.c.l.b16 %v191
    %v770 = vunpack.c.h.b16 %v191
    %v771 = vunpack.c.l.b16 %v192
    %v772 = vunpack.c.h.b16 %v192
    %v773 = vunpack.c.l.b16 %v193
    %v774 = vunpack.c.h.b16 %v193
    %v775 = vunpack.c.l.b16 %v194
    %v776 = vunpack.c.h.b16 %v194
    %v777 = vunpack.c.l.b16 %v195
    %v778 = vunpack.c.h.b16 %v195
    %v779 = vunpack.c.l.b16 %v196
    %v780 = vunpack.c.h.b16 %v196
    %v781 = vunpack.c.l.b16 %v197
    %v782 = vunpack.c.h.b16 %v197
    %v783 = vunpack.c.l.b16 %v198
    %v784 = vunpack.c.h.b16 %v198
    %v785 = vunpack.c.l.b16 %v199
    %v786 = vunpack.c.h.b16 %v199
    %v787 = vunpack.c.l.b16 %v200
    %v788 = vunpack.c.h.b16 %v200
    %v789 = vunpack.c.l.b16 %v201
    %v790 = vunpack.c.h.b16 %v201
    %v791 = vunpack.c.l.b16 %v202
    %v792 = vunpack.c.h.b16 %v202
    %v793 = vunpack.c.l.b16 %v203
    %v794 = vunpack.c.h.b16 %v203
    %v795 = vunpack.c.l.b16 %v204
    %v796 = vunpack.c.h.b16 %v204
    %v797 = vunpack.c.l.b16 %v205
    %v798 = vunpack.c.h.b16 %v205
    %v799 = vunpack.c.l.b16 %v206
    %v800 = vunpack.c.h.b16 %v206
    %v801 = vunpack.c.l.b16 %v207
    %v802 = vunpack.c.h.b16 %v207
    %v803 = vunpack.c.l.b16 %v208
    %v804 = vunpack.c.h.b16 %v208
    %v805 = vunpack.c.l.b16 %v209
    %v806 = vunpack.c.h.b16 %v209
    %v807 = vunpack.c.l.b16 %v210
    %v808 = vunpack.c.h.b16 %v210
    %v809 = vunpack.c.l.b16 %v211
    %v810 = vunpack.c.h.b16 %v211
    %v811 = vunpack.c.l.b16 %v212
    %v812 = vunpack.c.h.b16 %v212
    %v813 = vunpack.c.l.b16 %v213
    %v814 = vunpack.c.h.b16 %v213
    %v815 = vunpack.c.l.b16 %v214
    %v816 = vunpack.c.h.b16 %v214
    %v817 = vunpack.c.l.b16 %v215
    %v818 = vunpack.c.h.b16 %v215
    %v819 = vunpack.c.l.b16 %v216
    %v820 = vunpack.c.h.b16 %v216
    %v821 = vunpack.c.l.b16 %v217
    %v822 = vunpack.c.h.b16 %v217
    %v823 = vunpack.c.l.b16 %v218
    %v824 = vunpack.c.h.b16 %v218
    %v825 = vunpack.c.l.b16 %v219
    %v826 = vunpack.c.h.b16 %v219
    %v827 = vunpack.c.l.b16 %v220
    %v828 = vunpack.c.h.b16 %v220
    %v829 = vpack.c.b16 %v735, %v733
    %v830 = vpack.c.b16 %v736, %v734
    %v831 = vpack.c.b16 %v739, %v737
    %v832 = vpack.c.b16 %v740, %v738
    %v833 = vpack.c.b16 %v743, %v741
    %v834 = vpack.c.b16 %v744, %v742
    %v835 = vpack.c.b16 %v747, %v745
    %v836 = vpack.c.b16 %v748, %v746
    %v837 = vpack.c.b16 %v751, %v749
    %v838 = vpack.c.b16 %v752, %v750
    %v839 = vpack.c.b16 %v755, %v753
    %v840 = vpack.c.b16 %v756, %v754
    %v841 = vpack.c.b16 %v759, %v757
    %v842 = vpack.c.b16 %v760, %v758
    %v843 = vpack.c.b16 %v763, %v761
    %v844 = vpack.c.b16 %v764, %v762
    %v845 = vpack.c.b16 %v767, %v765
    %v846 = vpack.c.b16 %v768, %v766
    %v847 = vpack.c.b16 %v771, %v769
    %v848 = vpack.c.b16 %v772, %v770
    %v849 = vpack.c.b16 %v775, %v773
    %v850 = vpack.c.b16 %v776, %v774
    %v851 = vpack.c.b16 %v779, %v777
    %v852 = vpack.c.b16 %v780, %v778
    %v853 = vpack.c.b16 %v783, %v781
    %v854 = vpack.c.b16 %v784, %v782
    %v855 = vpack.c.b16 %v787, %v785
    %v856 = vpack.c.b16 %v788, %v786
    %v857 = vpack.c.b16 %v791, %v789
    %v858 = vpack.c.b16 %v792, %v790
    %v859 = vpack.c.b16 %v795, %v793
    %v860 = vpack.c.b16 %v796, %v794
    %v861 = vpack.c.b16 %v799, %v797
    %v862 = vpack.c.b16 %v800, %v798
    %v863 = vpack.c.b16 %v803, %v801
    %v864 = vpack.c.b16 %v804, %v802
    %v865 = vpack.c.b16 %v807, %v805
    %v866 = vpack.c.b16 %v808, %v806
    %v867 = vpack.c.b16 %v811, %v809
    %v868 = vpack.c.b16 %v812, %v810
    %v869 = vpack.c.b16 %v815, %v813
    %v870 = vpack.c.b16 %v816, %v814
    %v871 = vpack.c.b16 %v819, %v817
    %v872 = vpack.c.b16 %v820, %v818
    %v873 = vpack.c.b16 %v823, %v821
    %v874 = vpack.c.b16 %v824, %v822
    %v875 = vpack.c.b16 %v827, %v825
    %v876 = vpack.c.b16 %v828, %v826
    %925 = vmatpush.bf16.msra.mxu0 %v843
    %926 = vmatpush.bf16.msra.mxu0 %v841
    %927 = vmatpush.bf16.msra.mxu0 %v839
    %928 = vmatpush.bf16.msra.mxu0 %v837
    %929 = vmatpush.bf16.msra.mxu0 %v835
    %930 = vmatpush.bf16.msra.mxu0 %v833
    %931 = vmatpush.bf16.msra.mxu0 %v831
    %932 = vmatpush.bf16.msra.mxu0 %v829
    %933 = vmatmul.bf16.gmra.mxu0 %v679
    %v934 = vpop.f32.mrf.mxu0
    %v935 = vadd.f32 %v623, %v934
    %v936 = vpop.f32.mrf.mxu0
    %v937 = vadd.f32 %v625, %v936
    %938 = vdwg.mxu0
    %939 = vmatpush.bf16.msra.mxu0 %v859
    %940 = vmatpush.bf16.msra.mxu0 %v857
    %941 = vmatpush.bf16.msra.mxu0 %v855
    %942 = vmatpush.bf16.msra.mxu0 %v853
    %943 = vmatpush.bf16.msra.mxu0 %v851
    %944 = vmatpush.bf16.msra.mxu0 %v849
    %945 = vmatpush.bf16.msra.mxu0 %v847
    %946 = vmatpush.bf16.msra.mxu0 %v845
    %947 = vmatmul.bf16.gmra.mxu0 %v680
    %v948 = vpop.f32.mrf.mxu0
    %v949 = vadd.f32 %v935, %v948
    %v950 = vpop.f32.mrf.mxu0
    %v951 = vadd.f32 %v937, %v950
    %952 = vdwg.mxu0
    %953 = vmatpush.bf16.msra.mxu0 %v875
    %954 = vmatpush.bf16.msra.mxu0 %v873
    %955 = vmatpush.bf16.msra.mxu0 %v871
    %956 = vmatpush.bf16.msra.mxu0 %v869
    %957 = vmatpush.bf16.msra.mxu0 %v867
    %958 = vmatpush.bf16.msra.mxu0 %v865
    %959 = vmatpush.bf16.msra.mxu0 %v863
    %960 = vmatpush.bf16.msra.mxu0 %v861
    %961 = vmatmul.bf16.gmra.mxu0 %v681
    %v962 = vpop.f32.mrf.mxu0
    %v963 = vadd.f32 %v949, %v962
    %v964 = vpop.f32.mrf.mxu0
    %v965 = vadd.f32 %v951, %v964
    %966 = vdwg.mxu0
    %967 = vmatpush.bf16.msra.mxu0 %v844
    %968 = vmatpush.bf16.msra.mxu0 %v842
    %969 = vmatpush.bf16.msra.mxu0 %v840
    %970 = vmatpush.bf16.msra.mxu0 %v838
    %971 = vmatpush.bf16.msra.mxu0 %v836
    %972 = vmatpush.bf16.msra.mxu0 %v834
    %973 = vmatpush.bf16.msra.mxu0 %v832
    %974 = vmatpush.bf16.msra.mxu0 %v830
    %975 = vmatmul.bf16.gmra.mxu0 %v679
    %v976 = vpop.f32.mrf.mxu0
    %v977 = vadd.f32 %v665, %v976
    %v978 = vpop.f32.mrf.mxu0
    %v979 = vadd.f32 %v667, %v978
    %980 = vdwg.mxu0
    %981 = vmatpush.bf16.msra.mxu0 %v860
    %982 = vmatpush.bf16.msra.mxu0 %v858
    %983 = vmatpush.bf16.msra.mxu0 %v856
    %984 = vmatpush.bf16.msra.mxu0 %v854
    %985 = vmatpush.bf16.msra.mxu0 %v852
    %986 = vmatpush.bf16.msra.mxu0 %v850
    %987 = vmatpush.bf16.msra.mxu0 %v848
    %988 = vmatpush.bf16.msra.mxu0 %v846
    %989 = vmatmul.bf16.gmra.mxu0 %v680
    %v990 = vpop.f32.mrf.mxu0
    %v991 = vadd.f32 %v977, %v990
    %v992 = vpop.f32.mrf.mxu0
    %v993 = vadd.f32 %v979, %v992
    %994 = vdwg.mxu0
    %995 = vmatpush.bf16.msra.mxu0 %v876
    %996 = vmatpush.bf16.msra.mxu0 %v874
    %997 = vmatpush.bf16.msra.mxu0 %v872
    %998 = vmatpush.bf16.msra.mxu0 %v870
    %999 = vmatpush.bf16.msra.mxu0 %v868
    %1000 = vmatpush.bf16.msra.mxu0 %v866
    %1001 = vmatpush.bf16.msra.mxu0 %v864
    %1002 = vmatpush.bf16.msra.mxu0 %v862
    %1003 = vmatmul.bf16.gmra.mxu0 %v681
    %v1004 = vpop.f32.mrf.mxu0
    %v1005 = vadd.f32 %v991, %v1004
    %v1006 = vpop.f32.mrf.mxu0
    %v1007 = vadd.f32 %v993, %v1006
    %1008 = vdwg.mxu0
    %v1009 = vld [vmem:[%s0] sm:$0xee]
    %v1010 = vld [vmem:[%s0 + $0x8] sm:$0xe]
    %v1011 = vld [vmem:[%s0 + $0x18] sm:$0xee]
    %v1012 = vld [vmem:[%s0 + $0x20] sm:$0xe]
    %vm1021 = vcmask 1042432
    %vm1022 = vcmask 1046532
    %vm1023 = vmor %vm1021, %vm1022
    %v1024 = vrot.slane %v1009, 5
    %v1025 = vrot.slane %v1024, 4
    %v1026 = vrot.slane %v221, 5
    %v1027 = vsel %vm1023, %v1025, %v1026
    %v1028 = vrot.slane %v1010, 5
    %v1029 = vrot.slane %v1028, 4
    %v1030 = vrot.slane %v222, 5
    %v1031 = vsel %vm1023, %v1029, %v1030
    %v1032 = vrot.slane %v1011, 5
    %v1033 = vrot.slane %v1032, 4
    %v1034 = vrot.slane %v223, 5
    %v1035 = vsel %vm1023, %v1033, %v1034
    %v1036 = vrot.slane %v1012, 5
    %v1037 = vrot.slane %v1036, 4
    %v1038 = vrot.slane %v224, 5
    %v1039 = vsel %vm1023, %v1037, %v1038
    %s1040 = scalar_lea.vmem [#allocation2], 768
    %v1041 = vld [vmem:[%s1040] sm:$0xff]
    %v1042 = vld [vmem:[%s1040 + $0x8] sm:$0xff]
    %v1043 = vld [vmem:[%s1040 + $0x10] sm:$0xff]
    %v1044 = vld [vmem:[%s1040 + $0x18] sm:$0xff]
    %v1045 = vld [vmem:[%s1040 + $0x20] sm:$0xff]
    %v1046 = vld [vmem:[%s1040 + $0x28] sm:$0xff]
    %v1047 = vld [vmem:[%s1040 + $0x30] sm:$0xff]
    %v1048 = vld [vmem:[%s1040 + $0x38] sm:$0xff]
    %v1049 = vld [vmem:[%s1040 + $0x40] sm:$0xff]
    %v1050 = vld [vmem:[%s1040 + $0x48] sm:$0xff]
    %v1051 = vld [vmem:[%s1040 + $0x50] sm:$0xff]
    %v1052 = vld [vmem:[%s1040 + $0x58] sm:$0xff]
    %v1053 = vld [vmem:[%s1040 + $0x60] sm:$0xff]
    %v1054 = vld [vmem:[%s1040 + $0x68] sm:$0xff]
    %v1055 = vld [vmem:[%s1040 + $0x70] sm:$0xff]
    %v1056 = vld [vmem:[%s1040 + $0x78] sm:$0xff]
    %v1057 = vld [vmem:[%s1040 + $0x80] sm:$0xff]
    %v1058 = vld [vmem:[%s1040 + $0x88] sm:$0xff]
    %v1059 = vld [vmem:[%s1040 + $0x90] sm:$0xff]
    %v1060 = vld [vmem:[%s1040 + $0x98] sm:$0xff]
    %v1061 = vld [vmem:[%s1040 + $0xa0] sm:$0xff]
    %v1062 = vld [vmem:[%s1040 + $0xa8] sm:$0xff]
    %v1063 = vld [vmem:[%s1040 + $0xb0] sm:$0xff]
    %v1064 = vld [vmem:[%s1040 + $0xb8] sm:$0xff]
    %v1065 = vld [vmem:[%s1040 + $0xc0] sm:$0xff]
    %v1066 = vld [vmem:[%s1040 + $0xc8] sm:$0xff]
    %v1067 = vld [vmem:[%s1040 + $0xd0] sm:$0xff]
    %v1068 = vld [vmem:[%s1040 + $0xd8] sm:$0xff]
    %v1069 = vld [vmem:[%s1040 + $0xe0] sm:$0xff]
    %v1070 = vld [vmem:[%s1040 + $0xe8] sm:$0xff]
    %v1071 = vld [vmem:[%s1040 + $0xf0] sm:$0xff]
    %v1072 = vld [vmem:[%s1040 + $0xf8] sm:$0xff]
    %v1073 = vld [vmem:[%s1040 + $0x100] sm:$0xff]
    %v1074 = vld [vmem:[%s1040 + $0x108] sm:$0xff]
    %v1075 = vld [vmem:[%s1040 + $0x110] sm:$0xff]
    %v1076 = vld [vmem:[%s1040 + $0x118] sm:$0xff]
    %v1077 = vld [vmem:[%s1040 + $0x120] sm:$0xff]
    %v1078 = vld [vmem:[%s1040 + $0x128] sm:$0xff]
    %v1079 = vld [vmem:[%s1040 + $0x130] sm:$0xff]
    %v1080 = vld [vmem:[%s1040 + $0x138] sm:$0xff]
    %v1081 = vld [vmem:[%s1040 + $0x140] sm:$0xff]
    %v1082 = vld [vmem:[%s1040 + $0x148] sm:$0xff]
    %v1083 = vld [vmem:[%s1040 + $0x150] sm:$0xff]
    %v1084 = vld [vmem:[%s1040 + $0x158] sm:$0xff]
    %v1085 = vld [vmem:[%s1040 + $0x160] sm:$0xff]
    %v1086 = vld [vmem:[%s1040 + $0x168] sm:$0xff]
    %v1087 = vld [vmem:[%s1040 + $0x170] sm:$0xff]
    %v1088 = vld [vmem:[%s1040 + $0x178] sm:$0xff]
    %v1089 = vunpack.c.l.b16 %v1027
    %v1090 = vunpack.c.h.b16 %v1027
    %v1091 = vunpack.c.l.b16 %v1031
    %v1092 = vunpack.c.l.b16 %v1035
    %v1093 = vunpack.c.h.b16 %v1035
    %v1094 = vunpack.c.l.b16 %v1039
    %v1095 = vpack.c.b16 %v1092, %v1089
    %v1096 = vpack.c.b16 %v1093, %v1090
    %v1097 = vpack.c.b16 %v1094, %v1091
    %v1149 = vunpack.c.l.b16 %v1041
    %v1150 = vunpack.c.h.b16 %v1041
    %v1151 = vunpack.c.l.b16 %v1042
    %v1152 = vunpack.c.h.b16 %v1042
    %v1153 = vunpack.c.l.b16 %v1043
    %v1154 = vunpack.c.h.b16 %v1043
    %v1155 = vunpack.c.l.b16 %v1044
    %v1156 = vunpack.c.h.b16 %v1044
    %v1157 = vunpack.c.l.b16 %v1045
    %v1158 = vunpack.c.h.b16 %v1045
    %v1159 = vunpack.c.l.b16 %v1046
    %v1160 = vunpack.c.h.b16 %v1046
    %v1161 = vunpack.c.l.b16 %v1047
    %v1162 = vunpack.c.h.b16 %v1047
    %v1163 = vunpack.c.l.b16 %v1048
    %v1164 = vunpack.c.h.b16 %v1048
    %v1165 = vunpack.c.l.b16 %v1049
    %v1166 = vunpack.c.h.b16 %v1049
    %v1167 = vunpack.c.l.b16 %v1050
    %v1168 = vunpack.c.h.b16 %v1050
    %v1169 = vunpack.c.l.b16 %v1051
    %v1170 = vunpack.c.h.b16 %v1051
    %v1171 = vunpack.c.l.b16 %v1052
    %v1172 = vunpack.c.h.b16 %v1052
    %v1173 = vunpack.c.l.b16 %v1053
    %v1174 = vunpack.c.h.b16 %v1053
    %v1175 = vunpack.c.l.b16 %v1054
    %v1176 = vunpack.c.h.b16 %v1054
    %v1177 = vunpack.c.l.b16 %v1055
    %v1178 = vunpack.c.h.b16 %v1055
    %v1179 = vunpack.c.l.b16 %v1056
    %v1180 = vunpack.c.h.b16 %v1056
    %v1181 = vunpack.c.l.b16 %v1057
    %v1182 = vunpack.c.h.b16 %v1057
    %v1183 = vunpack.c.l.b16 %v1058
    %v1184 = vunpack.c.h.b16 %v1058
    %v1185 = vunpack.c.l.b16 %v1059
    %v1186 = vunpack.c.h.b16 %v1059
    %v1187 = vunpack.c.l.b16 %v1060
    %v1188 = vunpack.c.h.b16 %v1060
    %v1189 = vunpack.c.l.b16 %v1061
    %v1190 = vunpack.c.h.b16 %v1061
    %v1191 = vunpack.c.l.b16 %v1062
    %v1192 = vunpack.c.h.b16 %v1062
    %v1193 = vunpack.c.l.b16 %v1063
    %v1194 = vunpack.c.h.b16 %v1063
    %v1195 = vunpack.c.l.b16 %v1064
    %v1196 = vunpack.c.h.b16 %v1064
    %v1197 = vunpack.c.l.b16 %v1065
    %v1198 = vunpack.c.h.b16 %v1065
    %v1199 = vunpack.c.l.b16 %v1066
    %v1200 = vunpack.c.h.b16 %v1066
    %v1201 = vunpack.c.l.b16 %v1067
    %v1202 = vunpack.c.h.b16 %v1067
    %v1203 = vunpack.c.l.b16 %v1068
    %v1204 = vunpack.c.h.b16 %v1068
    %v1205 = vunpack.c.l.b16 %v1069
    %v1206 = vunpack.c.h.b16 %v1069
    %v1207 = vunpack.c.l.b16 %v1070
    %v1208 = vunpack.c.h.b16 %v1070
    %v1209 = vunpack.c.l.b16 %v1071
    %v1210 = vunpack.c.h.b16 %v1071
    %v1211 = vunpack.c.l.b16 %v1072
    %v1212 = vunpack.c.h.b16 %v1072
    %v1213 = vunpack.c.l.b16 %v1073
    %v1214 = vunpack.c.h.b16 %v1073
    %v1215 = vunpack.c.l.b16 %v1074
    %v1216 = vunpack.c.h.b16 %v1074
    %v1217 = vunpack.c.l.b16 %v1075
    %v1218 = vunpack.c.h.b16 %v1075
    %v1219 = vunpack.c.l.b16 %v1076
    %v1220 = vunpack.c.h.b16 %v1076
    %v1221 = vunpack.c.l.b16 %v1077
    %v1222 = vunpack.c.h.b16 %v1077
    %v1223 = vunpack.c.l.b16 %v1078
    %v1224 = vunpack.c.h.b16 %v1078
    %v1225 = vunpack.c.l.b16 %v1079
    %v1226 = vunpack.c.h.b16 %v1079
    %v1227 = vunpack.c.l.b16 %v1080
    %v1228 = vunpack.c.h.b16 %v1080
    %v1229 = vunpack.c.l.b16 %v1081
    %v1230 = vunpack.c.h.b16 %v1081
    %v1231 = vunpack.c.l.b16 %v1082
    %v1232 = vunpack.c.h.b16 %v1082
    %v1233 = vunpack.c.l.b16 %v1083
    %v1234 = vunpack.c.h.b16 %v1083
    %v1235 = vunpack.c.l.b16 %v1084
    %v1236 = vunpack.c.h.b16 %v1084
    %v1237 = vunpack.c.l.b16 %v1085
    %v1238 = vunpack.c.h.b16 %v1085
    %v1239 = vunpack.c.l.b16 %v1086
    %v1240 = vunpack.c.h.b16 %v1086
    %v1241 = vunpack.c.l.b16 %v1087
    %v1242 = vunpack.c.h.b16 %v1087
    %v1243 = vunpack.c.l.b16 %v1088
    %v1244 = vunpack.c.h.b16 %v1088
    %v1245 = vpack.c.b16 %v1151, %v1149
    %v1246 = vpack.c.b16 %v1152, %v1150
    %v1247 = vpack.c.b16 %v1155, %v1153
    %v1248 = vpack.c.b16 %v1156, %v1154
    %v1249 = vpack.c.b16 %v1159, %v1157
    %v1250 = vpack.c.b16 %v1160, %v1158
    %v1251 = vpack.c.b16 %v1163, %v1161
    %v1252 = vpack.c.b16 %v1164, %v1162
    %v1253 = vpack.c.b16 %v1167, %v1165
    %v1254 = vpack.c.b16 %v1168, %v1166
    %v1255 = vpack.c.b16 %v1171, %v1169
    %v1256 = vpack.c.b16 %v1172, %v1170
    %v1257 = vpack.c.b16 %v1175, %v1173
    %v1258 = vpack.c.b16 %v1176, %v1174
    %v1259 = vpack.c.b16 %v1179, %v1177
    %v1260 = vpack.c.b16 %v1180, %v1178
    %v1261 = vpack.c.b16 %v1183, %v1181
    %v1262 = vpack.c.b16 %v1184, %v1182
    %v1263 = vpack.c.b16 %v1187, %v1185
    %v1264 = vpack.c.b16 %v1188, %v1186
    %v1265 = vpack.c.b16 %v1191, %v1189
    %v1266 = vpack.c.b16 %v1192, %v1190
    %v1267 = vpack.c.b16 %v1195, %v1193
    %v1268 = vpack.c.b16 %v1196, %v1194
    %v1269 = vpack.c.b16 %v1199, %v1197
    %v1270 = vpack.c.b16 %v1200, %v1198
    %v1271 = vpack.c.b16 %v1203, %v1201
    %v1272 = vpack.c.b16 %v1204, %v1202
    %v1273 = vpack.c.b16 %v1207, %v1205
    %v1274 = vpack.c.b16 %v1208, %v1206
    %v1275 = vpack.c.b16 %v1211, %v1209
    %v1276 = vpack.c.b16 %v1212, %v1210
    %v1277 = vpack.c.b16 %v1215, %v1213
    %v1278 = vpack.c.b16 %v1216, %v1214
    %v1279 = vpack.c.b16 %v1219, %v1217
    %v1280 = vpack.c.b16 %v1220, %v1218
    %v1281 = vpack.c.b16 %v1223, %v1221
    %v1282 = vpack.c.b16 %v1224, %v1222
    %v1283 = vpack.c.b16 %v1227, %v1225
    %v1284 = vpack.c.b16 %v1228, %v1226
    %v1285 = vpack.c.b16 %v1231, %v1229
    %v1286 = vpack.c.b16 %v1232, %v1230
    %v1287 = vpack.c.b16 %v1235, %v1233
    %v1288 = vpack.c.b16 %v1236, %v1234
    %v1289 = vpack.c.b16 %v1239, %v1237
    %v1290 = vpack.c.b16 %v1240, %v1238
    %v1291 = vpack.c.b16 %v1243, %v1241
    %v1292 = vpack.c.b16 %v1244, %v1242
    %1341 = vmatpush.bf16.msra.mxu0 %v1259
    %1342 = vmatpush.bf16.msra.mxu0 %v1257
    %1343 = vmatpush.bf16.msra.mxu0 %v1255
    %1344 = vmatpush.bf16.msra.mxu0 %v1253
    %1345 = vmatpush.bf16.msra.mxu0 %v1251
    %1346 = vmatpush.bf16.msra.mxu0 %v1249
    %1347 = vmatpush.bf16.msra.mxu0 %v1247
    %1348 = vmatpush.bf16.msra.mxu0 %v1245
    %1349 = vmatmul.bf16.gmra.mxu0 %v1095
    %v1350 = vpop.f32.mrf.mxu0
    %v1351 = vadd.f32 0.0, %v1350
    %v1352 = vpop.f32.mrf.mxu0
    %v1353 = vadd.f32 0.0, %v1352
    %1354 = vdwg.mxu0
    %1355 = vmatpush.bf16.msra.mxu0 %v1275
    %1356 = vmatpush.bf16.msra.mxu0 %v1273
    %1357 = vmatpush.bf16.msra.mxu0 %v1271
    %1358 = vmatpush.bf16.msra.mxu0 %v1269
    %1359 = vmatpush.bf16.msra.mxu0 %v1267
    %1360 = vmatpush.bf16.msra.mxu0 %v1265
    %1361 = vmatpush.bf16.msra.mxu0 %v1263
    %1362 = vmatpush.bf16.msra.mxu0 %v1261
    %1363 = vmatmul.bf16.gmra.mxu0 %v1096
    %v1364 = vpop.f32.mrf.mxu0
    %v1365 = vadd.f32 %v1351, %v1364
    %v1366 = vpop.f32.mrf.mxu0
    %v1367 = vadd.f32 %v1353, %v1366
    %1368 = vdwg.mxu0
    %1369 = vmatpush.bf16.msra.mxu0 %v1291
    %1370 = vmatpush.bf16.msra.mxu0 %v1289
    %1371 = vmatpush.bf16.msra.mxu0 %v1287
    %1372 = vmatpush.bf16.msra.mxu0 %v1285
    %1373 = vmatpush.bf16.msra.mxu0 %v1283
    %1374 = vmatpush.bf16.msra.mxu0 %v1281
    %1375 = vmatpush.bf16.msra.mxu0 %v1279
    %1376 = vmatpush.bf16.msra.mxu0 %v1277
    %1377 = vmatmul.bf16.gmra.mxu0 %v1097
    %v1378 = vpop.f32.mrf.mxu0
    %v1379 = vadd.f32 %v1365, %v1378
    %v1380 = vpop.f32.mrf.mxu0
    %v1381 = vadd.f32 %v1367, %v1380
    %1382 = vdwg.mxu0
    %1383 = vmatpush.bf16.msra.mxu0 %v1260
    %1384 = vmatpush.bf16.msra.mxu0 %v1258
    %1385 = vmatpush.bf16.msra.mxu0 %v1256
    %1386 = vmatpush.bf16.msra.mxu0 %v1254
    %1387 = vmatpush.bf16.msra.mxu0 %v1252
    %1388 = vmatpush.bf16.msra.mxu0 %v1250
    %1389 = vmatpush.bf16.msra.mxu0 %v1248
    %1390 = vmatpush.bf16.msra.mxu0 %v1246
    %1391 = vmatmul.bf16.gmra.mxu0 %v1095
    %v1392 = vpop.f32.mrf.mxu0
    %v1393 = vadd.f32 0.0, %v1392
    %v1394 = vpop.f32.mrf.mxu0
    %v1395 = vadd.f32 0.0, %v1394
    %1396 = vdwg.mxu0
    %1397 = vmatpush.bf16.msra.mxu0 %v1276
    %1398 = vmatpush.bf16.msra.mxu0 %v1274
    %1399 = vmatpush.bf16.msra.mxu0 %v1272
    %1400 = vmatpush.bf16.msra.mxu0 %v1270
    %1401 = vmatpush.bf16.msra.mxu0 %v1268
    %1402 = vmatpush.bf16.msra.mxu0 %v1266
    %1403 = vmatpush.bf16.msra.mxu0 %v1264
    %1404 = vmatpush.bf16.msra.mxu0 %v1262
    %1405 = vmatmul.bf16.gmra.mxu0 %v1096
    %v1406 = vpop.f32.mrf.mxu0
    %v1407 = vadd.f32 %v1393, %v1406
    %v1408 = vpop.f32.mrf.mxu0
    %v1409 = vadd.f32 %v1395, %v1408
    %1410 = vdwg.mxu0
    %1411 = vmatpush.bf16.msra.mxu0 %v1292
    %1412 = vmatpush.bf16.msra.mxu0 %v1290
    %1413 = vmatpush.bf16.msra.mxu0 %v1288
    %1414 = vmatpush.bf16.msra.mxu0 %v1286
    %1415 = vmatpush.bf16.msra.mxu0 %v1284
    %1416 = vmatpush.bf16.msra.mxu0 %v1282
    %1417 = vmatpush.bf16.msra.mxu0 %v1280
    %1418 = vmatpush.bf16.msra.mxu0 %v1278
    %1419 = vmatmul.bf16.gmra.mxu0 %v1097
    %v1420 = vpop.f32.mrf.mxu0
    %v1421 = vadd.f32 %v1407, %v1420
    %v1422 = vpop.f32.mrf.mxu0
    %v1423 = vadd.f32 %v1409, %v1422
    %1424 = vdwg.mxu0
    %v1425 = vadd.f32 %v963, %v1379
    %v1426 = vadd.f32 %v1005, %v1421
    %v1427 = vadd.f32 %v965, %v1381
    %v1428 = vadd.f32 %v1007, %v1423
    %v1429 = vld [vmem:[%s0 + $0xc] sm:$0x33]
    %v1430 = vld [vmem:[%s0 + $0x14] sm:$0x3]
    %v1431 = vld [vmem:[%s0 + $0x24] sm:$0x33]
    %v1432 = vld [vmem:[%s0 + $0x2c] sm:$0x3]
    %vm1433 = vsmask.f32 2304
    %vm1434 = vsmask.f32 6416
    %vm1435 = vmor %vm1433, %vm1434
    %v1437 = vshrl.u32 %v1009, 16
    %v1439 = vrot.slane %v1437, 5
    %v1440 = vshll.u32 %v1009, 16
    %v1442 = vrot.slane %v1440, 6
    %v1443 = vor.u32 %v1439, %v1442
    %v1444 = vrot.slane %v1443, 4
    %v1446 = vshrl.u32 %v1429, 16
    %v1448 = vrot.slane %v1446, 5
    %v1449 = vshll.u32 %v1429, 16
    %v1451 = vrot.slane %v1449, 6
    %v1452 = vor.u32 %v1448, %v1451
    %v1453 = vsel %vm1435, %v1444, %v1452
    %v1455 = vshrl.u32 %v1010, 16
    %v1457 = vrot.slane %v1455, 5
    %v1458 = vshll.u32 %v1010, 16
    %v1460 = vrot.slane %v1458, 6
    %v1461 = vor.u32 %v1457, %v1460
    %v1462 = vrot.slane %v1461, 4
    %v1464 = vshrl.u32 %v1430, 16
    %v1466 = vrot.slane %v1464, 5
    %v1467 = vshll.u32 %v1430, 16
    %v1469 = vrot.slane %v1467, 6
    %v1470 = vor.u32 %v1466, %v1469
    %v1471 = vsel %vm1435, %v1462, %v1470
    %v1473 = vshrl.u32 %v1011, 16
    %v1475 = vrot.slane %v1473, 5
    %v1476 = vshll.u32 %v1011, 16
    %v1478 = vrot.slane %v1476, 6
    %v1479 = vor.u32 %v1475, %v1478
    %v1480 = vrot.slane %v1479, 4
    %v1482 = vshrl.u32 %v1431, 16
    %v1484 = vrot.slane %v1482, 5
    %v1485 = vshll.u32 %v1431, 16
    %v1487 = vrot.slane %v1485, 6
    %v1488 = vor.u32 %v1484, %v1487
    %v1489 = vsel %vm1435, %v1480, %v1488
    %v1491 = vshrl.u32 %v1012, 16
    %v1493 = vrot.slane %v1491, 5
    %v1494 = vshll.u32 %v1012, 16
    %v1496 = vrot.slane %v1494, 6
    %v1497 = vor.u32 %v1493, %v1496
    %v1498 = vrot.slane %v1497, 4
    %v1500 = vshrl.u32 %v1432, 16
    %v1502 = vrot.slane %v1500, 5
    %v1503 = vshll.u32 %v1432, 16
    %v1505 = vrot.slane %v1503, 6
    %v1506 = vor.u32 %v1502, %v1505
    %v1507 = vsel %vm1435, %v1498, %v1506
    %s1508 = scalar_lea.vmem [#allocation2], 1152
    %v1509 = vld [vmem:[%s1508] sm:$0xff]
    %v1510 = vld [vmem:[%s1508 + $0x8] sm:$0xff]
    %v1511 = vld [vmem:[%s1508 + $0x10] sm:$0xff]
    %v1512 = vld [vmem:[%s1508 + $0x18] sm:$0xff]
    %v1513 = vld [vmem:[%s1508 + $0x20] sm:$0xff]
    %v1514 = vld [vmem:[%s1508 + $0x28] sm:$0xff]
    %v1515 = vld [vmem:[%s1508 + $0x30] sm:$0xff]
    %v1516 = vld [vmem:[%s1508 + $0x38] sm:$0xff]
    %v1517 = vld [vmem:[%s1508 + $0x40] sm:$0xff]
    %v1518 = vld [vmem:[%s1508 + $0x48] sm:$0xff]
    %v1519 = vld [vmem:[%s1508 + $0x50] sm:$0xff]
    %v1520 = vld [vmem:[%s1508 + $0x58] sm:$0xff]
    %v1521 = vld [vmem:[%s1508 + $0x60] sm:$0xff]
    %v1522 = vld [vmem:[%s1508 + $0x68] sm:$0xff]
    %v1523 = vld [vmem:[%s1508 + $0x70] sm:$0xff]
    %v1524 = vld [vmem:[%s1508 + $0x78] sm:$0xff]
    %v1525 = vld [vmem:[%s1508 + $0x80] sm:$0xff]
    %v1526 = vld [vmem:[%s1508 + $0x88] sm:$0xff]
    %v1527 = vld [vmem:[%s1508 + $0x90] sm:$0xff]
    %v1528 = vld [vmem:[%s1508 + $0x98] sm:$0xff]
    %v1529 = vld [vmem:[%s1508 + $0xa0] sm:$0xff]
    %v1530 = vld [vmem:[%s1508 + $0xa8] sm:$0xff]
    %v1531 = vld [vmem:[%s1508 + $0xb0] sm:$0xff]
    %v1532 = vld [vmem:[%s1508 + $0xb8] sm:$0xff]
    %v1533 = vld [vmem:[%s1508 + $0xc0] sm:$0xff]
    %v1534 = vld [vmem:[%s1508 + $0xc8] sm:$0xff]
    %v1535 = vld [vmem:[%s1508 + $0xd0] sm:$0xff]
    %v1536 = vld [vmem:[%s1508 + $0xd8] sm:$0xff]
    %v1537 = vld [vmem:[%s1508 + $0xe0] sm:$0xff]
    %v1538 = vld [vmem:[%s1508 + $0xe8] sm:$0xff]
    %v1539 = vld [vmem:[%s1508 + $0xf0] sm:$0xff]
    %v1540 = vld [vmem:[%s1508 + $0xf8] sm:$0xff]
    %v1541 = vld [vmem:[%s1508 + $0x100] sm:$0xff]
    %v1542 = vld [vmem:[%s1508 + $0x108] sm:$0xff]
    %v1543 = vld [vmem:[%s1508 + $0x110] sm:$0xff]
    %v1544 = vld [vmem:[%s1508 + $0x118] sm:$0xff]
    %v1545 = vld [vmem:[%s1508 + $0x120] sm:$0xff]
    %v1546 = vld [vmem:[%s1508 + $0x128] sm:$0xff]
    %v1547 = vld [vmem:[%s1508 + $0x130] sm:$0xff]
    %v1548 = vld [vmem:[%s1508 + $0x138] sm:$0xff]
    %v1549 = vld [vmem:[%s1508 + $0x140] sm:$0xff]
    %v1550 = vld [vmem:[%s1508 + $0x148] sm:$0xff]
    %v1551 = vld [vmem:[%s1508 + $0x150] sm:$0xff]
    %v1552 = vld [vmem:[%s1508 + $0x158] sm:$0xff]
    %v1553 = vld [vmem:[%s1508 + $0x160] sm:$0xff]
    %v1554 = vld [vmem:[%s1508 + $0x168] sm:$0xff]
    %v1555 = vld [vmem:[%s1508 + $0x170] sm:$0xff]
    %v1556 = vld [vmem:[%s1508 + $0x178] sm:$0xff]
    %v1557 = vunpack.c.l.b16 %v1453
    %v1558 = vunpack.c.h.b16 %v1453
    %v1559 = vunpack.c.l.b16 %v1471
    %v1560 = vunpack.c.l.b16 %v1489
    %v1561 = vunpack.c.h.b16 %v1489
    %v1562 = vunpack.c.l.b16 %v1507
    %v1563 = vpack.c.b16 %v1560, %v1557
    %v1564 = vpack.c.b16 %v1561, %v1558
    %v1565 = vpack.c.b16 %v1562, %v1559
    %v1617 = vunpack.c.l.b16 %v1509
    %v1618 = vunpack.c.h.b16 %v1509
    %v1619 = vunpack.c.l.b16 %v1510
    %v1620 = vunpack.c.h.b16 %v1510
    %v1621 = vunpack.c.l.b16 %v1511
    %v1622 = vunpack.c.h.b16 %v1511
    %v1623 = vunpack.c.l.b16 %v1512
    %v1624 = vunpack.c.h.b16 %v1512
    %v1625 = vunpack.c.l.b16 %v1513
    %v1626 = vunpack.c.h.b16 %v1513
    %v1627 = vunpack.c.l.b16 %v1514
    %v1628 = vunpack.c.h.b16 %v1514
    %v1629 = vunpack.c.l.b16 %v1515
    %v1630 = vunpack.c.h.b16 %v1515
    %v1631 = vunpack.c.l.b16 %v1516
    %v1632 = vunpack.c.h.b16 %v1516
    %v1633 = vunpack.c.l.b16 %v1517
    %v1634 = vunpack.c.h.b16 %v1517
    %v1635 = vunpack.c.l.b16 %v1518
    %v1636 = vunpack.c.h.b16 %v1518
    %v1637 = vunpack.c.l.b16 %v1519
    %v1638 = vunpack.c.h.b16 %v1519
    %v1639 = vunpack.c.l.b16 %v1520
    %v1640 = vunpack.c.h.b16 %v1520
    %v1641 = vunpack.c.l.b16 %v1521
    %v1642 = vunpack.c.h.b16 %v1521
    %v1643 = vunpack.c.l.b16 %v1522
    %v1644 = vunpack.c.h.b16 %v1522
    %v1645 = vunpack.c.l.b16 %v1523
    %v1646 = vunpack.c.h.b16 %v1523
    %v1647 = vunpack.c.l.b16 %v1524
    %v1648 = vunpack.c.h.b16 %v1524
    %v1649 = vunpack.c.l.b16 %v1525
    %v1650 = vunpack.c.h.b16 %v1525
    %v1651 = vunpack.c.l.b16 %v1526
    %v1652 = vunpack.c.h.b16 %v1526
    %v1653 = vunpack.c.l.b16 %v1527
    %v1654 = vunpack.c.h.b16 %v1527
    %v1655 = vunpack.c.l.b16 %v1528
    %v1656 = vunpack.c.h.b16 %v1528
    %v1657 = vunpack.c.l.b16 %v1529
    %v1658 = vunpack.c.h.b16 %v1529
    %v1659 = vunpack.c.l.b16 %v1530
    %v1660 = vunpack.c.h.b16 %v1530
    %v1661 = vunpack.c.l.b16 %v1531
    %v1662 = vunpack.c.h.b16 %v1531
    %v1663 = vunpack.c.l.b16 %v1532
    %v1664 = vunpack.c.h.b16 %v1532
    %v1665 = vunpack.c.l.b16 %v1533
    %v1666 = vunpack.c.h.b16 %v1533
    %v1667 = vunpack.c.l.b16 %v1534
    %v1668 = vunpack.c.h.b16 %v1534
    %v1669 = vunpack.c.l.b16 %v1535
    %v1670 = vunpack.c.h.b16 %v1535
    %v1671 = vunpack.c.l.b16 %v1536
    %v1672 = vunpack.c.h.b16 %v1536
    %v1673 = vunpack.c.l.b16 %v1537
    %v1674 = vunpack.c.h.b16 %v1537
    %v1675 = vunpack.c.l.b16 %v1538
    %v1676 = vunpack.c.h.b16 %v1538
    %v1677 = vunpack.c.l.b16 %v1539
    %v1678 = vunpack.c.h.b16 %v1539
    %v1679 = vunpack.c.l.b16 %v1540
    %v1680 = vunpack.c.h.b16 %v1540
    %v1681 = vunpack.c.l.b16 %v1541
    %v1682 = vunpack.c.h.b16 %v1541
    %v1683 = vunpack.c.l.b16 %v1542
    %v1684 = vunpack.c.h.b16 %v1542
    %v1685 = vunpack.c.l.b16 %v1543
    %v1686 = vunpack.c.h.b16 %v1543
    %v1687 = vunpack.c.l.b16 %v1544
    %v1688 = vunpack.c.h.b16 %v1544
    %v1689 = vunpack.c.l.b16 %v1545
    %v1690 = vunpack.c.h.b16 %v1545
    %v1691 = vunpack.c.l.b16 %v1546
    %v1692 = vunpack.c.h.b16 %v1546
    %v1693 = vunpack.c.l.b16 %v1547
    %v1694 = vunpack.c.h.b16 %v1547
    %v1695 = vunpack.c.l.b16 %v1548
    %v1696 = vunpack.c.h.b16 %v1548
    %v1697 = vunpack.c.l.b16 %v1549
    %v1698 = vunpack.c.h.b16 %v1549
    %v1699 = vunpack.c.l.b16 %v1550
    %v1700 = vunpack.c.h.b16 %v1550
    %v1701 = vunpack.c.l.b16 %v1551
    %v1702 = vunpack.c.h.b16 %v1551
    %v1703 = vunpack.c.l.b16 %v1552
    %v1704 = vunpack.c.h.b16 %v1552
    %v1705 = vunpack.c.l.b16 %v1553
    %v1706 = vunpack.c.h.b16 %v1553
    %v1707 = vunpack.c.l.b16 %v1554
    %v1708 = vunpack.c.h.b16 %v1554
    %v1709 = vunpack.c.l.b16 %v1555
    %v1710 = vunpack.c.h.b16 %v1555
    %v1711 = vunpack.c.l.b16 %v1556
    %v1712 = vunpack.c.h.b16 %v1556
    %v1713 = vpack.c.b16 %v1619, %v1617
    %v1714 = vpack.c.b16 %v1620, %v1618
    %v1715 = vpack.c.b16 %v1623, %v1621
    %v1716 = vpack.c.b16 %v1624, %v1622
    %v1717 = vpack.c.b16 %v1627, %v1625
    %v1718 = vpack.c.b16 %v1628, %v1626
    %v1719 = vpack.c.b16 %v1631, %v1629
    %v1720 = vpack.c.b16 %v1632, %v1630
    %v1721 = vpack.c.b16 %v1635, %v1633
    %v1722 = vpack.c.b16 %v1636, %v1634
    %v1723 = vpack.c.b16 %v1639, %v1637
    %v1724 = vpack.c.b16 %v1640, %v1638
    %v1725 = vpack.c.b16 %v1643, %v1641
    %v1726 = vpack.c.b16 %v1644, %v1642
    %v1727 = vpack.c.b16 %v1647, %v1645
    %v1728 = vpack.c.b16 %v1648, %v1646
    %v1729 = vpack.c.b16 %v1651, %v1649
    %v1730 = vpack.c.b16 %v1652, %v1650
    %v1731 = vpack.c.b16 %v1655, %v1653
    %v1732 = vpack.c.b16 %v1656, %v1654
    %v1733 = vpack.c.b16 %v1659, %v1657
    %v1734 = vpack.c.b16 %v1660, %v1658
    %v1735 = vpack.c.b16 %v1663, %v1661
    %v1736 = vpack.c.b16 %v1664, %v1662
    %v1737 = vpack.c.b16 %v1667, %v1665
    %v1738 = vpack.c.b16 %v1668, %v1666
    %v1739 = vpack.c.b16 %v1671, %v1669
    %v1740 = vpack.c.b16 %v1672, %v1670
    %v1741 = vpack.c.b16 %v1675, %v1673
    %v1742 = vpack.c.b16 %v1676, %v1674
    %v1743 = vpack.c.b16 %v1679, %v1677
    %v1744 = vpack.c.b16 %v1680, %v1678
    %v1745 = vpack.c.b16 %v1683, %v1681
    %v1746 = vpack.c.b16 %v1684, %v1682
    %v1747 = vpack.c.b16 %v1687, %v1685
    %v1748 = vpack.c.b16 %v1688, %v1686
    %v1749 = vpack.c.b16 %v1691, %v1689
    %v1750 = vpack.c.b16 %v1692, %v1690
    %v1751 = vpack.c.b16 %v1695, %v1693
    %v1752 = vpack.c.b16 %v1696, %v1694
    %v1753 = vpack.c.b16 %v1699, %v1697
    %v1754 = vpack.c.b16 %v1700, %v1698
    %v1755 = vpack.c.b16 %v1703, %v1701
    %v1756 = vpack.c.b16 %v1704, %v1702
    %v1757 = vpack.c.b16 %v1707, %v1705
    %v1758 = vpack.c.b16 %v1708, %v1706
    %v1759 = vpack.c.b16 %v1711, %v1709
    %v1760 = vpack.c.b16 %v1712, %v1710
    %1809 = vmatpush.bf16.msra.mxu0 %v1727
    %1810 = vmatpush.bf16.msra.mxu0 %v1725
    %1811 = vmatpush.bf16.msra.mxu0 %v1723
    %1812 = vmatpush.bf16.msra.mxu0 %v1721
    %1813 = vmatpush.bf16.msra.mxu0 %v1719
    %1814 = vmatpush.bf16.msra.mxu0 %v1717
    %1815 = vmatpush.bf16.msra.mxu0 %v1715
    %1816 = vmatpush.bf16.msra.mxu0 %v1713
    %1817 = vmatmul.bf16.gmra.mxu0 %v1563
    %v1818 = vpop.f32.mrf.mxu0
    %v1819 = vadd.f32 0.0, %v1818
    %v1820 = vpop.f32.mrf.mxu0
    %v1821 = vadd.f32 0.0, %v1820
    %1822 = vdwg.mxu0
    %1823 = vmatpush.bf16.msra.mxu0 %v1743
    %1824 = vmatpush.bf16.msra.mxu0 %v1741
    %1825 = vmatpush.bf16.msra.mxu0 %v1739
    %1826 = vmatpush.bf16.msra.mxu0 %v1737
    %1827 = vmatpush.bf16.msra.mxu0 %v1735
    %1828 = vmatpush.bf16.msra.mxu0 %v1733
    %1829 = vmatpush.bf16.msra.mxu0 %v1731
    %1830 = vmatpush.bf16.msra.mxu0 %v1729
    %1831 = vmatmul.bf16.gmra.mxu0 %v1564
    %v1832 = vpop.f32.mrf.mxu0
    %v1833 = vadd.f32 %v1819, %v1832
    %v1834 = vpop.f32.mrf.mxu0
    %v1835 = vadd.f32 %v1821, %v1834
    %1836 = vdwg.mxu0
    %1837 = vmatpush.bf16.msra.mxu0 %v1759
    %1838 = vmatpush.bf16.msra.mxu0 %v1757
    %1839 = vmatpush.bf16.msra.mxu0 %v1755
    %1840 = vmatpush.bf16.msra.mxu0 %v1753
    %1841 = vmatpush.bf16.msra.mxu0 %v1751
    %1842 = vmatpush.bf16.msra.mxu0 %v1749
    %1843 = vmatpush.bf16.msra.mxu0 %v1747
    %1844 = vmatpush.bf16.msra.mxu0 %v1745
    %1845 = vmatmul.bf16.gmra.mxu0 %v1565
    %v1846 = vpop.f32.mrf.mxu0
    %v1847 = vadd.f32 %v1833, %v1846
    %v1848 = vpop.f32.mrf.mxu0
    %v1849 = vadd.f32 %v1835, %v1848
    %1850 = vdwg.mxu0
    %1851 = vmatpush.bf16.msra.mxu0 %v1728
    %1852 = vmatpush.bf16.msra.mxu0 %v1726
    %1853 = vmatpush.bf16.msra.mxu0 %v1724
    %1854 = vmatpush.bf16.msra.mxu0 %v1722
    %1855 = vmatpush.bf16.msra.mxu0 %v1720
    %1856 = vmatpush.bf16.msra.mxu0 %v1718
    %1857 = vmatpush.bf16.msra.mxu0 %v1716
    %1858 = vmatpush.bf16.msra.mxu0 %v1714
    %1859 = vmatmul.bf16.gmra.mxu0 %v1563
    %v1860 = vpop.f32.mrf.mxu0
    %v1861 = vadd.f32 0.0, %v1860
    %v1862 = vpop.f32.mrf.mxu0
    %v1863 = vadd.f32 0.0, %v1862
    %1864 = vdwg.mxu0
    %1865 = vmatpush.bf16.msra.mxu0 %v1744
    %1866 = vmatpush.bf16.msra.mxu0 %v1742
    %1867 = vmatpush.bf16.msra.mxu0 %v1740
    %1868 = vmatpush.bf16.msra.mxu0 %v1738
    %1869 = vmatpush.bf16.msra.mxu0 %v1736
    %1870 = vmatpush.bf16.msra.mxu0 %v1734
    %1871 = vmatpush.bf16.msra.mxu0 %v1732
    %1872 = vmatpush.bf16.msra.mxu0 %v1730
    %1873 = vmatmul.bf16.gmra.mxu0 %v1564
    %v1874 = vpop.f32.mrf.mxu0
    %v1875 = vadd.f32 %v1861, %v1874
    %v1876 = vpop.f32.mrf.mxu0
    %v1877 = vadd.f32 %v1863, %v1876
    %1878 = vdwg.mxu0
    %1879 = vmatpush.bf16.msra.mxu0 %v1760
    %1880 = vmatpush.bf16.msra.mxu0 %v1758
    %1881 = vmatpush.bf16.msra.mxu0 %v1756
    %1882 = vmatpush.bf16.msra.mxu0 %v1754
    %1883 = vmatpush.bf16.msra.mxu0 %v1752
    %1884 = vmatpush.bf16.msra.mxu0 %v1750
    %1885 = vmatpush.bf16.msra.mxu0 %v1748
    %1886 = vmatpush.bf16.msra.mxu0 %v1746
    %1887 = vmatmul.bf16.gmra.mxu0 %v1565
    %v1888 = vpop.f32.mrf.mxu0
    %v1889 = vadd.f32 %v1875, %v1888
    %v1890 = vpop.f32.mrf.mxu0
    %v1891 = vadd.f32 %v1877, %v1890
    %1892 = vdwg.mxu0
    %v1893 = vadd.f32 %v1425, %v1847
    %v1894 = vadd.f32 %v1426, %v1889
    %v1895 = vadd.f32 %v1427, %v1849
    %v1896 = vadd.f32 %v1428, %v1891
    %v1897 = vld [vmem:[%s0] sm:$0xcc]
    %v1898 = vld [vmem:[%s0 + $0x8] sm:$0xc]
    %v1899 = vld [vmem:[%s0 + $0x18] sm:$0xcc]
    %v1900 = vld [vmem:[%s0 + $0x20] sm:$0xc]
    %vm1909 = vcmask 1041408
    %vm1910 = vcmask 1045508
    %vm1911 = vmor %vm1909, %vm1910
    %v1912 = vrot.slane %v1897, 6
    %v1913 = vrot.slane %v1912, 4
    %v1914 = vrot.slane %v1429, 6
    %v1915 = vsel %vm1911, %v1913, %v1914
    %v1916 = vrot.slane %v1898, 6
    %v1917 = vrot.slane %v1916, 4
    %v1918 = vrot.slane %v1430, 6
    %v1919 = vsel %vm1911, %v1917, %v1918
    %v1920 = vrot.slane %v1899, 6
    %v1921 = vrot.slane %v1920, 4
    %v1922 = vrot.slane %v1431, 6
    %v1923 = vsel %vm1911, %v1921, %v1922
    %v1924 = vrot.slane %v1900, 6
    %v1925 = vrot.slane %v1924, 4
    %v1926 = vrot.slane %v1432, 6
    %v1927 = vsel %vm1911, %v1925, %v1926
    %s1928 = scalar_lea.vmem [#allocation2], 1536
    %v1929 = vld [vmem:[%s1928] sm:$0xff]
    %v1930 = vld [vmem:[%s1928 + $0x8] sm:$0xff]
    %v1931 = vld [vmem:[%s1928 + $0x10] sm:$0xff]
    %v1932 = vld [vmem:[%s1928 + $0x18] sm:$0xff]
    %v1933 = vld [vmem:[%s1928 + $0x20] sm:$0xff]
    %v1934 = vld [vmem:[%s1928 + $0x28] sm:$0xff]
    %v1935 = vld [vmem:[%s1928 + $0x30] sm:$0xff]
    %v1936 = vld [vmem:[%s1928 + $0x38] sm:$0xff]
    %v1937 = vld [vmem:[%s1928 + $0x40] sm:$0xff]
    %v1938 = vld [vmem:[%s1928 + $0x48] sm:$0xff]
    %v1939 = vld [vmem:[%s1928 + $0x50] sm:$0xff]
    %v1940 = vld [vmem:[%s1928 + $0x58] sm:$0xff]
    %v1941 = vld [vmem:[%s1928 + $0x60] sm:$0xff]
    %v1942 = vld [vmem:[%s1928 + $0x68] sm:$0xff]
    %v1943 = vld [vmem:[%s1928 + $0x70] sm:$0xff]
    %v1944 = vld [vmem:[%s1928 + $0x78] sm:$0xff]
    %v1945 = vld [vmem:[%s1928 + $0x80] sm:$0xff]
    %v1946 = vld [vmem:[%s1928 + $0x88] sm:$0xff]
    %v1947 = vld [vmem:[%s1928 + $0x90] sm:$0xff]
    %v1948 = vld [vmem:[%s1928 + $0x98] sm:$0xff]
    %v1949 = vld [vmem:[%s1928 + $0xa0] sm:$0xff]
    %v1950 = vld [vmem:[%s1928 + $0xa8] sm:$0xff]
    %v1951 = vld [vmem:[%s1928 + $0xb0] sm:$0xff]
    %v1952 = vld [vmem:[%s1928 + $0xb8] sm:$0xff]
    %v1953 = vld [vmem:[%s1928 + $0xc0] sm:$0xff]
    %v1954 = vld [vmem:[%s1928 + $0xc8] sm:$0xff]
    %v1955 = vld [vmem:[%s1928 + $0xd0] sm:$0xff]
    %v1956 = vld [vmem:[%s1928 + $0xd8] sm:$0xff]
    %v1957 = vld [vmem:[%s1928 + $0xe0] sm:$0xff]
    %v1958 = vld [vmem:[%s1928 + $0xe8] sm:$0xff]
    %v1959 = vld [vmem:[%s1928 + $0xf0] sm:$0xff]
    %v1960 = vld [vmem:[%s1928 + $0xf8] sm:$0xff]
    %v1961 = vld [vmem:[%s1928 + $0x100] sm:$0xff]
    %v1962 = vld [vmem:[%s1928 + $0x108] sm:$0xff]
    %v1963 = vld [vmem:[%s1928 + $0x110] sm:$0xff]
    %v1964 = vld [vmem:[%s1928 + $0x118] sm:$0xff]
    %v1965 = vld [vmem:[%s1928 + $0x120] sm:$0xff]
    %v1966 = vld [vmem:[%s1928 + $0x128] sm:$0xff]
    %v1967 = vld [vmem:[%s1928 + $0x130] sm:$0xff]
    %v1968 = vld [vmem:[%s1928 + $0x138] sm:$0xff]
    %v1969 = vld [vmem:[%s1928 + $0x140] sm:$0xff]
    %v1970 = vld [vmem:[%s1928 + $0x148] sm:$0xff]
    %v1971 = vld [vmem:[%s1928 + $0x150] sm:$0xff]
    %v1972 = vld [vmem:[%s1928 + $0x158] sm:$0xff]
    %v1973 = vld [vmem:[%s1928 + $0x160] sm:$0xff]
    %v1974 = vld [vmem:[%s1928 + $0x168] sm:$0xff]
    %v1975 = vld [vmem:[%s1928 + $0x170] sm:$0xff]
    %v1976 = vld [vmem:[%s1928 + $0x178] sm:$0xff]
    %v1977 = vunpack.c.l.b16 %v1915
    %v1978 = vunpack.c.h.b16 %v1915
    %v1979 = vunpack.c.l.b16 %v1919
    %v1980 = vunpack.c.l.b16 %v1923
    %v1981 = vunpack.c.h.b16 %v1923
    %v1982 = vunpack.c.l.b16 %v1927
    %v1983 = vpack.c.b16 %v1980, %v1977
    %v1984 = vpack.c.b16 %v1981, %v1978
    %v1985 = vpack.c.b16 %v1982, %v1979
    %v2037 = vunpack.c.l.b16 %v1929
    %v2038 = vunpack.c.h.b16 %v1929
    %v2039 = vunpack.c.l.b16 %v1930
    %v2040 = vunpack.c.h.b16 %v1930
    %v2041 = vunpack.c.l.b16 %v1931
    %v2042 = vunpack.c.h.b16 %v1931
    %v2043 = vunpack.c.l.b16 %v1932
    %v2044 = vunpack.c.h.b16 %v1932
    %v2045 = vunpack.c.l.b16 %v1933
    %v2046 = vunpack.c.h.b16 %v1933
    %v2047 = vunpack.c.l.b16 %v1934
    %v2048 = vunpack.c.h.b16 %v1934
    %v2049 = vunpack.c.l.b16 %v1935
    %v2050 = vunpack.c.h.b16 %v1935
    %v2051 = vunpack.c.l.b16 %v1936
    %v2052 = vunpack.c.h.b16 %v1936
    %v2053 = vunpack.c.l.b16 %v1937
    %v2054 = vunpack.c.h.b16 %v1937
    %v2055 = vunpack.c.l.b16 %v1938
    %v2056 = vunpack.c.h.b16 %v1938
    %v2057 = vunpack.c.l.b16 %v1939
    %v2058 = vunpack.c.h.b16 %v1939
    %v2059 = vunpack.c.l.b16 %v1940
    %v2060 = vunpack.c.h.b16 %v1940
    %v2061 = vunpack.c.l.b16 %v1941
    %v2062 = vunpack.c.h.b16 %v1941
    %v2063 = vunpack.c.l.b16 %v1942
    %v2064 = vunpack.c.h.b16 %v1942
    %v2065 = vunpack.c.l.b16 %v1943
    %v2066 = vunpack.c.h.b16 %v1943
    %v2067 = vunpack.c.l.b16 %v1944
    %v2068 = vunpack.c.h.b16 %v1944
    %v2069 = vunpack.c.l.b16 %v1945
    %v2070 = vunpack.c.h.b16 %v1945
    %v2071 = vunpack.c.l.b16 %v1946
    %v2072 = vunpack.c.h.b16 %v1946
    %v2073 = vunpack.c.l.b16 %v1947
    %v2074 = vunpack.c.h.b16 %v1947
    %v2075 = vunpack.c.l.b16 %v1948
    %v2076 = vunpack.c.h.b16 %v1948
    %v2077 = vunpack.c.l.b16 %v1949
    %v2078 = vunpack.c.h.b16 %v1949
    %v2079 = vunpack.c.l.b16 %v1950
    %v2080 = vunpack.c.h.b16 %v1950
    %v2081 = vunpack.c.l.b16 %v1951
    %v2082 = vunpack.c.h.b16 %v1951
    %v2083 = vunpack.c.l.b16 %v1952
    %v2084 = vunpack.c.h.b16 %v1952
    %v2085 = vunpack.c.l.b16 %v1953
    %v2086 = vunpack.c.h.b16 %v1953
    %v2087 = vunpack.c.l.b16 %v1954
    %v2088 = vunpack.c.h.b16 %v1954
    %v2089 = vunpack.c.l.b16 %v1955
    %v2090 = vunpack.c.h.b16 %v1955
    %v2091 = vunpack.c.l.b16 %v1956
    %v2092 = vunpack.c.h.b16 %v1956
    %v2093 = vunpack.c.l.b16 %v1957
    %v2094 = vunpack.c.h.b16 %v1957
    %v2095 = vunpack.c.l.b16 %v1958
    %v2096 = vunpack.c.h.b16 %v1958
    %v2097 = vunpack.c.l.b16 %v1959
    %v2098 = vunpack.c.h.b16 %v1959
    %v2099 = vunpack.c.l.b16 %v1960
    %v2100 = vunpack.c.h.b16 %v1960
    %v2101 = vunpack.c.l.b16 %v1961
    %v2102 = vunpack.c.h.b16 %v1961
    %v2103 = vunpack.c.l.b16 %v1962
    %v2104 = vunpack.c.h.b16 %v1962
    %v2105 = vunpack.c.l.b16 %v1963
    %v2106 = vunpack.c.h.b16 %v1963
    %v2107 = vunpack.c.l.b16 %v1964
    %v2108 = vunpack.c.h.b16 %v1964
    %v2109 = vunpack.c.l.b16 %v1965
    %v2110 = vunpack.c.h.b16 %v1965
    %v2111 = vunpack.c.l.b16 %v1966
    %v2112 = vunpack.c.h.b16 %v1966
    %v2113 = vunpack.c.l.b16 %v1967
    %v2114 = vunpack.c.h.b16 %v1967
    %v2115 = vunpack.c.l.b16 %v1968
    %v2116 = vunpack.c.h.b16 %v1968
    %v2117 = vunpack.c.l.b16 %v1969
    %v2118 = vunpack.c.h.b16 %v1969
    %v2119 = vunpack.c.l.b16 %v1970
    %v2120 = vunpack.c.h.b16 %v1970
    %v2121 = vunpack.c.l.b16 %v1971
    %v2122 = vunpack.c.h.b16 %v1971
    %v2123 = vunpack.c.l.b16 %v1972
    %v2124 = vunpack.c.h.b16 %v1972
    %v2125 = vunpack.c.l.b16 %v1973
    %v2126 = vunpack.c.h.b16 %v1973
    %v2127 = vunpack.c.l.b16 %v1974
    %v2128 = vunpack.c.h.b16 %v1974
    %v2129 = vunpack.c.l.b16 %v1975
    %v2130 = vunpack.c.h.b16 %v1975
    %v2131 = vunpack.c.l.b16 %v1976
    %v2132 = vunpack.c.h.b16 %v1976
    %v2133 = vpack.c.b16 %v2039, %v2037
    %v2134 = vpack.c.b16 %v2040, %v2038
    %v2135 = vpack.c.b16 %v2043, %v2041
    %v2136 = vpack.c.b16 %v2044, %v2042
    %v2137 = vpack.c.b16 %v2047, %v2045
    %v2138 = vpack.c.b16 %v2048, %v2046
    %v2139 = vpack.c.b16 %v2051, %v2049
    %v2140 = vpack.c.b16 %v2052, %v2050
    %v2141 = vpack.c.b16 %v2055, %v2053
    %v2142 = vpack.c.b16 %v2056, %v2054
    %v2143 = vpack.c.b16 %v2059, %v2057
    %v2144 = vpack.c.b16 %v2060, %v2058
    %v2145 = vpack.c.b16 %v2063, %v2061
    %v2146 = vpack.c.b16 %v2064, %v2062
    %v2147 = vpack.c.b16 %v2067, %v2065
    %v2148 = vpack.c.b16 %v2068, %v2066
    %v2149 = vpack.c.b16 %v2071, %v2069
    %v2150 = vpack.c.b16 %v2072, %v2070
    %v2151 = vpack.c.b16 %v2075, %v2073
    %v2152 = vpack.c.b16 %v2076, %v2074
    %v2153 = vpack.c.b16 %v2079, %v2077
    %v2154 = vpack.c.b16 %v2080, %v2078
    %v2155 = vpack.c.b16 %v2083, %v2081
    %v2156 = vpack.c.b16 %v2084, %v2082
    %v2157 = vpack.c.b16 %v2087, %v2085
    %v2158 = vpack.c.b16 %v2088, %v2086
    %v2159 = vpack.c.b16 %v2091, %v2089
    %v2160 = vpack.c.b16 %v2092, %v2090
    %v2161 = vpack.c.b16 %v2095, %v2093
    %v2162 = vpack.c.b16 %v2096, %v2094
    %v2163 = vpack.c.b16 %v2099, %v2097
    %v2164 = vpack.c.b16 %v2100, %v2098
    %v2165 = vpack.c.b16 %v2103, %v2101
    %v2166 = vpack.c.b16 %v2104, %v2102
    %v2167 = vpack.c.b16 %v2107, %v2105
    %v2168 = vpack.c.b16 %v2108, %v2106
    %v2169 = vpack.c.b16 %v2111, %v2109
    %v2170 = vpack.c.b16 %v2112, %v2110
    %v2171 = vpack.c.b16 %v2115, %v2113
    %v2172 = vpack.c.b16 %v2116, %v2114
    %v2173 = vpack.c.b16 %v2119, %v2117
    %v2174 = vpack.c.b16 %v2120, %v2118
    %v2175 = vpack.c.b16 %v2123, %v2121
    %v2176 = vpack.c.b16 %v2124, %v2122
    %v2177 = vpack.c.b16 %v2127, %v2125
    %v2178 = vpack.c.b16 %v2128, %v2126
    %v2179 = vpack.c.b16 %v2131, %v2129
    %v2180 = vpack.c.b16 %v2132, %v2130
    %2229 = vmatpush.bf16.msra.mxu0 %v2147
    %2230 = vmatpush.bf16.msra.mxu0 %v2145
    %2231 = vmatpush.bf16.msra.mxu0 %v2143
    %2232 = vmatpush.bf16.msra.mxu0 %v2141
    %2233 = vmatpush.bf16.msra.mxu0 %v2139
    %2234 = vmatpush.bf16.msra.mxu0 %v2137
    %2235 = vmatpush.bf16.msra.mxu0 %v2135
    %2236 = vmatpush.bf16.msra.mxu0 %v2133
    %2237 = vmatmul.bf16.gmra.mxu0 %v1983
    %v2238 = vpop.f32.mrf.mxu0
    %v2239 = vadd.f32 0.0, %v2238
    %v2240 = vpop.f32.mrf.mxu0
    %v2241 = vadd.f32 0.0, %v2240
    %2242 = vdwg.mxu0
    %2243 = vmatpush.bf16.msra.mxu0 %v2163
    %2244 = vmatpush.bf16.msra.mxu0 %v2161
    %2245 = vmatpush.bf16.msra.mxu0 %v2159
    %2246 = vmatpush.bf16.msra.mxu0 %v2157
    %2247 = vmatpush.bf16.msra.mxu0 %v2155
    %2248 = vmatpush.bf16.msra.mxu0 %v2153
    %2249 = vmatpush.bf16.msra.mxu0 %v2151
    %2250 = vmatpush.bf16.msra.mxu0 %v2149
    %2251 = vmatmul.bf16.gmra.mxu0 %v1984
    %v2252 = vpop.f32.mrf.mxu0
    %v2253 = vadd.f32 %v2239, %v2252
    %v2254 = vpop.f32.mrf.mxu0
    %v2255 = vadd.f32 %v2241, %v2254
    %2256 = vdwg.mxu0
    %2257 = vmatpush.bf16.msra.mxu0 %v2179
    %2258 = vmatpush.bf16.msra.mxu0 %v2177
    %2259 = vmatpush.bf16.msra.mxu0 %v2175
    %2260 = vmatpush.bf16.msra.mxu0 %v2173
    %2261 = vmatpush.bf16.msra.mxu0 %v2171
    %2262 = vmatpush.bf16.msra.mxu0 %v2169
    %2263 = vmatpush.bf16.msra.mxu0 %v2167
    %2264 = vmatpush.bf16.msra.mxu0 %v2165
    %2265 = vmatmul.bf16.gmra.mxu0 %v1985
    %v2266 = vpop.f32.mrf.mxu0
    %v2267 = vadd.f32 %v2253, %v2266
    %v2268 = vpop.f32.mrf.mxu0
    %v2269 = vadd.f32 %v2255, %v2268
    %2270 = vdwg.mxu0
    %2271 = vmatpush.bf16.msra.mxu0 %v2148
    %2272 = vmatpush.bf16.msra.mxu0 %v2146
    %2273 = vmatpush.bf16.msra.mxu0 %v2144
    %2274 = vmatpush.bf16.msra.mxu0 %v2142
    %2275 = vmatpush.bf16.msra.mxu0 %v2140
    %2276 = vmatpush.bf16.msra.mxu0 %v2138
    %2277 = vmatpush.bf16.msra.mxu0 %v2136
    %2278 = vmatpush.bf16.msra.mxu0 %v2134
    %2279 = vmatmul.bf16.gmra.mxu0 %v1983
    %v2280 = vpop.f32.mrf.mxu0
    %v2281 = vadd.f32 0.0, %v2280
    %v2282 = vpop.f32.mrf.mxu0
    %v2283 = vadd.f32 0.0, %v2282
    %2284 = vdwg.mxu0
    %2285 = vmatpush.bf16.msra.mxu0 %v2164
    %2286 = vmatpush.bf16.msra.mxu0 %v2162
    %2287 = vmatpush.bf16.msra.mxu0 %v2160
    %2288 = vmatpush.bf16.msra.mxu0 %v2158
    %2289 = vmatpush.bf16.msra.mxu0 %v2156
    %2290 = vmatpush.bf16.msra.mxu0 %v2154
    %2291 = vmatpush.bf16.msra.mxu0 %v2152
    %2292 = vmatpush.bf16.msra.mxu0 %v2150
    %2293 = vmatmul.bf16.gmra.mxu0 %v1984
    %v2294 = vpop.f32.mrf.mxu0
    %v2295 = vadd.f32 %v2281, %v2294
    %v2296 = vpop.f32.mrf.mxu0
    %v2297 = vadd.f32 %v2283, %v2296
    %2298 = vdwg.mxu0
    %2299 = vmatpush.bf16.msra.mxu0 %v2180
    %2300 = vmatpush.bf16.msra.mxu0 %v2178
    %2301 = vmatpush.bf16.msra.mxu0 %v2176
    %2302 = vmatpush.bf16.msra.mxu0 %v2174
    %2303 = vmatpush.bf16.msra.mxu0 %v2172
    %2304 = vmatpush.bf16.msra.mxu0 %v2170
    %2305 = vmatpush.bf16.msra.mxu0 %v2168
    %2306 = vmatpush.bf16.msra.mxu0 %v2166
    %2307 = vmatmul.bf16.gmra.mxu0 %v1985
    %v2308 = vpop.f32.mrf.mxu0
    %v2309 = vadd.f32 %v2295, %v2308
    %v2310 = vpop.f32.mrf.mxu0
    %v2311 = vadd.f32 %v2297, %v2310
    %2312 = vdwg.mxu0
    %v2313 = vadd.f32 %v1893, %v2267
    %v2314 = vadd.f32 %v1894, %v2309
    %v2315 = vadd.f32 %v1895, %v2269
    %v2316 = vadd.f32 %v1896, %v2311
    %v2317 = vld [vmem:[%s0 + $0xc] sm:$0x77]
    %v2318 = vld [vmem:[%s0 + $0x14] sm:$0x7]
    %v2319 = vld [vmem:[%s0 + $0x24] sm:$0x77]
    %v2320 = vld [vmem:[%s0 + $0x2c] sm:$0x7]
    %vm2321 = vsmask.f32 1280
    %vm2322 = vsmask.f32 5392
    %vm2323 = vmor %vm2321, %vm2322
    %v2325 = vshrl.u32 %v1897, 16
    %v2327 = vrot.slane %v2325, 6
    %v2328 = vshll.u32 %v1897, 16
    %v2330 = vrot.slane %v2328, 7
    %v2331 = vor.u32 %v2327, %v2330
    %v2332 = vrot.slane %v2331, 4
    %v2334 = vshrl.u32 %v2317, 16
    %v2336 = vrot.slane %v2334, 6
    %v2337 = vshll.u32 %v2317, 16
    %v2339 = vrot.slane %v2337, 7
    %v2340 = vor.u32 %v2336, %v2339
    %v2341 = vsel %vm2323, %v2332, %v2340
    %v2343 = vshrl.u32 %v1898, 16
    %v2345 = vrot.slane %v2343, 6
    %v2346 = vshll.u32 %v1898, 16
    %v2348 = vrot.slane %v2346, 7
    %v2349 = vor.u32 %v2345, %v2348
    %v2350 = vrot.slane %v2349, 4
    %v2352 = vshrl.u32 %v2318, 16
    %v2354 = vrot.slane %v2352, 6
    %v2355 = vshll.u32 %v2318, 16
    %v2357 = vrot.slane %v2355, 7
    %v2358 = vor.u32 %v2354, %v2357
    %v2359 = vsel %vm2323, %v2350, %v2358
    %v2361 = vshrl.u32 %v1899, 16
    %v2363 = vrot.slane %v2361, 6
    %v2364 = vshll.u32 %v1899, 16
    %v2366 = vrot.slane %v2364, 7
    %v2367 = vor.u32 %v2363, %v2366
    %v2368 = vrot.slane %v2367, 4
    %v2370 = vshrl.u32 %v2319, 16
    %v2372 = vrot.slane %v2370, 6
    %v2373 = vshll.u32 %v2319, 16
    %v2375 = vrot.slane %v2373, 7
    %v2376 = vor.u32 %v2372, %v2375
    %v2377 = vsel %vm2323, %v2368, %v2376
    %v2379 = vshrl.u32 %v1900, 16
    %v2381 = vrot.slane %v2379, 6
    %v2382 = vshll.u32 %v1900, 16
    %v2384 = vrot.slane %v2382, 7
    %v2385 = vor.u32 %v2381, %v2384
    %v2386 = vrot.slane %v2385, 4
    %v2388 = vshrl.u32 %v2320, 16
    %v2390 = vrot.slane %v2388, 6
    %v2391 = vshll.u32 %v2320, 16
    %v2393 = vrot.slane %v2391, 7
    %v2394 = vor.u32 %v2390, %v2393
    %v2395 = vsel %vm2323, %v2386, %v2394
    %s2396 = scalar_lea.vmem [#allocation2], 1920
    %v2397 = vld [vmem:[%s2396] sm:$0xff]
    %v2398 = vld [vmem:[%s2396 + $0x8] sm:$0xff]
    %v2399 = vld [vmem:[%s2396 + $0x10] sm:$0xff]
    %v2400 = vld [vmem:[%s2396 + $0x18] sm:$0xff]
    %v2401 = vld [vmem:[%s2396 + $0x20] sm:$0xff]
    %v2402 = vld [vmem:[%s2396 + $0x28] sm:$0xff]
    %v2403 = vld [vmem:[%s2396 + $0x30] sm:$0xff]
    %v2404 = vld [vmem:[%s2396 + $0x38] sm:$0xff]
    %v2405 = vld [vmem:[%s2396 + $0x40] sm:$0xff]
    %v2406 = vld [vmem:[%s2396 + $0x48] sm:$0xff]
    %v2407 = vld [vmem:[%s2396 + $0x50] sm:$0xff]
    %v2408 = vld [vmem:[%s2396 + $0x58] sm:$0xff]
    %v2409 = vld [vmem:[%s2396 + $0x60] sm:$0xff]
    %v2410 = vld [vmem:[%s2396 + $0x68] sm:$0xff]
    %v2411 = vld [vmem:[%s2396 + $0x70] sm:$0xff]
    %v2412 = vld [vmem:[%s2396 + $0x78] sm:$0xff]
    %v2413 = vld [vmem:[%s2396 + $0x80] sm:$0xff]
    %v2414 = vld [vmem:[%s2396 + $0x88] sm:$0xff]
    %v2415 = vld [vmem:[%s2396 + $0x90] sm:$0xff]
    %v2416 = vld [vmem:[%s2396 + $0x98] sm:$0xff]
    %v2417 = vld [vmem:[%s2396 + $0xa0] sm:$0xff]
    %v2418 = vld [vmem:[%s2396 + $0xa8] sm:$0xff]
    %v2419 = vld [vmem:[%s2396 + $0xb0] sm:$0xff]
    %v2420 = vld [vmem:[%s2396 + $0xb8] sm:$0xff]
    %v2421 = vld [vmem:[%s2396 + $0xc0] sm:$0xff]
    %v2422 = vld [vmem:[%s2396 + $0xc8] sm:$0xff]
    %v2423 = vld [vmem:[%s2396 + $0xd0] sm:$0xff]
    %v2424 = vld [vmem:[%s2396 + $0xd8] sm:$0xff]
    %v2425 = vld [vmem:[%s2396 + $0xe0] sm:$0xff]
    %v2426 = vld [vmem:[%s2396 + $0xe8] sm:$0xff]
    %v2427 = vld [vmem:[%s2396 + $0xf0] sm:$0xff]
    %v2428 = vld [vmem:[%s2396 + $0xf8] sm:$0xff]
    %v2429 = vld [vmem:[%s2396 + $0x100] sm:$0xff]
    %v2430 = vld [vmem:[%s2396 + $0x108] sm:$0xff]
    %v2431 = vld [vmem:[%s2396 + $0x110] sm:$0xff]
    %v2432 = vld [vmem:[%s2396 + $0x118] sm:$0xff]
    %v2433 = vld [vmem:[%s2396 + $0x120] sm:$0xff]
    %v2434 = vld [vmem:[%s2396 + $0x128] sm:$0xff]
    %v2435 = vld [vmem:[%s2396 + $0x130] sm:$0xff]
    %v2436 = vld [vmem:[%s2396 + $0x138] sm:$0xff]
    %v2437 = vld [vmem:[%s2396 + $0x140] sm:$0xff]
    %v2438 = vld [vmem:[%s2396 + $0x148] sm:$0xff]
    %v2439 = vld [vmem:[%s2396 + $0x150] sm:$0xff]
    %v2440 = vld [vmem:[%s2396 + $0x158] sm:$0xff]
    %v2441 = vld [vmem:[%s2396 + $0x160] sm:$0xff]
    %v2442 = vld [vmem:[%s2396 + $0x168] sm:$0xff]
    %v2443 = vld [vmem:[%s2396 + $0x170] sm:$0xff]
    %v2444 = vld [vmem:[%s2396 + $0x178] sm:$0xff]
    %v2445 = vunpack.c.l.b16 %v2341
    %v2446 = vunpack.c.h.b16 %v2341
    %v2447 = vunpack.c.l.b16 %v2359
    %v2448 = vunpack.c.l.b16 %v2377
    %v2449 = vunpack.c.h.b16 %v2377
    %v2450 = vunpack.c.l.b16 %v2395
    %v2451 = vpack.c.b16 %v2448, %v2445
    %v2452 = vpack.c.b16 %v2449, %v2446
    %v2453 = vpack.c.b16 %v2450, %v2447
    %v2505 = vunpack.c.l.b16 %v2397
    %v2506 = vunpack.c.h.b16 %v2397
    %v2507 = vunpack.c.l.b16 %v2398
    %v2508 = vunpack.c.h.b16 %v2398
    %v2509 = vunpack.c.l.b16 %v2399
    %v2510 = vunpack.c.h.b16 %v2399
    %v2511 = vunpack.c.l.b16 %v2400
    %v2512 = vunpack.c.h.b16 %v2400
    %v2513 = vunpack.c.l.b16 %v2401
    %v2514 = vunpack.c.h.b16 %v2401
    %v2515 = vunpack.c.l.b16 %v2402
    %v2516 = vunpack.c.h.b16 %v2402
    %v2517 = vunpack.c.l.b16 %v2403
    %v2518 = vunpack.c.h.b16 %v2403
    %v2519 = vunpack.c.l.b16 %v2404
    %v2520 = vunpack.c.h.b16 %v2404
    %v2521 = vunpack.c.l.b16 %v2405
    %v2522 = vunpack.c.h.b16 %v2405
    %v2523 = vunpack.c.l.b16 %v2406
    %v2524 = vunpack.c.h.b16 %v2406
    %v2525 = vunpack.c.l.b16 %v2407
    %v2526 = vunpack.c.h.b16 %v2407
    %v2527 = vunpack.c.l.b16 %v2408
    %v2528 = vunpack.c.h.b16 %v2408
    %v2529 = vunpack.c.l.b16 %v2409
    %v2530 = vunpack.c.h.b16 %v2409
    %v2531 = vunpack.c.l.b16 %v2410
    %v2532 = vunpack.c.h.b16 %v2410
    %v2533 = vunpack.c.l.b16 %v2411
    %v2534 = vunpack.c.h.b16 %v2411
    %v2535 = vunpack.c.l.b16 %v2412
    %v2536 = vunpack.c.h.b16 %v2412
    %v2537 = vunpack.c.l.b16 %v2413
    %v2538 = vunpack.c.h.b16 %v2413
    %v2539 = vunpack.c.l.b16 %v2414
    %v2540 = vunpack.c.h.b16 %v2414
    %v2541 = vunpack.c.l.b16 %v2415
    %v2542 = vunpack.c.h.b16 %v2415
    %v2543 = vunpack.c.l.b16 %v2416
    %v2544 = vunpack.c.h.b16 %v2416
    %v2545 = vunpack.c.l.b16 %v2417
    %v2546 = vunpack.c.h.b16 %v2417
    %v2547 = vunpack.c.l.b16 %v2418
    %v2548 = vunpack.c.h.b16 %v2418
    %v2549 = vunpack.c.l.b16 %v2419
    %v2550 = vunpack.c.h.b16 %v2419
    %v2551 = vunpack.c.l.b16 %v2420
    %v2552 = vunpack.c.h.b16 %v2420
    %v2553 = vunpack.c.l.b16 %v2421
    %v2554 = vunpack.c.h.b16 %v2421
    %v2555 = vunpack.c.l.b16 %v2422
    %v2556 = vunpack.c.h.b16 %v2422
    %v2557 = vunpack.c.l.b16 %v2423
    %v2558 = vunpack.c.h.b16 %v2423
    %v2559 = vunpack.c.l.b16 %v2424
    %v2560 = vunpack.c.h.b16 %v2424
    %v2561 = vunpack.c.l.b16 %v2425
    %v2562 = vunpack.c.h.b16 %v2425
    %v2563 = vunpack.c.l.b16 %v2426
    %v2564 = vunpack.c.h.b16 %v2426
    %v2565 = vunpack.c.l.b16 %v2427
    %v2566 = vunpack.c.h.b16 %v2427
    %v2567 = vunpack.c.l.b16 %v2428
    %v2568 = vunpack.c.h.b16 %v2428
    %v2569 = vunpack.c.l.b16 %v2429
    %v2570 = vunpack.c.h.b16 %v2429
    %v2571 = vunpack.c.l.b16 %v2430
    %v2572 = vunpack.c.h.b16 %v2430
    %v2573 = vunpack.c.l.b16 %v2431
    %v2574 = vunpack.c.h.b16 %v2431
    %v2575 = vunpack.c.l.b16 %v2432
    %v2576 = vunpack.c.h.b16 %v2432
    %v2577 = vunpack.c.l.b16 %v2433
    %v2578 = vunpack.c.h.b16 %v2433
    %v2579 = vunpack.c.l.b16 %v2434
    %v2580 = vunpack.c.h.b16 %v2434
    %v2581 = vunpack.c.l.b16 %v2435
    %v2582 = vunpack.c.h.b16 %v2435
    %v2583 = vunpack.c.l.b16 %v2436
    %v2584 = vunpack.c.h.b16 %v2436
    %v2585 = vunpack.c.l.b16 %v2437
    %v2586 = vunpack.c.h.b16 %v2437
    %v2587 = vunpack.c.l.b16 %v2438
    %v2588 = vunpack.c.h.b16 %v2438
    %v2589 = vunpack.c.l.b16 %v2439
    %v2590 = vunpack.c.h.b16 %v2439
    %v2591 = vunpack.c.l.b16 %v2440
    %v2592 = vunpack.c.h.b16 %v2440
    %v2593 = vunpack.c.l.b16 %v2441
    %v2594 = vunpack.c.h.b16 %v2441
    %v2595 = vunpack.c.l.b16 %v2442
    %v2596 = vunpack.c.h.b16 %v2442
    %v2597 = vunpack.c.l.b16 %v2443
    %v2598 = vunpack.c.h.b16 %v2443
    %v2599 = vunpack.c.l.b16 %v2444
    %v2600 = vunpack.c.h.b16 %v2444
    %v2601 = vpack.c.b16 %v2507, %v2505
    %v2602 = vpack.c.b16 %v2508, %v2506
    %v2603 = vpack.c.b16 %v2511, %v2509
    %v2604 = vpack.c.b16 %v2512, %v2510
    %v2605 = vpack.c.b16 %v2515, %v2513
    %v2606 = vpack.c.b16 %v2516, %v2514
    %v2607 = vpack.c.b16 %v2519, %v2517
    %v2608 = vpack.c.b16 %v2520, %v2518
    %v2609 = vpack.c.b16 %v2523, %v2521
    %v2610 = vpack.c.b16 %v2524, %v2522
    %v2611 = vpack.c.b16 %v2527, %v2525
    %v2612 = vpack.c.b16 %v2528, %v2526
    %v2613 = vpack.c.b16 %v2531, %v2529
    %v2614 = vpack.c.b16 %v2532, %v2530
    %v2615 = vpack.c.b16 %v2535, %v2533
    %v2616 = vpack.c.b16 %v2536, %v2534
    %v2617 = vpack.c.b16 %v2539, %v2537
    %v2618 = vpack.c.b16 %v2540, %v2538
    %v2619 = vpack.c.b16 %v2543, %v2541
    %v2620 = vpack.c.b16 %v2544, %v2542
    %v2621 = vpack.c.b16 %v2547, %v2545
    %v2622 = vpack.c.b16 %v2548, %v2546
    %v2623 = vpack.c.b16 %v2551, %v2549
    %v2624 = vpack.c.b16 %v2552, %v2550
    %v2625 = vpack.c.b16 %v2555, %v2553
    %v2626 = vpack.c.b16 %v2556, %v2554
    %v2627 = vpack.c.b16 %v2559, %v2557
    %v2628 = vpack.c.b16 %v2560, %v2558
    %v2629 = vpack.c.b16 %v2563, %v2561
    %v2630 = vpack.c.b16 %v2564, %v2562
    %v2631 = vpack.c.b16 %v2567, %v2565
    %v2632 = vpack.c.b16 %v2568, %v2566
    %v2633 = vpack.c.b16 %v2571, %v2569
    %v2634 = vpack.c.b16 %v2572, %v2570
    %v2635 = vpack.c.b16 %v2575, %v2573
    %v2636 = vpack.c.b16 %v2576, %v2574
    %v2637 = vpack.c.b16 %v2579, %v2577
    %v2638 = vpack.c.b16 %v2580, %v2578
    %v2639 = vpack.c.b16 %v2583, %v2581
    %v2640 = vpack.c.b16 %v2584, %v2582
    %v2641 = vpack.c.b16 %v2587, %v2585
    %v2642 = vpack.c.b16 %v2588, %v2586
    %v2643 = vpack.c.b16 %v2591, %v2589
    %v2644 = vpack.c.b16 %v2592, %v2590
    %v2645 = vpack.c.b16 %v2595, %v2593
    %v2646 = vpack.c.b16 %v2596, %v2594
    %v2647 = vpack.c.b16 %v2599, %v2597
    %v2648 = vpack.c.b16 %v2600, %v2598
    %2697 = vmatpush.bf16.msra.mxu0 %v2615
    %2698 = vmatpush.bf16.msra.mxu0 %v2613
    %2699 = vmatpush.bf16.msra.mxu0 %v2611
    %2700 = vmatpush.bf16.msra.mxu0 %v2609
    %2701 = vmatpush.bf16.msra.mxu0 %v2607
    %2702 = vmatpush.bf16.msra.mxu0 %v2605
    %2703 = vmatpush.bf16.msra.mxu0 %v2603
    %2704 = vmatpush.bf16.msra.mxu0 %v2601
    %2705 = vmatmul.bf16.gmra.mxu0 %v2451
    %v2706 = vpop.f32.mrf.mxu0
    %v2707 = vadd.f32 0.0, %v2706
    %v2708 = vpop.f32.mrf.mxu0
    %v2709 = vadd.f32 0.0, %v2708
    %2710 = vdwg.mxu0
    %2711 = vmatpush.bf16.msra.mxu0 %v2631
    %2712 = vmatpush.bf16.msra.mxu0 %v2629
    %2713 = vmatpush.bf16.msra.mxu0 %v2627
    %2714 = vmatpush.bf16.msra.mxu0 %v2625
    %2715 = vmatpush.bf16.msra.mxu0 %v2623
    %2716 = vmatpush.bf16.msra.mxu0 %v2621
    %2717 = vmatpush.bf16.msra.mxu0 %v2619
    %2718 = vmatpush.bf16.msra.mxu0 %v2617
    %2719 = vmatmul.bf16.gmra.mxu0 %v2452
    %v2720 = vpop.f32.mrf.mxu0
    %v2721 = vadd.f32 %v2707, %v2720
    %v2722 = vpop.f32.mrf.mxu0
    %v2723 = vadd.f32 %v2709, %v2722
    %2724 = vdwg.mxu0
    %2725 = vmatpush.bf16.msra.mxu0 %v2647
    %2726 = vmatpush.bf16.msra.mxu0 %v2645
    %2727 = vmatpush.bf16.msra.mxu0 %v2643
    %2728 = vmatpush.bf16.msra.mxu0 %v2641
    %2729 = vmatpush.bf16.msra.mxu0 %v2639
    %2730 = vmatpush.bf16.msra.mxu0 %v2637
    %2731 = vmatpush.bf16.msra.mxu0 %v2635
    %2732 = vmatpush.bf16.msra.mxu0 %v2633
    %2733 = vmatmul.bf16.gmra.mxu0 %v2453
    %v2734 = vpop.f32.mrf.mxu0
    %v2735 = vadd.f32 %v2721, %v2734
    %v2736 = vpop.f32.mrf.mxu0
    %v2737 = vadd.f32 %v2723, %v2736
    %2738 = vdwg.mxu0
    %2739 = vmatpush.bf16.msra.mxu0 %v2616
    %2740 = vmatpush.bf16.msra.mxu0 %v2614
    %2741 = vmatpush.bf16.msra.mxu0 %v2612
    %2742 = vmatpush.bf16.msra.mxu0 %v2610
    %2743 = vmatpush.bf16.msra.mxu0 %v2608
    %2744 = vmatpush.bf16.msra.mxu0 %v2606
    %2745 = vmatpush.bf16.msra.mxu0 %v2604
    %2746 = vmatpush.bf16.msra.mxu0 %v2602
    %2747 = vmatmul.bf16.gmra.mxu0 %v2451
    %v2748 = vpop.f32.mrf.mxu0
    %v2749 = vadd.f32 0.0, %v2748
    %v2750 = vpop.f32.mrf.mxu0
    %v2751 = vadd.f32 0.0, %v2750
    %2752 = vdwg.mxu0
    %2753 = vmatpush.bf16.msra.mxu0 %v2632
    %2754 = vmatpush.bf16.msra.mxu0 %v2630
    %2755 = vmatpush.bf16.msra.mxu0 %v2628
    %2756 = vmatpush.bf16.msra.mxu0 %v2626
    %2757 = vmatpush.bf16.msra.mxu0 %v2624
    %2758 = vmatpush.bf16.msra.mxu0 %v2622
    %2759 = vmatpush.bf16.msra.mxu0 %v2620
    %2760 = vmatpush.bf16.msra.mxu0 %v2618
    %2761 = vmatmul.bf16.gmra.mxu0 %v2452
    %v2762 = vpop.f32.mrf.mxu0
    %v2763 = vadd.f32 %v2749, %v2762
    %v2764 = vpop.f32.mrf.mxu0
    %v2765 = vadd.f32 %v2751, %v2764
    %2766 = vdwg.mxu0
    %2767 = vmatpush.bf16.msra.mxu0 %v2648
    %2768 = vmatpush.bf16.msra.mxu0 %v2646
    %2769 = vmatpush.bf16.msra.mxu0 %v2644
    %2770 = vmatpush.bf16.msra.mxu0 %v2642
    %2771 = vmatpush.bf16.msra.mxu0 %v2640
    %2772 = vmatpush.bf16.msra.mxu0 %v2638
    %2773 = vmatpush.bf16.msra.mxu0 %v2636
    %2774 = vmatpush.bf16.msra.mxu0 %v2634
    %2775 = vmatmul.bf16.gmra.mxu0 %v2453
    %v2776 = vpop.f32.mrf.mxu0
    %v2777 = vadd.f32 %v2763, %v2776
    %v2778 = vpop.f32.mrf.mxu0
    %v2779 = vadd.f32 %v2765, %v2778
    %2780 = vdwg.mxu0
    %v2781 = vadd.f32 %v2313, %v2735
    %v2782 = vadd.f32 %v2314, %v2777
    %v2783 = vadd.f32 %v2315, %v2737
    %v2784 = vadd.f32 %v2316, %v2779
    %v2785 = vld [vmem:[%s0] sm:$0x88]
    %v2786 = vld [vmem:[%s0 + $0x8] sm:$0x8]
    %v2787 = vld [vmem:[%s0 + $0x18] sm:$0x88]
    %v2788 = vld [vmem:[%s0 + $0x20] sm:$0x8]
    %vm2797 = vcmask 1040384
    %vm2798 = vcmask 1044484
    %vm2799 = vmor %vm2797, %vm2798
    %v2800 = vrot.slane %v2785, 7
    %v2801 = vrot.slane %v2800, 4
    %v2802 = vrot.slane %v2317, 7
    %v2803 = vsel %vm2799, %v2801, %v2802
    %v2804 = vrot.slane %v2786, 7
    %v2805 = vrot.slane %v2804, 4
    %v2806 = vrot.slane %v2318, 7
    %v2807 = vsel %vm2799, %v2805, %v2806
    %v2808 = vrot.slane %v2787, 7
    %v2809 = vrot.slane %v2808, 4
    %v2810 = vrot.slane %v2319, 7
    %v2811 = vsel %vm2799, %v2809, %v2810
    %v2812 = vrot.slane %v2788, 7
    %v2813 = vrot.slane %v2812, 4
    %v2814 = vrot.slane %v2320, 7
    %v2815 = vsel %vm2799, %v2813, %v2814
    %s2816 = scalar_lea.vmem [#allocation2], 2304
    %v2817 = vld [vmem:[%s2816] sm:$0xff]
    %v2818 = vld [vmem:[%s2816 + $0x8] sm:$0xff]
    %v2819 = vld [vmem:[%s2816 + $0x10] sm:$0xff]
    %v2820 = vld [vmem:[%s2816 + $0x18] sm:$0xff]
    %v2821 = vld [vmem:[%s2816 + $0x20] sm:$0xff]
    %v2822 = vld [vmem:[%s2816 + $0x28] sm:$0xff]
    %v2823 = vld [vmem:[%s2816 + $0x30] sm:$0xff]
    %v2824 = vld [vmem:[%s2816 + $0x38] sm:$0xff]
    %v2825 = vld [vmem:[%s2816 + $0x40] sm:$0xff]
    %v2826 = vld [vmem:[%s2816 + $0x48] sm:$0xff]
    %v2827 = vld [vmem:[%s2816 + $0x50] sm:$0xff]
    %v2828 = vld [vmem:[%s2816 + $0x58] sm:$0xff]
    %v2829 = vld [vmem:[%s2816 + $0x60] sm:$0xff]
    %v2830 = vld [vmem:[%s2816 + $0x68] sm:$0xff]
    %v2831 = vld [vmem:[%s2816 + $0x70] sm:$0xff]
    %v2832 = vld [vmem:[%s2816 + $0x78] sm:$0xff]
    %v2833 = vld [vmem:[%s2816 + $0x80] sm:$0xff]
    %v2834 = vld [vmem:[%s2816 + $0x88] sm:$0xff]
    %v2835 = vld [vmem:[%s2816 + $0x90] sm:$0xff]
    %v2836 = vld [vmem:[%s2816 + $0x98] sm:$0xff]
    %v2837 = vld [vmem:[%s2816 + $0xa0] sm:$0xff]
    %v2838 = vld [vmem:[%s2816 + $0xa8] sm:$0xff]
    %v2839 = vld [vmem:[%s2816 + $0xb0] sm:$0xff]
    %v2840 = vld [vmem:[%s2816 + $0xb8] sm:$0xff]
    %v2841 = vld [vmem:[%s2816 + $0xc0] sm:$0xff]
    %v2842 = vld [vmem:[%s2816 + $0xc8] sm:$0xff]
    %v2843 = vld [vmem:[%s2816 + $0xd0] sm:$0xff]
    %v2844 = vld [vmem:[%s2816 + $0xd8] sm:$0xff]
    %v2845 = vld [vmem:[%s2816 + $0xe0] sm:$0xff]
    %v2846 = vld [vmem:[%s2816 + $0xe8] sm:$0xff]
    %v2847 = vld [vmem:[%s2816 + $0xf0] sm:$0xff]
    %v2848 = vld [vmem:[%s2816 + $0xf8] sm:$0xff]
    %v2849 = vld [vmem:[%s2816 + $0x100] sm:$0xff]
    %v2850 = vld [vmem:[%s2816 + $0x108] sm:$0xff]
    %v2851 = vld [vmem:[%s2816 + $0x110] sm:$0xff]
    %v2852 = vld [vmem:[%s2816 + $0x118] sm:$0xff]
    %v2853 = vld [vmem:[%s2816 + $0x120] sm:$0xff]
    %v2854 = vld [vmem:[%s2816 + $0x128] sm:$0xff]
    %v2855 = vld [vmem:[%s2816 + $0x130] sm:$0xff]
    %v2856 = vld [vmem:[%s2816 + $0x138] sm:$0xff]
    %v2857 = vld [vmem:[%s2816 + $0x140] sm:$0xff]
    %v2858 = vld [vmem:[%s2816 + $0x148] sm:$0xff]
    %v2859 = vld [vmem:[%s2816 + $0x150] sm:$0xff]
    %v2860 = vld [vmem:[%s2816 + $0x158] sm:$0xff]
    %v2861 = vld [vmem:[%s2816 + $0x160] sm:$0xff]
    %v2862 = vld [vmem:[%s2816 + $0x168] sm:$0xff]
    %v2863 = vld [vmem:[%s2816 + $0x170] sm:$0xff]
    %v2864 = vld [vmem:[%s2816 + $0x178] sm:$0xff]
    %v2865 = vunpack.c.l.b16 %v2803
    %v2866 = vunpack.c.h.b16 %v2803
    %v2867 = vunpack.c.l.b16 %v2807
    %v2868 = vunpack.c.l.b16 %v2811
    %v2869 = vunpack.c.h.b16 %v2811
    %v2870 = vunpack.c.l.b16 %v2815
    %v2871 = vpack.c.b16 %v2868, %v2865
    %v2872 = vpack.c.b16 %v2869, %v2866
    %v2873 = vpack.c.b16 %v2870, %v2867
    %v2925 = vunpack.c.l.b16 %v2817
    %v2926 = vunpack.c.h.b16 %v2817
    %v2927 = vunpack.c.l.b16 %v2818
    %v2928 = vunpack.c.h.b16 %v2818
    %v2929 = vunpack.c.l.b16 %v2819
    %v2930 = vunpack.c.h.b16 %v2819
    %v2931 = vunpack.c.l.b16 %v2820
    %v2932 = vunpack.c.h.b16 %v2820
    %v2933 = vunpack.c.l.b16 %v2821
    %v2934 = vunpack.c.h.b16 %v2821
    %v2935 = vunpack.c.l.b16 %v2822
    %v2936 = vunpack.c.h.b16 %v2822
    %v2937 = vunpack.c.l.b16 %v2823
    %v2938 = vunpack.c.h.b16 %v2823
    %v2939 = vunpack.c.l.b16 %v2824
    %v2940 = vunpack.c.h.b16 %v2824
    %v2941 = vunpack.c.l.b16 %v2825
    %v2942 = vunpack.c.h.b16 %v2825
    %v2943 = vunpack.c.l.b16 %v2826
    %v2944 = vunpack.c.h.b16 %v2826
    %v2945 = vunpack.c.l.b16 %v2827
    %v2946 = vunpack.c.h.b16 %v2827
    %v2947 = vunpack.c.l.b16 %v2828
    %v2948 = vunpack.c.h.b16 %v2828
    %v2949 = vunpack.c.l.b16 %v2829
    %v2950 = vunpack.c.h.b16 %v2829
    %v2951 = vunpack.c.l.b16 %v2830
    %v2952 = vunpack.c.h.b16 %v2830
    %v2953 = vunpack.c.l.b16 %v2831
    %v2954 = vunpack.c.h.b16 %v2831
    %v2955 = vunpack.c.l.b16 %v2832
    %v2956 = vunpack.c.h.b16 %v2832
    %v2957 = vunpack.c.l.b16 %v2833
    %v2958 = vunpack.c.h.b16 %v2833
    %v2959 = vunpack.c.l.b16 %v2834
    %v2960 = vunpack.c.h.b16 %v2834
    %v2961 = vunpack.c.l.b16 %v2835
    %v2962 = vunpack.c.h.b16 %v2835
    %v2963 = vunpack.c.l.b16 %v2836
    %v2964 = vunpack.c.h.b16 %v2836
    %v2965 = vunpack.c.l.b16 %v2837
    %v2966 = vunpack.c.h.b16 %v2837
    %v2967 = vunpack.c.l.b16 %v2838
    %v2968 = vunpack.c.h.b16 %v2838
    %v2969 = vunpack.c.l.b16 %v2839
    %v2970 = vunpack.c.h.b16 %v2839
    %v2971 = vunpack.c.l.b16 %v2840
    %v2972 = vunpack.c.h.b16 %v2840
    %v2973 = vunpack.c.l.b16 %v2841
    %v2974 = vunpack.c.h.b16 %v2841
    %v2975 = vunpack.c.l.b16 %v2842
    %v2976 = vunpack.c.h.b16 %v2842
    %v2977 = vunpack.c.l.b16 %v2843
    %v2978 = vunpack.c.h.b16 %v2843
    %v2979 = vunpack.c.l.b16 %v2844
    %v2980 = vunpack.c.h.b16 %v2844
    %v2981 = vunpack.c.l.b16 %v2845
    %v2982 = vunpack.c.h.b16 %v2845
    %v2983 = vunpack.c.l.b16 %v2846
    %v2984 = vunpack.c.h.b16 %v2846
    %v2985 = vunpack.c.l.b16 %v2847
    %v2986 = vunpack.c.h.b16 %v2847
    %v2987 = vunpack.c.l.b16 %v2848
    %v2988 = vunpack.c.h.b16 %v2848
    %v2989 = vunpack.c.l.b16 %v2849
    %v2990 = vunpack.c.h.b16 %v2849
    %v2991 = vunpack.c.l.b16 %v2850
    %v2992 = vunpack.c.h.b16 %v2850
    %v2993 = vunpack.c.l.b16 %v2851
    %v2994 = vunpack.c.h.b16 %v2851
    %v2995 = vunpack.c.l.b16 %v2852
    %v2996 = vunpack.c.h.b16 %v2852
    %v2997 = vunpack.c.l.b16 %v2853
    %v2998 = vunpack.c.h.b16 %v2853
    %v2999 = vunpack.c.l.b16 %v2854
    %v3000 = vunpack.c.h.b16 %v2854
    %v3001 = vunpack.c.l.b16 %v2855
    %v3002 = vunpack.c.h.b16 %v2855
    %v3003 = vunpack.c.l.b16 %v2856
    %v3004 = vunpack.c.h.b16 %v2856
    %v3005 = vunpack.c.l.b16 %v2857
    %v3006 = vunpack.c.h.b16 %v2857
    %v3007 = vunpack.c.l.b16 %v2858
    %v3008 = vunpack.c.h.b16 %v2858
    %v3009 = vunpack.c.l.b16 %v2859
    %v3010 = vunpack.c.h.b16 %v2859
    %v3011 = vunpack.c.l.b16 %v2860
    %v3012 = vunpack.c.h.b16 %v2860
    %v3013 = vunpack.c.l.b16 %v2861
    %v3014 = vunpack.c.h.b16 %v2861
    %v3015 = vunpack.c.l.b16 %v2862
    %v3016 = vunpack.c.h.b16 %v2862
    %v3017 = vunpack.c.l.b16 %v2863
    %v3018 = vunpack.c.h.b16 %v2863
    %v3019 = vunpack.c.l.b16 %v2864
    %v3020 = vunpack.c.h.b16 %v2864
    %v3021 = vpack.c.b16 %v2927, %v2925
    %v3022 = vpack.c.b16 %v2928, %v2926
    %v3023 = vpack.c.b16 %v2931, %v2929
    %v3024 = vpack.c.b16 %v2932, %v2930
    %v3025 = vpack.c.b16 %v2935, %v2933
    %v3026 = vpack.c.b16 %v2936, %v2934
    %v3027 = vpack.c.b16 %v2939, %v2937
    %v3028 = vpack.c.b16 %v2940, %v2938
    %v3029 = vpack.c.b16 %v2943, %v2941
    %v3030 = vpack.c.b16 %v2944, %v2942
    %v3031 = vpack.c.b16 %v2947, %v2945
    %v3032 = vpack.c.b16 %v2948, %v2946
    %v3033 = vpack.c.b16 %v2951, %v2949
    %v3034 = vpack.c.b16 %v2952, %v2950
    %v3035 = vpack.c.b16 %v2955, %v2953
    %v3036 = vpack.c.b16 %v2956, %v2954
    %v3037 = vpack.c.b16 %v2959, %v2957
    %v3038 = vpack.c.b16 %v2960, %v2958
    %v3039 = vpack.c.b16 %v2963, %v2961
    %v3040 = vpack.c.b16 %v2964, %v2962
    %v3041 = vpack.c.b16 %v2967, %v2965
    %v3042 = vpack.c.b16 %v2968, %v2966
    %v3043 = vpack.c.b16 %v2971, %v2969
    %v3044 = vpack.c.b16 %v2972, %v2970
    %v3045 = vpack.c.b16 %v2975, %v2973
    %v3046 = vpack.c.b16 %v2976, %v2974
    %v3047 = vpack.c.b16 %v2979, %v2977
    %v3048 = vpack.c.b16 %v2980, %v2978
    %v3049 = vpack.c.b16 %v2983, %v2981
    %v3050 = vpack.c.b16 %v2984, %v2982
    %v3051 = vpack.c.b16 %v2987, %v2985
    %v3052 = vpack.c.b16 %v2988, %v2986
    %v3053 = vpack.c.b16 %v2991, %v2989
    %v3054 = vpack.c.b16 %v2992, %v2990
    %v3055 = vpack.c.b16 %v2995, %v2993
    %v3056 = vpack.c.b16 %v2996, %v2994
    %v3057 = vpack.c.b16 %v2999, %v2997
    %v3058 = vpack.c.b16 %v3000, %v2998
    %v3059 = vpack.c.b16 %v3003, %v3001
    %v3060 = vpack.c.b16 %v3004, %v3002
    %v3061 = vpack.c.b16 %v3007, %v3005
    %v3062 = vpack.c.b16 %v3008, %v3006
    %v3063 = vpack.c.b16 %v3011, %v3009
    %v3064 = vpack.c.b16 %v3012, %v3010
    %v3065 = vpack.c.b16 %v3015, %v3013
    %v3066 = vpack.c.b16 %v3016, %v3014
    %v3067 = vpack.c.b16 %v3019, %v3017
    %v3068 = vpack.c.b16 %v3020, %v3018
    %3117 = vmatpush.bf16.msra.mxu0 %v3035
    %3118 = vmatpush.bf16.msra.mxu0 %v3033
    %3119 = vmatpush.bf16.msra.mxu0 %v3031
    %3120 = vmatpush.bf16.msra.mxu0 %v3029
    %3121 = vmatpush.bf16.msra.mxu0 %v3027
    %3122 = vmatpush.bf16.msra.mxu0 %v3025
    %3123 = vmatpush.bf16.msra.mxu0 %v3023
    %3124 = vmatpush.bf16.msra.mxu0 %v3021
    %3125 = vmatmul.bf16.gmra.mxu0 %v2871
    %v3126 = vpop.f32.mrf.mxu0
    %v3127 = vadd.f32 0.0, %v3126
    %v3128 = vpop.f32.mrf.mxu0
    %v3129 = vadd.f32 0.0, %v3128
    %3130 = vdwg.mxu0
    %3131 = vmatpush.bf16.msra.mxu0 %v3051
    %3132 = vmatpush.bf16.msra.mxu0 %v3049
    %3133 = vmatpush.bf16.msra.mxu0 %v3047
    %3134 = vmatpush.bf16.msra.mxu0 %v3045
    %3135 = vmatpush.bf16.msra.mxu0 %v3043
    %3136 = vmatpush.bf16.msra.mxu0 %v3041
    %3137 = vmatpush.bf16.msra.mxu0 %v3039
    %3138 = vmatpush.bf16.msra.mxu0 %v3037
    %3139 = vmatmul.bf16.gmra.mxu0 %v2872
    %v3140 = vpop.f32.mrf.mxu0
    %v3141 = vadd.f32 %v3127, %v3140
    %v3142 = vpop.f32.mrf.mxu0
    %v3143 = vadd.f32 %v3129, %v3142
    %3144 = vdwg.mxu0
    %3145 = vmatpush.bf16.msra.mxu0 %v3067
    %3146 = vmatpush.bf16.msra.mxu0 %v3065
    %3147 = vmatpush.bf16.msra.mxu0 %v3063
    %3148 = vmatpush.bf16.msra.mxu0 %v3061
    %3149 = vmatpush.bf16.msra.mxu0 %v3059
    %3150 = vmatpush.bf16.msra.mxu0 %v3057
    %3151 = vmatpush.bf16.msra.mxu0 %v3055
    %3152 = vmatpush.bf16.msra.mxu0 %v3053
    %3153 = vmatmul.bf16.gmra.mxu0 %v2873
    %v3154 = vpop.f32.mrf.mxu0
    %v3155 = vadd.f32 %v3141, %v3154
    %v3156 = vpop.f32.mrf.mxu0
    %v3157 = vadd.f32 %v3143, %v3156
    %3158 = vdwg.mxu0
    %3159 = vmatpush.bf16.msra.mxu0 %v3036
    %3160 = vmatpush.bf16.msra.mxu0 %v3034
    %3161 = vmatpush.bf16.msra.mxu0 %v3032
    %3162 = vmatpush.bf16.msra.mxu0 %v3030
    %3163 = vmatpush.bf16.msra.mxu0 %v3028
    %3164 = vmatpush.bf16.msra.mxu0 %v3026
    %3165 = vmatpush.bf16.msra.mxu0 %v3024
    %3166 = vmatpush.bf16.msra.mxu0 %v3022
    %3167 = vmatmul.bf16.gmra.mxu0 %v2871
    %v3168 = vpop.f32.mrf.mxu0
    %v3169 = vadd.f32 0.0, %v3168
    %v3170 = vpop.f32.mrf.mxu0
    %v3171 = vadd.f32 0.0, %v3170
    %3172 = vdwg.mxu0
    %3173 = vmatpush.bf16.msra.mxu0 %v3052
    %3174 = vmatpush.bf16.msra.mxu0 %v3050
    %3175 = vmatpush.bf16.msra.mxu0 %v3048
    %3176 = vmatpush.bf16.msra.mxu0 %v3046
    %3177 = vmatpush.bf16.msra.mxu0 %v3044
    %3178 = vmatpush.bf16.msra.mxu0 %v3042
    %3179 = vmatpush.bf16.msra.mxu0 %v3040
    %3180 = vmatpush.bf16.msra.mxu0 %v3038
    %3181 = vmatmul.bf16.gmra.mxu0 %v2872
    %v3182 = vpop.f32.mrf.mxu0
    %v3183 = vadd.f32 %v3169, %v3182
    %v3184 = vpop.f32.mrf.mxu0
    %v3185 = vadd.f32 %v3171, %v3184
    %3186 = vdwg.mxu0
    %3187 = vmatpush.bf16.msra.mxu0 %v3068
    %3188 = vmatpush.bf16.msra.mxu0 %v3066
    %3189 = vmatpush.bf16.msra.mxu0 %v3064
    %3190 = vmatpush.bf16.msra.mxu0 %v3062
    %3191 = vmatpush.bf16.msra.mxu0 %v3060
    %3192 = vmatpush.bf16.msra.mxu0 %v3058
    %3193 = vmatpush.bf16.msra.mxu0 %v3056
    %3194 = vmatpush.bf16.msra.mxu0 %v3054
    %3195 = vmatmul.bf16.gmra.mxu0 %v2873
    %v3196 = vpop.f32.mrf.mxu0
    %v3197 = vadd.f32 %v3183, %v3196
    %v3198 = vpop.f32.mrf.mxu0
    %v3199 = vadd.f32 %v3185, %v3198
    %3200 = vdwg.mxu0
    %v3201 = vadd.f32 %v2781, %v3155
    %v3202 = vadd.f32 %v2782, %v3197
    %v3203 = vadd.f32 %v2783, %v3157
    %v3204 = vadd.f32 %v2784, %v3199
    %v3205 = vld [vmem:[#allocation4] sm:$0x3]
    %v3207 = vperm.slane %v3205, 0
    %v3208 = vperm.slane %v3205, 1
    %v3211 = vadd.f32 %v3201, %v3207
    %v3212 = vadd.f32 %v3202, %v3208
    %v3213 = vadd.f32 %v3203, %v3207
    %v3214 = vadd.f32 %v3204, %v3208
    %v3215 = vmax.f32 %v3211, 0.0
    %v3216 = vmax.f32 %v3212, 0.0
    %v3217 = vmax.f32 %v3213, 0.0
    %v3218 = vmax.f32 %v3214, 0.0
    %v3219 = vpack.c.bf16 %v3217, %v3215
    %v3220 = vpack.c.bf16 %v3218, %v3216
    %v3221 = vld [vmem:[%s3] sm:$0xff]
    %v3222 = vld [vmem:[%s3 + $0x8] sm:$0xff]
    %v3223 = vld [vmem:[%s3 + $0x10] sm:$0xff]
    %v3224 = vld [vmem:[%s3 + $0x18] sm:$0xff]
    %v3225 = vld [vmem:[%s3 + $0x20] sm:$0xff]
    %v3226 = vld [vmem:[%s3 + $0x28] sm:$0xff]
    %v3227 = vld [vmem:[%s3 + $0x30] sm:$0xff]
    %v3228 = vld [vmem:[%s3 + $0x38] sm:$0xff]
    %v3229 = vld [vmem:[%s3 + $0x40] sm:$0xff]
    %v3230 = vld [vmem:[%s3 + $0x48] sm:$0xff]
    %v3231 = vld [vmem:[%s3 + $0x50] sm:$0xff]
    %v3232 = vld [vmem:[%s3 + $0x58] sm:$0xff]
    %v3233 = vld [vmem:[%s3 + $0x60] sm:$0xff]
    %v3234 = vld [vmem:[%s3 + $0x68] sm:$0xff]
    %v3235 = vld [vmem:[%s3 + $0x70] sm:$0xff]
    %v3236 = vld [vmem:[%s3 + $0x78] sm:$0xff]
    %v3237 = vld [vmem:[%s3 + $0x80] sm:$0xff]
    %v3238 = vld [vmem:[%s3 + $0x88] sm:$0xff]
    %v3239 = vld [vmem:[%s3 + $0x90] sm:$0xff]
    %v3240 = vld [vmem:[%s3 + $0x98] sm:$0xff]
    %v3241 = vld [vmem:[%s3 + $0xa0] sm:$0xff]
    %v3242 = vld [vmem:[%s3 + $0xa8] sm:$0xff]
    %v3243 = vld [vmem:[%s3 + $0xb0] sm:$0xff]
    %v3244 = vld [vmem:[%s3 + $0xb8] sm:$0xff]
    %v3245 = vld [vmem:[%s3 + $0xc0] sm:$0xff]
    %v3246 = vld [vmem:[%s3 + $0xc8] sm:$0xff]
    %v3247 = vld [vmem:[%s3 + $0xd0] sm:$0xff]
    %v3248 = vld [vmem:[%s3 + $0xd8] sm:$0xff]
    %v3249 = vld [vmem:[%s3 + $0xe0] sm:$0xff]
    %v3250 = vld [vmem:[%s3 + $0xe8] sm:$0xff]
    %v3251 = vld [vmem:[%s3 + $0xf0] sm:$0xff]
    %v3252 = vld [vmem:[%s3 + $0xf8] sm:$0xff]
    %v3253 = vld [vmem:[%s3 + $0x100] sm:$0xff]
    %v3254 = vld [vmem:[%s3 + $0x108] sm:$0xff]
    %v3255 = vld [vmem:[%s3 + $0x110] sm:$0xff]
    %v3256 = vld [vmem:[%s3 + $0x118] sm:$0xff]
    %v3257 = vld [vmem:[%s3 + $0x120] sm:$0xff]
    %v3258 = vld [vmem:[%s3 + $0x128] sm:$0xff]
    %v3259 = vld [vmem:[%s3 + $0x130] sm:$0xff]
    %v3260 = vld [vmem:[%s3 + $0x138] sm:$0xff]
    %v3261 = vld [vmem:[%s3 + $0x140] sm:$0xff]
    %v3262 = vld [vmem:[%s3 + $0x148] sm:$0xff]
    %v3263 = vld [vmem:[%s3 + $0x150] sm:$0xff]
    %v3264 = vld [vmem:[%s3 + $0x158] sm:$0xff]
    %v3265 = vld [vmem:[%s3 + $0x160] sm:$0xff]
    %v3266 = vld [vmem:[%s3 + $0x168] sm:$0xff]
    %v3267 = vld [vmem:[%s3 + $0x170] sm:$0xff]
    %v3268 = vld [vmem:[%s3 + $0x178] sm:$0xff]
    %v3269 = vld [vmem:[%s3 + $0x180] sm:$0xff]
    %v3270 = vld [vmem:[%s3 + $0x188] sm:$0xff]
    %v3271 = vld [vmem:[%s3 + $0x190] sm:$0xff]
    %v3272 = vld [vmem:[%s3 + $0x198] sm:$0xff]
    %v3273 = vld [vmem:[%s3 + $0x1a0] sm:$0xff]
    %v3274 = vld [vmem:[%s3 + $0x1a8] sm:$0xff]
    %v3275 = vld [vmem:[%s3 + $0x1b0] sm:$0xff]
    %v3276 = vld [vmem:[%s3 + $0x1b8] sm:$0xff]
    %v3277 = vld [vmem:[%s3 + $0x1c0] sm:$0xff]
    %v3278 = vld [vmem:[%s3 + $0x1c8] sm:$0xff]
    %v3279 = vld [vmem:[%s3 + $0x1d0] sm:$0xff]
    %v3280 = vld [vmem:[%s3 + $0x1d8] sm:$0xff]
    %v3281 = vld [vmem:[%s3 + $0x1e0] sm:$0xff]
    %v3282 = vld [vmem:[%s3 + $0x1e8] sm:$0xff]
    %v3283 = vld [vmem:[%s3 + $0x1f0] sm:$0xff]
    %v3284 = vld [vmem:[%s3 + $0x1f8] sm:$0xff]
    %v3285 = vld [vmem:[#allocation6] sm:$0xf]
    %v3287 = vperm.slane %v3285, 0
    %v3288 = vperm.slane %v3285, 1
    %v3289 = vperm.slane %v3285, 2
    %v3290 = vperm.slane %v3285, 3
    %v3359 = vunpack.c.l.b16 %v3221
    %v3360 = vunpack.c.h.b16 %v3221
    %v3361 = vunpack.c.l.b16 %v3222
    %v3362 = vunpack.c.h.b16 %v3222
    %v3363 = vunpack.c.l.b16 %v3223
    %v3364 = vunpack.c.h.b16 %v3223
    %v3365 = vunpack.c.l.b16 %v3224
    %v3366 = vunpack.c.h.b16 %v3224
    %v3367 = vunpack.c.l.b16 %v3225
    %v3368 = vunpack.c.h.b16 %v3225
    %v3369 = vunpack.c.l.b16 %v3226
    %v3370 = vunpack.c.h.b16 %v3226
    %v3371 = vunpack.c.l.b16 %v3227
    %v3372 = vunpack.c.h.b16 %v3227
    %v3373 = vunpack.c.l.b16 %v3228
    %v3374 = vunpack.c.h.b16 %v3228
    %v3375 = vunpack.c.l.b16 %v3229
    %v3376 = vunpack.c.h.b16 %v3229
    %v3377 = vunpack.c.l.b16 %v3230
    %v3378 = vunpack.c.h.b16 %v3230
    %v3379 = vunpack.c.l.b16 %v3231
    %v3380 = vunpack.c.h.b16 %v3231
    %v3381 = vunpack.c.l.b16 %v3232
    %v3382 = vunpack.c.h.b16 %v3232
    %v3383 = vunpack.c.l.b16 %v3233
    %v3384 = vunpack.c.h.b16 %v3233
    %v3385 = vunpack.c.l.b16 %v3234
    %v3386 = vunpack.c.h.b16 %v3234
    %v3387 = vunpack.c.l.b16 %v3235
    %v3388 = vunpack.c.h.b16 %v3235
    %v3389 = vunpack.c.l.b16 %v3236
    %v3390 = vunpack.c.h.b16 %v3236
    %v3391 = vunpack.c.l.b16 %v3237
    %v3392 = vunpack.c.h.b16 %v3237
    %v3393 = vunpack.c.l.b16 %v3238
    %v3394 = vunpack.c.h.b16 %v3238
    %v3395 = vunpack.c.l.b16 %v3239
    %v3396 = vunpack.c.h.b16 %v3239
    %v3397 = vunpack.c.l.b16 %v3240
    %v3398 = vunpack.c.h.b16 %v3240
    %v3399 = vunpack.c.l.b16 %v3241
    %v3400 = vunpack.c.h.b16 %v3241
    %v3401 = vunpack.c.l.b16 %v3242
    %v3402 = vunpack.c.h.b16 %v3242
    %v3403 = vunpack.c.l.b16 %v3243
    %v3404 = vunpack.c.h.b16 %v3243
    %v3405 = vunpack.c.l.b16 %v3244
    %v3406 = vunpack.c.h.b16 %v3244
    %v3407 = vunpack.c.l.b16 %v3245
    %v3408 = vunpack.c.h.b16 %v3245
    %v3409 = vunpack.c.l.b16 %v3246
    %v3410 = vunpack.c.h.b16 %v3246
    %v3411 = vunpack.c.l.b16 %v3247
    %v3412 = vunpack.c.h.b16 %v3247
    %v3413 = vunpack.c.l.b16 %v3248
    %v3414 = vunpack.c.h.b16 %v3248
    %v3415 = vunpack.c.l.b16 %v3249
    %v3416 = vunpack.c.h.b16 %v3249
    %v3417 = vunpack.c.l.b16 %v3250
    %v3418 = vunpack.c.h.b16 %v3250
    %v3419 = vunpack.c.l.b16 %v3251
    %v3420 = vunpack.c.h.b16 %v3251
    %v3421 = vunpack.c.l.b16 %v3252
    %v3422 = vunpack.c.h.b16 %v3252
    %v3423 = vunpack.c.l.b16 %v3253
    %v3424 = vunpack.c.h.b16 %v3253
    %v3425 = vunpack.c.l.b16 %v3254
    %v3426 = vunpack.c.h.b16 %v3254
    %v3427 = vunpack.c.l.b16 %v3255
    %v3428 = vunpack.c.h.b16 %v3255
    %v3429 = vunpack.c.l.b16 %v3256
    %v3430 = vunpack.c.h.b16 %v3256
    %v3431 = vunpack.c.l.b16 %v3257
    %v3432 = vunpack.c.h.b16 %v3257
    %v3433 = vunpack.c.l.b16 %v3258
    %v3434 = vunpack.c.h.b16 %v3258
    %v3435 = vunpack.c.l.b16 %v3259
    %v3436 = vunpack.c.h.b16 %v3259
    %v3437 = vunpack.c.l.b16 %v3260
    %v3438 = vunpack.c.h.b16 %v3260
    %v3439 = vunpack.c.l.b16 %v3261
    %v3440 = vunpack.c.h.b16 %v3261
    %v3441 = vunpack.c.l.b16 %v3262
    %v3442 = vunpack.c.h.b16 %v3262
    %v3443 = vunpack.c.l.b16 %v3263
    %v3444 = vunpack.c.h.b16 %v3263
    %v3445 = vunpack.c.l.b16 %v3264
    %v3446 = vunpack.c.h.b16 %v3264
    %v3447 = vunpack.c.l.b16 %v3265
    %v3448 = vunpack.c.h.b16 %v3265
    %v3449 = vunpack.c.l.b16 %v3266
    %v3450 = vunpack.c.h.b16 %v3266
    %v3451 = vunpack.c.l.b16 %v3267
    %v3452 = vunpack.c.h.b16 %v3267
    %v3453 = vunpack.c.l.b16 %v3268
    %v3454 = vunpack.c.h.b16 %v3268
    %v3455 = vunpack.c.l.b16 %v3269
    %v3456 = vunpack.c.h.b16 %v3269
    %v3457 = vunpack.c.l.b16 %v3270
    %v3458 = vunpack.c.h.b16 %v3270
    %v3459 = vunpack.c.l.b16 %v3271
    %v3460 = vunpack.c.h.b16 %v3271
    %v3461 = vunpack.c.l.b16 %v3272
    %v3462 = vunpack.c.h.b16 %v3272
    %v3463 = vunpack.c.l.b16 %v3273
    %v3464 = vunpack.c.h.b16 %v3273
    %v3465 = vunpack.c.l.b16 %v3274
    %v3466 = vunpack.c.h.b16 %v3274
    %v3467 = vunpack.c.l.b16 %v3275
    %v3468 = vunpack.c.h.b16 %v3275
    %v3469 = vunpack.c.l.b16 %v3276
    %v3470 = vunpack.c.h.b16 %v3276
    %v3471 = vunpack.c.l.b16 %v3277
    %v3472 = vunpack.c.h.b16 %v3277
    %v3473 = vunpack.c.l.b16 %v3278
    %v3474 = vunpack.c.h.b16 %v3278
    %v3475 = vunpack.c.l.b16 %v3279
    %v3476 = vunpack.c.h.b16 %v3279
    %v3477 = vunpack.c.l.b16 %v3280
    %v3478 = vunpack.c.h.b16 %v3280
    %v3479 = vunpack.c.l.b16 %v3281
    %v3480 = vunpack.c.h.b16 %v3281
    %v3481 = vunpack.c.l.b16 %v3282
    %v3482 = vunpack.c.h.b16 %v3282
    %v3483 = vunpack.c.l.b16 %v3283
    %v3484 = vunpack.c.h.b16 %v3283
    %v3485 = vunpack.c.l.b16 %v3284
    %v3486 = vunpack.c.h.b16 %v3284
    %v3487 = vpack.c.b16 %v3363, %v3359
    %v3488 = vpack.c.b16 %v3364, %v3360
    %v3489 = vpack.c.b16 %v3365, %v3361
    %v3490 = vpack.c.b16 %v3366, %v3362
    %v3491 = vpack.c.b16 %v3371, %v3367
    %v3492 = vpack.c.b16 %v3372, %v3368
    %v3493 = vpack.c.b16 %v3373, %v3369
    %v3494 = vpack.c.b16 %v3374, %v3370
    %v3495 = vpack.c.b16 %v3379, %v3375
    %v3496 = vpack.c.b16 %v3380, %v3376
    %v3497 = vpack.c.b16 %v3381, %v3377
    %v3498 = vpack.c.b16 %v3382, %v3378
    %v3499 = vpack.c.b16 %v3387, %v3383
    %v3500 = vpack.c.b16 %v3388, %v3384
    %v3501 = vpack.c.b16 %v3389, %v3385
    %v3502 = vpack.c.b16 %v3390, %v3386
    %v3503 = vpack.c.b16 %v3395, %v3391
    %v3504 = vpack.c.b16 %v3396, %v3392
    %v3505 = vpack.c.b16 %v3397, %v3393
    %v3506 = vpack.c.b16 %v3398, %v3394
    %v3507 = vpack.c.b16 %v3403, %v3399
    %v3508 = vpack.c.b16 %v3404, %v3400
    %v3509 = vpack.c.b16 %v3405, %v3401
    %v3510 = vpack.c.b16 %v3406, %v3402
    %v3511 = vpack.c.b16 %v3411, %v3407
    %v3512 = vpack.c.b16 %v3412, %v3408
    %v3513 = vpack.c.b16 %v3413, %v3409
    %v3514 = vpack.c.b16 %v3414, %v3410
    %v3515 = vpack.c.b16 %v3419, %v3415
    %v3516 = vpack.c.b16 %v3420, %v3416
    %v3517 = vpack.c.b16 %v3421, %v3417
    %v3518 = vpack.c.b16 %v3422, %v3418
    %v3519 = vpack.c.b16 %v3427, %v3423
    %v3520 = vpack.c.b16 %v3428, %v3424
    %v3521 = vpack.c.b16 %v3429, %v3425
    %v3522 = vpack.c.b16 %v3430, %v3426
    %v3523 = vpack.c.b16 %v3435, %v3431
    %v3524 = vpack.c.b16 %v3436, %v3432
    %v3525 = vpack.c.b16 %v3437, %v3433
    %v3526 = vpack.c.b16 %v3438, %v3434
    %v3527 = vpack.c.b16 %v3443, %v3439
    %v3528 = vpack.c.b16 %v3444, %v3440
    %v3529 = vpack.c.b16 %v3445, %v3441
    %v3530 = vpack.c.b16 %v3446, %v3442
    %v3531 = vpack.c.b16 %v3451, %v3447
    %v3532 = vpack.c.b16 %v3452, %v3448
    %v3533 = vpack.c.b16 %v3453, %v3449
    %v3534 = vpack.c.b16 %v3454, %v3450
    %v3535 = vpack.c.b16 %v3459, %v3455
    %v3536 = vpack.c.b16 %v3460, %v3456
    %v3537 = vpack.c.b16 %v3461, %v3457
    %v3538 = vpack.c.b16 %v3462, %v3458
    %v3539 = vpack.c.b16 %v3467, %v3463
    %v3540 = vpack.c.b16 %v3468, %v3464
    %v3541 = vpack.c.b16 %v3469, %v3465
    %v3542 = vpack.c.b16 %v3470, %v3466
    %v3543 = vpack.c.b16 %v3475, %v3471
    %v3544 = vpack.c.b16 %v3476, %v3472
    %v3545 = vpack.c.b16 %v3477, %v3473
    %v3546 = vpack.c.b16 %v3478, %v3474
    %v3547 = vpack.c.b16 %v3483, %v3479
    %v3548 = vpack.c.b16 %v3484, %v3480
    %v3549 = vpack.c.b16 %v3485, %v3481
    %v3550 = vpack.c.b16 %v3486, %v3482
    %3615 = vmatpush.bf16.msra.mxu0 %v3515
    %3616 = vmatpush.bf16.msra.mxu0 %v3511
    %3617 = vmatpush.bf16.msra.mxu0 %v3507
    %3618 = vmatpush.bf16.msra.mxu0 %v3503
    %3619 = vmatpush.bf16.msra.mxu0 %v3499
    %3620 = vmatpush.bf16.msra.mxu0 %v3495
    %3621 = vmatpush.bf16.msra.mxu0 %v3491
    %3622 = vmatpush.bf16.msra.mxu0 %v3487
    %3623 = vmatmul.bf16.gmra.mxu0 %v3219
    %v3624 = vpop.f32.mrf.mxu0
    %v3625 = vadd.f32 %v3287, %v3624
    %v3626 = vpop.f32.mrf.mxu0
    %v3627 = vadd.f32 %v3287, %v3626
    %3628 = vdwg.mxu0
    %3629 = vmatpush.bf16.msra.mxu0 %v3547
    %3630 = vmatpush.bf16.msra.mxu0 %v3543
    %3631 = vmatpush.bf16.msra.mxu0 %v3539
    %3632 = vmatpush.bf16.msra.mxu0 %v3535
    %3633 = vmatpush.bf16.msra.mxu0 %v3531
    %3634 = vmatpush.bf16.msra.mxu0 %v3527
    %3635 = vmatpush.bf16.msra.mxu0 %v3523
    %3636 = vmatpush.bf16.msra.mxu0 %v3519
    %3637 = vmatmul.bf16.gmra.mxu0 %v3220
    %v3638 = vpop.f32.mrf.mxu0
    %v3639 = vadd.f32 %v3625, %v3638
    %v3640 = vpop.f32.mrf.mxu0
    %v3641 = vadd.f32 %v3627, %v3640
    %3642 = vdwg.mxu0
    %3643 = vmatpush.bf16.msra.mxu0 %v3516
    %3644 = vmatpush.bf16.msra.mxu0 %v3512
    %3645 = vmatpush.bf16.msra.mxu0 %v3508
    %3646 = vmatpush.bf16.msra.mxu0 %v3504
    %3647 = vmatpush.bf16.msra.mxu0 %v3500
    %3648 = vmatpush.bf16.msra.mxu0 %v3496
    %3649 = vmatpush.bf16.msra.mxu0 %v3492
    %3650 = vmatpush.bf16.msra.mxu0 %v3488
    %3651 = vmatmul.bf16.gmra.mxu0 %v3219
    %v3652 = vpop.f32.mrf.mxu0
    %v3653 = vadd.f32 %v3288, %v3652
    %v3654 = vpop.f32.mrf.mxu0
    %v3655 = vadd.f32 %v3288, %v3654
    %3656 = vdwg.mxu0
    %3657 = vmatpush.bf16.msra.mxu0 %v3548
    %3658 = vmatpush.bf16.msra.mxu0 %v3544
    %3659 = vmatpush.bf16.msra.mxu0 %v3540
    %3660 = vmatpush.bf16.msra.mxu0 %v3536
    %3661 = vmatpush.bf16.msra.mxu0 %v3532
    %3662 = vmatpush.bf16.msra.mxu0 %v3528
    %3663 = vmatpush.bf16.msra.mxu0 %v3524
    %3664 = vmatpush.bf16.msra.mxu0 %v3520
    %3665 = vmatmul.bf16.gmra.mxu0 %v3220
    %v3666 = vpop.f32.mrf.mxu0
    %v3667 = vadd.f32 %v3653, %v3666
    %v3668 = vpop.f32.mrf.mxu0
    %v3669 = vadd.f32 %v3655, %v3668
    %3670 = vdwg.mxu0
    %3671 = vmatpush.bf16.msra.mxu0 %v3517
    %3672 = vmatpush.bf16.msra.mxu0 %v3513
    %3673 = vmatpush.bf16.msra.mxu0 %v3509
    %3674 = vmatpush.bf16.msra.mxu0 %v3505
    %3675 = vmatpush.bf16.msra.mxu0 %v3501
    %3676 = vmatpush.bf16.msra.mxu0 %v3497
    %3677 = vmatpush.bf16.msra.mxu0 %v3493
    %3678 = vmatpush.bf16.msra.mxu0 %v3489
    %3679 = vmatmul.bf16.gmra.mxu0 %v3219
    %v3680 = vpop.f32.mrf.mxu0
    %v3681 = vadd.f32 %v3289, %v3680
    %v3682 = vpop.f32.mrf.mxu0
    %v3683 = vadd.f32 %v3289, %v3682
    %3684 = vdwg.mxu0
    %3685 = vmatpush.bf16.msra.mxu0 %v3549
    %3686 = vmatpush.bf16.msra.mxu0 %v3545
    %3687 = vmatpush.bf16.msra.mxu0 %v3541
    %3688 = vmatpush.bf16.msra.mxu0 %v3537
    %3689 = vmatpush.bf16.msra.mxu0 %v3533
    %3690 = vmatpush.bf16.msra.mxu0 %v3529
    %3691 = vmatpush.bf16.msra.mxu0 %v3525
    %3692 = vmatpush.bf16.msra.mxu0 %v3521
    %3693 = vmatmul.bf16.gmra.mxu0 %v3220
    %v3694 = vpop.f32.mrf.mxu0
    %v3695 = vadd.f32 %v3681, %v3694
    %v3696 = vpop.f32.mrf.mxu0
    %v3697 = vadd.f32 %v3683, %v3696
    %3698 = vdwg.mxu0
    %3699 = vmatpush.bf16.msra.mxu0 %v3518
    %3700 = vmatpush.bf16.msra.mxu0 %v3514
    %3701 = vmatpush.bf16.msra.mxu0 %v3510
    %3702 = vmatpush.bf16.msra.mxu0 %v3506
    %3703 = vmatpush.bf16.msra.mxu0 %v3502
    %3704 = vmatpush.bf16.msra.mxu0 %v3498
    %3705 = vmatpush.bf16.msra.mxu0 %v3494
    %3706 = vmatpush.bf16.msra.mxu0 %v3490
    %3707 = vmatmul.bf16.gmra.mxu0 %v3219
    %v3708 = vpop.f32.mrf.mxu0
    %v3709 = vadd.f32 %v3290, %v3708
    %v3710 = vpop.f32.mrf.mxu0
    %v3711 = vadd.f32 %v3290, %v3710
    %3712 = vdwg.mxu0
    %3713 = vmatpush.bf16.msra.mxu0 %v3550
    %3714 = vmatpush.bf16.msra.mxu0 %v3546
    %3715 = vmatpush.bf16.msra.mxu0 %v3542
    %3716 = vmatpush.bf16.msra.mxu0 %v3538
    %3717 = vmatpush.bf16.msra.mxu0 %v3534
    %3718 = vmatpush.bf16.msra.mxu0 %v3530
    %3719 = vmatpush.bf16.msra.mxu0 %v3526
    %3720 = vmatpush.bf16.msra.mxu0 %v3522
    %3721 = vmatmul.bf16.gmra.mxu0 %v3220
    %v3722 = vpop.f32.mrf.mxu0
    %v3723 = vadd.f32 %v3709, %v3722
    %v3724 = vpop.f32.mrf.mxu0
    %v3725 = vadd.f32 %v3711, %v3724
    %3726 = vdwg.mxu0
    %v3727 = vmax.f32 %v3639, 0.0
    %v3728 = vmax.f32 %v3667, 0.0
    %v3729 = vmax.f32 %v3695, 0.0
    %v3730 = vmax.f32 %v3723, 0.0
    %v3731 = vmax.f32 %v3641, 0.0
    %v3732 = vmax.f32 %v3669, 0.0
    %v3733 = vmax.f32 %v3697, 0.0
    %v3734 = vmax.f32 %v3725, 0.0
    %v3735 = vpack.c.bf16 %v3731, %v3727
    %v3736 = vpack.c.bf16 %v3732, %v3728
    %v3737 = vpack.c.bf16 %v3733, %v3729
    %v3738 = vpack.c.bf16 %v3734, %v3730
    %v3739 = vld [vmem:[#allocation7] sm:$0xff]
    %v3740 = vld [vmem:[#allocation7 + $0x8] sm:$0xff]
    %v3741 = vld [vmem:[#allocation7 + $0x10] sm:$0xff]
    %v3742 = vld [vmem:[#allocation7 + $0x18] sm:$0xff]
    %v3743 = vld [vmem:[#allocation7 + $0x20] sm:$0xff]
    %v3744 = vld [vmem:[#allocation7 + $0x28] sm:$0xff]
    %v3745 = vld [vmem:[#allocation7 + $0x30] sm:$0xff]
    %v3746 = vld [vmem:[#allocation7 + $0x38] sm:$0xff]
    %v3747 = vld [vmem:[#allocation7 + $0x40] sm:$0xff]
    %v3748 = vld [vmem:[#allocation7 + $0x48] sm:$0xff]
    %v3749 = vld [vmem:[#allocation7 + $0x50] sm:$0xff]
    %v3750 = vld [vmem:[#allocation7 + $0x58] sm:$0xff]
    %v3751 = vld [vmem:[#allocation7 + $0x60] sm:$0xff]
    %v3752 = vld [vmem:[#allocation7 + $0x68] sm:$0xff]
    %v3753 = vld [vmem:[#allocation7 + $0x70] sm:$0xff]
    %v3754 = vld [vmem:[#allocation7 + $0x78] sm:$0xff]
    %v3755 = vld [vmem:[#allocation7 + $0x80] sm:$0xff]
    %v3756 = vld [vmem:[#allocation7 + $0x88] sm:$0xff]
    %v3757 = vld [vmem:[#allocation7 + $0x90] sm:$0xff]
    %v3758 = vld [vmem:[#allocation7 + $0x98] sm:$0xff]
    %v3759 = vld [vmem:[#allocation7 + $0xa0] sm:$0xff]
    %v3760 = vld [vmem:[#allocation7 + $0xa8] sm:$0xff]
    %v3761 = vld [vmem:[#allocation7 + $0xb0] sm:$0xff]
    %v3762 = vld [vmem:[#allocation7 + $0xb8] sm:$0xff]
    %v3763 = vld [vmem:[#allocation7 + $0xc0] sm:$0xff]
    %v3764 = vld [vmem:[#allocation7 + $0xc8] sm:$0xff]
    %v3765 = vld [vmem:[#allocation7 + $0xd0] sm:$0xff]
    %v3766 = vld [vmem:[#allocation7 + $0xd8] sm:$0xff]
    %v3767 = vld [vmem:[#allocation7 + $0xe0] sm:$0xff]
    %v3768 = vld [vmem:[#allocation7 + $0xe8] sm:$0xff]
    %v3769 = vld [vmem:[#allocation7 + $0xf0] sm:$0xff]
    %v3770 = vld [vmem:[#allocation7 + $0xf8] sm:$0xff]
    %v3771 = vld [vmem:[#allocation7 + $0x100] sm:$0xff]
    %v3772 = vld [vmem:[#allocation7 + $0x108] sm:$0xff]
    %v3773 = vld [vmem:[#allocation7 + $0x110] sm:$0xff]
    %v3774 = vld [vmem:[#allocation7 + $0x118] sm:$0xff]
    %v3775 = vld [vmem:[#allocation7 + $0x120] sm:$0xff]
    %v3776 = vld [vmem:[#allocation7 + $0x128] sm:$0xff]
    %v3777 = vld [vmem:[#allocation7 + $0x130] sm:$0xff]
    %v3778 = vld [vmem:[#allocation7 + $0x138] sm:$0xff]
    %v3779 = vld [vmem:[#allocation7 + $0x140] sm:$0xff]
    %v3780 = vld [vmem:[#allocation7 + $0x148] sm:$0xff]
    %v3781 = vld [vmem:[#allocation7 + $0x150] sm:$0xff]
    %v3782 = vld [vmem:[#allocation7 + $0x158] sm:$0xff]
    %v3783 = vld [vmem:[#allocation7 + $0x160] sm:$0xff]
    %v3784 = vld [vmem:[#allocation7 + $0x168] sm:$0xff]
    %v3785 = vld [vmem:[#allocation7 + $0x170] sm:$0xff]
    %v3786 = vld [vmem:[#allocation7 + $0x178] sm:$0xff]
    %v3787 = vld [vmem:[#allocation7 + $0x180] sm:$0xff]
    %v3788 = vld [vmem:[#allocation7 + $0x188] sm:$0xff]
    %v3789 = vld [vmem:[#allocation7 + $0x190] sm:$0xff]
    %v3790 = vld [vmem:[#allocation7 + $0x198] sm:$0xff]
    %v3791 = vld [vmem:[#allocation7 + $0x1a0] sm:$0xff]
    %v3792 = vld [vmem:[#allocation7 + $0x1a8] sm:$0xff]
    %v3793 = vld [vmem:[#allocation7 + $0x1b0] sm:$0xff]
    %v3794 = vld [vmem:[#allocation7 + $0x1b8] sm:$0xff]
    %v3795 = vld [vmem:[#allocation7 + $0x1c0] sm:$0xff]
    %v3796 = vld [vmem:[#allocation7 + $0x1c8] sm:$0xff]
    %v3797 = vld [vmem:[#allocation7 + $0x1d0] sm:$0xff]
    %v3798 = vld [vmem:[#allocation7 + $0x1d8] sm:$0xff]
    %v3799 = vld [vmem:[#allocation7 + $0x1e0] sm:$0xff]
    %v3800 = vld [vmem:[#allocation7 + $0x1e8] sm:$0xff]
    %v3801 = vld [vmem:[#allocation7 + $0x1f0] sm:$0xff]
    %v3802 = vld [vmem:[#allocation7 + $0x1f8] sm:$0xff]
    %v3803 = vld [vmem:[#allocation7 + $0x200] sm:$0xff]
    %v3804 = vld [vmem:[#allocation7 + $0x208] sm:$0xff]
    %v3805 = vld [vmem:[#allocation7 + $0x210] sm:$0xff]
    %v3806 = vld [vmem:[#allocation7 + $0x218] sm:$0xff]
    %v3807 = vld [vmem:[#allocation7 + $0x220] sm:$0xff]
    %v3808 = vld [vmem:[#allocation7 + $0x228] sm:$0xff]
    %v3809 = vld [vmem:[#allocation7 + $0x230] sm:$0xff]
    %v3810 = vld [vmem:[#allocation7 + $0x238] sm:$0xff]
    %v3811 = vld [vmem:[#allocation7 + $0x240] sm:$0xff]
    %v3812 = vld [vmem:[#allocation7 + $0x248] sm:$0xff]
    %v3813 = vld [vmem:[#allocation7 + $0x250] sm:$0xff]
    %v3814 = vld [vmem:[#allocation7 + $0x258] sm:$0xff]
    %v3815 = vld [vmem:[#allocation7 + $0x260] sm:$0xff]
    %v3816 = vld [vmem:[#allocation7 + $0x268] sm:$0xff]
    %v3817 = vld [vmem:[#allocation7 + $0x270] sm:$0xff]
    %v3818 = vld [vmem:[#allocation7 + $0x278] sm:$0xff]
    %v3819 = vld [vmem:[#allocation7 + $0x280] sm:$0xff]
    %v3820 = vld [vmem:[#allocation7 + $0x288] sm:$0xff]
    %v3821 = vld [vmem:[#allocation7 + $0x290] sm:$0xff]
    %v3822 = vld [vmem:[#allocation7 + $0x298] sm:$0xff]
    %v3823 = vld [vmem:[#allocation7 + $0x2a0] sm:$0xff]
    %v3824 = vld [vmem:[#allocation7 + $0x2a8] sm:$0xff]
    %v3825 = vld [vmem:[#allocation7 + $0x2b0] sm:$0xff]
    %v3826 = vld [vmem:[#allocation7 + $0x2b8] sm:$0xff]
    %v3827 = vld [vmem:[#allocation7 + $0x2c0] sm:$0xff]
    %v3828 = vld [vmem:[#allocation7 + $0x2c8] sm:$0xff]
    %v3829 = vld [vmem:[#allocation7 + $0x2d0] sm:$0xff]
    %v3830 = vld [vmem:[#allocation7 + $0x2d8] sm:$0xff]
    %v3831 = vld [vmem:[#allocation7 + $0x2e0] sm:$0xff]
    %v3832 = vld [vmem:[#allocation7 + $0x2e8] sm:$0xff]
    %v3833 = vld [vmem:[#allocation7 + $0x2f0] sm:$0xff]
    %v3834 = vld [vmem:[#allocation7 + $0x2f8] sm:$0xff]
    %v3835 = vld [vmem:[#allocation7 + $0x300] sm:$0xff]
    %v3836 = vld [vmem:[#allocation7 + $0x308] sm:$0xff]
    %v3837 = vld [vmem:[#allocation7 + $0x310] sm:$0xff]
    %v3838 = vld [vmem:[#allocation7 + $0x318] sm:$0xff]
    %v3839 = vld [vmem:[#allocation9] sm:$0xf]
    %v3841 = vperm.slane %v3839, 0
    %v3842 = vperm.slane %v3839, 1
    %v3843 = vperm.slane %v3839, 2
    %v3844 = vperm.slane %v3839, 3
    %v3949 = vunpack.c.l.b16 %v3739
    %v3950 = vunpack.c.h.b16 %v3739
    %v3951 = vunpack.c.l.b16 %v3740
    %v3952 = vunpack.c.h.b16 %v3740
    %v3953 = vunpack.c.l.b16 %v3741
    %v3954 = vunpack.c.h.b16 %v3741
    %v3955 = vunpack.c.l.b16 %v3742
    %v3956 = vunpack.c.h.b16 %v3742
    %v3957 = vunpack.c.l.b16 %v3743
    %v3958 = vunpack.c.h.b16 %v3743
    %v3959 = vunpack.c.l.b16 %v3744
    %v3960 = vunpack.c.h.b16 %v3744
    %v3961 = vunpack.c.l.b16 %v3745
    %v3962 = vunpack.c.h.b16 %v3745
    %v3963 = vunpack.c.l.b16 %v3746
    %v3964 = vunpack.c.h.b16 %v3746
    %v3965 = vunpack.c.l.b16 %v3747
    %v3966 = vunpack.c.h.b16 %v3747
    %v3967 = vunpack.c.l.b16 %v3748
    %v3968 = vunpack.c.h.b16 %v3748
    %v3969 = vunpack.c.l.b16 %v3749
    %v3970 = vunpack.c.h.b16 %v3749
    %v3971 = vunpack.c.l.b16 %v3750
    %v3972 = vunpack.c.h.b16 %v3750
    %v3973 = vunpack.c.l.b16 %v3751
    %v3974 = vunpack.c.h.b16 %v3751
    %v3975 = vunpack.c.l.b16 %v3752
    %v3976 = vunpack.c.h.b16 %v3752
    %v3977 = vunpack.c.l.b16 %v3753
    %v3978 = vunpack.c.h.b16 %v3753
    %v3979 = vunpack.c.l.b16 %v3754
    %v3980 = vunpack.c.h.b16 %v3754
    %v3981 = vunpack.c.l.b16 %v3755
    %v3982 = vunpack.c.h.b16 %v3755
    %v3983 = vunpack.c.l.b16 %v3756
    %v3984 = vunpack.c.h.b16 %v3756
    %v3985 = vunpack.c.l.b16 %v3757
    %v3986 = vunpack.c.h.b16 %v3757
    %v3987 = vunpack.c.l.b16 %v3758
    %v3988 = vunpack.c.h.b16 %v3758
    %v3989 = vunpack.c.l.b16 %v3759
    %v3990 = vunpack.c.h.b16 %v3759
    %v3991 = vunpack.c.l.b16 %v3760
    %v3992 = vunpack.c.h.b16 %v3760
    %v3993 = vunpack.c.l.b16 %v3761
    %v3994 = vunpack.c.h.b16 %v3761
    %v3995 = vunpack.c.l.b16 %v3762
    %v3996 = vunpack.c.h.b16 %v3762
    %v3997 = vunpack.c.l.b16 %v3763
    %v3998 = vunpack.c.h.b16 %v3763
    %v3999 = vunpack.c.l.b16 %v3764
    %v4000 = vunpack.c.h.b16 %v3764
    %v4001 = vunpack.c.l.b16 %v3765
    %v4002 = vunpack.c.h.b16 %v3765
    %v4003 = vunpack.c.l.b16 %v3766
    %v4004 = vunpack.c.h.b16 %v3766
    %v4005 = vunpack.c.l.b16 %v3767
    %v4006 = vunpack.c.h.b16 %v3767
    %v4007 = vunpack.c.l.b16 %v3768
    %v4008 = vunpack.c.h.b16 %v3768
    %v4009 = vunpack.c.l.b16 %v3769
    %v4010 = vunpack.c.h.b16 %v3769
    %v4011 = vunpack.c.l.b16 %v3770
    %v4012 = vunpack.c.h.b16 %v3770
    %v4013 = vunpack.c.l.b16 %v3771
    %v4014 = vunpack.c.h.b16 %v3771
    %v4015 = vunpack.c.l.b16 %v3772
    %v4016 = vunpack.c.h.b16 %v3772
    %v4017 = vunpack.c.l.b16 %v3773
    %v4018 = vunpack.c.h.b16 %v3773
    %v4019 = vunpack.c.l.b16 %v3774
    %v4020 = vunpack.c.h.b16 %v3774
    %v4021 = vunpack.c.l.b16 %v3775
    %v4022 = vunpack.c.h.b16 %v3775
    %v4023 = vunpack.c.l.b16 %v3776
    %v4024 = vunpack.c.h.b16 %v3776
    %v4025 = vunpack.c.l.b16 %v3777
    %v4026 = vunpack.c.h.b16 %v3777
    %v4027 = vunpack.c.l.b16 %v3778
    %v4028 = vunpack.c.h.b16 %v3778
    %v4029 = vunpack.c.l.b16 %v3779
    %v4030 = vunpack.c.h.b16 %v3779
    %v4031 = vunpack.c.l.b16 %v3780
    %v4032 = vunpack.c.h.b16 %v3780
    %v4033 = vunpack.c.l.b16 %v3781
    %v4034 = vunpack.c.h.b16 %v3781
    %v4035 = vunpack.c.l.b16 %v3782
    %v4036 = vunpack.c.h.b16 %v3782
    %v4037 = vunpack.c.l.b16 %v3783
    %v4038 = vunpack.c.h.b16 %v3783
    %v4039 = vunpack.c.l.b16 %v3784
    %v4040 = vunpack.c.h.b16 %v3784
    %v4041 = vunpack.c.l.b16 %v3785
    %v4042 = vunpack.c.h.b16 %v3785
    %v4043 = vunpack.c.l.b16 %v3786
    %v4044 = vunpack.c.h.b16 %v3786
    %v4045 = vunpack.c.l.b16 %v3787
    %v4046 = vunpack.c.h.b16 %v3787
    %v4047 = vunpack.c.l.b16 %v3788
    %v4048 = vunpack.c.h.b16 %v3788
    %v4049 = vunpack.c.l.b16 %v3789
    %v4050 = vunpack.c.h.b16 %v3789
    %v4051 = vunpack.c.l.b16 %v3790
    %v4052 = vunpack.c.h.b16 %v3790
    %v4053 = vunpack.c.l.b16 %v3791
    %v4054 = vunpack.c.h.b16 %v3791
    %v4055 = vunpack.c.l.b16 %v3792
    %v4056 = vunpack.c.h.b16 %v3792
    %v4057 = vunpack.c.l.b16 %v3793
    %v4058 = vunpack.c.h.b16 %v3793
    %v4059 = vunpack.c.l.b16 %v3794
    %v4060 = vunpack.c.h.b16 %v3794
    %v4061 = vunpack.c.l.b16 %v3795
    %v4062 = vunpack.c.h.b16 %v3795
    %v4063 = vunpack.c.l.b16 %v3796
    %v4064 = vunpack.c.h.b16 %v3796
    %v4065 = vunpack.c.l.b16 %v3797
    %v4066 = vunpack.c.h.b16 %v3797
    %v4067 = vunpack.c.l.b16 %v3798
    %v4068 = vunpack.c.h.b16 %v3798
    %v4069 = vunpack.c.l.b16 %v3799
    %v4070 = vunpack.c.h.b16 %v3799
    %v4071 = vunpack.c.l.b16 %v3800
    %v4072 = vunpack.c.h.b16 %v3800
    %v4073 = vunpack.c.l.b16 %v3801
    %v4074 = vunpack.c.h.b16 %v3801
    %v4075 = vunpack.c.l.b16 %v3802
    %v4076 = vunpack.c.h.b16 %v3802
    %v4077 = vunpack.c.l.b16 %v3803
    %v4078 = vunpack.c.h.b16 %v3803
    %v4079 = vunpack.c.l.b16 %v3804
    %v4080 = vunpack.c.h.b16 %v3804
    %v4081 = vunpack.c.l.b16 %v3805
    %v4082 = vunpack.c.h.b16 %v3805
    %v4083 = vunpack.c.l.b16 %v3806
    %v4084 = vunpack.c.h.b16 %v3806
    %v4085 = vunpack.c.l.b16 %v3807
    %v4086 = vunpack.c.h.b16 %v3807
    %v4087 = vunpack.c.l.b16 %v3808
    %v4088 = vunpack.c.h.b16 %v3808
    %v4089 = vunpack.c.l.b16 %v3809
    %v4090 = vunpack.c.h.b16 %v3809
    %v4091 = vunpack.c.l.b16 %v3810
    %v4092 = vunpack.c.h.b16 %v3810
    %v4093 = vunpack.c.l.b16 %v3811
    %v4094 = vunpack.c.h.b16 %v3811
    %v4095 = vunpack.c.l.b16 %v3812
    %v4096 = vunpack.c.h.b16 %v3812
    %v4097 = vunpack.c.l.b16 %v3813
    %v4098 = vunpack.c.h.b16 %v3813
    %v4099 = vunpack.c.l.b16 %v3814
    %v4100 = vunpack.c.h.b16 %v3814
    %v4101 = vunpack.c.l.b16 %v3815
    %v4102 = vunpack.c.h.b16 %v3815
    %v4103 = vunpack.c.l.b16 %v3816
    %v4104 = vunpack.c.h.b16 %v3816
    %v4105 = vunpack.c.l.b16 %v3817
    %v4106 = vunpack.c.h.b16 %v3817
    %v4107 = vunpack.c.l.b16 %v3818
    %v4108 = vunpack.c.h.b16 %v3818
    %v4109 = vunpack.c.l.b16 %v3819
    %v4110 = vunpack.c.h.b16 %v3819
    %v4111 = vunpack.c.l.b16 %v3820
    %v4112 = vunpack.c.h.b16 %v3820
    %v4113 = vunpack.c.l.b16 %v3821
    %v4114 = vunpack.c.h.b16 %v3821
    %v4115 = vunpack.c.l.b16 %v3822
    %v4116 = vunpack.c.h.b16 %v3822
    %v4117 = vunpack.c.l.b16 %v3823
    %v4118 = vunpack.c.h.b16 %v3823
    %v4119 = vunpack.c.l.b16 %v3824
    %v4120 = vunpack.c.h.b16 %v3824
    %v4121 = vunpack.c.l.b16 %v3825
    %v4122 = vunpack.c.h.b16 %v3825
    %v4123 = vunpack.c.l.b16 %v3826
    %v4124 = vunpack.c.h.b16 %v3826
    %v4125 = vunpack.c.l.b16 %v3827
    %v4126 = vunpack.c.h.b16 %v3827
    %v4127 = vunpack.c.l.b16 %v3828
    %v4128 = vunpack.c.h.b16 %v3828
    %v4129 = vunpack.c.l.b16 %v3829
    %v4130 = vunpack.c.h.b16 %v3829
    %v4131 = vunpack.c.l.b16 %v3830
    %v4132 = vunpack.c.h.b16 %v3830
    %v4133 = vunpack.c.l.b16 %v3831
    %v4134 = vunpack.c.h.b16 %v3831
    %v4135 = vunpack.c.l.b16 %v3832
    %v4136 = vunpack.c.h.b16 %v3832
    %v4137 = vunpack.c.l.b16 %v3833
    %v4138 = vunpack.c.h.b16 %v3833
    %v4139 = vunpack.c.l.b16 %v3834
    %v4140 = vunpack.c.h.b16 %v3834
    %v4141 = vunpack.c.l.b16 %v3835
    %v4142 = vunpack.c.h.b16 %v3835
    %v4143 = vunpack.c.l.b16 %v3836
    %v4144 = vunpack.c.h.b16 %v3836
    %v4145 = vunpack.c.l.b16 %v3837
    %v4146 = vunpack.c.h.b16 %v3837
    %v4147 = vunpack.c.l.b16 %v3838
    %v4148 = vunpack.c.h.b16 %v3838
    %v4149 = vpack.c.b16 %v3953, %v3949
    %v4150 = vpack.c.b16 %v3954, %v3950
    %v4151 = vpack.c.b16 %v3955, %v3951
    %v4152 = vpack.c.b16 %v3956, %v3952
    %v4153 = vpack.c.b16 %v3961, %v3957
    %v4154 = vpack.c.b16 %v3962, %v3958
    %v4155 = vpack.c.b16 %v3963, %v3959
    %v4156 = vpack.c.b16 %v3964, %v3960
    %v4157 = vpack.c.b16 %v3969, %v3965
    %v4158 = vpack.c.b16 %v3970, %v3966
    %v4159 = vpack.c.b16 %v3971, %v3967
    %v4160 = vpack.c.b16 %v3972, %v3968
    %v4161 = vpack.c.b16 %v3977, %v3973
    %v4162 = vpack.c.b16 %v3978, %v3974
    %v4163 = vpack.c.b16 %v3979, %v3975
    %v4164 = vpack.c.b16 %v3980, %v3976
    %v4165 = vpack.c.b16 %v3985, %v3981
    %v4166 = vpack.c.b16 %v3986, %v3982
    %v4167 = vpack.c.b16 %v3987, %v3983
    %v4168 = vpack.c.b16 %v3988, %v3984
    %v4169 = vpack.c.b16 %v3993, %v3989
    %v4170 = vpack.c.b16 %v3994, %v3990
    %v4171 = vpack.c.b16 %v3995, %v3991
    %v4172 = vpack.c.b16 %v3996, %v3992
    %v4173 = vpack.c.b16 %v4001, %v3997
    %v4174 = vpack.c.b16 %v4002, %v3998
    %v4175 = vpack.c.b16 %v4003, %v3999
    %v4176 = vpack.c.b16 %v4004, %v4000
    %v4177 = vpack.c.b16 %v4009, %v4005
    %v4178 = vpack.c.b16 %v4010, %v4006
    %v4179 = vpack.c.b16 %v4011, %v4007
    %v4180 = vpack.c.b16 %v4012, %v4008
    %v4181 = vpack.c.b16 %v4017, %v4013
    %v4182 = vpack.c.b16 %v4018, %v4014
    %v4183 = vpack.c.b16 %v4019, %v4015
    %v4184 = vpack.c.b16 %v4020, %v4016
    %v4185 = vpack.c.b16 %v4025, %v4021
    %v4186 = vpack.c.b16 %v4026, %v4022
    %v4187 = vpack.c.b16 %v4027, %v4023
    %v4188 = vpack.c.b16 %v4028, %v4024
    %v4189 = vpack.c.b16 %v4033, %v4029
    %v4190 = vpack.c.b16 %v4034, %v4030
    %v4191 = vpack.c.b16 %v4035, %v4031
    %v4192 = vpack.c.b16 %v4036, %v4032
    %v4193 = vpack.c.b16 %v4041, %v4037
    %v4194 = vpack.c.b16 %v4042, %v4038
    %v4195 = vpack.c.b16 %v4043, %v4039
    %v4196 = vpack.c.b16 %v4044, %v4040
    %v4197 = vpack.c.b16 %v4049, %v4045
    %v4198 = vpack.c.b16 %v4050, %v4046
    %v4199 = vpack.c.b16 %v4051, %v4047
    %v4200 = vpack.c.b16 %v4052, %v4048
    %v4201 = vpack.c.b16 %v4057, %v4053
    %v4202 = vpack.c.b16 %v4058, %v4054
    %v4203 = vpack.c.b16 %v4059, %v4055
    %v4204 = vpack.c.b16 %v4060, %v4056
    %v4205 = vpack.c.b16 %v4065, %v4061
    %v4206 = vpack.c.b16 %v4066, %v4062
    %v4207 = vpack.c.b16 %v4067, %v4063
    %v4208 = vpack.c.b16 %v4068, %v4064
    %v4209 = vpack.c.b16 %v4073, %v4069
    %v4210 = vpack.c.b16 %v4074, %v4070
    %v4211 = vpack.c.b16 %v4075, %v4071
    %v4212 = vpack.c.b16 %v4076, %v4072
    %v4213 = vpack.c.b16 %v4081, %v4077
    %v4214 = vpack.c.b16 %v4082, %v4078
    %v4215 = vpack.c.b16 %v4083, %v4079
    %v4216 = vpack.c.b16 %v4084, %v4080
    %v4217 = vpack.c.b16 %v4089, %v4085
    %v4218 = vpack.c.b16 %v4090, %v4086
    %v4219 = vpack.c.b16 %v4091, %v4087
    %v4220 = vpack.c.b16 %v4092, %v4088
    %v4221 = vpack.c.b16 %v4097, %v4093
    %v4222 = vpack.c.b16 %v4098, %v4094
    %v4223 = vpack.c.b16 %v4099, %v4095
    %v4224 = vpack.c.b16 %v4100, %v4096
    %v4225 = vpack.c.b16 %v4105, %v4101
    %v4226 = vpack.c.b16 %v4106, %v4102
    %v4227 = vpack.c.b16 %v4107, %v4103
    %v4228 = vpack.c.b16 %v4108, %v4104
    %v4229 = vpack.c.b16 %v4113, %v4109
    %v4230 = vpack.c.b16 %v4114, %v4110
    %v4231 = vpack.c.b16 %v4115, %v4111
    %v4232 = vpack.c.b16 %v4116, %v4112
    %v4233 = vpack.c.b16 %v4121, %v4117
    %v4234 = vpack.c.b16 %v4122, %v4118
    %v4235 = vpack.c.b16 %v4123, %v4119
    %v4236 = vpack.c.b16 %v4124, %v4120
    %v4237 = vpack.c.b16 %v4129, %v4125
    %v4238 = vpack.c.b16 %v4130, %v4126
    %v4239 = vpack.c.b16 %v4131, %v4127
    %v4240 = vpack.c.b16 %v4132, %v4128
    %v4241 = vpack.c.b16 %v4137, %v4133
    %v4242 = vpack.c.b16 %v4138, %v4134
    %v4243 = vpack.c.b16 %v4139, %v4135
    %v4244 = vpack.c.b16 %v4140, %v4136
    %v4245 = vpack.c.b16 %v4145, %v4141
    %v4246 = vpack.c.b16 %v4146, %v4142
    %v4247 = vpack.c.b16 %v4147, %v4143
    %v4248 = vpack.c.b16 %v4148, %v4144
    %vm4349 = vcmask 130048
    %v4351 = vsel %vm4349, %v3738, 0
    %4353 = vmatpush.bf16.msra.mxu0 %v4177
    %4354 = vmatpush.bf16.msra.mxu0 %v4173
    %4355 = vmatpush.bf16.msra.mxu0 %v4169
    %4356 = vmatpush.bf16.msra.mxu0 %v4165
    %4357 = vmatpush.bf16.msra.mxu0 %v4161
    %4358 = vmatpush.bf16.msra.mxu0 %v4157
    %4359 = vmatpush.bf16.msra.mxu0 %v4153
    %4360 = vmatpush.bf16.msra.mxu0 %v4149
    %4361 = vmatmul.bf16.gmra.mxu0 %v3735
    %v4362 = vpop.f32.mrf.mxu0
    %v4363 = vadd.f32 %v3841, %v4362
    %v4364 = vpop.f32.mrf.mxu0
    %v4365 = vadd.f32 %v3841, %v4364
    %4366 = vdwg.mxu0
    %4367 = vmatpush.bf16.msra.mxu0 %v4209
    %4368 = vmatpush.bf16.msra.mxu0 %v4205
    %4369 = vmatpush.bf16.msra.mxu0 %v4201
    %4370 = vmatpush.bf16.msra.mxu0 %v4197
    %4371 = vmatpush.bf16.msra.mxu0 %v4193
    %4372 = vmatpush.bf16.msra.mxu0 %v4189
    %4373 = vmatpush.bf16.msra.mxu0 %v4185
    %4374 = vmatpush.bf16.msra.mxu0 %v4181
    %4375 = vmatmul.bf16.gmra.mxu0 %v3736
    %v4376 = vpop.f32.mrf.mxu0
    %v4377 = vadd.f32 %v4363, %v4376
    %v4378 = vpop.f32.mrf.mxu0
    %v4379 = vadd.f32 %v4365, %v4378
    %4380 = vdwg.mxu0
    %4381 = vmatpush.bf16.msra.mxu0 %v4241
    %4382 = vmatpush.bf16.msra.mxu0 %v4237
    %4383 = vmatpush.bf16.msra.mxu0 %v4233
    %4384 = vmatpush.bf16.msra.mxu0 %v4229
    %4385 = vmatpush.bf16.msra.mxu0 %v4225
    %4386 = vmatpush.bf16.msra.mxu0 %v4221
    %4387 = vmatpush.bf16.msra.mxu0 %v4217
    %4388 = vmatpush.bf16.msra.mxu0 %v4213
    %4389 = vmatmul.bf16.gmra.mxu0 %v3737
    %v4390 = vpop.f32.mrf.mxu0
    %v4391 = vadd.f32 %v4377, %v4390
    %v4392 = vpop.f32.mrf.mxu0
    %v4393 = vadd.f32 %v4379, %v4392
    %4394 = vdwg.mxu0
    %4395 = vmatpush.bf16.msra.mxu0 0
    %4396 = vmatpush.bf16.msra.mxu0 0
    %4397 = vmatpush.bf16.msra.mxu0 0
    %4398 = vmatpush.bf16.msra.mxu0 0
    %4399 = vmatpush.bf16.msra.mxu0 0
    %4400 = vmatpush.bf16.msra.mxu0 0
    %4401 = vmatpush.bf16.msra.mxu0 0
    %4402 = vmatpush.bf16.msra.mxu0 %v4245
    %4403 = vmatmul.bf16.gmra.mxu0 %v4351
    %v4404 = vpop.f32.mrf.mxu0
    %v4405 = vadd.f32 %v4391, %v4404
    %v4406 = vpop.f32.mrf.mxu0
    %v4407 = vadd.f32 %v4393, %v4406
    %4408 = vdwg.mxu0
    %4409 = vmatpush.bf16.msra.mxu0 %v4178
    %4410 = vmatpush.bf16.msra.mxu0 %v4174
    %4411 = vmatpush.bf16.msra.mxu0 %v4170
    %4412 = vmatpush.bf16.msra.mxu0 %v4166
    %4413 = vmatpush.bf16.msra.mxu0 %v4162
    %4414 = vmatpush.bf16.msra.mxu0 %v4158
    %4415 = vmatpush.bf16.msra.mxu0 %v4154
    %4416 = vmatpush.bf16.msra.mxu0 %v4150
    %4417 = vmatmul.bf16.gmra.mxu0 %v3735
    %v4418 = vpop.f32.mrf.mxu0
    %v4419 = vadd.f32 %v3842, %v4418
    %v4420 = vpop.f32.mrf.mxu0
    %v4421 = vadd.f32 %v3842, %v4420
    %4422 = vdwg.mxu0
    %4423 = vmatpush.bf16.msra.mxu0 %v4210
    %4424 = vmatpush.bf16.msra.mxu0 %v4206
    %4425 = vmatpush.bf16.msra.mxu0 %v4202
    %4426 = vmatpush.bf16.msra.mxu0 %v4198
    %4427 = vmatpush.bf16.msra.mxu0 %v4194
    %4428 = vmatpush.bf16.msra.mxu0 %v4190
    %4429 = vmatpush.bf16.msra.mxu0 %v4186
    %4430 = vmatpush.bf16.msra.mxu0 %v4182
    %4431 = vmatmul.bf16.gmra.mxu0 %v3736
    %v4432 = vpop.f32.mrf.mxu0
    %v4433 = vadd.f32 %v4419, %v4432
    %v4434 = vpop.f32.mrf.mxu0
    %v4435 = vadd.f32 %v4421, %v4434
    %4436 = vdwg.mxu0
    %4437 = vmatpush.bf16.msra.mxu0 %v4242
    %4438 = vmatpush.bf16.msra.mxu0 %v4238
    %4439 = vmatpush.bf16.msra.mxu0 %v4234
    %4440 = vmatpush.bf16.msra.mxu0 %v4230
    %4441 = vmatpush.bf16.msra.mxu0 %v4226
    %4442 = vmatpush.bf16.msra.mxu0 %v4222
    %4443 = vmatpush.bf16.msra.mxu0 %v4218
    %4444 = vmatpush.bf16.msra.mxu0 %v4214
    %4445 = vmatmul.bf16.gmra.mxu0 %v3737
    %v4446 = vpop.f32.mrf.mxu0
    %v4447 = vadd.f32 %v4433, %v4446
    %v4448 = vpop.f32.mrf.mxu0
    %v4449 = vadd.f32 %v4435, %v4448
    %4450 = vdwg.mxu0
    %4451 = vmatpush.bf16.msra.mxu0 0
    %4452 = vmatpush.bf16.msra.mxu0 0
    %4453 = vmatpush.bf16.msra.mxu0 0
    %4454 = vmatpush.bf16.msra.mxu0 0
    %4455 = vmatpush.bf16.msra.mxu0 0
    %4456 = vmatpush.bf16.msra.mxu0 0
    %4457 = vmatpush.bf16.msra.mxu0 0
    %4458 = vmatpush.bf16.msra.mxu0 %v4246
    %4459 = vmatmul.bf16.gmra.mxu0 %v4351
    %v4460 = vpop.f32.mrf.mxu0
    %v4461 = vadd.f32 %v4447, %v4460
    %v4462 = vpop.f32.mrf.mxu0
    %v4463 = vadd.f32 %v4449, %v4462
    %4464 = vdwg.mxu0
    %4465 = vmatpush.bf16.msra.mxu0 %v4179
    %4466 = vmatpush.bf16.msra.mxu0 %v4175
    %4467 = vmatpush.bf16.msra.mxu0 %v4171
    %4468 = vmatpush.bf16.msra.mxu0 %v4167
    %4469 = vmatpush.bf16.msra.mxu0 %v4163
    %4470 = vmatpush.bf16.msra.mxu0 %v4159
    %4471 = vmatpush.bf16.msra.mxu0 %v4155
    %4472 = vmatpush.bf16.msra.mxu0 %v4151
    %4473 = vmatmul.bf16.gmra.mxu0 %v3735
    %v4474 = vpop.f32.mrf.mxu0
    %v4475 = vadd.f32 %v3843, %v4474
    %v4476 = vpop.f32.mrf.mxu0
    %v4477 = vadd.f32 %v3843, %v4476
    %4478 = vdwg.mxu0
    %4479 = vmatpush.bf16.msra.mxu0 %v4211
    %4480 = vmatpush.bf16.msra.mxu0 %v4207
    %4481 = vmatpush.bf16.msra.mxu0 %v4203
    %4482 = vmatpush.bf16.msra.mxu0 %v4199
    %4483 = vmatpush.bf16.msra.mxu0 %v4195
    %4484 = vmatpush.bf16.msra.mxu0 %v4191
    %4485 = vmatpush.bf16.msra.mxu0 %v4187
    %4486 = vmatpush.bf16.msra.mxu0 %v4183
    %4487 = vmatmul.bf16.gmra.mxu0 %v3736
    %v4488 = vpop.f32.mrf.mxu0
    %v4489 = vadd.f32 %v4475, %v4488
    %v4490 = vpop.f32.mrf.mxu0
    %v4491 = vadd.f32 %v4477, %v4490
    %4492 = vdwg.mxu0
    %4493 = vmatpush.bf16.msra.mxu0 %v4243
    %4494 = vmatpush.bf16.msra.mxu0 %v4239
    %4495 = vmatpush.bf16.msra.mxu0 %v4235
    %4496 = vmatpush.bf16.msra.mxu0 %v4231
    %4497 = vmatpush.bf16.msra.mxu0 %v4227
    %4498 = vmatpush.bf16.msra.mxu0 %v4223
    %4499 = vmatpush.bf16.msra.mxu0 %v4219
    %4500 = vmatpush.bf16.msra.mxu0 %v4215
    %4501 = vmatmul.bf16.gmra.mxu0 %v3737
    %v4502 = vpop.f32.mrf.mxu0
    %v4503 = vadd.f32 %v4489, %v4502
    %v4504 = vpop.f32.mrf.mxu0
    %v4505 = vadd.f32 %v4491, %v4504
    %4506 = vdwg.mxu0
    %4507 = vmatpush.bf16.msra.mxu0 0
    %4508 = vmatpush.bf16.msra.mxu0 0
    %4509 = vmatpush.bf16.msra.mxu0 0
    %4510 = vmatpush.bf16.msra.mxu0 0
    %4511 = vmatpush.bf16.msra.mxu0 0
    %4512 = vmatpush.bf16.msra.mxu0 0
    %4513 = vmatpush.bf16.msra.mxu0 0
    %4514 = vmatpush.bf16.msra.mxu0 %v4247
    %4515 = vmatmul.bf16.gmra.mxu0 %v4351
    %v4516 = vpop.f32.mrf.mxu0
    %v4517 = vadd.f32 %v4503, %v4516
    %v4518 = vpop.f32.mrf.mxu0
    %v4519 = vadd.f32 %v4505, %v4518
    %4520 = vdwg.mxu0
    %4521 = vmatpush.bf16.msra.mxu0 %v4180
    %4522 = vmatpush.bf16.msra.mxu0 %v4176
    %4523 = vmatpush.bf16.msra.mxu0 %v4172
    %4524 = vmatpush.bf16.msra.mxu0 %v4168
    %4525 = vmatpush.bf16.msra.mxu0 %v4164
    %4526 = vmatpush.bf16.msra.mxu0 %v4160
    %4527 = vmatpush.bf16.msra.mxu0 %v4156
    %4528 = vmatpush.bf16.msra.mxu0 %v4152
    %4529 = vmatmul.bf16.gmra.mxu0 %v3735
    %v4530 = vpop.f32.mrf.mxu0
    %v4531 = vadd.f32 %v3844, %v4530
    %v4532 = vpop.f32.mrf.mxu0
    %v4533 = vadd.f32 %v3844, %v4532
    %4534 = vdwg.mxu0
    %4535 = vmatpush.bf16.msra.mxu0 %v4212
    %4536 = vmatpush.bf16.msra.mxu0 %v4208
    %4537 = vmatpush.bf16.msra.mxu0 %v4204
    %4538 = vmatpush.bf16.msra.mxu0 %v4200
    %4539 = vmatpush.bf16.msra.mxu0 %v4196
    %4540 = vmatpush.bf16.msra.mxu0 %v4192
    %4541 = vmatpush.bf16.msra.mxu0 %v4188
    %4542 = vmatpush.bf16.msra.mxu0 %v4184
    %4543 = vmatmul.bf16.gmra.mxu0 %v3736
    %v4544 = vpop.f32.mrf.mxu0
    %v4545 = vadd.f32 %v4531, %v4544
    %v4546 = vpop.f32.mrf.mxu0
    %v4547 = vadd.f32 %v4533, %v4546
    %4548 = vdwg.mxu0
    %4549 = vmatpush.bf16.msra.mxu0 %v4244
    %4550 = vmatpush.bf16.msra.mxu0 %v4240
    %4551 = vmatpush.bf16.msra.mxu0 %v4236
    %4552 = vmatpush.bf16.msra.mxu0 %v4232
    %4553 = vmatpush.bf16.msra.mxu0 %v4228
    %4554 = vmatpush.bf16.msra.mxu0 %v4224
    %4555 = vmatpush.bf16.msra.mxu0 %v4220
    %4556 = vmatpush.bf16.msra.mxu0 %v4216
    %4557 = vmatmul.bf16.gmra.mxu0 %v3737
    %v4558 = vpop.f32.mrf.mxu0
    %v4559 = vadd.f32 %v4545, %v4558
    %v4560 = vpop.f32.mrf.mxu0
    %v4561 = vadd.f32 %v4547, %v4560
    %4562 = vdwg.mxu0
    %4563 = vmatpush.bf16.msra.mxu0 0
    %4564 = vmatpush.bf16.msra.mxu0 0
    %4565 = vmatpush.bf16.msra.mxu0 0
    %4566 = vmatpush.bf16.msra.mxu0 0
    %4567 = vmatpush.bf16.msra.mxu0 0
    %4568 = vmatpush.bf16.msra.mxu0 0
    %4569 = vmatpush.bf16.msra.mxu0 0
    %4570 = vmatpush.bf16.msra.mxu0 %v4248
    %4571 = vmatmul.bf16.gmra.mxu0 %v4351
    %v4572 = vpop.f32.mrf.mxu0
    %v4573 = vadd.f32 %v4559, %v4572
    %v4574 = vpop.f32.mrf.mxu0
    %v4575 = vadd.f32 %v4561, %v4574
    %4576 = vdwg.mxu0
    %v4577 = vmax.f32 %v4405, 0.0
    %v4578 = vmax.f32 %v4461, 0.0
    %v4579 = vmax.f32 %v4517, 0.0
    %v4580 = vmax.f32 %v4573, 0.0
    %v4581 = vmax.f32 %v4407, 0.0
    %v4582 = vmax.f32 %v4463, 0.0
    %v4583 = vmax.f32 %v4519, 0.0
    %v4584 = vmax.f32 %v4575, 0.0
    %v4585 = vpack.c.bf16 %v4581, %v4577
    %v4586 = vpack.c.bf16 %v4582, %v4578
    %v4587 = vpack.c.bf16 %v4583, %v4579
    %v4588 = vpack.c.bf16 %v4584, %v4580
    %v4589 = vld [vmem:[#allocation10] sm:$0xff]
    %v4590 = vld [vmem:[#allocation10 + $0x8] sm:$0xff]
    %v4591 = vld [vmem:[#allocation10 + $0x10] sm:$0xff]
    %v4592 = vld [vmem:[#allocation10 + $0x18] sm:$0xff]
    %v4593 = vld [vmem:[#allocation10 + $0x20] sm:$0xff]
    %v4594 = vld [vmem:[#allocation10 + $0x28] sm:$0xff]
    %v4595 = vld [vmem:[#allocation10 + $0x30] sm:$0xff]
    %v4596 = vld [vmem:[#allocation10 + $0x38] sm:$0xff]
    %v4597 = vld [vmem:[#allocation10 + $0x40] sm:$0xff]
    %v4598 = vld [vmem:[#allocation10 + $0x48] sm:$0xff]
    %v4599 = vld [vmem:[#allocation10 + $0x50] sm:$0xff]
    %v4600 = vld [vmem:[#allocation10 + $0x58] sm:$0xff]
    %v4601 = vld [vmem:[#allocation10 + $0x60] sm:$0xff]
    %v4602 = vld [vmem:[#allocation10 + $0x68] sm:$0xff]
    %v4603 = vld [vmem:[#allocation10 + $0x70] sm:$0xff]
    %v4604 = vld [vmem:[#allocation10 + $0x78] sm:$0xff]
    %v4605 = vld [vmem:[#allocation10 + $0x80] sm:$0xff]
    %v4606 = vld [vmem:[#allocation10 + $0x88] sm:$0xff]
    %v4607 = vld [vmem:[#allocation10 + $0x90] sm:$0xff]
    %v4608 = vld [vmem:[#allocation10 + $0x98] sm:$0xff]
    %v4609 = vld [vmem:[#allocation10 + $0xa0] sm:$0xff]
    %v4610 = vld [vmem:[#allocation10 + $0xa8] sm:$0xff]
    %v4611 = vld [vmem:[#allocation10 + $0xb0] sm:$0xff]
    %v4612 = vld [vmem:[#allocation10 + $0xb8] sm:$0xff]
    %v4613 = vld [vmem:[#allocation10 + $0xc0] sm:$0xff]
    %v4614 = vld [vmem:[#allocation10 + $0xc8] sm:$0xff]
    %v4615 = vld [vmem:[#allocation10 + $0xd0] sm:$0xff]
    %v4616 = vld [vmem:[#allocation10 + $0xd8] sm:$0xff]
    %v4617 = vld [vmem:[#allocation10 + $0xe0] sm:$0xff]
    %v4618 = vld [vmem:[#allocation10 + $0xe8] sm:$0xff]
    %v4619 = vld [vmem:[#allocation10 + $0xf0] sm:$0xff]
    %v4620 = vld [vmem:[#allocation10 + $0xf8] sm:$0xff]
    %v4621 = vld [vmem:[#allocation10 + $0x100] sm:$0xff]
    %v4622 = vld [vmem:[#allocation10 + $0x108] sm:$0xff]
    %v4623 = vld [vmem:[#allocation10 + $0x110] sm:$0xff]
    %v4624 = vld [vmem:[#allocation10 + $0x118] sm:$0xff]
    %v4625 = vld [vmem:[#allocation10 + $0x120] sm:$0xff]
    %v4626 = vld [vmem:[#allocation10 + $0x128] sm:$0xff]
    %v4627 = vld [vmem:[#allocation10 + $0x130] sm:$0xff]
    %v4628 = vld [vmem:[#allocation10 + $0x138] sm:$0xff]
    %v4629 = vld [vmem:[#allocation10 + $0x140] sm:$0xff]
    %v4630 = vld [vmem:[#allocation10 + $0x148] sm:$0xff]
    %v4631 = vld [vmem:[#allocation10 + $0x150] sm:$0xff]
    %v4632 = vld [vmem:[#allocation10 + $0x158] sm:$0xff]
    %v4633 = vld [vmem:[#allocation10 + $0x160] sm:$0xff]
    %v4634 = vld [vmem:[#allocation10 + $0x168] sm:$0xff]
    %v4635 = vld [vmem:[#allocation10 + $0x170] sm:$0xff]
    %v4636 = vld [vmem:[#allocation10 + $0x178] sm:$0xff]
    %v4637 = vld [vmem:[#allocation10 + $0x180] sm:$0xff]
    %v4638 = vld [vmem:[#allocation10 + $0x188] sm:$0xff]
    %v4639 = vld [vmem:[#allocation10 + $0x190] sm:$0xff]
    %v4640 = vld [vmem:[#allocation10 + $0x198] sm:$0xff]
    %v4641 = vld [vmem:[#allocation10 + $0x1a0] sm:$0xff]
    %v4642 = vld [vmem:[#allocation10 + $0x1a8] sm:$0xff]
    %v4643 = vld [vmem:[#allocation10 + $0x1b0] sm:$0xff]
    %v4644 = vld [vmem:[#allocation10 + $0x1b8] sm:$0xff]
    %v4645 = vld [vmem:[#allocation10 + $0x1c0] sm:$0xff]
    %v4646 = vld [vmem:[#allocation10 + $0x1c8] sm:$0xff]
    %v4647 = vld [vmem:[#allocation10 + $0x1d0] sm:$0xff]
    %v4648 = vld [vmem:[#allocation10 + $0x1d8] sm:$0xff]
    %v4649 = vld [vmem:[#allocation10 + $0x1e0] sm:$0xff]
    %v4650 = vld [vmem:[#allocation10 + $0x1e8] sm:$0xff]
    %v4651 = vld [vmem:[#allocation10 + $0x1f0] sm:$0xff]
    %v4652 = vld [vmem:[#allocation10 + $0x1f8] sm:$0xff]
    %v4653 = vld [vmem:[#allocation10 + $0x200] sm:$0xff]
    %v4654 = vld [vmem:[#allocation10 + $0x208] sm:$0xff]
    %v4655 = vld [vmem:[#allocation10 + $0x210] sm:$0xff]
    %v4656 = vld [vmem:[#allocation10 + $0x218] sm:$0xff]
    %v4657 = vld [vmem:[#allocation10 + $0x220] sm:$0xff]
    %v4658 = vld [vmem:[#allocation10 + $0x228] sm:$0xff]
    %v4659 = vld [vmem:[#allocation10 + $0x230] sm:$0xff]
    %v4660 = vld [vmem:[#allocation10 + $0x238] sm:$0xff]
    %v4661 = vld [vmem:[#allocation10 + $0x240] sm:$0xff]
    %v4662 = vld [vmem:[#allocation10 + $0x248] sm:$0xff]
    %v4663 = vld [vmem:[#allocation10 + $0x250] sm:$0xff]
    %v4664 = vld [vmem:[#allocation10 + $0x258] sm:$0xff]
    %v4665 = vld [vmem:[#allocation10 + $0x260] sm:$0xff]
    %v4666 = vld [vmem:[#allocation10 + $0x268] sm:$0xff]
    %v4667 = vld [vmem:[#allocation10 + $0x270] sm:$0xff]
    %v4668 = vld [vmem:[#allocation10 + $0x278] sm:$0xff]
    %v4669 = vld [vmem:[#allocation10 + $0x280] sm:$0xff]
    %v4670 = vld [vmem:[#allocation10 + $0x288] sm:$0xff]
    %v4671 = vld [vmem:[#allocation10 + $0x290] sm:$0xff]
    %v4672 = vld [vmem:[#allocation10 + $0x298] sm:$0xff]
    %v4673 = vld [vmem:[#allocation10 + $0x2a0] sm:$0xff]
    %v4674 = vld [vmem:[#allocation10 + $0x2a8] sm:$0xff]
    %v4675 = vld [vmem:[#allocation10 + $0x2b0] sm:$0xff]
    %v4676 = vld [vmem:[#allocation10 + $0x2b8] sm:$0xff]
    %v4677 = vld [vmem:[#allocation10 + $0x2c0] sm:$0xff]
    %v4678 = vld [vmem:[#allocation10 + $0x2c8] sm:$0xff]
    %v4679 = vld [vmem:[#allocation10 + $0x2d0] sm:$0xff]
    %v4680 = vld [vmem:[#allocation10 + $0x2d8] sm:$0xff]
    %v4681 = vld [vmem:[#allocation10 + $0x2e0] sm:$0xff]
    %v4682 = vld [vmem:[#allocation10 + $0x2e8] sm:$0xff]
    %v4683 = vld [vmem:[#allocation10 + $0x2f0] sm:$0xff]
    %v4684 = vld [vmem:[#allocation10 + $0x2f8] sm:$0xff]
    %v4685 = vld [vmem:[#allocation10 + $0x300] sm:$0xff]
    %v4686 = vld [vmem:[#allocation10 + $0x308] sm:$0xff]
    %v4687 = vld [vmem:[#allocation10 + $0x310] sm:$0xff]
    %v4688 = vld [vmem:[#allocation10 + $0x318] sm:$0xff]
    %v4689 = vld [vmem:[#allocation10 + $0x320] sm:$0xff]
    %v4690 = vld [vmem:[#allocation10 + $0x328] sm:$0xff]
    %v4691 = vld [vmem:[#allocation10 + $0x330] sm:$0xff]
    %v4692 = vld [vmem:[#allocation10 + $0x338] sm:$0xff]
    %v4693 = vld [vmem:[#allocation10 + $0x340] sm:$0xff]
    %v4694 = vld [vmem:[#allocation10 + $0x348] sm:$0xff]
    %v4695 = vld [vmem:[#allocation10 + $0x350] sm:$0xff]
    %v4696 = vld [vmem:[#allocation10 + $0x358] sm:$0xff]
    %v4697 = vld [vmem:[#allocation10 + $0x360] sm:$0xff]
    %v4698 = vld [vmem:[#allocation10 + $0x368] sm:$0xff]
    %v4699 = vld [vmem:[#allocation10 + $0x370] sm:$0xff]
    %v4700 = vld [vmem:[#allocation10 + $0x378] sm:$0xff]
    %v4701 = vld [vmem:[#allocation10 + $0x380] sm:$0xff]
    %v4702 = vld [vmem:[#allocation10 + $0x388] sm:$0xff]
    %v4703 = vld [vmem:[#allocation10 + $0x390] sm:$0xff]
    %v4704 = vld [vmem:[#allocation10 + $0x398] sm:$0xff]
    %v4705 = vld [vmem:[#allocation10 + $0x3a0] sm:$0xff]
    %v4706 = vld [vmem:[#allocation10 + $0x3a8] sm:$0xff]
    %v4707 = vld [vmem:[#allocation10 + $0x3b0] sm:$0xff]
    %v4708 = vld [vmem:[#allocation10 + $0x3b8] sm:$0xff]
    %v4709 = vld [vmem:[#allocation10 + $0x3c0] sm:$0xff]
    %v4710 = vld [vmem:[#allocation10 + $0x3c8] sm:$0xff]
    %v4711 = vld [vmem:[#allocation10 + $0x3d0] sm:$0xff]
    %v4712 = vld [vmem:[#allocation10 + $0x3d8] sm:$0xff]
    %v4713 = vld [vmem:[#allocation10 + $0x3e0] sm:$0xff]
    %v4714 = vld [vmem:[#allocation10 + $0x3e8] sm:$0xff]
    %v4715 = vld [vmem:[#allocation10 + $0x3f0] sm:$0xff]
    %v4716 = vld [vmem:[#allocation10 + $0x3f8] sm:$0xff]
    %v4717 = vld [vmem:[#allocation10 + $0x400] sm:$0xff]
    %v4718 = vld [vmem:[#allocation10 + $0x408] sm:$0xff]
    %v4719 = vld [vmem:[#allocation10 + $0x410] sm:$0xff]
    %v4720 = vld [vmem:[#allocation10 + $0x418] sm:$0xff]
    %v4721 = vld [vmem:[#allocation10 + $0x420] sm:$0xff]
    %v4722 = vld [vmem:[#allocation10 + $0x428] sm:$0xff]
    %v4723 = vld [vmem:[#allocation10 + $0x430] sm:$0xff]
    %v4724 = vld [vmem:[#allocation10 + $0x438] sm:$0xff]
    %v4725 = vld [vmem:[#allocation10 + $0x440] sm:$0xff]
    %v4726 = vld [vmem:[#allocation10 + $0x448] sm:$0xff]
    %v4727 = vld [vmem:[#allocation10 + $0x450] sm:$0xff]
    %v4728 = vld [vmem:[#allocation10 + $0x458] sm:$0xff]
    %v4729 = vld [vmem:[#allocation10 + $0x460] sm:$0xff]
    %v4730 = vld [vmem:[#allocation10 + $0x468] sm:$0xff]
    %v4731 = vld [vmem:[#allocation10 + $0x470] sm:$0xff]
    %v4732 = vld [vmem:[#allocation10 + $0x478] sm:$0xff]
    %v4733 = vld [vmem:[#allocation10 + $0x480] sm:$0xff]
    %v4734 = vld [vmem:[#allocation10 + $0x488] sm:$0xff]
    %v4735 = vld [vmem:[#allocation10 + $0x490] sm:$0xff]
    %v4736 = vld [vmem:[#allocation10 + $0x498] sm:$0xff]
    %v4737 = vld [vmem:[#allocation10 + $0x4a0] sm:$0xff]
    %v4738 = vld [vmem:[#allocation10 + $0x4a8] sm:$0xff]
    %v4739 = vld [vmem:[#allocation10 + $0x4b0] sm:$0xff]
    %v4740 = vld [vmem:[#allocation10 + $0x4b8] sm:$0xff]
    %v4741 = vld [vmem:[#allocation10 + $0x4c0] sm:$0xff]
    %v4742 = vld [vmem:[#allocation10 + $0x4c8] sm:$0xff]
    %v4743 = vld [vmem:[#allocation10 + $0x4d0] sm:$0xff]
    %v4744 = vld [vmem:[#allocation10 + $0x4d8] sm:$0xff]
    %v4745 = vld [vmem:[#allocation10 + $0x4e0] sm:$0xff]
    %v4746 = vld [vmem:[#allocation10 + $0x4e8] sm:$0xff]
    %v4747 = vld [vmem:[#allocation10 + $0x4f0] sm:$0xff]
    %v4748 = vld [vmem:[#allocation10 + $0x4f8] sm:$0xff]
    %v4749 = vld [vmem:[#allocation10 + $0x500] sm:$0xff]
    %v4750 = vld [vmem:[#allocation10 + $0x508] sm:$0xff]
    %v4751 = vld [vmem:[#allocation10 + $0x510] sm:$0xff]
    %v4752 = vld [vmem:[#allocation10 + $0x518] sm:$0xff]
    %v4753 = vld [vmem:[#allocation10 + $0x520] sm:$0xff]
    %v4754 = vld [vmem:[#allocation10 + $0x528] sm:$0xff]
    %v4755 = vld [vmem:[#allocation10 + $0x530] sm:$0xff]
    %v4756 = vld [vmem:[#allocation10 + $0x538] sm:$0xff]
    %v4757 = vld [vmem:[#allocation10 + $0x540] sm:$0xff]
    %v4758 = vld [vmem:[#allocation10 + $0x548] sm:$0xff]
    %v4759 = vld [vmem:[#allocation10 + $0x550] sm:$0xff]
    %v4760 = vld [vmem:[#allocation10 + $0x558] sm:$0xff]
    %v4761 = vld [vmem:[#allocation10 + $0x560] sm:$0xff]
    %v4762 = vld [vmem:[#allocation10 + $0x568] sm:$0xff]
    %v4763 = vld [vmem:[#allocation10 + $0x570] sm:$0xff]
    %v4764 = vld [vmem:[#allocation10 + $0x578] sm:$0xff]
    %v4765 = vld [vmem:[#allocation10 + $0x580] sm:$0xff]
    %v4766 = vld [vmem:[#allocation10 + $0x588] sm:$0xff]
    %v4767 = vld [vmem:[#allocation10 + $0x590] sm:$0xff]
    %v4768 = vld [vmem:[#allocation10 + $0x598] sm:$0xff]
    %v4769 = vld [vmem:[#allocation10 + $0x5a0] sm:$0xff]
    %v4770 = vld [vmem:[#allocation10 + $0x5a8] sm:$0xff]
    %v4771 = vld [vmem:[#allocation10 + $0x5b0] sm:$0xff]
    %v4772 = vld [vmem:[#allocation10 + $0x5b8] sm:$0xff]
    %v4773 = vld [vmem:[#allocation10 + $0x5c0] sm:$0xff]
    %v4774 = vld [vmem:[#allocation10 + $0x5c8] sm:$0xff]
    %v4775 = vld [vmem:[#allocation10 + $0x5d0] sm:$0xff]
    %v4776 = vld [vmem:[#allocation10 + $0x5d8] sm:$0xff]
    %v4777 = vld [vmem:[#allocation10 + $0x5e0] sm:$0xff]
    %v4778 = vld [vmem:[#allocation10 + $0x5e8] sm:$0xff]
    %v4779 = vld [vmem:[#allocation10 + $0x5f0] sm:$0xff]
    %v4780 = vld [vmem:[#allocation10 + $0x5f8] sm:$0xff]
    %v4781 = vld [vmem:[#allocation10 + $0x600] sm:$0xff]
    %v4782 = vld [vmem:[#allocation10 + $0x608] sm:$0xff]
    %v4783 = vld [vmem:[#allocation10 + $0x610] sm:$0xff]
    %v4784 = vld [vmem:[#allocation10 + $0x618] sm:$0xff]
    %v4785 = vld [vmem:[#allocation10 + $0x620] sm:$0xff]
    %v4786 = vld [vmem:[#allocation10 + $0x628] sm:$0xff]
    %v4787 = vld [vmem:[#allocation10 + $0x630] sm:$0xff]
    %v4788 = vld [vmem:[#allocation10 + $0x638] sm:$0xff]
    %v4789 = vld [vmem:[#allocation12] sm:$0xff]
    %v4791 = vperm.slane %v4789, 0
    %v4792 = vperm.slane %v4789, 1
    %v4793 = vperm.slane %v4789, 2
    %v4794 = vperm.slane %v4789, 3
    %v4795 = vperm.slane %v4789, 4
    %v4796 = vperm.slane %v4789, 5
    %v4797 = vperm.slane %v4789, 6
    %v4798 = vperm.slane %v4789, 7
    %v5007 = vunpack.c.l.b16 %v4589
    %v5008 = vunpack.c.h.b16 %v4589
    %v5009 = vunpack.c.l.b16 %v4590
    %v5010 = vunpack.c.h.b16 %v4590
    %v5011 = vunpack.c.l.b16 %v4591
    %v5012 = vunpack.c.h.b16 %v4591
    %v5013 = vunpack.c.l.b16 %v4592
    %v5014 = vunpack.c.h.b16 %v4592
    %v5015 = vunpack.c.l.b16 %v4593
    %v5016 = vunpack.c.h.b16 %v4593
    %v5017 = vunpack.c.l.b16 %v4594
    %v5018 = vunpack.c.h.b16 %v4594
    %v5019 = vunpack.c.l.b16 %v4595
    %v5020 = vunpack.c.h.b16 %v4595
    %v5021 = vunpack.c.l.b16 %v4596
    %v5022 = vunpack.c.h.b16 %v4596
    %v5023 = vunpack.c.l.b16 %v4597
    %v5024 = vunpack.c.h.b16 %v4597
    %v5025 = vunpack.c.l.b16 %v4598
    %v5026 = vunpack.c.h.b16 %v4598
    %v5027 = vunpack.c.l.b16 %v4599
    %v5028 = vunpack.c.h.b16 %v4599
    %v5029 = vunpack.c.l.b16 %v4600
    %v5030 = vunpack.c.h.b16 %v4600
    %v5031 = vunpack.c.l.b16 %v4601
    %v5032 = vunpack.c.h.b16 %v4601
    %v5033 = vunpack.c.l.b16 %v4602
    %v5034 = vunpack.c.h.b16 %v4602
    %v5035 = vunpack.c.l.b16 %v4603
    %v5036 = vunpack.c.h.b16 %v4603
    %v5037 = vunpack.c.l.b16 %v4604
    %v5038 = vunpack.c.h.b16 %v4604
    %v5039 = vunpack.c.l.b16 %v4605
    %v5040 = vunpack.c.h.b16 %v4605
    %v5041 = vunpack.c.l.b16 %v4606
    %v5042 = vunpack.c.h.b16 %v4606
    %v5043 = vunpack.c.l.b16 %v4607
    %v5044 = vunpack.c.h.b16 %v4607
    %v5045 = vunpack.c.l.b16 %v4608
    %v5046 = vunpack.c.h.b16 %v4608
    %v5047 = vunpack.c.l.b16 %v4609
    %v5048 = vunpack.c.h.b16 %v4609
    %v5049 = vunpack.c.l.b16 %v4610
    %v5050 = vunpack.c.h.b16 %v4610
    %v5051 = vunpack.c.l.b16 %v4611
    %v5052 = vunpack.c.h.b16 %v4611
    %v5053 = vunpack.c.l.b16 %v4612
    %v5054 = vunpack.c.h.b16 %v4612
    %v5055 = vunpack.c.l.b16 %v4613
    %v5056 = vunpack.c.h.b16 %v4613
    %v5057 = vunpack.c.l.b16 %v4614
    %v5058 = vunpack.c.h.b16 %v4614
    %v5059 = vunpack.c.l.b16 %v4615
    %v5060 = vunpack.c.h.b16 %v4615
    %v5061 = vunpack.c.l.b16 %v4616
    %v5062 = vunpack.c.h.b16 %v4616
    %v5063 = vunpack.c.l.b16 %v4617
    %v5064 = vunpack.c.h.b16 %v4617
    %v5065 = vunpack.c.l.b16 %v4618
    %v5066 = vunpack.c.h.b16 %v4618
    %v5067 = vunpack.c.l.b16 %v4619
    %v5068 = vunpack.c.h.b16 %v4619
    %v5069 = vunpack.c.l.b16 %v4620
    %v5070 = vunpack.c.h.b16 %v4620
    %v5071 = vunpack.c.l.b16 %v4621
    %v5072 = vunpack.c.h.b16 %v4621
    %v5073 = vunpack.c.l.b16 %v4622
    %v5074 = vunpack.c.h.b16 %v4622
    %v5075 = vunpack.c.l.b16 %v4623
    %v5076 = vunpack.c.h.b16 %v4623
    %v5077 = vunpack.c.l.b16 %v4624
    %v5078 = vunpack.c.h.b16 %v4624
    %v5079 = vunpack.c.l.b16 %v4625
    %v5080 = vunpack.c.h.b16 %v4625
    %v5081 = vunpack.c.l.b16 %v4626
    %v5082 = vunpack.c.h.b16 %v4626
    %v5083 = vunpack.c.l.b16 %v4627
    %v5084 = vunpack.c.h.b16 %v4627
    %v5085 = vunpack.c.l.b16 %v4628
    %v5086 = vunpack.c.h.b16 %v4628
    %v5087 = vunpack.c.l.b16 %v4629
    %v5088 = vunpack.c.h.b16 %v4629
    %v5089 = vunpack.c.l.b16 %v4630
    %v5090 = vunpack.c.h.b16 %v4630
    %v5091 = vunpack.c.l.b16 %v4631
    %v5092 = vunpack.c.h.b16 %v4631
    %v5093 = vunpack.c.l.b16 %v4632
    %v5094 = vunpack.c.h.b16 %v4632
    %v5095 = vunpack.c.l.b16 %v4633
    %v5096 = vunpack.c.h.b16 %v4633
    %v5097 = vunpack.c.l.b16 %v4634
    %v5098 = vunpack.c.h.b16 %v4634
    %v5099 = vunpack.c.l.b16 %v4635
    %v5100 = vunpack.c.h.b16 %v4635
    %v5101 = vunpack.c.l.b16 %v4636
    %v5102 = vunpack.c.h.b16 %v4636
    %v5103 = vunpack.c.l.b16 %v4637
    %v5104 = vunpack.c.h.b16 %v4637
    %v5105 = vunpack.c.l.b16 %v4638
    %v5106 = vunpack.c.h.b16 %v4638
    %v5107 = vunpack.c.l.b16 %v4639
    %v5108 = vunpack.c.h.b16 %v4639
    %v5109 = vunpack.c.l.b16 %v4640
    %v5110 = vunpack.c.h.b16 %v4640
    %v5111 = vunpack.c.l.b16 %v4641
    %v5112 = vunpack.c.h.b16 %v4641
    %v5113 = vunpack.c.l.b16 %v4642
    %v5114 = vunpack.c.h.b16 %v4642
    %v5115 = vunpack.c.l.b16 %v4643
    %v5116 = vunpack.c.h.b16 %v4643
    %v5117 = vunpack.c.l.b16 %v4644
    %v5118 = vunpack.c.h.b16 %v4644
    %v5119 = vunpack.c.l.b16 %v4645
    %v5120 = vunpack.c.h.b16 %v4645
    %v5121 = vunpack.c.l.b16 %v4646
    %v5122 = vunpack.c.h.b16 %v4646
    %v5123 = vunpack.c.l.b16 %v4647
    %v5124 = vunpack.c.h.b16 %v4647
    %v5125 = vunpack.c.l.b16 %v4648
    %v5126 = vunpack.c.h.b16 %v4648
    %v5127 = vunpack.c.l.b16 %v4649
    %v5128 = vunpack.c.h.b16 %v4649
    %v5129 = vunpack.c.l.b16 %v4650
    %v5130 = vunpack.c.h.b16 %v4650
    %v5131 = vunpack.c.l.b16 %v4651
    %v5132 = vunpack.c.h.b16 %v4651
    %v5133 = vunpack.c.l.b16 %v4652
    %v5134 = vunpack.c.h.b16 %v4652
    %v5135 = vunpack.c.l.b16 %v4653
    %v5136 = vunpack.c.h.b16 %v4653
    %v5137 = vunpack.c.l.b16 %v4654
    %v5138 = vunpack.c.h.b16 %v4654
    %v5139 = vunpack.c.l.b16 %v4655
    %v5140 = vunpack.c.h.b16 %v4655
    %v5141 = vunpack.c.l.b16 %v4656
    %v5142 = vunpack.c.h.b16 %v4656
    %v5143 = vunpack.c.l.b16 %v4657
    %v5144 = vunpack.c.h.b16 %v4657
    %v5145 = vunpack.c.l.b16 %v4658
    %v5146 = vunpack.c.h.b16 %v4658
    %v5147 = vunpack.c.l.b16 %v4659
    %v5148 = vunpack.c.h.b16 %v4659
    %v5149 = vunpack.c.l.b16 %v4660
    %v5150 = vunpack.c.h.b16 %v4660
    %v5151 = vunpack.c.l.b16 %v4661
    %v5152 = vunpack.c.h.b16 %v4661
    %v5153 = vunpack.c.l.b16 %v4662
    %v5154 = vunpack.c.h.b16 %v4662
    %v5155 = vunpack.c.l.b16 %v4663
    %v5156 = vunpack.c.h.b16 %v4663
    %v5157 = vunpack.c.l.b16 %v4664
    %v5158 = vunpack.c.h.b16 %v4664
    %v5159 = vunpack.c.l.b16 %v4665
    %v5160 = vunpack.c.h.b16 %v4665
    %v5161 = vunpack.c.l.b16 %v4666
    %v5162 = vunpack.c.h.b16 %v4666
    %v5163 = vunpack.c.l.b16 %v4667
    %v5164 = vunpack.c.h.b16 %v4667
    %v5165 = vunpack.c.l.b16 %v4668
    %v5166 = vunpack.c.h.b16 %v4668
    %v5167 = vunpack.c.l.b16 %v4669
    %v5168 = vunpack.c.h.b16 %v4669
    %v5169 = vunpack.c.l.b16 %v4670
    %v5170 = vunpack.c.h.b16 %v4670
    %v5171 = vunpack.c.l.b16 %v4671
    %v5172 = vunpack.c.h.b16 %v4671
    %v5173 = vunpack.c.l.b16 %v4672
    %v5174 = vunpack.c.h.b16 %v4672
    %v5175 = vunpack.c.l.b16 %v4673
    %v5176 = vunpack.c.h.b16 %v4673
    %v5177 = vunpack.c.l.b16 %v4674
    %v5178 = vunpack.c.h.b16 %v4674
    %v5179 = vunpack.c.l.b16 %v4675
    %v5180 = vunpack.c.h.b16 %v4675
    %v5181 = vunpack.c.l.b16 %v4676
    %v5182 = vunpack.c.h.b16 %v4676
    %v5183 = vunpack.c.l.b16 %v4677
    %v5184 = vunpack.c.h.b16 %v4677
    %v5185 = vunpack.c.l.b16 %v4678
    %v5186 = vunpack.c.h.b16 %v4678
    %v5187 = vunpack.c.l.b16 %v4679
    %v5188 = vunpack.c.h.b16 %v4679
    %v5189 = vunpack.c.l.b16 %v4680
    %v5190 = vunpack.c.h.b16 %v4680
    %v5191 = vunpack.c.l.b16 %v4681
    %v5192 = vunpack.c.h.b16 %v4681
    %v5193 = vunpack.c.l.b16 %v4682
    %v5194 = vunpack.c.h.b16 %v4682
    %v5195 = vunpack.c.l.b16 %v4683
    %v5196 = vunpack.c.h.b16 %v4683
    %v5197 = vunpack.c.l.b16 %v4684
    %v5198 = vunpack.c.h.b16 %v4684
    %v5199 = vunpack.c.l.b16 %v4685
    %v5200 = vunpack.c.h.b16 %v4685
    %v5201 = vunpack.c.l.b16 %v4686
    %v5202 = vunpack.c.h.b16 %v4686
    %v5203 = vunpack.c.l.b16 %v4687
    %v5204 = vunpack.c.h.b16 %v4687
    %v5205 = vunpack.c.l.b16 %v4688
    %v5206 = vunpack.c.h.b16 %v4688
    %v5207 = vunpack.c.l.b16 %v4689
    %v5208 = vunpack.c.h.b16 %v4689
    %v5209 = vunpack.c.l.b16 %v4690
    %v5210 = vunpack.c.h.b16 %v4690
    %v5211 = vunpack.c.l.b16 %v4691
    %v5212 = vunpack.c.h.b16 %v4691
    %v5213 = vunpack.c.l.b16 %v4692
    %v5214 = vunpack.c.h.b16 %v4692
    %v5215 = vunpack.c.l.b16 %v4693
    %v5216 = vunpack.c.h.b16 %v4693
    %v5217 = vunpack.c.l.b16 %v4694
    %v5218 = vunpack.c.h.b16 %v4694
    %v5219 = vunpack.c.l.b16 %v4695
    %v5220 = vunpack.c.h.b16 %v4695
    %v5221 = vunpack.c.l.b16 %v4696
    %v5222 = vunpack.c.h.b16 %v4696
    %v5223 = vunpack.c.l.b16 %v4697
    %v5224 = vunpack.c.h.b16 %v4697
    %v5225 = vunpack.c.l.b16 %v4698
    %v5226 = vunpack.c.h.b16 %v4698
    %v5227 = vunpack.c.l.b16 %v4699
    %v5228 = vunpack.c.h.b16 %v4699
    %v5229 = vunpack.c.l.b16 %v4700
    %v5230 = vunpack.c.h.b16 %v4700
    %v5231 = vunpack.c.l.b16 %v4701
    %v5232 = vunpack.c.h.b16 %v4701
    %v5233 = vunpack.c.l.b16 %v4702
    %v5234 = vunpack.c.h.b16 %v4702
    %v5235 = vunpack.c.l.b16 %v4703
    %v5236 = vunpack.c.h.b16 %v4703
    %v5237 = vunpack.c.l.b16 %v4704
    %v5238 = vunpack.c.h.b16 %v4704
    %v5239 = vunpack.c.l.b16 %v4705
    %v5240 = vunpack.c.h.b16 %v4705
    %v5241 = vunpack.c.l.b16 %v4706
    %v5242 = vunpack.c.h.b16 %v4706
    %v5243 = vunpack.c.l.b16 %v4707
    %v5244 = vunpack.c.h.b16 %v4707
    %v5245 = vunpack.c.l.b16 %v4708
    %v5246 = vunpack.c.h.b16 %v4708
    %v5247 = vunpack.c.l.b16 %v4709
    %v5248 = vunpack.c.h.b16 %v4709
    %v5249 = vunpack.c.l.b16 %v4710
    %v5250 = vunpack.c.h.b16 %v4710
    %v5251 = vunpack.c.l.b16 %v4711
    %v5252 = vunpack.c.h.b16 %v4711
    %v5253 = vunpack.c.l.b16 %v4712
    %v5254 = vunpack.c.h.b16 %v4712
    %v5255 = vunpack.c.l.b16 %v4713
    %v5256 = vunpack.c.h.b16 %v4713
    %v5257 = vunpack.c.l.b16 %v4714
    %v5258 = vunpack.c.h.b16 %v4714
    %v5259 = vunpack.c.l.b16 %v4715
    %v5260 = vunpack.c.h.b16 %v4715
    %v5261 = vunpack.c.l.b16 %v4716
    %v5262 = vunpack.c.h.b16 %v4716
    %v5263 = vunpack.c.l.b16 %v4717
    %v5264 = vunpack.c.h.b16 %v4717
    %v5265 = vunpack.c.l.b16 %v4718
    %v5266 = vunpack.c.h.b16 %v4718
    %v5267 = vunpack.c.l.b16 %v4719
    %v5268 = vunpack.c.h.b16 %v4719
    %v5269 = vunpack.c.l.b16 %v4720
    %v5270 = vunpack.c.h.b16 %v4720
    %v5271 = vunpack.c.l.b16 %v4721
    %v5272 = vunpack.c.h.b16 %v4721
    %v5273 = vunpack.c.l.b16 %v4722
    %v5274 = vunpack.c.h.b16 %v4722
    %v5275 = vunpack.c.l.b16 %v4723
    %v5276 = vunpack.c.h.b16 %v4723
    %v5277 = vunpack.c.l.b16 %v4724
    %v5278 = vunpack.c.h.b16 %v4724
    %v5279 = vunpack.c.l.b16 %v4725
    %v5280 = vunpack.c.h.b16 %v4725
    %v5281 = vunpack.c.l.b16 %v4726
    %v5282 = vunpack.c.h.b16 %v4726
    %v5283 = vunpack.c.l.b16 %v4727
    %v5284 = vunpack.c.h.b16 %v4727
    %v5285 = vunpack.c.l.b16 %v4728
    %v5286 = vunpack.c.h.b16 %v4728
    %v5287 = vunpack.c.l.b16 %v4729
    %v5288 = vunpack.c.h.b16 %v4729
    %v5289 = vunpack.c.l.b16 %v4730
    %v5290 = vunpack.c.h.b16 %v4730
    %v5291 = vunpack.c.l.b16 %v4731
    %v5292 = vunpack.c.h.b16 %v4731
    %v5293 = vunpack.c.l.b16 %v4732
    %v5294 = vunpack.c.h.b16 %v4732
    %v5295 = vunpack.c.l.b16 %v4733
    %v5296 = vunpack.c.h.b16 %v4733
    %v5297 = vunpack.c.l.b16 %v4734
    %v5298 = vunpack.c.h.b16 %v4734
    %v5299 = vunpack.c.l.b16 %v4735
    %v5300 = vunpack.c.h.b16 %v4735
    %v5301 = vunpack.c.l.b16 %v4736
    %v5302 = vunpack.c.h.b16 %v4736
    %v5303 = vunpack.c.l.b16 %v4737
    %v5304 = vunpack.c.h.b16 %v4737
    %v5305 = vunpack.c.l.b16 %v4738
    %v5306 = vunpack.c.h.b16 %v4738
    %v5307 = vunpack.c.l.b16 %v4739
    %v5308 = vunpack.c.h.b16 %v4739
    %v5309 = vunpack.c.l.b16 %v4740
    %v5310 = vunpack.c.h.b16 %v4740
    %v5311 = vunpack.c.l.b16 %v4741
    %v5312 = vunpack.c.h.b16 %v4741
    %v5313 = vunpack.c.l.b16 %v4742
    %v5314 = vunpack.c.h.b16 %v4742
    %v5315 = vunpack.c.l.b16 %v4743
    %v5316 = vunpack.c.h.b16 %v4743
    %v5317 = vunpack.c.l.b16 %v4744
    %v5318 = vunpack.c.h.b16 %v4744
    %v5319 = vunpack.c.l.b16 %v4745
    %v5320 = vunpack.c.h.b16 %v4745
    %v5321 = vunpack.c.l.b16 %v4746
    %v5322 = vunpack.c.h.b16 %v4746
    %v5323 = vunpack.c.l.b16 %v4747
    %v5324 = vunpack.c.h.b16 %v4747
    %v5325 = vunpack.c.l.b16 %v4748
    %v5326 = vunpack.c.h.b16 %v4748
    %v5327 = vunpack.c.l.b16 %v4749
    %v5328 = vunpack.c.h.b16 %v4749
    %v5329 = vunpack.c.l.b16 %v4750
    %v5330 = vunpack.c.h.b16 %v4750
    %v5331 = vunpack.c.l.b16 %v4751
    %v5332 = vunpack.c.h.b16 %v4751
    %v5333 = vunpack.c.l.b16 %v4752
    %v5334 = vunpack.c.h.b16 %v4752
    %v5335 = vunpack.c.l.b16 %v4753
    %v5336 = vunpack.c.h.b16 %v4753
    %v5337 = vunpack.c.l.b16 %v4754
    %v5338 = vunpack.c.h.b16 %v4754
    %v5339 = vunpack.c.l.b16 %v4755
    %v5340 = vunpack.c.h.b16 %v4755
    %v5341 = vunpack.c.l.b16 %v4756
    %v5342 = vunpack.c.h.b16 %v4756
    %v5343 = vunpack.c.l.b16 %v4757
    %v5344 = vunpack.c.h.b16 %v4757
    %v5345 = vunpack.c.l.b16 %v4758
    %v5346 = vunpack.c.h.b16 %v4758
    %v5347 = vunpack.c.l.b16 %v4759
    %v5348 = vunpack.c.h.b16 %v4759
    %v5349 = vunpack.c.l.b16 %v4760
    %v5350 = vunpack.c.h.b16 %v4760
    %v5351 = vunpack.c.l.b16 %v4761
    %v5352 = vunpack.c.h.b16 %v4761
    %v5353 = vunpack.c.l.b16 %v4762
    %v5354 = vunpack.c.h.b16 %v4762
    %v5355 = vunpack.c.l.b16 %v4763
    %v5356 = vunpack.c.h.b16 %v4763
    %v5357 = vunpack.c.l.b16 %v4764
    %v5358 = vunpack.c.h.b16 %v4764
    %v5359 = vunpack.c.l.b16 %v4765
    %v5360 = vunpack.c.h.b16 %v4765
    %v5361 = vunpack.c.l.b16 %v4766
    %v5362 = vunpack.c.h.b16 %v4766
    %v5363 = vunpack.c.l.b16 %v4767
    %v5364 = vunpack.c.h.b16 %v4767
    %v5365 = vunpack.c.l.b16 %v4768
    %v5366 = vunpack.c.h.b16 %v4768
    %v5367 = vunpack.c.l.b16 %v4769
    %v5368 = vunpack.c.h.b16 %v4769
    %v5369 = vunpack.c.l.b16 %v4770
    %v5370 = vunpack.c.h.b16 %v4770
    %v5371 = vunpack.c.l.b16 %v4771
    %v5372 = vunpack.c.h.b16 %v4771
    %v5373 = vunpack.c.l.b16 %v4772
    %v5374 = vunpack.c.h.b16 %v4772
    %v5375 = vunpack.c.l.b16 %v4773
    %v5376 = vunpack.c.h.b16 %v4773
    %v5377 = vunpack.c.l.b16 %v4774
    %v5378 = vunpack.c.h.b16 %v4774
    %v5379 = vunpack.c.l.b16 %v4775
    %v5380 = vunpack.c.h.b16 %v4775
    %v5381 = vunpack.c.l.b16 %v4776
    %v5382 = vunpack.c.h.b16 %v4776
    %v5383 = vunpack.c.l.b16 %v4777
    %v5384 = vunpack.c.h.b16 %v4777
    %v5385 = vunpack.c.l.b16 %v4778
    %v5386 = vunpack.c.h.b16 %v4778
    %v5387 = vunpack.c.l.b16 %v4779
    %v5388 = vunpack.c.h.b16 %v4779
    %v5389 = vunpack.c.l.b16 %v4780
    %v5390 = vunpack.c.h.b16 %v4780
    %v5391 = vunpack.c.l.b16 %v4781
    %v5392 = vunpack.c.h.b16 %v4781
    %v5393 = vunpack.c.l.b16 %v4782
    %v5394 = vunpack.c.h.b16 %v4782
    %v5395 = vunpack.c.l.b16 %v4783
    %v5396 = vunpack.c.h.b16 %v4783
    %v5397 = vunpack.c.l.b16 %v4784
    %v5398 = vunpack.c.h.b16 %v4784
    %v5399 = vunpack.c.l.b16 %v4785
    %v5400 = vunpack.c.h.b16 %v4785
    %v5401 = vunpack.c.l.b16 %v4786
    %v5402 = vunpack.c.h.b16 %v4786
    %v5403 = vunpack.c.l.b16 %v4787
    %v5404 = vunpack.c.h.b16 %v4787
    %v5405 = vunpack.c.l.b16 %v4788
    %v5406 = vunpack.c.h.b16 %v4788
    %v5407 = vpack.c.b16 %v5015, %v5007
    %v5408 = vpack.c.b16 %v5016, %v5008
    %v5409 = vpack.c.b16 %v5017, %v5009
    %v5410 = vpack.c.b16 %v5018, %v5010
    %v5411 = vpack.c.b16 %v5019, %v5011
    %v5412 = vpack.c.b16 %v5020, %v5012
    %v5413 = vpack.c.b16 %v5021, %v5013
    %v5414 = vpack.c.b16 %v5022, %v5014
    %v5415 = vpack.c.b16 %v5031, %v5023
    %v5416 = vpack.c.b16 %v5032, %v5024
    %v5417 = vpack.c.b16 %v5033, %v5025
    %v5418 = vpack.c.b16 %v5034, %v5026
    %v5419 = vpack.c.b16 %v5035, %v5027
    %v5420 = vpack.c.b16 %v5036, %v5028
    %v5421 = vpack.c.b16 %v5037, %v5029
    %v5422 = vpack.c.b16 %v5038, %v5030
    %v5423 = vpack.c.b16 %v5047, %v5039
    %v5424 = vpack.c.b16 %v5048, %v5040
    %v5425 = vpack.c.b16 %v5049, %v5041
    %v5426 = vpack.c.b16 %v5050, %v5042
    %v5427 = vpack.c.b16 %v5051, %v5043
    %v5428 = vpack.c.b16 %v5052, %v5044
    %v5429 = vpack.c.b16 %v5053, %v5045
    %v5430 = vpack.c.b16 %v5054, %v5046
    %v5431 = vpack.c.b16 %v5063, %v5055
    %v5432 = vpack.c.b16 %v5064, %v5056
    %v5433 = vpack.c.b16 %v5065, %v5057
    %v5434 = vpack.c.b16 %v5066, %v5058
    %v5435 = vpack.c.b16 %v5067, %v5059
    %v5436 = vpack.c.b16 %v5068, %v5060
    %v5437 = vpack.c.b16 %v5069, %v5061
    %v5438 = vpack.c.b16 %v5070, %v5062
    %v5439 = vpack.c.b16 %v5079, %v5071
    %v5440 = vpack.c.b16 %v5080, %v5072
    %v5441 = vpack.c.b16 %v5081, %v5073
    %v5442 = vpack.c.b16 %v5082, %v5074
    %v5443 = vpack.c.b16 %v5083, %v5075
    %v5444 = vpack.c.b16 %v5084, %v5076
    %v5445 = vpack.c.b16 %v5085, %v5077
    %v5446 = vpack.c.b16 %v5086, %v5078
    %v5447 = vpack.c.b16 %v5095, %v5087
    %v5448 = vpack.c.b16 %v5096, %v5088
    %v5449 = vpack.c.b16 %v5097, %v5089
    %v5450 = vpack.c.b16 %v5098, %v5090
    %v5451 = vpack.c.b16 %v5099, %v5091
    %v5452 = vpack.c.b16 %v5100, %v5092
    %v5453 = vpack.c.b16 %v5101, %v5093
    %v5454 = vpack.c.b16 %v5102, %v5094
    %v5455 = vpack.c.b16 %v5111, %v5103
    %v5456 = vpack.c.b16 %v5112, %v5104
    %v5457 = vpack.c.b16 %v5113, %v5105
    %v5458 = vpack.c.b16 %v5114, %v5106
    %v5459 = vpack.c.b16 %v5115, %v5107
    %v5460 = vpack.c.b16 %v5116, %v5108
    %v5461 = vpack.c.b16 %v5117, %v5109
    %v5462 = vpack.c.b16 %v5118, %v5110
    %v5463 = vpack.c.b16 %v5127, %v5119
    %v5464 = vpack.c.b16 %v5128, %v5120
    %v5465 = vpack.c.b16 %v5129, %v5121
    %v5466 = vpack.c.b16 %v5130, %v5122
    %v5467 = vpack.c.b16 %v5131, %v5123
    %v5468 = vpack.c.b16 %v5132, %v5124
    %v5469 = vpack.c.b16 %v5133, %v5125
    %v5470 = vpack.c.b16 %v5134, %v5126
    %v5471 = vpack.c.b16 %v5143, %v5135
    %v5472 = vpack.c.b16 %v5144, %v5136
    %v5473 = vpack.c.b16 %v5145, %v5137
    %v5474 = vpack.c.b16 %v5146, %v5138
    %v5475 = vpack.c.b16 %v5147, %v5139
    %v5476 = vpack.c.b16 %v5148, %v5140
    %v5477 = vpack.c.b16 %v5149, %v5141
    %v5478 = vpack.c.b16 %v5150, %v5142
    %v5479 = vpack.c.b16 %v5159, %v5151
    %v5480 = vpack.c.b16 %v5160, %v5152
    %v5481 = vpack.c.b16 %v5161, %v5153
    %v5482 = vpack.c.b16 %v5162, %v5154
    %v5483 = vpack.c.b16 %v5163, %v5155
    %v5484 = vpack.c.b16 %v5164, %v5156
    %v5485 = vpack.c.b16 %v5165, %v5157
    %v5486 = vpack.c.b16 %v5166, %v5158
    %v5487 = vpack.c.b16 %v5175, %v5167
    %v5488 = vpack.c.b16 %v5176, %v5168
    %v5489 = vpack.c.b16 %v5177, %v5169
    %v5490 = vpack.c.b16 %v5178, %v5170
    %v5491 = vpack.c.b16 %v5179, %v5171
    %v5492 = vpack.c.b16 %v5180, %v5172
    %v5493 = vpack.c.b16 %v5181, %v5173
    %v5494 = vpack.c.b16 %v5182, %v5174
    %v5495 = vpack.c.b16 %v5191, %v5183
    %v5496 = vpack.c.b16 %v5192, %v5184
    %v5497 = vpack.c.b16 %v5193, %v5185
    %v5498 = vpack.c.b16 %v5194, %v5186
    %v5499 = vpack.c.b16 %v5195, %v5187
    %v5500 = vpack.c.b16 %v5196, %v5188
    %v5501 = vpack.c.b16 %v5197, %v5189
    %v5502 = vpack.c.b16 %v5198, %v5190
    %v5503 = vpack.c.b16 %v5207, %v5199
    %v5504 = vpack.c.b16 %v5208, %v5200
    %v5505 = vpack.c.b16 %v5209, %v5201
    %v5506 = vpack.c.b16 %v5210, %v5202
    %v5507 = vpack.c.b16 %v5211, %v5203
    %v5508 = vpack.c.b16 %v5212, %v5204
    %v5509 = vpack.c.b16 %v5213, %v5205
    %v5510 = vpack.c.b16 %v5214, %v5206
    %v5511 = vpack.c.b16 %v5223, %v5215
    %v5512 = vpack.c.b16 %v5224, %v5216
    %v5513 = vpack.c.b16 %v5225, %v5217
    %v5514 = vpack.c.b16 %v5226, %v5218
    %v5515 = vpack.c.b16 %v5227, %v5219
    %v5516 = vpack.c.b16 %v5228, %v5220
    %v5517 = vpack.c.b16 %v5229, %v5221
    %v5518 = vpack.c.b16 %v5230, %v5222
    %v5519 = vpack.c.b16 %v5239, %v5231
    %v5520 = vpack.c.b16 %v5240, %v5232
    %v5521 = vpack.c.b16 %v5241, %v5233
    %v5522 = vpack.c.b16 %v5242, %v5234
    %v5523 = vpack.c.b16 %v5243, %v5235
    %v5524 = vpack.c.b16 %v5244, %v5236
    %v5525 = vpack.c.b16 %v5245, %v5237
    %v5526 = vpack.c.b16 %v5246, %v5238
    %v5527 = vpack.c.b16 %v5255, %v5247
    %v5528 = vpack.c.b16 %v5256, %v5248
    %v5529 = vpack.c.b16 %v5257, %v5249
    %v5530 = vpack.c.b16 %v5258, %v5250
    %v5531 = vpack.c.b16 %v5259, %v5251
    %v5532 = vpack.c.b16 %v5260, %v5252
    %v5533 = vpack.c.b16 %v5261, %v5253
    %v5534 = vpack.c.b16 %v5262, %v5254
    %v5535 = vpack.c.b16 %v5271, %v5263
    %v5536 = vpack.c.b16 %v5272, %v5264
    %v5537 = vpack.c.b16 %v5273, %v5265
    %v5538 = vpack.c.b16 %v5274, %v5266
    %v5539 = vpack.c.b16 %v5275, %v5267
    %v5540 = vpack.c.b16 %v5276, %v5268
    %v5541 = vpack.c.b16 %v5277, %v5269
    %v5542 = vpack.c.b16 %v5278, %v5270
    %v5543 = vpack.c.b16 %v5287, %v5279
    %v5544 = vpack.c.b16 %v5288, %v5280
    %v5545 = vpack.c.b16 %v5289, %v5281
    %v5546 = vpack.c.b16 %v5290, %v5282
    %v5547 = vpack.c.b16 %v5291, %v5283
    %v5548 = vpack.c.b16 %v5292, %v5284
    %v5549 = vpack.c.b16 %v5293, %v5285
    %v5550 = vpack.c.b16 %v5294, %v5286
    %v5551 = vpack.c.b16 %v5303, %v5295
    %v5552 = vpack.c.b16 %v5304, %v5296
    %v5553 = vpack.c.b16 %v5305, %v5297
    %v5554 = vpack.c.b16 %v5306, %v5298
    %v5555 = vpack.c.b16 %v5307, %v5299
    %v5556 = vpack.c.b16 %v5308, %v5300
    %v5557 = vpack.c.b16 %v5309, %v5301
    %v5558 = vpack.c.b16 %v5310, %v5302
    %v5559 = vpack.c.b16 %v5319, %v5311
    %v5560 = vpack.c.b16 %v5320, %v5312
    %v5561 = vpack.c.b16 %v5321, %v5313
    %v5562 = vpack.c.b16 %v5322, %v5314
    %v5563 = vpack.c.b16 %v5323, %v5315
    %v5564 = vpack.c.b16 %v5324, %v5316
    %v5565 = vpack.c.b16 %v5325, %v5317
    %v5566 = vpack.c.b16 %v5326, %v5318
    %v5567 = vpack.c.b16 %v5335, %v5327
    %v5568 = vpack.c.b16 %v5336, %v5328
    %v5569 = vpack.c.b16 %v5337, %v5329
    %v5570 = vpack.c.b16 %v5338, %v5330
    %v5571 = vpack.c.b16 %v5339, %v5331
    %v5572 = vpack.c.b16 %v5340, %v5332
    %v5573 = vpack.c.b16 %v5341, %v5333
    %v5574 = vpack.c.b16 %v5342, %v5334
    %v5575 = vpack.c.b16 %v5351, %v5343
    %v5576 = vpack.c.b16 %v5352, %v5344
    %v5577 = vpack.c.b16 %v5353, %v5345
    %v5578 = vpack.c.b16 %v5354, %v5346
    %v5579 = vpack.c.b16 %v5355, %v5347
    %v5580 = vpack.c.b16 %v5356, %v5348
    %v5581 = vpack.c.b16 %v5357, %v5349
    %v5582 = vpack.c.b16 %v5358, %v5350
    %v5583 = vpack.c.b16 %v5367, %v5359
    %v5584 = vpack.c.b16 %v5368, %v5360
    %v5585 = vpack.c.b16 %v5369, %v5361
    %v5586 = vpack.c.b16 %v5370, %v5362
    %v5587 = vpack.c.b16 %v5371, %v5363
    %v5588 = vpack.c.b16 %v5372, %v5364
    %v5589 = vpack.c.b16 %v5373, %v5365
    %v5590 = vpack.c.b16 %v5374, %v5366
    %v5591 = vpack.c.b16 %v5383, %v5375
    %v5592 = vpack.c.b16 %v5384, %v5376
    %v5593 = vpack.c.b16 %v5385, %v5377
    %v5594 = vpack.c.b16 %v5386, %v5378
    %v5595 = vpack.c.b16 %v5387, %v5379
    %v5596 = vpack.c.b16 %v5388, %v5380
    %v5597 = vpack.c.b16 %v5389, %v5381
    %v5598 = vpack.c.b16 %v5390, %v5382
    %v5599 = vpack.c.b16 %v5399, %v5391
    %v5600 = vpack.c.b16 %v5400, %v5392
    %v5601 = vpack.c.b16 %v5401, %v5393
    %v5602 = vpack.c.b16 %v5402, %v5394
    %v5603 = vpack.c.b16 %v5403, %v5395
    %v5604 = vpack.c.b16 %v5404, %v5396
    %v5605 = vpack.c.b16 %v5405, %v5397
    %v5606 = vpack.c.b16 %v5406, %v5398
    %v5808 = vsel %vm4349, %v4588, 0
    %5810 = vmatpush.bf16.msra.mxu0 %v5463
    %5811 = vmatpush.bf16.msra.mxu0 %v5455
    %5812 = vmatpush.bf16.msra.mxu0 %v5447
    %5813 = vmatpush.bf16.msra.mxu0 %v5439
    %5814 = vmatpush.bf16.msra.mxu0 %v5431
    %5815 = vmatpush.bf16.msra.mxu0 %v5423
    %5816 = vmatpush.bf16.msra.mxu0 %v5415
    %5817 = vmatpush.bf16.msra.mxu0 %v5407
    %5818 = vmatmul.bf16.gmra.mxu0 %v4585
    %v5819 = vpop.f32.mrf.mxu0
    %v5820 = vadd.f32 %v4791, %v5819
    %v5821 = vpop.f32.mrf.mxu0
    %v5822 = vadd.f32 %v4791, %v5821
    %5823 = vdwg.mxu0
    %5824 = vmatpush.bf16.msra.mxu0 %v5527
    %5825 = vmatpush.bf16.msra.mxu0 %v5519
    %5826 = vmatpush.bf16.msra.mxu0 %v5511
    %5827 = vmatpush.bf16.msra.mxu0 %v5503
    %5828 = vmatpush.bf16.msra.mxu0 %v5495
    %5829 = vmatpush.bf16.msra.mxu0 %v5487
    %5830 = vmatpush.bf16.msra.mxu0 %v5479
    %5831 = vmatpush.bf16.msra.mxu0 %v5471
    %5832 = vmatmul.bf16.gmra.mxu0 %v4586
    %v5833 = vpop.f32.mrf.mxu0
    %v5834 = vadd.f32 %v5820, %v5833
    %v5835 = vpop.f32.mrf.mxu0
    %v5836 = vadd.f32 %v5822, %v5835
    %5837 = vdwg.mxu0
    %5838 = vmatpush.bf16.msra.mxu0 %v5591
    %5839 = vmatpush.bf16.msra.mxu0 %v5583
    %5840 = vmatpush.bf16.msra.mxu0 %v5575
    %5841 = vmatpush.bf16.msra.mxu0 %v5567
    %5842 = vmatpush.bf16.msra.mxu0 %v5559
    %5843 = vmatpush.bf16.msra.mxu0 %v5551
    %5844 = vmatpush.bf16.msra.mxu0 %v5543
    %5845 = vmatpush.bf16.msra.mxu0 %v5535
    %5846 = vmatmul.bf16.gmra.mxu0 %v4587
    %v5847 = vpop.f32.mrf.mxu0
    %v5848 = vadd.f32 %v5834, %v5847
    %v5849 = vpop.f32.mrf.mxu0
    %v5850 = vadd.f32 %v5836, %v5849
    %5851 = vdwg.mxu0
    %5852 = vmatpush.bf16.msra.mxu0 0
    %5853 = vmatpush.bf16.msra.mxu0 0
    %5854 = vmatpush.bf16.msra.mxu0 0
    %5855 = vmatpush.bf16.msra.mxu0 0
    %5856 = vmatpush.bf16.msra.mxu0 0
    %5857 = vmatpush.bf16.msra.mxu0 0
    %5858 = vmatpush.bf16.msra.mxu0 0
    %5859 = vmatpush.bf16.msra.mxu0 %v5599
    %5860 = vmatmul.bf16.gmra.mxu0 %v5808
    %v5861 = vpop.f32.mrf.mxu0
    %v5862 = vadd.f32 %v5848, %v5861
    %v5863 = vpop.f32.mrf.mxu0
    %v5864 = vadd.f32 %v5850, %v5863
    %5865 = vdwg.mxu0
    %5866 = vmatpush.bf16.msra.mxu0 %v5464
    %5867 = vmatpush.bf16.msra.mxu0 %v5456
    %5868 = vmatpush.bf16.msra.mxu0 %v5448
    %5869 = vmatpush.bf16.msra.mxu0 %v5440
    %5870 = vmatpush.bf16.msra.mxu0 %v5432
    %5871 = vmatpush.bf16.msra.mxu0 %v5424
    %5872 = vmatpush.bf16.msra.mxu0 %v5416
    %5873 = vmatpush.bf16.msra.mxu0 %v5408
    %5874 = vmatmul.bf16.gmra.mxu0 %v4585
    %v5875 = vpop.f32.mrf.mxu0
    %v5876 = vadd.f32 %v4792, %v5875
    %v5877 = vpop.f32.mrf.mxu0
    %v5878 = vadd.f32 %v4792, %v5877
    %5879 = vdwg.mxu0
    %5880 = vmatpush.bf16.msra.mxu0 %v5528
    %5881 = vmatpush.bf16.msra.mxu0 %v5520
    %5882 = vmatpush.bf16.msra.mxu0 %v5512
    %5883 = vmatpush.bf16.msra.mxu0 %v5504
    %5884 = vmatpush.bf16.msra.mxu0 %v5496
    %5885 = vmatpush.bf16.msra.mxu0 %v5488
    %5886 = vmatpush.bf16.msra.mxu0 %v5480
    %5887 = vmatpush.bf16.msra.mxu0 %v5472
    %5888 = vmatmul.bf16.gmra.mxu0 %v4586
    %v5889 = vpop.f32.mrf.mxu0
    %v5890 = vadd.f32 %v5876, %v5889
    %v5891 = vpop.f32.mrf.mxu0
    %v5892 = vadd.f32 %v5878, %v5891
    %5893 = vdwg.mxu0
    %5894 = vmatpush.bf16.msra.mxu0 %v5592
    %5895 = vmatpush.bf16.msra.mxu0 %v5584
    %5896 = vmatpush.bf16.msra.mxu0 %v5576
    %5897 = vmatpush.bf16.msra.mxu0 %v5568
    %5898 = vmatpush.bf16.msra.mxu0 %v5560
    %5899 = vmatpush.bf16.msra.mxu0 %v5552
    %5900 = vmatpush.bf16.msra.mxu0 %v5544
    %5901 = vmatpush.bf16.msra.mxu0 %v5536
    %5902 = vmatmul.bf16.gmra.mxu0 %v4587
    %v5903 = vpop.f32.mrf.mxu0
    %v5904 = vadd.f32 %v5890, %v5903
    %v5905 = vpop.f32.mrf.mxu0
    %v5906 = vadd.f32 %v5892, %v5905
    %5907 = vdwg.mxu0
    %5908 = vmatpush.bf16.msra.mxu0 0
    %5909 = vmatpush.bf16.msra.mxu0 0
    %5910 = vmatpush.bf16.msra.mxu0 0
    %5911 = vmatpush.bf16.msra.mxu0 0
    %5912 = vmatpush.bf16.msra.mxu0 0
    %5913 = vmatpush.bf16.msra.mxu0 0
    %5914 = vmatpush.bf16.msra.mxu0 0
    %5915 = vmatpush.bf16.msra.mxu0 %v5600
    %5916 = vmatmul.bf16.gmra.mxu0 %v5808
    %v5917 = vpop.f32.mrf.mxu0
    %v5918 = vadd.f32 %v5904, %v5917
    %v5919 = vpop.f32.mrf.mxu0
    %v5920 = vadd.f32 %v5906, %v5919
    %5921 = vdwg.mxu0
    %5922 = vmatpush.bf16.msra.mxu0 %v5465
    %5923 = vmatpush.bf16.msra.mxu0 %v5457
    %5924 = vmatpush.bf16.msra.mxu0 %v5449
    %5925 = vmatpush.bf16.msra.mxu0 %v5441
    %5926 = vmatpush.bf16.msra.mxu0 %v5433
    %5927 = vmatpush.bf16.msra.mxu0 %v5425
    %5928 = vmatpush.bf16.msra.mxu0 %v5417
    %5929 = vmatpush.bf16.msra.mxu0 %v5409
    %5930 = vmatmul.bf16.gmra.mxu0 %v4585
    %v5931 = vpop.f32.mrf.mxu0
    %v5932 = vadd.f32 %v4793, %v5931
    %v5933 = vpop.f32.mrf.mxu0
    %v5934 = vadd.f32 %v4793, %v5933
    %5935 = vdwg.mxu0
    %5936 = vmatpush.bf16.msra.mxu0 %v5529
    %5937 = vmatpush.bf16.msra.mxu0 %v5521
    %5938 = vmatpush.bf16.msra.mxu0 %v5513
    %5939 = vmatpush.bf16.msra.mxu0 %v5505
    %5940 = vmatpush.bf16.msra.mxu0 %v5497
    %5941 = vmatpush.bf16.msra.mxu0 %v5489
    %5942 = vmatpush.bf16.msra.mxu0 %v5481
    %5943 = vmatpush.bf16.msra.mxu0 %v5473
    %5944 = vmatmul.bf16.gmra.mxu0 %v4586
    %v5945 = vpop.f32.mrf.mxu0
    %v5946 = vadd.f32 %v5932, %v5945
    %v5947 = vpop.f32.mrf.mxu0
    %v5948 = vadd.f32 %v5934, %v5947
    %5949 = vdwg.mxu0
    %5950 = vmatpush.bf16.msra.mxu0 %v5593
    %5951 = vmatpush.bf16.msra.mxu0 %v5585
    %5952 = vmatpush.bf16.msra.mxu0 %v5577
    %5953 = vmatpush.bf16.msra.mxu0 %v5569
    %5954 = vmatpush.bf16.msra.mxu0 %v5561
    %5955 = vmatpush.bf16.msra.mxu0 %v5553
    %5956 = vmatpush.bf16.msra.mxu0 %v5545
    %5957 = vmatpush.bf16.msra.mxu0 %v5537
    %5958 = vmatmul.bf16.gmra.mxu0 %v4587
    %v5959 = vpop.f32.mrf.mxu0
    %v5960 = vadd.f32 %v5946, %v5959
    %v5961 = vpop.f32.mrf.mxu0
    %v5962 = vadd.f32 %v5948, %v5961
    %5963 = vdwg.mxu0
    %5964 = vmatpush.bf16.msra.mxu0 0
    %5965 = vmatpush.bf16.msra.mxu0 0
    %5966 = vmatpush.bf16.msra.mxu0 0
    %5967 = vmatpush.bf16.msra.mxu0 0
    %5968 = vmatpush.bf16.msra.mxu0 0
    %5969 = vmatpush.bf16.msra.mxu0 0
    %5970 = vmatpush.bf16.msra.mxu0 0
    %5971 = vmatpush.bf16.msra.mxu0 %v5601
    %5972 = vmatmul.bf16.gmra.mxu0 %v5808
    %v5973 = vpop.f32.mrf.mxu0
    %v5974 = vadd.f32 %v5960, %v5973
    %v5975 = vpop.f32.mrf.mxu0
    %v5976 = vadd.f32 %v5962, %v5975
    %5977 = vdwg.mxu0
    %5978 = vmatpush.bf16.msra.mxu0 %v5466
    %5979 = vmatpush.bf16.msra.mxu0 %v5458
    %5980 = vmatpush.bf16.msra.mxu0 %v5450
    %5981 = vmatpush.bf16.msra.mxu0 %v5442
    %5982 = vmatpush.bf16.msra.mxu0 %v5434
    %5983 = vmatpush.bf16.msra.mxu0 %v5426
    %5984 = vmatpush.bf16.msra.mxu0 %v5418
    %5985 = vmatpush.bf16.msra.mxu0 %v5410
    %5986 = vmatmul.bf16.gmra.mxu0 %v4585
    %v5987 = vpop.f32.mrf.mxu0
    %v5988 = vadd.f32 %v4794, %v5987
    %v5989 = vpop.f32.mrf.mxu0
    %v5990 = vadd.f32 %v4794, %v5989
    %5991 = vdwg.mxu0
    %5992 = vmatpush.bf16.msra.mxu0 %v5530
    %5993 = vmatpush.bf16.msra.mxu0 %v5522
    %5994 = vmatpush.bf16.msra.mxu0 %v5514
    %5995 = vmatpush.bf16.msra.mxu0 %v5506
    %5996 = vmatpush.bf16.msra.mxu0 %v5498
    %5997 = vmatpush.bf16.msra.mxu0 %v5490
    %5998 = vmatpush.bf16.msra.mxu0 %v5482
    %5999 = vmatpush.bf16.msra.mxu0 %v5474
    %6000 = vmatmul.bf16.gmra.mxu0 %v4586
    %v6001 = vpop.f32.mrf.mxu0
    %v6002 = vadd.f32 %v5988, %v6001
    %v6003 = vpop.f32.mrf.mxu0
    %v6004 = vadd.f32 %v5990, %v6003
    %6005 = vdwg.mxu0
    %6006 = vmatpush.bf16.msra.mxu0 %v5594
    %6007 = vmatpush.bf16.msra.mxu0 %v5586
    %6008 = vmatpush.bf16.msra.mxu0 %v5578
    %6009 = vmatpush.bf16.msra.mxu0 %v5570
    %6010 = vmatpush.bf16.msra.mxu0 %v5562
    %6011 = vmatpush.bf16.msra.mxu0 %v5554
    %6012 = vmatpush.bf16.msra.mxu0 %v5546
    %6013 = vmatpush.bf16.msra.mxu0 %v5538
    %6014 = vmatmul.bf16.gmra.mxu0 %v4587
    %v6015 = vpop.f32.mrf.mxu0
    %v6016 = vadd.f32 %v6002, %v6015
    %v6017 = vpop.f32.mrf.mxu0
    %v6018 = vadd.f32 %v6004, %v6017
    %6019 = vdwg.mxu0
    %6020 = vmatpush.bf16.msra.mxu0 0
    %6021 = vmatpush.bf16.msra.mxu0 0
    %6022 = vmatpush.bf16.msra.mxu0 0
    %6023 = vmatpush.bf16.msra.mxu0 0
    %6024 = vmatpush.bf16.msra.mxu0 0
    %6025 = vmatpush.bf16.msra.mxu0 0
    %6026 = vmatpush.bf16.msra.mxu0 0
    %6027 = vmatpush.bf16.msra.mxu0 %v5602
    %6028 = vmatmul.bf16.gmra.mxu0 %v5808
    %v6029 = vpop.f32.mrf.mxu0
    %v6030 = vadd.f32 %v6016, %v6029
    %v6031 = vpop.f32.mrf.mxu0
    %v6032 = vadd.f32 %v6018, %v6031
    %6033 = vdwg.mxu0
    %6034 = vmatpush.bf16.msra.mxu0 %v5467
    %6035 = vmatpush.bf16.msra.mxu0 %v5459
    %6036 = vmatpush.bf16.msra.mxu0 %v5451
    %6037 = vmatpush.bf16.msra.mxu0 %v5443
    %6038 = vmatpush.bf16.msra.mxu0 %v5435
    %6039 = vmatpush.bf16.msra.mxu0 %v5427
    %6040 = vmatpush.bf16.msra.mxu0 %v5419
    %6041 = vmatpush.bf16.msra.mxu0 %v5411
    %6042 = vmatmul.bf16.gmra.mxu0 %v4585
    %v6043 = vpop.f32.mrf.mxu0
    %v6044 = vadd.f32 %v4795, %v6043
    %v6045 = vpop.f32.mrf.mxu0
    %v6046 = vadd.f32 %v4795, %v6045
    %6047 = vdwg.mxu0
    %6048 = vmatpush.bf16.msra.mxu0 %v5531
    %6049 = vmatpush.bf16.msra.mxu0 %v5523
    %6050 = vmatpush.bf16.msra.mxu0 %v5515
    %6051 = vmatpush.bf16.msra.mxu0 %v5507
    %6052 = vmatpush.bf16.msra.mxu0 %v5499
    %6053 = vmatpush.bf16.msra.mxu0 %v5491
    %6054 = vmatpush.bf16.msra.mxu0 %v5483
    %6055 = vmatpush.bf16.msra.mxu0 %v5475
    %6056 = vmatmul.bf16.gmra.mxu0 %v4586
    %v6057 = vpop.f32.mrf.mxu0
    %v6058 = vadd.f32 %v6044, %v6057
    %v6059 = vpop.f32.mrf.mxu0
    %v6060 = vadd.f32 %v6046, %v6059
    %6061 = vdwg.mxu0
    %6062 = vmatpush.bf16.msra.mxu0 %v5595
    %6063 = vmatpush.bf16.msra.mxu0 %v5587
    %6064 = vmatpush.bf16.msra.mxu0 %v5579
    %6065 = vmatpush.bf16.msra.mxu0 %v5571
    %6066 = vmatpush.bf16.msra.mxu0 %v5563
    %6067 = vmatpush.bf16.msra.mxu0 %v5555
    %6068 = vmatpush.bf16.msra.mxu0 %v5547
    %6069 = vmatpush.bf16.msra.mxu0 %v5539
    %6070 = vmatmul.bf16.gmra.mxu0 %v4587
    %v6071 = vpop.f32.mrf.mxu0
    %v6072 = vadd.f32 %v6058, %v6071
    %v6073 = vpop.f32.mrf.mxu0
    %v6074 = vadd.f32 %v6060, %v6073
    %6075 = vdwg.mxu0
    %6076 = vmatpush.bf16.msra.mxu0 0
    %6077 = vmatpush.bf16.msra.mxu0 0
    %6078 = vmatpush.bf16.msra.mxu0 0
    %6079 = vmatpush.bf16.msra.mxu0 0
    %6080 = vmatpush.bf16.msra.mxu0 0
    %6081 = vmatpush.bf16.msra.mxu0 0
    %6082 = vmatpush.bf16.msra.mxu0 0
    %6083 = vmatpush.bf16.msra.mxu0 %v5603
    %6084 = vmatmul.bf16.gmra.mxu0 %v5808
    %v6085 = vpop.f32.mrf.mxu0
    %v6086 = vadd.f32 %v6072, %v6085
    %v6087 = vpop.f32.mrf.mxu0
    %v6088 = vadd.f32 %v6074, %v6087
    %6089 = vdwg.mxu0
    %6090 = vmatpush.bf16.msra.mxu0 %v5468
    %6091 = vmatpush.bf16.msra.mxu0 %v5460
    %6092 = vmatpush.bf16.msra.mxu0 %v5452
    %6093 = vmatpush.bf16.msra.mxu0 %v5444
    %6094 = vmatpush.bf16.msra.mxu0 %v5436
    %6095 = vmatpush.bf16.msra.mxu0 %v5428
    %6096 = vmatpush.bf16.msra.mxu0 %v5420
    %6097 = vmatpush.bf16.msra.mxu0 %v5412
    %6098 = vmatmul.bf16.gmra.mxu0 %v4585
    %v6099 = vpop.f32.mrf.mxu0
    %v6100 = vadd.f32 %v4796, %v6099
    %v6101 = vpop.f32.mrf.mxu0
    %v6102 = vadd.f32 %v4796, %v6101
    %6103 = vdwg.mxu0
    %6104 = vmatpush.bf16.msra.mxu0 %v5532
    %6105 = vmatpush.bf16.msra.mxu0 %v5524
    %6106 = vmatpush.bf16.msra.mxu0 %v5516
    %6107 = vmatpush.bf16.msra.mxu0 %v5508
    %6108 = vmatpush.bf16.msra.mxu0 %v5500
    %6109 = vmatpush.bf16.msra.mxu0 %v5492
    %6110 = vmatpush.bf16.msra.mxu0 %v5484
    %6111 = vmatpush.bf16.msra.mxu0 %v5476
    %6112 = vmatmul.bf16.gmra.mxu0 %v4586
    %v6113 = vpop.f32.mrf.mxu0
    %v6114 = vadd.f32 %v6100, %v6113
    %v6115 = vpop.f32.mrf.mxu0
    %v6116 = vadd.f32 %v6102, %v6115
    %6117 = vdwg.mxu0
    %6118 = vmatpush.bf16.msra.mxu0 %v5596
    %6119 = vmatpush.bf16.msra.mxu0 %v5588
    %6120 = vmatpush.bf16.msra.mxu0 %v5580
    %6121 = vmatpush.bf16.msra.mxu0 %v5572
    %6122 = vmatpush.bf16.msra.mxu0 %v5564
    %6123 = vmatpush.bf16.msra.mxu0 %v5556
    %6124 = vmatpush.bf16.msra.mxu0 %v5548
    %6125 = vmatpush.bf16.msra.mxu0 %v5540
    %6126 = vmatmul.bf16.gmra.mxu0 %v4587
    %v6127 = vpop.f32.mrf.mxu0
    %v6128 = vadd.f32 %v6114, %v6127
    %v6129 = vpop.f32.mrf.mxu0
    %v6130 = vadd.f32 %v6116, %v6129
    %6131 = vdwg.mxu0
    %6132 = vmatpush.bf16.msra.mxu0 0
    %6133 = vmatpush.bf16.msra.mxu0 0
    %6134 = vmatpush.bf16.msra.mxu0 0
    %6135 = vmatpush.bf16.msra.mxu0 0
    %6136 = vmatpush.bf16.msra.mxu0 0
    %6137 = vmatpush.bf16.msra.mxu0 0
    %6138 = vmatpush.bf16.msra.mxu0 0
    %6139 = vmatpush.bf16.msra.mxu0 %v5604
    %6140 = vmatmul.bf16.gmra.mxu0 %v5808
    %v6141 = vpop.f32.mrf.mxu0
    %v6142 = vadd.f32 %v6128, %v6141
    %v6143 = vpop.f32.mrf.mxu0
    %v6144 = vadd.f32 %v6130, %v6143
    %6145 = vdwg.mxu0
    %6146 = vmatpush.bf16.msra.mxu0 %v5469
    %6147 = vmatpush.bf16.msra.mxu0 %v5461
    %6148 = vmatpush.bf16.msra.mxu0 %v5453
    %6149 = vmatpush.bf16.msra.mxu0 %v5445
    %6150 = vmatpush.bf16.msra.mxu0 %v5437
    %6151 = vmatpush.bf16.msra.mxu0 %v5429
    %6152 = vmatpush.bf16.msra.mxu0 %v5421
    %6153 = vmatpush.bf16.msra.mxu0 %v5413
    %6154 = vmatmul.bf16.gmra.mxu0 %v4585
    %v6155 = vpop.f32.mrf.mxu0
    %v6156 = vadd.f32 %v4797, %v6155
    %v6157 = vpop.f32.mrf.mxu0
    %v6158 = vadd.f32 %v4797, %v6157
    %6159 = vdwg.mxu0
    %6160 = vmatpush.bf16.msra.mxu0 %v5533
    %6161 = vmatpush.bf16.msra.mxu0 %v5525
    %6162 = vmatpush.bf16.msra.mxu0 %v5517
    %6163 = vmatpush.bf16.msra.mxu0 %v5509
    %6164 = vmatpush.bf16.msra.mxu0 %v5501
    %6165 = vmatpush.bf16.msra.mxu0 %v5493
    %6166 = vmatpush.bf16.msra.mxu0 %v5485
    %6167 = vmatpush.bf16.msra.mxu0 %v5477
    %6168 = vmatmul.bf16.gmra.mxu0 %v4586
    %v6169 = vpop.f32.mrf.mxu0
    %v6170 = vadd.f32 %v6156, %v6169
    %v6171 = vpop.f32.mrf.mxu0
    %v6172 = vadd.f32 %v6158, %v6171
    %6173 = vdwg.mxu0
    %6174 = vmatpush.bf16.msra.mxu0 %v5597
    %6175 = vmatpush.bf16.msra.mxu0 %v5589
    %6176 = vmatpush.bf16.msra.mxu0 %v5581
    %6177 = vmatpush.bf16.msra.mxu0 %v5573
    %6178 = vmatpush.bf16.msra.mxu0 %v5565
    %6179 = vmatpush.bf16.msra.mxu0 %v5557
    %6180 = vmatpush.bf16.msra.mxu0 %v5549
    %6181 = vmatpush.bf16.msra.mxu0 %v5541
    %6182 = vmatmul.bf16.gmra.mxu0 %v4587
    %v6183 = vpop.f32.mrf.mxu0
    %v6184 = vadd.f32 %v6170, %v6183
    %v6185 = vpop.f32.mrf.mxu0
    %v6186 = vadd.f32 %v6172, %v6185
    %6187 = vdwg.mxu0
    %6188 = vmatpush.bf16.msra.mxu0 0
    %6189 = vmatpush.bf16.msra.mxu0 0
    %6190 = vmatpush.bf16.msra.mxu0 0
    %6191 = vmatpush.bf16.msra.mxu0 0
    %6192 = vmatpush.bf16.msra.mxu0 0
    %6193 = vmatpush.bf16.msra.mxu0 0
    %6194 = vmatpush.bf16.msra.mxu0 0
    %6195 = vmatpush.bf16.msra.mxu0 %v5605
    %6196 = vmatmul.bf16.gmra.mxu0 %v5808
    %v6197 = vpop.f32.mrf.mxu0
    %v6198 = vadd.f32 %v6184, %v6197
    %v6199 = vpop.f32.mrf.mxu0
    %v6200 = vadd.f32 %v6186, %v6199
    %6201 = vdwg.mxu0
    %6202 = vmatpush.bf16.msra.mxu0 %v5470
    %6203 = vmatpush.bf16.msra.mxu0 %v5462
    %6204 = vmatpush.bf16.msra.mxu0 %v5454
    %6205 = vmatpush.bf16.msra.mxu0 %v5446
    %6206 = vmatpush.bf16.msra.mxu0 %v5438
    %6207 = vmatpush.bf16.msra.mxu0 %v5430
    %6208 = vmatpush.bf16.msra.mxu0 %v5422
    %6209 = vmatpush.bf16.msra.mxu0 %v5414
    %6210 = vmatmul.bf16.gmra.mxu0 %v4585
    %v6211 = vpop.f32.mrf.mxu0
    %v6212 = vadd.f32 %v4798, %v6211
    %v6213 = vpop.f32.mrf.mxu0
    %v6214 = vadd.f32 %v4798, %v6213
    %6215 = vdwg.mxu0
    %6216 = vmatpush.bf16.msra.mxu0 %v5534
    %6217 = vmatpush.bf16.msra.mxu0 %v5526
    %6218 = vmatpush.bf16.msra.mxu0 %v5518
    %6219 = vmatpush.bf16.msra.mxu0 %v5510
    %6220 = vmatpush.bf16.msra.mxu0 %v5502
    %6221 = vmatpush.bf16.msra.mxu0 %v5494
    %6222 = vmatpush.bf16.msra.mxu0 %v5486
    %6223 = vmatpush.bf16.msra.mxu0 %v5478
    %6224 = vmatmul.bf16.gmra.mxu0 %v4586
    %v6225 = vpop.f32.mrf.mxu0
    %v6226 = vadd.f32 %v6212, %v6225
    %v6227 = vpop.f32.mrf.mxu0
    %v6228 = vadd.f32 %v6214, %v6227
    %6229 = vdwg.mxu0
    %6230 = vmatpush.bf16.msra.mxu0 %v5598
    %6231 = vmatpush.bf16.msra.mxu0 %v5590
    %6232 = vmatpush.bf16.msra.mxu0 %v5582
    %6233 = vmatpush.bf16.msra.mxu0 %v5574
    %6234 = vmatpush.bf16.msra.mxu0 %v5566
    %6235 = vmatpush.bf16.msra.mxu0 %v5558
    %6236 = vmatpush.bf16.msra.mxu0 %v5550
    %6237 = vmatpush.bf16.msra.mxu0 %v5542
    %6238 = vmatmul.bf16.gmra.mxu0 %v4587
    %v6239 = vpop.f32.mrf.mxu0
    %v6240 = vadd.f32 %v6226, %v6239
    %v6241 = vpop.f32.mrf.mxu0
    %v6242 = vadd.f32 %v6228, %v6241
    %6243 = vdwg.mxu0
    %6244 = vmatpush.bf16.msra.mxu0 0
    %6245 = vmatpush.bf16.msra.mxu0 0
    %6246 = vmatpush.bf16.msra.mxu0 0
    %6247 = vmatpush.bf16.msra.mxu0 0
    %6248 = vmatpush.bf16.msra.mxu0 0
    %6249 = vmatpush.bf16.msra.mxu0 0
    %6250 = vmatpush.bf16.msra.mxu0 0
    %6251 = vmatpush.bf16.msra.mxu0 %v5606
    %6252 = vmatmul.bf16.gmra.mxu0 %v5808
    %v6253 = vpop.f32.mrf.mxu0
    %v6254 = vadd.f32 %v6240, %v6253
    %v6255 = vpop.f32.mrf.mxu0
    %v6256 = vadd.f32 %v6242, %v6255
    %6257 = vdwg.mxu0
    %v6258 = vld [vmem:[#allocation13] sm:$0xff]
    %v6259 = vld [vmem:[#allocation13 + $0x8] sm:$0xff]
    %v6260 = vld [vmem:[#allocation13 + $0x10] sm:$0xff]
    %v6261 = vld [vmem:[#allocation13 + $0x18] sm:$0xff]
    %v6262 = vld [vmem:[#allocation13 + $0x20] sm:$0xff]
    %v6263 = vld [vmem:[#allocation13 + $0x28] sm:$0xff]
    %v6264 = vld [vmem:[#allocation13 + $0x30] sm:$0xff]
    %v6265 = vld [vmem:[#allocation13 + $0x38] sm:$0xff]
    %v6266 = vld [vmem:[#allocation13 + $0x40] sm:$0xff]
    %v6267 = vld [vmem:[#allocation13 + $0x48] sm:$0xff]
    %v6268 = vld [vmem:[#allocation13 + $0x50] sm:$0xff]
    %v6269 = vld [vmem:[#allocation13 + $0x58] sm:$0xff]
    %v6270 = vld [vmem:[#allocation13 + $0x60] sm:$0xff]
    %v6271 = vld [vmem:[#allocation13 + $0x68] sm:$0xff]
    %v6272 = vld [vmem:[#allocation13 + $0x70] sm:$0xff]
    %v6273 = vld [vmem:[#allocation13 + $0x78] sm:$0xff]
    %v6274 = vld [vmem:[#allocation13 + $0x80] sm:$0xff]
    %v6275 = vld [vmem:[#allocation13 + $0x88] sm:$0xff]
    %v6276 = vld [vmem:[#allocation13 + $0x90] sm:$0xff]
    %v6277 = vld [vmem:[#allocation13 + $0x98] sm:$0xff]
    %v6278 = vld [vmem:[#allocation13 + $0xa0] sm:$0xff]
    %v6279 = vld [vmem:[#allocation13 + $0xa8] sm:$0xff]
    %v6280 = vld [vmem:[#allocation13 + $0xb0] sm:$0xff]
    %v6281 = vld [vmem:[#allocation13 + $0xb8] sm:$0xff]
    %v6282 = vld [vmem:[#allocation13 + $0xc0] sm:$0xff]
    %v6283 = vld [vmem:[#allocation13 + $0xc8] sm:$0xff]
    %v6284 = vld [vmem:[#allocation13 + $0xd0] sm:$0xff]
    %v6285 = vld [vmem:[#allocation13 + $0xd8] sm:$0xff]
    %v6286 = vld [vmem:[#allocation13 + $0xe0] sm:$0xff]
    %v6287 = vld [vmem:[#allocation13 + $0xe8] sm:$0xff]
    %v6288 = vld [vmem:[#allocation13 + $0xf0] sm:$0xff]
    %v6289 = vld [vmem:[#allocation13 + $0xf8] sm:$0xff]
    %v6290 = vld [vmem:[#allocation13 + $0x100] sm:$0xff]
    %v6291 = vld [vmem:[#allocation13 + $0x108] sm:$0xff]
    %v6292 = vld [vmem:[#allocation13 + $0x110] sm:$0xff]
    %v6293 = vld [vmem:[#allocation13 + $0x118] sm:$0xff]
    %v6294 = vld [vmem:[#allocation13 + $0x120] sm:$0xff]
    %v6295 = vld [vmem:[#allocation13 + $0x128] sm:$0xff]
    %v6296 = vld [vmem:[#allocation13 + $0x130] sm:$0xff]
    %v6297 = vld [vmem:[#allocation13 + $0x138] sm:$0xff]
    %v6298 = vld [vmem:[#allocation13 + $0x140] sm:$0xff]
    %v6299 = vld [vmem:[#allocation13 + $0x148] sm:$0xff]
    %v6300 = vld [vmem:[#allocation13 + $0x150] sm:$0xff]
    %v6301 = vld [vmem:[#allocation13 + $0x158] sm:$0xff]
    %v6302 = vld [vmem:[#allocation13 + $0x160] sm:$0xff]
    %v6303 = vld [vmem:[#allocation13 + $0x168] sm:$0xff]
    %v6304 = vld [vmem:[#allocation13 + $0x170] sm:$0xff]
    %v6305 = vld [vmem:[#allocation13 + $0x178] sm:$0xff]
    %v6306 = vld [vmem:[#allocation13 + $0x180] sm:$0xff]
    %v6307 = vld [vmem:[#allocation13 + $0x188] sm:$0xff]
    %v6308 = vld [vmem:[#allocation13 + $0x190] sm:$0xff]
    %v6309 = vld [vmem:[#allocation13 + $0x198] sm:$0xff]
    %v6310 = vld [vmem:[#allocation13 + $0x1a0] sm:$0xff]
    %v6311 = vld [vmem:[#allocation13 + $0x1a8] sm:$0xff]
    %v6312 = vld [vmem:[#allocation13 + $0x1b0] sm:$0xff]
    %v6313 = vld [vmem:[#allocation13 + $0x1b8] sm:$0xff]
    %v6314 = vld [vmem:[#allocation13 + $0x1c0] sm:$0xff]
    %v6315 = vld [vmem:[#allocation13 + $0x1c8] sm:$0xff]
    %v6316 = vld [vmem:[#allocation13 + $0x1d0] sm:$0xff]
    %v6317 = vld [vmem:[#allocation13 + $0x1d8] sm:$0xff]
    %v6318 = vld [vmem:[#allocation13 + $0x1e0] sm:$0xff]
    %v6319 = vld [vmem:[#allocation13 + $0x1e8] sm:$0xff]
    %v6320 = vld [vmem:[#allocation13 + $0x1f0] sm:$0xff]
    %v6321 = vld [vmem:[#allocation13 + $0x1f8] sm:$0xff]
    %v6322 = vld [vmem:[#allocation13 + $0x200] sm:$0xff]
    %v6323 = vld [vmem:[#allocation13 + $0x208] sm:$0xff]
    %v6324 = vld [vmem:[#allocation13 + $0x210] sm:$0xff]
    %v6325 = vld [vmem:[#allocation13 + $0x218] sm:$0xff]
    %v6326 = vld [vmem:[#allocation13 + $0x220] sm:$0xff]
    %v6327 = vld [vmem:[#allocation13 + $0x228] sm:$0xff]
    %v6328 = vld [vmem:[#allocation13 + $0x230] sm:$0xff]
    %v6329 = vld [vmem:[#allocation13 + $0x238] sm:$0xff]
    %v6330 = vld [vmem:[#allocation13 + $0x240] sm:$0xff]
    %v6331 = vld [vmem:[#allocation13 + $0x248] sm:$0xff]
    %v6332 = vld [vmem:[#allocation13 + $0x250] sm:$0xff]
    %v6333 = vld [vmem:[#allocation13 + $0x258] sm:$0xff]
    %v6334 = vld [vmem:[#allocation13 + $0x260] sm:$0xff]
    %v6335 = vld [vmem:[#allocation13 + $0x268] sm:$0xff]
    %v6336 = vld [vmem:[#allocation13 + $0x270] sm:$0xff]
    %v6337 = vld [vmem:[#allocation13 + $0x278] sm:$0xff]
    %v6338 = vld [vmem:[#allocation13 + $0x280] sm:$0xff]
    %v6339 = vld [vmem:[#allocation13 + $0x288] sm:$0xff]
    %v6340 = vld [vmem:[#allocation13 + $0x290] sm:$0xff]
    %v6341 = vld [vmem:[#allocation13 + $0x298] sm:$0xff]
    %v6342 = vld [vmem:[#allocation13 + $0x2a0] sm:$0xff]
    %v6343 = vld [vmem:[#allocation13 + $0x2a8] sm:$0xff]
    %v6344 = vld [vmem:[#allocation13 + $0x2b0] sm:$0xff]
    %v6345 = vld [vmem:[#allocation13 + $0x2b8] sm:$0xff]
    %v6346 = vld [vmem:[#allocation13 + $0x2c0] sm:$0xff]
    %v6347 = vld [vmem:[#allocation13 + $0x2c8] sm:$0xff]
    %v6348 = vld [vmem:[#allocation13 + $0x2d0] sm:$0xff]
    %v6349 = vld [vmem:[#allocation13 + $0x2d8] sm:$0xff]
    %v6350 = vld [vmem:[#allocation13 + $0x2e0] sm:$0xff]
    %v6351 = vld [vmem:[#allocation13 + $0x2e8] sm:$0xff]
    %v6352 = vld [vmem:[#allocation13 + $0x2f0] sm:$0xff]
    %v6353 = vld [vmem:[#allocation13 + $0x2f8] sm:$0xff]
    %v6354 = vld [vmem:[#allocation13 + $0x300] sm:$0xff]
    %v6355 = vld [vmem:[#allocation13 + $0x308] sm:$0xff]
    %v6356 = vld [vmem:[#allocation13 + $0x310] sm:$0xff]
    %v6357 = vld [vmem:[#allocation13 + $0x318] sm:$0xff]
    %v6358 = vld [vmem:[#allocation13 + $0x320] sm:$0xff]
    %v6359 = vld [vmem:[#allocation13 + $0x328] sm:$0xff]
    %v6360 = vld [vmem:[#allocation13 + $0x330] sm:$0xff]
    %v6361 = vld [vmem:[#allocation13 + $0x338] sm:$0xff]
    %v6362 = vld [vmem:[#allocation13 + $0x340] sm:$0xff]
    %v6363 = vld [vmem:[#allocation13 + $0x348] sm:$0xff]
    %v6364 = vld [vmem:[#allocation13 + $0x350] sm:$0xff]
    %v6365 = vld [vmem:[#allocation13 + $0x358] sm:$0xff]
    %v6366 = vld [vmem:[#allocation13 + $0x360] sm:$0xff]
    %v6367 = vld [vmem:[#allocation13 + $0x368] sm:$0xff]
    %v6368 = vld [vmem:[#allocation13 + $0x370] sm:$0xff]
    %v6369 = vld [vmem:[#allocation13 + $0x378] sm:$0xff]
    %v6370 = vld [vmem:[#allocation13 + $0x380] sm:$0xff]
    %v6371 = vld [vmem:[#allocation13 + $0x388] sm:$0xff]
    %v6372 = vld [vmem:[#allocation13 + $0x390] sm:$0xff]
    %v6373 = vld [vmem:[#allocation13 + $0x398] sm:$0xff]
    %v6374 = vld [vmem:[#allocation13 + $0x3a0] sm:$0xff]
    %v6375 = vld [vmem:[#allocation13 + $0x3a8] sm:$0xff]
    %v6376 = vld [vmem:[#allocation13 + $0x3b0] sm:$0xff]
    %v6377 = vld [vmem:[#allocation13 + $0x3b8] sm:$0xff]
    %v6378 = vld [vmem:[#allocation13 + $0x3c0] sm:$0xff]
    %v6379 = vld [vmem:[#allocation13 + $0x3c8] sm:$0xff]
    %v6380 = vld [vmem:[#allocation13 + $0x3d0] sm:$0xff]
    %v6381 = vld [vmem:[#allocation13 + $0x3d8] sm:$0xff]
    %v6382 = vld [vmem:[#allocation13 + $0x3e0] sm:$0xff]
    %v6383 = vld [vmem:[#allocation13 + $0x3e8] sm:$0xff]
    %v6384 = vld [vmem:[#allocation13 + $0x3f0] sm:$0xff]
    %v6385 = vld [vmem:[#allocation13 + $0x3f8] sm:$0xff]
    %v6386 = vld [vmem:[#allocation13 + $0x400] sm:$0xff]
    %v6387 = vld [vmem:[#allocation13 + $0x408] sm:$0xff]
    %v6388 = vld [vmem:[#allocation13 + $0x410] sm:$0xff]
    %v6389 = vld [vmem:[#allocation13 + $0x418] sm:$0xff]
    %v6390 = vld [vmem:[#allocation13 + $0x420] sm:$0xff]
    %v6391 = vld [vmem:[#allocation13 + $0x428] sm:$0xff]
    %v6392 = vld [vmem:[#allocation13 + $0x430] sm:$0xff]
    %v6393 = vld [vmem:[#allocation13 + $0x438] sm:$0xff]
    %v6394 = vld [vmem:[#allocation13 + $0x440] sm:$0xff]
    %v6395 = vld [vmem:[#allocation13 + $0x448] sm:$0xff]
    %v6396 = vld [vmem:[#allocation13 + $0x450] sm:$0xff]
    %v6397 = vld [vmem:[#allocation13 + $0x458] sm:$0xff]
    %v6398 = vld [vmem:[#allocation13 + $0x460] sm:$0xff]
    %v6399 = vld [vmem:[#allocation13 + $0x468] sm:$0xff]
    %v6400 = vld [vmem:[#allocation13 + $0x470] sm:$0xff]
    %v6401 = vld [vmem:[#allocation13 + $0x478] sm:$0xff]
    %v6402 = vld [vmem:[#allocation13 + $0x480] sm:$0xff]
    %v6403 = vld [vmem:[#allocation13 + $0x488] sm:$0xff]
    %v6404 = vld [vmem:[#allocation13 + $0x490] sm:$0xff]
    %v6405 = vld [vmem:[#allocation13 + $0x498] sm:$0xff]
    %v6406 = vld [vmem:[#allocation13 + $0x4a0] sm:$0xff]
    %v6407 = vld [vmem:[#allocation13 + $0x4a8] sm:$0xff]
    %v6408 = vld [vmem:[#allocation13 + $0x4b0] sm:$0xff]
    %v6409 = vld [vmem:[#allocation13 + $0x4b8] sm:$0xff]
    %v6410 = vld [vmem:[#allocation13 + $0x4c0] sm:$0xff]
    %v6411 = vld [vmem:[#allocation13 + $0x4c8] sm:$0xff]
    %v6412 = vld [vmem:[#allocation13 + $0x4d0] sm:$0xff]
    %v6413 = vld [vmem:[#allocation13 + $0x4d8] sm:$0xff]
    %v6414 = vld [vmem:[#allocation13 + $0x4e0] sm:$0xff]
    %v6415 = vld [vmem:[#allocation13 + $0x4e8] sm:$0xff]
    %v6416 = vld [vmem:[#allocation13 + $0x4f0] sm:$0xff]
    %v6417 = vld [vmem:[#allocation13 + $0x4f8] sm:$0xff]
    %v6418 = vld [vmem:[#allocation13 + $0x500] sm:$0xff]
    %v6419 = vld [vmem:[#allocation13 + $0x508] sm:$0xff]
    %v6420 = vld [vmem:[#allocation13 + $0x510] sm:$0xff]
    %v6421 = vld [vmem:[#allocation13 + $0x518] sm:$0xff]
    %v6422 = vld [vmem:[#allocation13 + $0x520] sm:$0xff]
    %v6423 = vld [vmem:[#allocation13 + $0x528] sm:$0xff]
    %v6424 = vld [vmem:[#allocation13 + $0x530] sm:$0xff]
    %v6425 = vld [vmem:[#allocation13 + $0x538] sm:$0xff]
    %v6426 = vld [vmem:[#allocation13 + $0x540] sm:$0xff]
    %v6427 = vld [vmem:[#allocation13 + $0x548] sm:$0xff]
    %v6428 = vld [vmem:[#allocation13 + $0x550] sm:$0xff]
    %v6429 = vld [vmem:[#allocation13 + $0x558] sm:$0xff]
    %v6430 = vld [vmem:[#allocation13 + $0x560] sm:$0xff]
    %v6431 = vld [vmem:[#allocation13 + $0x568] sm:$0xff]
    %v6432 = vld [vmem:[#allocation13 + $0x570] sm:$0xff]
    %v6433 = vld [vmem:[#allocation13 + $0x578] sm:$0xff]
    %v6434 = vld [vmem:[#allocation13 + $0x580] sm:$0xff]
    %v6435 = vld [vmem:[#allocation13 + $0x588] sm:$0xff]
    %v6436 = vld [vmem:[#allocation13 + $0x590] sm:$0xff]
    %v6437 = vld [vmem:[#allocation13 + $0x598] sm:$0xff]
    %v6438 = vld [vmem:[#allocation13 + $0x5a0] sm:$0xff]
    %v6439 = vld [vmem:[#allocation13 + $0x5a8] sm:$0xff]
    %v6440 = vld [vmem:[#allocation13 + $0x5b0] sm:$0xff]
    %v6441 = vld [vmem:[#allocation13 + $0x5b8] sm:$0xff]
    %v6442 = vld [vmem:[#allocation13 + $0x5c0] sm:$0xff]
    %v6443 = vld [vmem:[#allocation13 + $0x5c8] sm:$0xff]
    %v6444 = vld [vmem:[#allocation13 + $0x5d0] sm:$0xff]
    %v6445 = vld [vmem:[#allocation13 + $0x5d8] sm:$0xff]
    %v6446 = vld [vmem:[#allocation13 + $0x5e0] sm:$0xff]
    %v6447 = vld [vmem:[#allocation13 + $0x5e8] sm:$0xff]
    %v6448 = vld [vmem:[#allocation13 + $0x5f0] sm:$0xff]
    %v6449 = vld [vmem:[#allocation13 + $0x5f8] sm:$0xff]
    %v6450 = vld [vmem:[#allocation13 + $0x600] sm:$0xff]
    %v6451 = vld [vmem:[#allocation13 + $0x608] sm:$0xff]
    %v6452 = vld [vmem:[#allocation13 + $0x610] sm:$0xff]
    %v6453 = vld [vmem:[#allocation13 + $0x618] sm:$0xff]
    %v6454 = vld [vmem:[#allocation13 + $0x620] sm:$0xff]
    %v6455 = vld [vmem:[#allocation13 + $0x628] sm:$0xff]
    %v6456 = vld [vmem:[#allocation13 + $0x630] sm:$0xff]
    %v6457 = vld [vmem:[#allocation13 + $0x638] sm:$0xff]
    %v6458 = vld [vmem:[#allocation15] sm:$0xff]
    %v6460 = vperm.slane %v6458, 0
    %v6461 = vperm.slane %v6458, 1
    %v6462 = vperm.slane %v6458, 2
    %v6463 = vperm.slane %v6458, 3
    %v6464 = vperm.slane %v6458, 4
    %v6465 = vperm.slane %v6458, 5
    %v6466 = vperm.slane %v6458, 6
    %v6467 = vperm.slane %v6458, 7
    %v6676 = vunpack.c.l.b16 %v6258
    %v6677 = vunpack.c.h.b16 %v6258
    %v6678 = vunpack.c.l.b16 %v6259
    %v6679 = vunpack.c.h.b16 %v6259
    %v6680 = vunpack.c.l.b16 %v6260
    %v6681 = vunpack.c.h.b16 %v6260
    %v6682 = vunpack.c.l.b16 %v6261
    %v6683 = vunpack.c.h.b16 %v6261
    %v6684 = vunpack.c.l.b16 %v6262
    %v6685 = vunpack.c.h.b16 %v6262
    %v6686 = vunpack.c.l.b16 %v6263
    %v6687 = vunpack.c.h.b16 %v6263
    %v6688 = vunpack.c.l.b16 %v6264
    %v6689 = vunpack.c.h.b16 %v6264
    %v6690 = vunpack.c.l.b16 %v6265
    %v6691 = vunpack.c.h.b16 %v6265
    %v6692 = vunpack.c.l.b16 %v6266
    %v6693 = vunpack.c.h.b16 %v6266
    %v6694 = vunpack.c.l.b16 %v6267
    %v6695 = vunpack.c.h.b16 %v6267
    %v6696 = vunpack.c.l.b16 %v6268
    %v6697 = vunpack.c.h.b16 %v6268
    %v6698 = vunpack.c.l.b16 %v6269
    %v6699 = vunpack.c.h.b16 %v6269
    %v6700 = vunpack.c.l.b16 %v6270
    %v6701 = vunpack.c.h.b16 %v6270
    %v6702 = vunpack.c.l.b16 %v6271
    %v6703 = vunpack.c.h.b16 %v6271
    %v6704 = vunpack.c.l.b16 %v6272
    %v6705 = vunpack.c.h.b16 %v6272
    %v6706 = vunpack.c.l.b16 %v6273
    %v6707 = vunpack.c.h.b16 %v6273
    %v6708 = vunpack.c.l.b16 %v6274
    %v6709 = vunpack.c.h.b16 %v6274
    %v6710 = vunpack.c.l.b16 %v6275
    %v6711 = vunpack.c.h.b16 %v6275
    %v6712 = vunpack.c.l.b16 %v6276
    %v6713 = vunpack.c.h.b16 %v6276
    %v6714 = vunpack.c.l.b16 %v6277
    %v6715 = vunpack.c.h.b16 %v6277
    %v6716 = vunpack.c.l.b16 %v6278
    %v6717 = vunpack.c.h.b16 %v6278
    %v6718 = vunpack.c.l.b16 %v6279
    %v6719 = vunpack.c.h.b16 %v6279
    %v6720 = vunpack.c.l.b16 %v6280
    %v6721 = vunpack.c.h.b16 %v6280
    %v6722 = vunpack.c.l.b16 %v6281
    %v6723 = vunpack.c.h.b16 %v6281
    %v6724 = vunpack.c.l.b16 %v6282
    %v6725 = vunpack.c.h.b16 %v6282
    %v6726 = vunpack.c.l.b16 %v6283
    %v6727 = vunpack.c.h.b16 %v6283
    %v6728 = vunpack.c.l.b16 %v6284
    %v6729 = vunpack.c.h.b16 %v6284
    %v6730 = vunpack.c.l.b16 %v6285
    %v6731 = vunpack.c.h.b16 %v6285
    %v6732 = vunpack.c.l.b16 %v6286
    %v6733 = vunpack.c.h.b16 %v6286
    %v6734 = vunpack.c.l.b16 %v6287
    %v6735 = vunpack.c.h.b16 %v6287
    %v6736 = vunpack.c.l.b16 %v6288
    %v6737 = vunpack.c.h.b16 %v6288
    %v6738 = vunpack.c.l.b16 %v6289
    %v6739 = vunpack.c.h.b16 %v6289
    %v6740 = vunpack.c.l.b16 %v6290
    %v6741 = vunpack.c.h.b16 %v6290
    %v6742 = vunpack.c.l.b16 %v6291
    %v6743 = vunpack.c.h.b16 %v6291
    %v6744 = vunpack.c.l.b16 %v6292
    %v6745 = vunpack.c.h.b16 %v6292
    %v6746 = vunpack.c.l.b16 %v6293
    %v6747 = vunpack.c.h.b16 %v6293
    %v6748 = vunpack.c.l.b16 %v6294
    %v6749 = vunpack.c.h.b16 %v6294
    %v6750 = vunpack.c.l.b16 %v6295
    %v6751 = vunpack.c.h.b16 %v6295
    %v6752 = vunpack.c.l.b16 %v6296
    %v6753 = vunpack.c.h.b16 %v6296
    %v6754 = vunpack.c.l.b16 %v6297
    %v6755 = vunpack.c.h.b16 %v6297
    %v6756 = vunpack.c.l.b16 %v6298
    %v6757 = vunpack.c.h.b16 %v6298
    %v6758 = vunpack.c.l.b16 %v6299
    %v6759 = vunpack.c.h.b16 %v6299
    %v6760 = vunpack.c.l.b16 %v6300
    %v6761 = vunpack.c.h.b16 %v6300
    %v6762 = vunpack.c.l.b16 %v6301
    %v6763 = vunpack.c.h.b16 %v6301
    %v6764 = vunpack.c.l.b16 %v6302
    %v6765 = vunpack.c.h.b16 %v6302
    %v6766 = vunpack.c.l.b16 %v6303
    %v6767 = vunpack.c.h.b16 %v6303
    %v6768 = vunpack.c.l.b16 %v6304
    %v6769 = vunpack.c.h.b16 %v6304
    %v6770 = vunpack.c.l.b16 %v6305
    %v6771 = vunpack.c.h.b16 %v6305
    %v6772 = vunpack.c.l.b16 %v6306
    %v6773 = vunpack.c.h.b16 %v6306
    %v6774 = vunpack.c.l.b16 %v6307
    %v6775 = vunpack.c.h.b16 %v6307
    %v6776 = vunpack.c.l.b16 %v6308
    %v6777 = vunpack.c.h.b16 %v6308
    %v6778 = vunpack.c.l.b16 %v6309
    %v6779 = vunpack.c.h.b16 %v6309
    %v6780 = vunpack.c.l.b16 %v6310
    %v6781 = vunpack.c.h.b16 %v6310
    %v6782 = vunpack.c.l.b16 %v6311
    %v6783 = vunpack.c.h.b16 %v6311
    %v6784 = vunpack.c.l.b16 %v6312
    %v6785 = vunpack.c.h.b16 %v6312
    %v6786 = vunpack.c.l.b16 %v6313
    %v6787 = vunpack.c.h.b16 %v6313
    %v6788 = vunpack.c.l.b16 %v6314
    %v6789 = vunpack.c.h.b16 %v6314
    %v6790 = vunpack.c.l.b16 %v6315
    %v6791 = vunpack.c.h.b16 %v6315
    %v6792 = vunpack.c.l.b16 %v6316
    %v6793 = vunpack.c.h.b16 %v6316
    %v6794 = vunpack.c.l.b16 %v6317
    %v6795 = vunpack.c.h.b16 %v6317
    %v6796 = vunpack.c.l.b16 %v6318
    %v6797 = vunpack.c.h.b16 %v6318
    %v6798 = vunpack.c.l.b16 %v6319
    %v6799 = vunpack.c.h.b16 %v6319
    %v6800 = vunpack.c.l.b16 %v6320
    %v6801 = vunpack.c.h.b16 %v6320
    %v6802 = vunpack.c.l.b16 %v6321
    %v6803 = vunpack.c.h.b16 %v6321
    %v6804 = vunpack.c.l.b16 %v6322
    %v6805 = vunpack.c.h.b16 %v6322
    %v6806 = vunpack.c.l.b16 %v6323
    %v6807 = vunpack.c.h.b16 %v6323
    %v6808 = vunpack.c.l.b16 %v6324
    %v6809 = vunpack.c.h.b16 %v6324
    %v6810 = vunpack.c.l.b16 %v6325
    %v6811 = vunpack.c.h.b16 %v6325
    %v6812 = vunpack.c.l.b16 %v6326
    %v6813 = vunpack.c.h.b16 %v6326
    %v6814 = vunpack.c.l.b16 %v6327
    %v6815 = vunpack.c.h.b16 %v6327
    %v6816 = vunpack.c.l.b16 %v6328
    %v6817 = vunpack.c.h.b16 %v6328
    %v6818 = vunpack.c.l.b16 %v6329
    %v6819 = vunpack.c.h.b16 %v6329
    %v6820 = vunpack.c.l.b16 %v6330
    %v6821 = vunpack.c.h.b16 %v6330
    %v6822 = vunpack.c.l.b16 %v6331
    %v6823 = vunpack.c.h.b16 %v6331
    %v6824 = vunpack.c.l.b16 %v6332
    %v6825 = vunpack.c.h.b16 %v6332
    %v6826 = vunpack.c.l.b16 %v6333
    %v6827 = vunpack.c.h.b16 %v6333
    %v6828 = vunpack.c.l.b16 %v6334
    %v6829 = vunpack.c.h.b16 %v6334
    %v6830 = vunpack.c.l.b16 %v6335
    %v6831 = vunpack.c.h.b16 %v6335
    %v6832 = vunpack.c.l.b16 %v6336
    %v6833 = vunpack.c.h.b16 %v6336
    %v6834 = vunpack.c.l.b16 %v6337
    %v6835 = vunpack.c.h.b16 %v6337
    %v6836 = vunpack.c.l.b16 %v6338
    %v6837 = vunpack.c.h.b16 %v6338
    %v6838 = vunpack.c.l.b16 %v6339
    %v6839 = vunpack.c.h.b16 %v6339
    %v6840 = vunpack.c.l.b16 %v6340
    %v6841 = vunpack.c.h.b16 %v6340
    %v6842 = vunpack.c.l.b16 %v6341
    %v6843 = vunpack.c.h.b16 %v6341
    %v6844 = vunpack.c.l.b16 %v6342
    %v6845 = vunpack.c.h.b16 %v6342
    %v6846 = vunpack.c.l.b16 %v6343
    %v6847 = vunpack.c.h.b16 %v6343
    %v6848 = vunpack.c.l.b16 %v6344
    %v6849 = vunpack.c.h.b16 %v6344
    %v6850 = vunpack.c.l.b16 %v6345
    %v6851 = vunpack.c.h.b16 %v6345
    %v6852 = vunpack.c.l.b16 %v6346
    %v6853 = vunpack.c.h.b16 %v6346
    %v6854 = vunpack.c.l.b16 %v6347
    %v6855 = vunpack.c.h.b16 %v6347
    %v6856 = vunpack.c.l.b16 %v6348
    %v6857 = vunpack.c.h.b16 %v6348
    %v6858 = vunpack.c.l.b16 %v6349
    %v6859 = vunpack.c.h.b16 %v6349
    %v6860 = vunpack.c.l.b16 %v6350
    %v6861 = vunpack.c.h.b16 %v6350
    %v6862 = vunpack.c.l.b16 %v6351
    %v6863 = vunpack.c.h.b16 %v6351
    %v6864 = vunpack.c.l.b16 %v6352
    %v6865 = vunpack.c.h.b16 %v6352
    %v6866 = vunpack.c.l.b16 %v6353
    %v6867 = vunpack.c.h.b16 %v6353
    %v6868 = vunpack.c.l.b16 %v6354
    %v6869 = vunpack.c.h.b16 %v6354
    %v6870 = vunpack.c.l.b16 %v6355
    %v6871 = vunpack.c.h.b16 %v6355
    %v6872 = vunpack.c.l.b16 %v6356
    %v6873 = vunpack.c.h.b16 %v6356
    %v6874 = vunpack.c.l.b16 %v6357
    %v6875 = vunpack.c.h.b16 %v6357
    %v6876 = vunpack.c.l.b16 %v6358
    %v6877 = vunpack.c.h.b16 %v6358
    %v6878 = vunpack.c.l.b16 %v6359
    %v6879 = vunpack.c.h.b16 %v6359
    %v6880 = vunpack.c.l.b16 %v6360
    %v6881 = vunpack.c.h.b16 %v6360
    %v6882 = vunpack.c.l.b16 %v6361
    %v6883 = vunpack.c.h.b16 %v6361
    %v6884 = vunpack.c.l.b16 %v6362
    %v6885 = vunpack.c.h.b16 %v6362
    %v6886 = vunpack.c.l.b16 %v6363
    %v6887 = vunpack.c.h.b16 %v6363
    %v6888 = vunpack.c.l.b16 %v6364
    %v6889 = vunpack.c.h.b16 %v6364
    %v6890 = vunpack.c.l.b16 %v6365
    %v6891 = vunpack.c.h.b16 %v6365
    %v6892 = vunpack.c.l.b16 %v6366
    %v6893 = vunpack.c.h.b16 %v6366
    %v6894 = vunpack.c.l.b16 %v6367
    %v6895 = vunpack.c.h.b16 %v6367
    %v6896 = vunpack.c.l.b16 %v6368
    %v6897 = vunpack.c.h.b16 %v6368
    %v6898 = vunpack.c.l.b16 %v6369
    %v6899 = vunpack.c.h.b16 %v6369
    %v6900 = vunpack.c.l.b16 %v6370
    %v6901 = vunpack.c.h.b16 %v6370
    %v6902 = vunpack.c.l.b16 %v6371
    %v6903 = vunpack.c.h.b16 %v6371
    %v6904 = vunpack.c.l.b16 %v6372
    %v6905 = vunpack.c.h.b16 %v6372
    %v6906 = vunpack.c.l.b16 %v6373
    %v6907 = vunpack.c.h.b16 %v6373
    %v6908 = vunpack.c.l.b16 %v6374
    %v6909 = vunpack.c.h.b16 %v6374
    %v6910 = vunpack.c.l.b16 %v6375
    %v6911 = vunpack.c.h.b16 %v6375
    %v6912 = vunpack.c.l.b16 %v6376
    %v6913 = vunpack.c.h.b16 %v6376
    %v6914 = vunpack.c.l.b16 %v6377
    %v6915 = vunpack.c.h.b16 %v6377
    %v6916 = vunpack.c.l.b16 %v6378
    %v6917 = vunpack.c.h.b16 %v6378
    %v6918 = vunpack.c.l.b16 %v6379
    %v6919 = vunpack.c.h.b16 %v6379
    %v6920 = vunpack.c.l.b16 %v6380
    %v6921 = vunpack.c.h.b16 %v6380
    %v6922 = vunpack.c.l.b16 %v6381
    %v6923 = vunpack.c.h.b16 %v6381
    %v6924 = vunpack.c.l.b16 %v6382
    %v6925 = vunpack.c.h.b16 %v6382
    %v6926 = vunpack.c.l.b16 %v6383
    %v6927 = vunpack.c.h.b16 %v6383
    %v6928 = vunpack.c.l.b16 %v6384
    %v6929 = vunpack.c.h.b16 %v6384
    %v6930 = vunpack.c.l.b16 %v6385
    %v6931 = vunpack.c.h.b16 %v6385
    %v6932 = vunpack.c.l.b16 %v6386
    %v6933 = vunpack.c.h.b16 %v6386
    %v6934 = vunpack.c.l.b16 %v6387
    %v6935 = vunpack.c.h.b16 %v6387
    %v6936 = vunpack.c.l.b16 %v6388
    %v6937 = vunpack.c.h.b16 %v6388
    %v6938 = vunpack.c.l.b16 %v6389
    %v6939 = vunpack.c.h.b16 %v6389
    %v6940 = vunpack.c.l.b16 %v6390
    %v6941 = vunpack.c.h.b16 %v6390
    %v6942 = vunpack.c.l.b16 %v6391
    %v6943 = vunpack.c.h.b16 %v6391
    %v6944 = vunpack.c.l.b16 %v6392
    %v6945 = vunpack.c.h.b16 %v6392
    %v6946 = vunpack.c.l.b16 %v6393
    %v6947 = vunpack.c.h.b16 %v6393
    %v6948 = vunpack.c.l.b16 %v6394
    %v6949 = vunpack.c.h.b16 %v6394
    %v6950 = vunpack.c.l.b16 %v6395
    %v6951 = vunpack.c.h.b16 %v6395
    %v6952 = vunpack.c.l.b16 %v6396
    %v6953 = vunpack.c.h.b16 %v6396
    %v6954 = vunpack.c.l.b16 %v6397
    %v6955 = vunpack.c.h.b16 %v6397
    %v6956 = vunpack.c.l.b16 %v6398
    %v6957 = vunpack.c.h.b16 %v6398
    %v6958 = vunpack.c.l.b16 %v6399
    %v6959 = vunpack.c.h.b16 %v6399
    %v6960 = vunpack.c.l.b16 %v6400
    %v6961 = vunpack.c.h.b16 %v6400
    %v6962 = vunpack.c.l.b16 %v6401
    %v6963 = vunpack.c.h.b16 %v6401
    %v6964 = vunpack.c.l.b16 %v6402
    %v6965 = vunpack.c.h.b16 %v6402
    %v6966 = vunpack.c.l.b16 %v6403
    %v6967 = vunpack.c.h.b16 %v6403
    %v6968 = vunpack.c.l.b16 %v6404
    %v6969 = vunpack.c.h.b16 %v6404
    %v6970 = vunpack.c.l.b16 %v6405
    %v6971 = vunpack.c.h.b16 %v6405
    %v6972 = vunpack.c.l.b16 %v6406
    %v6973 = vunpack.c.h.b16 %v6406
    %v6974 = vunpack.c.l.b16 %v6407
    %v6975 = vunpack.c.h.b16 %v6407
    %v6976 = vunpack.c.l.b16 %v6408
    %v6977 = vunpack.c.h.b16 %v6408
    %v6978 = vunpack.c.l.b16 %v6409
    %v6979 = vunpack.c.h.b16 %v6409
    %v6980 = vunpack.c.l.b16 %v6410
    %v6981 = vunpack.c.h.b16 %v6410
    %v6982 = vunpack.c.l.b16 %v6411
    %v6983 = vunpack.c.h.b16 %v6411
    %v6984 = vunpack.c.l.b16 %v6412
    %v6985 = vunpack.c.h.b16 %v6412
    %v6986 = vunpack.c.l.b16 %v6413
    %v6987 = vunpack.c.h.b16 %v6413
    %v6988 = vunpack.c.l.b16 %v6414
    %v6989 = vunpack.c.h.b16 %v6414
    %v6990 = vunpack.c.l.b16 %v6415
    %v6991 = vunpack.c.h.b16 %v6415
    %v6992 = vunpack.c.l.b16 %v6416
    %v6993 = vunpack.c.h.b16 %v6416
    %v6994 = vunpack.c.l.b16 %v6417
    %v6995 = vunpack.c.h.b16 %v6417
    %v6996 = vunpack.c.l.b16 %v6418
    %v6997 = vunpack.c.h.b16 %v6418
    %v6998 = vunpack.c.l.b16 %v6419
    %v6999 = vunpack.c.h.b16 %v6419
    %v7000 = vunpack.c.l.b16 %v6420
    %v7001 = vunpack.c.h.b16 %v6420
    %v7002 = vunpack.c.l.b16 %v6421
    %v7003 = vunpack.c.h.b16 %v6421
    %v7004 = vunpack.c.l.b16 %v6422
    %v7005 = vunpack.c.h.b16 %v6422
    %v7006 = vunpack.c.l.b16 %v6423
    %v7007 = vunpack.c.h.b16 %v6423
    %v7008 = vunpack.c.l.b16 %v6424
    %v7009 = vunpack.c.h.b16 %v6424
    %v7010 = vunpack.c.l.b16 %v6425
    %v7011 = vunpack.c.h.b16 %v6425
    %v7012 = vunpack.c.l.b16 %v6426
    %v7013 = vunpack.c.h.b16 %v6426
    %v7014 = vunpack.c.l.b16 %v6427
    %v7015 = vunpack.c.h.b16 %v6427
    %v7016 = vunpack.c.l.b16 %v6428
    %v7017 = vunpack.c.h.b16 %v6428
    %v7018 = vunpack.c.l.b16 %v6429
    %v7019 = vunpack.c.h.b16 %v6429
    %v7020 = vunpack.c.l.b16 %v6430
    %v7021 = vunpack.c.h.b16 %v6430
    %v7022 = vunpack.c.l.b16 %v6431
    %v7023 = vunpack.c.h.b16 %v6431
    %v7024 = vunpack.c.l.b16 %v6432
    %v7025 = vunpack.c.h.b16 %v6432
    %v7026 = vunpack.c.l.b16 %v6433
    %v7027 = vunpack.c.h.b16 %v6433
    %v7028 = vunpack.c.l.b16 %v6434
    %v7029 = vunpack.c.h.b16 %v6434
    %v7030 = vunpack.c.l.b16 %v6435
    %v7031 = vunpack.c.h.b16 %v6435
    %v7032 = vunpack.c.l.b16 %v6436
    %v7033 = vunpack.c.h.b16 %v6436
    %v7034 = vunpack.c.l.b16 %v6437
    %v7035 = vunpack.c.h.b16 %v6437
    %v7036 = vunpack.c.l.b16 %v6438
    %v7037 = vunpack.c.h.b16 %v6438
    %v7038 = vunpack.c.l.b16 %v6439
    %v7039 = vunpack.c.h.b16 %v6439
    %v7040 = vunpack.c.l.b16 %v6440
    %v7041 = vunpack.c.h.b16 %v6440
    %v7042 = vunpack.c.l.b16 %v6441
    %v7043 = vunpack.c.h.b16 %v6441
    %v7044 = vunpack.c.l.b16 %v6442
    %v7045 = vunpack.c.h.b16 %v6442
    %v7046 = vunpack.c.l.b16 %v6443
    %v7047 = vunpack.c.h.b16 %v6443
    %v7048 = vunpack.c.l.b16 %v6444
    %v7049 = vunpack.c.h.b16 %v6444
    %v7050 = vunpack.c.l.b16 %v6445
    %v7051 = vunpack.c.h.b16 %v6445
    %v7052 = vunpack.c.l.b16 %v6446
    %v7053 = vunpack.c.h.b16 %v6446
    %v7054 = vunpack.c.l.b16 %v6447
    %v7055 = vunpack.c.h.b16 %v6447
    %v7056 = vunpack.c.l.b16 %v6448
    %v7057 = vunpack.c.h.b16 %v6448
    %v7058 = vunpack.c.l.b16 %v6449
    %v7059 = vunpack.c.h.b16 %v6449
    %v7060 = vunpack.c.l.b16 %v6450
    %v7061 = vunpack.c.h.b16 %v6450
    %v7062 = vunpack.c.l.b16 %v6451
    %v7063 = vunpack.c.h.b16 %v6451
    %v7064 = vunpack.c.l.b16 %v6452
    %v7065 = vunpack.c.h.b16 %v6452
    %v7066 = vunpack.c.l.b16 %v6453
    %v7067 = vunpack.c.h.b16 %v6453
    %v7068 = vunpack.c.l.b16 %v6454
    %v7069 = vunpack.c.h.b16 %v6454
    %v7070 = vunpack.c.l.b16 %v6455
    %v7071 = vunpack.c.h.b16 %v6455
    %v7072 = vunpack.c.l.b16 %v6456
    %v7073 = vunpack.c.h.b16 %v6456
    %v7074 = vunpack.c.l.b16 %v6457
    %v7075 = vunpack.c.h.b16 %v6457
    %v7076 = vpack.c.b16 %v6684, %v6676
    %v7077 = vpack.c.b16 %v6685, %v6677
    %v7078 = vpack.c.b16 %v6686, %v6678
    %v7079 = vpack.c.b16 %v6687, %v6679
    %v7080 = vpack.c.b16 %v6688, %v6680
    %v7081 = vpack.c.b16 %v6689, %v6681
    %v7082 = vpack.c.b16 %v6690, %v6682
    %v7083 = vpack.c.b16 %v6691, %v6683
    %v7084 = vpack.c.b16 %v6700, %v6692
    %v7085 = vpack.c.b16 %v6701, %v6693
    %v7086 = vpack.c.b16 %v6702, %v6694
    %v7087 = vpack.c.b16 %v6703, %v6695
    %v7088 = vpack.c.b16 %v6704, %v6696
    %v7089 = vpack.c.b16 %v6705, %v6697
    %v7090 = vpack.c.b16 %v6706, %v6698
    %v7091 = vpack.c.b16 %v6707, %v6699
    %v7092 = vpack.c.b16 %v6716, %v6708
    %v7093 = vpack.c.b16 %v6717, %v6709
    %v7094 = vpack.c.b16 %v6718, %v6710
    %v7095 = vpack.c.b16 %v6719, %v6711
    %v7096 = vpack.c.b16 %v6720, %v6712
    %v7097 = vpack.c.b16 %v6721, %v6713
    %v7098 = vpack.c.b16 %v6722, %v6714
    %v7099 = vpack.c.b16 %v6723, %v6715
    %v7100 = vpack.c.b16 %v6732, %v6724
    %v7101 = vpack.c.b16 %v6733, %v6725
    %v7102 = vpack.c.b16 %v6734, %v6726
    %v7103 = vpack.c.b16 %v6735, %v6727
    %v7104 = vpack.c.b16 %v6736, %v6728
    %v7105 = vpack.c.b16 %v6737, %v6729
    %v7106 = vpack.c.b16 %v6738, %v6730
    %v7107 = vpack.c.b16 %v6739, %v6731
    %v7108 = vpack.c.b16 %v6748, %v6740
    %v7109 = vpack.c.b16 %v6749, %v6741
    %v7110 = vpack.c.b16 %v6750, %v6742
    %v7111 = vpack.c.b16 %v6751, %v6743
    %v7112 = vpack.c.b16 %v6752, %v6744
    %v7113 = vpack.c.b16 %v6753, %v6745
    %v7114 = vpack.c.b16 %v6754, %v6746
    %v7115 = vpack.c.b16 %v6755, %v6747
    %v7116 = vpack.c.b16 %v6764, %v6756
    %v7117 = vpack.c.b16 %v6765, %v6757
    %v7118 = vpack.c.b16 %v6766, %v6758
    %v7119 = vpack.c.b16 %v6767, %v6759
    %v7120 = vpack.c.b16 %v6768, %v6760
    %v7121 = vpack.c.b16 %v6769, %v6761
    %v7122 = vpack.c.b16 %v6770, %v6762
    %v7123 = vpack.c.b16 %v6771, %v6763
    %v7124 = vpack.c.b16 %v6780, %v6772
    %v7125 = vpack.c.b16 %v6781, %v6773
    %v7126 = vpack.c.b16 %v6782, %v6774
    %v7127 = vpack.c.b16 %v6783, %v6775
    %v7128 = vpack.c.b16 %v6784, %v6776
    %v7129 = vpack.c.b16 %v6785, %v6777
    %v7130 = vpack.c.b16 %v6786, %v6778
    %v7131 = vpack.c.b16 %v6787, %v6779
    %v7132 = vpack.c.b16 %v6796, %v6788
    %v7133 = vpack.c.b16 %v6797, %v6789
    %v7134 = vpack.c.b16 %v6798, %v6790
    %v7135 = vpack.c.b16 %v6799, %v6791
    %v7136 = vpack.c.b16 %v6800, %v6792
    %v7137 = vpack.c.b16 %v6801, %v6793
    %v7138 = vpack.c.b16 %v6802, %v6794
    %v7139 = vpack.c.b16 %v6803, %v6795
    %v7140 = vpack.c.b16 %v6812, %v6804
    %v7141 = vpack.c.b16 %v6813, %v6805
    %v7142 = vpack.c.b16 %v6814, %v6806
    %v7143 = vpack.c.b16 %v6815, %v6807
    %v7144 = vpack.c.b16 %v6816, %v6808
    %v7145 = vpack.c.b16 %v6817, %v6809
    %v7146 = vpack.c.b16 %v6818, %v6810
    %v7147 = vpack.c.b16 %v6819, %v6811
    %v7148 = vpack.c.b16 %v6828, %v6820
    %v7149 = vpack.c.b16 %v6829, %v6821
    %v7150 = vpack.c.b16 %v6830, %v6822
    %v7151 = vpack.c.b16 %v6831, %v6823
    %v7152 = vpack.c.b16 %v6832, %v6824
    %v7153 = vpack.c.b16 %v6833, %v6825
    %v7154 = vpack.c.b16 %v6834, %v6826
    %v7155 = vpack.c.b16 %v6835, %v6827
    %v7156 = vpack.c.b16 %v6844, %v6836
    %v7157 = vpack.c.b16 %v6845, %v6837
    %v7158 = vpack.c.b16 %v6846, %v6838
    %v7159 = vpack.c.b16 %v6847, %v6839
    %v7160 = vpack.c.b16 %v6848, %v6840
    %v7161 = vpack.c.b16 %v6849, %v6841
    %v7162 = vpack.c.b16 %v6850, %v6842
    %v7163 = vpack.c.b16 %v6851, %v6843
    %v7164 = vpack.c.b16 %v6860, %v6852
    %v7165 = vpack.c.b16 %v6861, %v6853
    %v7166 = vpack.c.b16 %v6862, %v6854
    %v7167 = vpack.c.b16 %v6863, %v6855
    %v7168 = vpack.c.b16 %v6864, %v6856
    %v7169 = vpack.c.b16 %v6865, %v6857
    %v7170 = vpack.c.b16 %v6866, %v6858
    %v7171 = vpack.c.b16 %v6867, %v6859
    %v7172 = vpack.c.b16 %v6876, %v6868
    %v7173 = vpack.c.b16 %v6877, %v6869
    %v7174 = vpack.c.b16 %v6878, %v6870
    %v7175 = vpack.c.b16 %v6879, %v6871
    %v7176 = vpack.c.b16 %v6880, %v6872
    %v7177 = vpack.c.b16 %v6881, %v6873
    %v7178 = vpack.c.b16 %v6882, %v6874
    %v7179 = vpack.c.b16 %v6883, %v6875
    %v7180 = vpack.c.b16 %v6892, %v6884
    %v7181 = vpack.c.b16 %v6893, %v6885
    %v7182 = vpack.c.b16 %v6894, %v6886
    %v7183 = vpack.c.b16 %v6895, %v6887
    %v7184 = vpack.c.b16 %v6896, %v6888
    %v7185 = vpack.c.b16 %v6897, %v6889
    %v7186 = vpack.c.b16 %v6898, %v6890
    %v7187 = vpack.c.b16 %v6899, %v6891
    %v7188 = vpack.c.b16 %v6908, %v6900
    %v7189 = vpack.c.b16 %v6909, %v6901
    %v7190 = vpack.c.b16 %v6910, %v6902
    %v7191 = vpack.c.b16 %v6911, %v6903
    %v7192 = vpack.c.b16 %v6912, %v6904
    %v7193 = vpack.c.b16 %v6913, %v6905
    %v7194 = vpack.c.b16 %v6914, %v6906
    %v7195 = vpack.c.b16 %v6915, %v6907
    %v7196 = vpack.c.b16 %v6924, %v6916
    %v7197 = vpack.c.b16 %v6925, %v6917
    %v7198 = vpack.c.b16 %v6926, %v6918
    %v7199 = vpack.c.b16 %v6927, %v6919
    %v7200 = vpack.c.b16 %v6928, %v6920
    %v7201 = vpack.c.b16 %v6929, %v6921
    %v7202 = vpack.c.b16 %v6930, %v6922
    %v7203 = vpack.c.b16 %v6931, %v6923
    %v7204 = vpack.c.b16 %v6940, %v6932
    %v7205 = vpack.c.b16 %v6941, %v6933
    %v7206 = vpack.c.b16 %v6942, %v6934
    %v7207 = vpack.c.b16 %v6943, %v6935
    %v7208 = vpack.c.b16 %v6944, %v6936
    %v7209 = vpack.c.b16 %v6945, %v6937
    %v7210 = vpack.c.b16 %v6946, %v6938
    %v7211 = vpack.c.b16 %v6947, %v6939
    %v7212 = vpack.c.b16 %v6956, %v6948
    %v7213 = vpack.c.b16 %v6957, %v6949
    %v7214 = vpack.c.b16 %v6958, %v6950
    %v7215 = vpack.c.b16 %v6959, %v6951
    %v7216 = vpack.c.b16 %v6960, %v6952
    %v7217 = vpack.c.b16 %v6961, %v6953
    %v7218 = vpack.c.b16 %v6962, %v6954
    %v7219 = vpack.c.b16 %v6963, %v6955
    %v7220 = vpack.c.b16 %v6972, %v6964
    %v7221 = vpack.c.b16 %v6973, %v6965
    %v7222 = vpack.c.b16 %v6974, %v6966
    %v7223 = vpack.c.b16 %v6975, %v6967
    %v7224 = vpack.c.b16 %v6976, %v6968
    %v7225 = vpack.c.b16 %v6977, %v6969
    %v7226 = vpack.c.b16 %v6978, %v6970
    %v7227 = vpack.c.b16 %v6979, %v6971
    %v7228 = vpack.c.b16 %v6988, %v6980
    %v7229 = vpack.c.b16 %v6989, %v6981
    %v7230 = vpack.c.b16 %v6990, %v6982
    %v7231 = vpack.c.b16 %v6991, %v6983
    %v7232 = vpack.c.b16 %v6992, %v6984
    %v7233 = vpack.c.b16 %v6993, %v6985
    %v7234 = vpack.c.b16 %v6994, %v6986
    %v7235 = vpack.c.b16 %v6995, %v6987
    %v7236 = vpack.c.b16 %v7004, %v6996
    %v7237 = vpack.c.b16 %v7005, %v6997
    %v7238 = vpack.c.b16 %v7006, %v6998
    %v7239 = vpack.c.b16 %v7007, %v6999
    %v7240 = vpack.c.b16 %v7008, %v7000
    %v7241 = vpack.c.b16 %v7009, %v7001
    %v7242 = vpack.c.b16 %v7010, %v7002
    %v7243 = vpack.c.b16 %v7011, %v7003
    %v7244 = vpack.c.b16 %v7020, %v7012
    %v7245 = vpack.c.b16 %v7021, %v7013
    %v7246 = vpack.c.b16 %v7022, %v7014
    %v7247 = vpack.c.b16 %v7023, %v7015
    %v7248 = vpack.c.b16 %v7024, %v7016
    %v7249 = vpack.c.b16 %v7025, %v7017
    %v7250 = vpack.c.b16 %v7026, %v7018
    %v7251 = vpack.c.b16 %v7027, %v7019
    %v7252 = vpack.c.b16 %v7036, %v7028
    %v7253 = vpack.c.b16 %v7037, %v7029
    %v7254 = vpack.c.b16 %v7038, %v7030
    %v7255 = vpack.c.b16 %v7039, %v7031
    %v7256 = vpack.c.b16 %v7040, %v7032
    %v7257 = vpack.c.b16 %v7041, %v7033
    %v7258 = vpack.c.b16 %v7042, %v7034
    %v7259 = vpack.c.b16 %v7043, %v7035
    %v7260 = vpack.c.b16 %v7052, %v7044
    %v7261 = vpack.c.b16 %v7053, %v7045
    %v7262 = vpack.c.b16 %v7054, %v7046
    %v7263 = vpack.c.b16 %v7055, %v7047
    %v7264 = vpack.c.b16 %v7056, %v7048
    %v7265 = vpack.c.b16 %v7057, %v7049
    %v7266 = vpack.c.b16 %v7058, %v7050
    %v7267 = vpack.c.b16 %v7059, %v7051
    %v7268 = vpack.c.b16 %v7068, %v7060
    %v7269 = vpack.c.b16 %v7069, %v7061
    %v7270 = vpack.c.b16 %v7070, %v7062
    %v7271 = vpack.c.b16 %v7071, %v7063
    %v7272 = vpack.c.b16 %v7072, %v7064
    %v7273 = vpack.c.b16 %v7073, %v7065
    %v7274 = vpack.c.b16 %v7074, %v7066
    %v7275 = vpack.c.b16 %v7075, %v7067
    %7476 = vmatpush.bf16.msra.mxu0 %v7132
    %7477 = vmatpush.bf16.msra.mxu0 %v7124
    %7478 = vmatpush.bf16.msra.mxu0 %v7116
    %7479 = vmatpush.bf16.msra.mxu0 %v7108
    %7480 = vmatpush.bf16.msra.mxu0 %v7100
    %7481 = vmatpush.bf16.msra.mxu0 %v7092
    %7482 = vmatpush.bf16.msra.mxu0 %v7084
    %7483 = vmatpush.bf16.msra.mxu0 %v7076
    %7484 = vmatmul.bf16.gmra.mxu0 %v4585
    %v7485 = vpop.f32.mrf.mxu0
    %v7486 = vadd.f32 %v6460, %v7485
    %v7487 = vpop.f32.mrf.mxu0
    %v7488 = vadd.f32 %v6460, %v7487
    %7489 = vdwg.mxu0
    %7490 = vmatpush.bf16.msra.mxu0 %v7196
    %7491 = vmatpush.bf16.msra.mxu0 %v7188
    %7492 = vmatpush.bf16.msra.mxu0 %v7180
    %7493 = vmatpush.bf16.msra.mxu0 %v7172
    %7494 = vmatpush.bf16.msra.mxu0 %v7164
    %7495 = vmatpush.bf16.msra.mxu0 %v7156
    %7496 = vmatpush.bf16.msra.mxu0 %v7148
    %7497 = vmatpush.bf16.msra.mxu0 %v7140
    %7498 = vmatmul.bf16.gmra.mxu0 %v4586
    %v7499 = vpop.f32.mrf.mxu0
    %v7500 = vadd.f32 %v7486, %v7499
    %v7501 = vpop.f32.mrf.mxu0
    %v7502 = vadd.f32 %v7488, %v7501
    %7503 = vdwg.mxu0
    %7504 = vmatpush.bf16.msra.mxu0 %v7260
    %7505 = vmatpush.bf16.msra.mxu0 %v7252
    %7506 = vmatpush.bf16.msra.mxu0 %v7244
    %7507 = vmatpush.bf16.msra.mxu0 %v7236
    %7508 = vmatpush.bf16.msra.mxu0 %v7228
    %7509 = vmatpush.bf16.msra.mxu0 %v7220
    %7510 = vmatpush.bf16.msra.mxu0 %v7212
    %7511 = vmatpush.bf16.msra.mxu0 %v7204
    %7512 = vmatmul.bf16.gmra.mxu0 %v4587
    %v7513 = vpop.f32.mrf.mxu0
    %v7514 = vadd.f32 %v7500, %v7513
    %v7515 = vpop.f32.mrf.mxu0
    %v7516 = vadd.f32 %v7502, %v7515
    %7517 = vdwg.mxu0
    %7518 = vmatpush.bf16.msra.mxu0 0
    %7519 = vmatpush.bf16.msra.mxu0 0
    %7520 = vmatpush.bf16.msra.mxu0 0
    %7521 = vmatpush.bf16.msra.mxu0 0
    %7522 = vmatpush.bf16.msra.mxu0 0
    %7523 = vmatpush.bf16.msra.mxu0 0
    %7524 = vmatpush.bf16.msra.mxu0 0
    %7525 = vmatpush.bf16.msra.mxu0 %v7268
    %7526 = vmatmul.bf16.gmra.mxu0 %v5808
    %v7527 = vpop.f32.mrf.mxu0
    %v7528 = vadd.f32 %v7514, %v7527
    %v7529 = vpop.f32.mrf.mxu0
    %v7530 = vadd.f32 %v7516, %v7529
    %7531 = vdwg.mxu0
    %7532 = vmatpush.bf16.msra.mxu0 %v7133
    %7533 = vmatpush.bf16.msra.mxu0 %v7125
    %7534 = vmatpush.bf16.msra.mxu0 %v7117
    %7535 = vmatpush.bf16.msra.mxu0 %v7109
    %7536 = vmatpush.bf16.msra.mxu0 %v7101
    %7537 = vmatpush.bf16.msra.mxu0 %v7093
    %7538 = vmatpush.bf16.msra.mxu0 %v7085
    %7539 = vmatpush.bf16.msra.mxu0 %v7077
    %7540 = vmatmul.bf16.gmra.mxu0 %v4585
    %v7541 = vpop.f32.mrf.mxu0
    %v7542 = vadd.f32 %v6461, %v7541
    %v7543 = vpop.f32.mrf.mxu0
    %v7544 = vadd.f32 %v6461, %v7543
    %7545 = vdwg.mxu0
    %7546 = vmatpush.bf16.msra.mxu0 %v7197
    %7547 = vmatpush.bf16.msra.mxu0 %v7189
    %7548 = vmatpush.bf16.msra.mxu0 %v7181
    %7549 = vmatpush.bf16.msra.mxu0 %v7173
    %7550 = vmatpush.bf16.msra.mxu0 %v7165
    %7551 = vmatpush.bf16.msra.mxu0 %v7157
    %7552 = vmatpush.bf16.msra.mxu0 %v7149
    %7553 = vmatpush.bf16.msra.mxu0 %v7141
    %7554 = vmatmul.bf16.gmra.mxu0 %v4586
    %v7555 = vpop.f32.mrf.mxu0
    %v7556 = vadd.f32 %v7542, %v7555
    %v7557 = vpop.f32.mrf.mxu0
    %v7558 = vadd.f32 %v7544, %v7557
    %7559 = vdwg.mxu0
    %7560 = vmatpush.bf16.msra.mxu0 %v7261
    %7561 = vmatpush.bf16.msra.mxu0 %v7253
    %7562 = vmatpush.bf16.msra.mxu0 %v7245
    %7563 = vmatpush.bf16.msra.mxu0 %v7237
    %7564 = vmatpush.bf16.msra.mxu0 %v7229
    %7565 = vmatpush.bf16.msra.mxu0 %v7221
    %7566 = vmatpush.bf16.msra.mxu0 %v7213
    %7567 = vmatpush.bf16.msra.mxu0 %v7205
    %7568 = vmatmul.bf16.gmra.mxu0 %v4587
    %v7569 = vpop.f32.mrf.mxu0
    %v7570 = vadd.f32 %v7556, %v7569
    %v7571 = vpop.f32.mrf.mxu0
    %v7572 = vadd.f32 %v7558, %v7571
    %7573 = vdwg.mxu0
    %7574 = vmatpush.bf16.msra.mxu0 0
    %7575 = vmatpush.bf16.msra.mxu0 0
    %7576 = vmatpush.bf16.msra.mxu0 0
    %7577 = vmatpush.bf16.msra.mxu0 0
    %7578 = vmatpush.bf16.msra.mxu0 0
    %7579 = vmatpush.bf16.msra.mxu0 0
    %7580 = vmatpush.bf16.msra.mxu0 0
    %7581 = vmatpush.bf16.msra.mxu0 %v7269
    %7582 = vmatmul.bf16.gmra.mxu0 %v5808
    %v7583 = vpop.f32.mrf.mxu0
    %v7584 = vadd.f32 %v7570, %v7583
    %v7585 = vpop.f32.mrf.mxu0
    %v7586 = vadd.f32 %v7572, %v7585
    %7587 = vdwg.mxu0
    %7588 = vmatpush.bf16.msra.mxu0 %v7134
    %7589 = vmatpush.bf16.msra.mxu0 %v7126
    %7590 = vmatpush.bf16.msra.mxu0 %v7118
    %7591 = vmatpush.bf16.msra.mxu0 %v7110
    %7592 = vmatpush.bf16.msra.mxu0 %v7102
    %7593 = vmatpush.bf16.msra.mxu0 %v7094
    %7594 = vmatpush.bf16.msra.mxu0 %v7086
    %7595 = vmatpush.bf16.msra.mxu0 %v7078
    %7596 = vmatmul.bf16.gmra.mxu0 %v4585
    %v7597 = vpop.f32.mrf.mxu0
    %v7598 = vadd.f32 %v6462, %v7597
    %v7599 = vpop.f32.mrf.mxu0
    %v7600 = vadd.f32 %v6462, %v7599
    %7601 = vdwg.mxu0
    %7602 = vmatpush.bf16.msra.mxu0 %v7198
    %7603 = vmatpush.bf16.msra.mxu0 %v7190
    %7604 = vmatpush.bf16.msra.mxu0 %v7182
    %7605 = vmatpush.bf16.msra.mxu0 %v7174
    %7606 = vmatpush.bf16.msra.mxu0 %v7166
    %7607 = vmatpush.bf16.msra.mxu0 %v7158
    %7608 = vmatpush.bf16.msra.mxu0 %v7150
    %7609 = vmatpush.bf16.msra.mxu0 %v7142
    %7610 = vmatmul.bf16.gmra.mxu0 %v4586
    %v7611 = vpop.f32.mrf.mxu0
    %v7612 = vadd.f32 %v7598, %v7611
    %v7613 = vpop.f32.mrf.mxu0
    %v7614 = vadd.f32 %v7600, %v7613
    %7615 = vdwg.mxu0
    %7616 = vmatpush.bf16.msra.mxu0 %v7262
    %7617 = vmatpush.bf16.msra.mxu0 %v7254
    %7618 = vmatpush.bf16.msra.mxu0 %v7246
    %7619 = vmatpush.bf16.msra.mxu0 %v7238
    %7620 = vmatpush.bf16.msra.mxu0 %v7230
    %7621 = vmatpush.bf16.msra.mxu0 %v7222
    %7622 = vmatpush.bf16.msra.mxu0 %v7214
    %7623 = vmatpush.bf16.msra.mxu0 %v7206
    %7624 = vmatmul.bf16.gmra.mxu0 %v4587
    %v7625 = vpop.f32.mrf.mxu0
    %v7626 = vadd.f32 %v7612, %v7625
    %v7627 = vpop.f32.mrf.mxu0
    %v7628 = vadd.f32 %v7614, %v7627
    %7629 = vdwg.mxu0
    %7630 = vmatpush.bf16.msra.mxu0 0
    %7631 = vmatpush.bf16.msra.mxu0 0
    %7632 = vmatpush.bf16.msra.mxu0 0
    %7633 = vmatpush.bf16.msra.mxu0 0
    %7634 = vmatpush.bf16.msra.mxu0 0
    %7635 = vmatpush.bf16.msra.mxu0 0
    %7636 = vmatpush.bf16.msra.mxu0 0
    %7637 = vmatpush.bf16.msra.mxu0 %v7270
    %7638 = vmatmul.bf16.gmra.mxu0 %v5808
    %v7639 = vpop.f32.mrf.mxu0
    %v7640 = vadd.f32 %v7626, %v7639
    %v7641 = vpop.f32.mrf.mxu0
    %v7642 = vadd.f32 %v7628, %v7641
    %7643 = vdwg.mxu0
    %7644 = vmatpush.bf16.msra.mxu0 %v7135
    %7645 = vmatpush.bf16.msra.mxu0 %v7127
    %7646 = vmatpush.bf16.msra.mxu0 %v7119
    %7647 = vmatpush.bf16.msra.mxu0 %v7111
    %7648 = vmatpush.bf16.msra.mxu0 %v7103
    %7649 = vmatpush.bf16.msra.mxu0 %v7095
    %7650 = vmatpush.bf16.msra.mxu0 %v7087
    %7651 = vmatpush.bf16.msra.mxu0 %v7079
    %7652 = vmatmul.bf16.gmra.mxu0 %v4585
    %v7653 = vpop.f32.mrf.mxu0
    %v7654 = vadd.f32 %v6463, %v7653
    %v7655 = vpop.f32.mrf.mxu0
    %v7656 = vadd.f32 %v6463, %v7655
    %7657 = vdwg.mxu0
    %7658 = vmatpush.bf16.msra.mxu0 %v7199
    %7659 = vmatpush.bf16.msra.mxu0 %v7191
    %7660 = vmatpush.bf16.msra.mxu0 %v7183
    %7661 = vmatpush.bf16.msra.mxu0 %v7175
    %7662 = vmatpush.bf16.msra.mxu0 %v7167
    %7663 = vmatpush.bf16.msra.mxu0 %v7159
    %7664 = vmatpush.bf16.msra.mxu0 %v7151
    %7665 = vmatpush.bf16.msra.mxu0 %v7143
    %7666 = vmatmul.bf16.gmra.mxu0 %v4586
    %v7667 = vpop.f32.mrf.mxu0
    %v7668 = vadd.f32 %v7654, %v7667
    %v7669 = vpop.f32.mrf.mxu0
    %v7670 = vadd.f32 %v7656, %v7669
    %7671 = vdwg.mxu0
    %7672 = vmatpush.bf16.msra.mxu0 %v7263
    %7673 = vmatpush.bf16.msra.mxu0 %v7255
    %7674 = vmatpush.bf16.msra.mxu0 %v7247
    %7675 = vmatpush.bf16.msra.mxu0 %v7239
    %7676 = vmatpush.bf16.msra.mxu0 %v7231
    %7677 = vmatpush.bf16.msra.mxu0 %v7223
    %7678 = vmatpush.bf16.msra.mxu0 %v7215
    %7679 = vmatpush.bf16.msra.mxu0 %v7207
    %7680 = vmatmul.bf16.gmra.mxu0 %v4587
    %v7681 = vpop.f32.mrf.mxu0
    %v7682 = vadd.f32 %v7668, %v7681
    %v7683 = vpop.f32.mrf.mxu0
    %v7684 = vadd.f32 %v7670, %v7683
    %7685 = vdwg.mxu0
    %7686 = vmatpush.bf16.msra.mxu0 0
    %7687 = vmatpush.bf16.msra.mxu0 0
    %7688 = vmatpush.bf16.msra.mxu0 0
    %7689 = vmatpush.bf16.msra.mxu0 0
    %7690 = vmatpush.bf16.msra.mxu0 0
    %7691 = vmatpush.bf16.msra.mxu0 0
    %7692 = vmatpush.bf16.msra.mxu0 0
    %7693 = vmatpush.bf16.msra.mxu0 %v7271
    %7694 = vmatmul.bf16.gmra.mxu0 %v5808
    %v7695 = vpop.f32.mrf.mxu0
    %v7696 = vadd.f32 %v7682, %v7695
    %v7697 = vpop.f32.mrf.mxu0
    %v7698 = vadd.f32 %v7684, %v7697
    %7699 = vdwg.mxu0
    %7700 = vmatpush.bf16.msra.mxu0 %v7136
    %7701 = vmatpush.bf16.msra.mxu0 %v7128
    %7702 = vmatpush.bf16.msra.mxu0 %v7120
    %7703 = vmatpush.bf16.msra.mxu0 %v7112
    %7704 = vmatpush.bf16.msra.mxu0 %v7104
    %7705 = vmatpush.bf16.msra.mxu0 %v7096
    %7706 = vmatpush.bf16.msra.mxu0 %v7088
    %7707 = vmatpush.bf16.msra.mxu0 %v7080
    %7708 = vmatmul.bf16.gmra.mxu0 %v4585
    %v7709 = vpop.f32.mrf.mxu0
    %v7710 = vadd.f32 %v6464, %v7709
    %v7711 = vpop.f32.mrf.mxu0
    %v7712 = vadd.f32 %v6464, %v7711
    %7713 = vdwg.mxu0
    %7714 = vmatpush.bf16.msra.mxu0 %v7200
    %7715 = vmatpush.bf16.msra.mxu0 %v7192
    %7716 = vmatpush.bf16.msra.mxu0 %v7184
    %7717 = vmatpush.bf16.msra.mxu0 %v7176
    %7718 = vmatpush.bf16.msra.mxu0 %v7168
    %7719 = vmatpush.bf16.msra.mxu0 %v7160
    %7720 = vmatpush.bf16.msra.mxu0 %v7152
    %7721 = vmatpush.bf16.msra.mxu0 %v7144
    %7722 = vmatmul.bf16.gmra.mxu0 %v4586
    %v7723 = vpop.f32.mrf.mxu0
    %v7724 = vadd.f32 %v7710, %v7723
    %v7725 = vpop.f32.mrf.mxu0
    %v7726 = vadd.f32 %v7712, %v7725
    %7727 = vdwg.mxu0
    %7728 = vmatpush.bf16.msra.mxu0 %v7264
    %7729 = vmatpush.bf16.msra.mxu0 %v7256
    %7730 = vmatpush.bf16.msra.mxu0 %v7248
    %7731 = vmatpush.bf16.msra.mxu0 %v7240
    %7732 = vmatpush.bf16.msra.mxu0 %v7232
    %7733 = vmatpush.bf16.msra.mxu0 %v7224
    %7734 = vmatpush.bf16.msra.mxu0 %v7216
    %7735 = vmatpush.bf16.msra.mxu0 %v7208
    %7736 = vmatmul.bf16.gmra.mxu0 %v4587
    %v7737 = vpop.f32.mrf.mxu0
    %v7738 = vadd.f32 %v7724, %v7737
    %v7739 = vpop.f32.mrf.mxu0
    %v7740 = vadd.f32 %v7726, %v7739
    %7741 = vdwg.mxu0
    %7742 = vmatpush.bf16.msra.mxu0 0
    %7743 = vmatpush.bf16.msra.mxu0 0
    %7744 = vmatpush.bf16.msra.mxu0 0
    %7745 = vmatpush.bf16.msra.mxu0 0
    %7746 = vmatpush.bf16.msra.mxu0 0
    %7747 = vmatpush.bf16.msra.mxu0 0
    %7748 = vmatpush.bf16.msra.mxu0 0
    %7749 = vmatpush.bf16.msra.mxu0 %v7272
    %7750 = vmatmul.bf16.gmra.mxu0 %v5808
    %v7751 = vpop.f32.mrf.mxu0
    %v7752 = vadd.f32 %v7738, %v7751
    %v7753 = vpop.f32.mrf.mxu0
    %v7754 = vadd.f32 %v7740, %v7753
    %7755 = vdwg.mxu0
    %7756 = vmatpush.bf16.msra.mxu0 %v7137
    %7757 = vmatpush.bf16.msra.mxu0 %v7129
    %7758 = vmatpush.bf16.msra.mxu0 %v7121
    %7759 = vmatpush.bf16.msra.mxu0 %v7113
    %7760 = vmatpush.bf16.msra.mxu0 %v7105
    %7761 = vmatpush.bf16.msra.mxu0 %v7097
    %7762 = vmatpush.bf16.msra.mxu0 %v7089
    %7763 = vmatpush.bf16.msra.mxu0 %v7081
    %7764 = vmatmul.bf16.gmra.mxu0 %v4585
    %v7765 = vpop.f32.mrf.mxu0
    %v7766 = vadd.f32 %v6465, %v7765
    %v7767 = vpop.f32.mrf.mxu0
    %v7768 = vadd.f32 %v6465, %v7767
    %7769 = vdwg.mxu0
    %7770 = vmatpush.bf16.msra.mxu0 %v7201
    %7771 = vmatpush.bf16.msra.mxu0 %v7193
    %7772 = vmatpush.bf16.msra.mxu0 %v7185
    %7773 = vmatpush.bf16.msra.mxu0 %v7177
    %7774 = vmatpush.bf16.msra.mxu0 %v7169
    %7775 = vmatpush.bf16.msra.mxu0 %v7161
    %7776 = vmatpush.bf16.msra.mxu0 %v7153
    %7777 = vmatpush.bf16.msra.mxu0 %v7145
    %7778 = vmatmul.bf16.gmra.mxu0 %v4586
    %v7779 = vpop.f32.mrf.mxu0
    %v7780 = vadd.f32 %v7766, %v7779
    %v7781 = vpop.f32.mrf.mxu0
    %v7782 = vadd.f32 %v7768, %v7781
    %7783 = vdwg.mxu0
    %7784 = vmatpush.bf16.msra.mxu0 %v7265
    %7785 = vmatpush.bf16.msra.mxu0 %v7257
    %7786 = vmatpush.bf16.msra.mxu0 %v7249
    %7787 = vmatpush.bf16.msra.mxu0 %v7241
    %7788 = vmatpush.bf16.msra.mxu0 %v7233
    %7789 = vmatpush.bf16.msra.mxu0 %v7225
    %7790 = vmatpush.bf16.msra.mxu0 %v7217
    %7791 = vmatpush.bf16.msra.mxu0 %v7209
    %7792 = vmatmul.bf16.gmra.mxu0 %v4587
    %v7793 = vpop.f32.mrf.mxu0
    %v7794 = vadd.f32 %v7780, %v7793
    %v7795 = vpop.f32.mrf.mxu0
    %v7796 = vadd.f32 %v7782, %v7795
    %7797 = vdwg.mxu0
    %7798 = vmatpush.bf16.msra.mxu0 0
    %7799 = vmatpush.bf16.msra.mxu0 0
    %7800 = vmatpush.bf16.msra.mxu0 0
    %7801 = vmatpush.bf16.msra.mxu0 0
    %7802 = vmatpush.bf16.msra.mxu0 0
    %7803 = vmatpush.bf16.msra.mxu0 0
    %7804 = vmatpush.bf16.msra.mxu0 0
    %7805 = vmatpush.bf16.msra.mxu0 %v7273
    %7806 = vmatmul.bf16.gmra.mxu0 %v5808
    %v7807 = vpop.f32.mrf.mxu0
    %v7808 = vadd.f32 %v7794, %v7807
    %v7809 = vpop.f32.mrf.mxu0
    %v7810 = vadd.f32 %v7796, %v7809
    %7811 = vdwg.mxu0
    %7812 = vmatpush.bf16.msra.mxu0 %v7138
    %7813 = vmatpush.bf16.msra.mxu0 %v7130
    %7814 = vmatpush.bf16.msra.mxu0 %v7122
    %7815 = vmatpush.bf16.msra.mxu0 %v7114
    %7816 = vmatpush.bf16.msra.mxu0 %v7106
    %7817 = vmatpush.bf16.msra.mxu0 %v7098
    %7818 = vmatpush.bf16.msra.mxu0 %v7090
    %7819 = vmatpush.bf16.msra.mxu0 %v7082
    %7820 = vmatmul.bf16.gmra.mxu0 %v4585
    %v7821 = vpop.f32.mrf.mxu0
    %v7822 = vadd.f32 %v6466, %v7821
    %v7823 = vpop.f32.mrf.mxu0
    %v7824 = vadd.f32 %v6466, %v7823
    %7825 = vdwg.mxu0
    %7826 = vmatpush.bf16.msra.mxu0 %v7202
    %7827 = vmatpush.bf16.msra.mxu0 %v7194
    %7828 = vmatpush.bf16.msra.mxu0 %v7186
    %7829 = vmatpush.bf16.msra.mxu0 %v7178
    %7830 = vmatpush.bf16.msra.mxu0 %v7170
    %7831 = vmatpush.bf16.msra.mxu0 %v7162
    %7832 = vmatpush.bf16.msra.mxu0 %v7154
    %7833 = vmatpush.bf16.msra.mxu0 %v7146
    %7834 = vmatmul.bf16.gmra.mxu0 %v4586
    %v7835 = vpop.f32.mrf.mxu0
    %v7836 = vadd.f32 %v7822, %v7835
    %v7837 = vpop.f32.mrf.mxu0
    %v7838 = vadd.f32 %v7824, %v7837
    %7839 = vdwg.mxu0
    %7840 = vmatpush.bf16.msra.mxu0 %v7266
    %7841 = vmatpush.bf16.msra.mxu0 %v7258
    %7842 = vmatpush.bf16.msra.mxu0 %v7250
    %7843 = vmatpush.bf16.msra.mxu0 %v7242
    %7844 = vmatpush.bf16.msra.mxu0 %v7234
    %7845 = vmatpush.bf16.msra.mxu0 %v7226
    %7846 = vmatpush.bf16.msra.mxu0 %v7218
    %7847 = vmatpush.bf16.msra.mxu0 %v7210
    %7848 = vmatmul.bf16.gmra.mxu0 %v4587
    %v7849 = vpop.f32.mrf.mxu0
    %v7850 = vadd.f32 %v7836, %v7849
    %v7851 = vpop.f32.mrf.mxu0
    %v7852 = vadd.f32 %v7838, %v7851
    %7853 = vdwg.mxu0
    %7854 = vmatpush.bf16.msra.mxu0 0
    %7855 = vmatpush.bf16.msra.mxu0 0
    %7856 = vmatpush.bf16.msra.mxu0 0
    %7857 = vmatpush.bf16.msra.mxu0 0
    %7858 = vmatpush.bf16.msra.mxu0 0
    %7859 = vmatpush.bf16.msra.mxu0 0
    %7860 = vmatpush.bf16.msra.mxu0 0
    %7861 = vmatpush.bf16.msra.mxu0 %v7274
    %7862 = vmatmul.bf16.gmra.mxu0 %v5808
    %v7863 = vpop.f32.mrf.mxu0
    %v7864 = vadd.f32 %v7850, %v7863
    %v7865 = vpop.f32.mrf.mxu0
    %v7866 = vadd.f32 %v7852, %v7865
    %7867 = vdwg.mxu0
    %7868 = vmatpush.bf16.msra.mxu0 %v7139
    %7869 = vmatpush.bf16.msra.mxu0 %v7131
    %7870 = vmatpush.bf16.msra.mxu0 %v7123
    %7871 = vmatpush.bf16.msra.mxu0 %v7115
    %7872 = vmatpush.bf16.msra.mxu0 %v7107
    %7873 = vmatpush.bf16.msra.mxu0 %v7099
    %7874 = vmatpush.bf16.msra.mxu0 %v7091
    %7875 = vmatpush.bf16.msra.mxu0 %v7083
    %7876 = vmatmul.bf16.gmra.mxu0 %v4585
    %v7877 = vpop.f32.mrf.mxu0
    %v7878 = vadd.f32 %v6467, %v7877
    %v7879 = vpop.f32.mrf.mxu0
    %v7880 = vadd.f32 %v6467, %v7879
    %7881 = vdwg.mxu0
    %7882 = vmatpush.bf16.msra.mxu0 %v7203
    %7883 = vmatpush.bf16.msra.mxu0 %v7195
    %7884 = vmatpush.bf16.msra.mxu0 %v7187
    %7885 = vmatpush.bf16.msra.mxu0 %v7179
    %7886 = vmatpush.bf16.msra.mxu0 %v7171
    %7887 = vmatpush.bf16.msra.mxu0 %v7163
    %7888 = vmatpush.bf16.msra.mxu0 %v7155
    %7889 = vmatpush.bf16.msra.mxu0 %v7147
    %7890 = vmatmul.bf16.gmra.mxu0 %v4586
    %v7891 = vpop.f32.mrf.mxu0
    %v7892 = vadd.f32 %v7878, %v7891
    %v7893 = vpop.f32.mrf.mxu0
    %v7894 = vadd.f32 %v7880, %v7893
    %7895 = vdwg.mxu0
    %7896 = vmatpush.bf16.msra.mxu0 %v7267
    %7897 = vmatpush.bf16.msra.mxu0 %v7259
    %7898 = vmatpush.bf16.msra.mxu0 %v7251
    %7899 = vmatpush.bf16.msra.mxu0 %v7243
    %7900 = vmatpush.bf16.msra.mxu0 %v7235
    %7901 = vmatpush.bf16.msra.mxu0 %v7227
    %7902 = vmatpush.bf16.msra.mxu0 %v7219
    %7903 = vmatpush.bf16.msra.mxu0 %v7211
    %7904 = vmatmul.bf16.gmra.mxu0 %v4587
    %v7905 = vpop.f32.mrf.mxu0
    %v7906 = vadd.f32 %v7892, %v7905
    %v7907 = vpop.f32.mrf.mxu0
    %v7908 = vadd.f32 %v7894, %v7907
    %7909 = vdwg.mxu0
    %7910 = vmatpush.bf16.msra.mxu0 0
    %7911 = vmatpush.bf16.msra.mxu0 0
    %7912 = vmatpush.bf16.msra.mxu0 0
    %7913 = vmatpush.bf16.msra.mxu0 0
    %7914 = vmatpush.bf16.msra.mxu0 0
    %7915 = vmatpush.bf16.msra.mxu0 0
    %7916 = vmatpush.bf16.msra.mxu0 0
    %7917 = vmatpush.bf16.msra.mxu0 %v7275
    %7918 = vmatmul.bf16.gmra.mxu0 %v5808
    %v7919 = vpop.f32.mrf.mxu0
    %v7920 = vadd.f32 %v7906, %v7919
    %v7921 = vpop.f32.mrf.mxu0
    %v7922 = vadd.f32 %v7908, %v7921
    %7923 = vdwg.mxu0
    %7924 = vst [vmem:[%s11] sm:$0xff] %v5862
    %7925 = vst [vmem:[%s11 + $0x8] sm:$0xff] %v5918
    %7926 = vst [vmem:[%s11 + $0x10] sm:$0xff] %v5974
    %7927 = vst [vmem:[%s11 + $0x18] sm:$0xff] %v6030
    %7928 = vst [vmem:[%s11 + $0x20] sm:$0xff] %v6086
    %7929 = vst [vmem:[%s11 + $0x28] sm:$0xff] %v6142
    %7930 = vst [vmem:[%s11 + $0x30] sm:$0xff] %v6198
    %7931 = vst [vmem:[%s11 + $0x38] sm:$0xff] %v6254
    %7932 = vst [vmem:[%s11 + $0x40] sm:$0xff] %v5864
    %7933 = vst [vmem:[%s11 + $0x48] sm:$0xff] %v5920
    %7934 = vst [vmem:[%s11 + $0x50] sm:$0xff] %v5976
    %7935 = vst [vmem:[%s11 + $0x58] sm:$0xff] %v6032
    %7936 = vst [vmem:[%s11 + $0x60] sm:$0xff] %v6088
    %7937 = vst [vmem:[%s11 + $0x68] sm:$0xff] %v6144
    %7938 = vst [vmem:[%s11 + $0x70] sm:$0xff] %v6200
    %7939 = vst [vmem:[%s11 + $0x78] sm:$0xff] %v6256
    %s7940 = scalar_lea.vmem %s11, 128
    %7941 = vst [vmem:[%s7940] sm:$0xff] %v7528
    %7942 = vst [vmem:[%s7940 + $0x8] sm:$0xff] %v7584
    %7943 = vst [vmem:[%s7940 + $0x10] sm:$0xff] %v7640
    %7944 = vst [vmem:[%s7940 + $0x18] sm:$0xff] %v7696
    %7945 = vst [vmem:[%s7940 + $0x20] sm:$0xff] %v7752
    %7946 = vst [vmem:[%s7940 + $0x28] sm:$0xff] %v7808
    %7947 = vst [vmem:[%s7940 + $0x30] sm:$0xff] %v7864
    %7948 = vst [vmem:[%s7940 + $0x38] sm:$0xff] %v7920
    %7949 = vst [vmem:[%s7940 + $0x40] sm:$0xff] %v7530
    %7950 = vst [vmem:[%s7940 + $0x48] sm:$0xff] %v7586
    %7951 = vst [vmem:[%s7940 + $0x50] sm:$0xff] %v7642
    %7952 = vst [vmem:[%s7940 + $0x58] sm:$0xff] %v7698
    %7953 = vst [vmem:[%s7940 + $0x60] sm:$0xff] %v7754
    %7954 = vst [vmem:[%s7940 + $0x68] sm:$0xff] %v7810
    %7955 = vst [vmem:[%s7940 + $0x70] sm:$0xff] %v7866
    %7956 = vst [vmem:[%s7940 + $0x78] sm:$0xff] %v7922
    // Predicated region
    $region82: #{main_model_forward.5} parent=1 // pred_check
      _
    $region83: #{main_model_forward.5} parent=1 // pred_check_branch
      %7958 = sbr.rel (0) target = $region85
    $region84: #{main_model_forward.5} parent=1 // pred_region
      _
    $region85: #{main_model_forward.5} parent=1 // pred_fallthru
      _
    // Predicated region
    $region86: #{main_model_forward.5} parent=1 // pred_check
      _
    $region87: #{main_model_forward.5} parent=1 // pred_check_branch
      %7960 = sbr.rel (0) target = $region89
    $region88: #{main_model_forward.5} parent=1 // pred_region
      _
    $region89: #{main_model_forward.5} parent=1 // pred_fallthru
      _
    %7961 = vsyncpa [#allocation3], 1
    %7962 = vsyncpa [#allocation5], 1
    %7963 = vsyncpa [#allocation8], 1
    %7964 = vsyncpa [#allocation11], 1
    %7965 = vsyncpa [#allocation14], 1

</llo_original>
